<compile_context>
chip_gen: v7x
topology: tpu7x:2x2x1
jax: 0.10.0
libtpu: 0.0.40
codegen_flags: <defaults>
</compile_context>

<pallas_src>
import functools

import jax
import jax.numpy as jnp
from jax import lax
from jax.experimental import pallas as pl
from jax.experimental.pallas import tpu as pltpu


def _resblock_kernel(x_ref, w1_ref, b1_ref, w2_ref, b2_ref, o_ref,
                     pad1, pad2, *, res_scale):
    # x_ref : (1, H, W, C)  f32 input tile (one batch element)
    # w*_ref: (9, C, C)     bf16 tap-major weights (tap index = ky*3 + kx)
    # b*_ref: (1, C)        f32 bias
    # o_ref : (1, H, W, C)  f32 output tile
    # pad1/pad2: (PADN, C)  bf16 flattened zero-halo scratch, PADN >= (H+2)*(W+2)+2
    _, H, W, C = x_ref.shape
    Wp = W + 2                       # padded row stride
    M = H * Wp                       # matmul M dimension (flattened padded rows)
    row1 = Wp                        # flat offset of padded row 1
    row_bot = (H + 1) * Wp           # flat offset of bottom halo row
    PADN = pad1.shape[0]

    # --- stage x into pad1 interior, zero only the halo (every grid step, so
    # --- scratch is always valid under "parallel" megacore sharding) --------
    x_f32 = x_ref[0]                                          # (H, W, C) f32
    zcol = jnp.zeros((H, 1, C), jnp.float32)
    slab_in = jnp.concatenate([zcol, x_f32, zcol], axis=1)    # (H, Wp, C): [0|row|0]
    pad1[row1:row1 + M, :] = slab_in.reshape(M, C).astype(pad1.dtype)
    pad1[0:Wp, :] = jnp.zeros((Wp, C), pad1.dtype)                       # top halo
    pad1[row_bot:PADN, :] = jnp.zeros((PADN - row_bot, C), pad1.dtype)   # bottom halo + tail

    # pad2: only the border pieces NOT covered by conv1's masked store need
    # explicit zeroing (top halo + left border of row 1, bottom halo + tail).
    pad2[0:Wp + 1, :] = jnp.zeros((Wp + 1, C), pad2.dtype)
    pad2[row_bot:PADN, :] = jnp.zeros((PADN - row_bot, C), pad2.dtype)

    # Mask over the flat M axis: positions with in-row column >= W are "wrap"
    # junk (they straddle the halo) — zeroed before store-back, dropped at end.
    col = lax.broadcasted_iota(jnp.int32, (M, 1), 0) % Wp
    keep = col < W

    def conv3x3(pad_ref, w_ref, b_ref):
        """3x3 conv = 9 MXU matmuls on contiguous flat offset slices."""
        acc = jnp.broadcast_to(b_ref[...], (M, C)).astype(jnp.float32)  # bias folded in
        for ky in range(3):
            for kx in range(3):
                start = ky * Wp + kx                       # static offset
                patch = pad_ref[start:start + M, :]        # (M, C) bf16, contiguous
                acc = acc + jnp.dot(patch, w_ref[ky * 3 + kx],
                                    preferred_element_type=jnp.float32)
        return acc

    # --- conv1 + bias + ReLU -> pad2 interior (never leaves VMEM) ------------
    r1 = conv3x3(pad1, w1_ref, b1_ref)
    r1 = jnp.where(keep, jnp.maximum(r1, 0.0), 0.0)        # ReLU + mask wrap cols
    # Contiguous store: slab row (r, c) lands at padded (r+1, c+1); the masked
    # wrap columns land exactly on pad2's left/right zero borders.
    pad2[row1 + 1:row1 + 1 + M, :] = r1.astype(pad2.dtype)

    # --- conv2 + bias, residual scale/add ------------------------------------
    r2 = conv3x3(pad2, w2_ref, b2_ref)
    r2_int = r2.reshape(H, Wp, C)[:, :W, :]                # drop wrap columns
    o_ref[0, :, :, :] = (x_f32 + res_scale * r2_int).astype(o_ref.dtype)


def resblock_pallas(x_nhwc, w1_taps, b1, w2_taps, b2, res_scale):
    """Fused ResBlock on NHWC activations (C on the 128-lane axis)."""
    B, H, W, C = x_nhwc.shape
    # +2 spare rows for the last tap's overrun into junk output positions;
    # rounded up to a sublane-friendly multiple of 16.
    padn = ((H + 2) * (W + 2) + 2 + 15) // 16 * 16
    kernel = functools.partial(_resblock_kernel, res_scale=float(res_scale))
    return pl.pallas_call(
        kernel,
        out_shape=jax.ShapeDtypeStruct((B, H, W, C), jnp.float32),
        grid_spec=pltpu.PrefetchScalarGridSpec(
            num_scalar_prefetch=0,
            grid=(B,),
            in_specs=[
                pl.BlockSpec((1, H, W, C), lambda b: (b, 0, 0, 0)),
                pl.BlockSpec((9, C, C), lambda b: (0, 0, 0)),
                pl.BlockSpec((1, C), lambda b: (0, 0)),
                pl.BlockSpec((9, C, C), lambda b: (0, 0, 0)),
                pl.BlockSpec((1, C), lambda b: (0, 0)),
            ],
            out_specs=pl.BlockSpec((1, H, W, C), lambda b: (b, 0, 0, 0)),
            scratch_shapes=[
                pltpu.VMEM((padn, C), jnp.bfloat16),
                pltpu.VMEM((padn, C), jnp.bfloat16),
            ],
        ),
        compiler_params=pltpu.CompilerParams(
            dimension_semantics=("parallel",)),
        # TODO(synk): for large images (e.g. H,W >= 128) tile H into the grid
        # with a 2-row halo per block, size the pad scratches to (TH+2)*(W+2),
        # convert the tap loop to lax.fori_loop(unroll=True), and set
        # vmem_limit_bytes explicitly so blocks fit v7x's 64 MiB VMEM and the
        # pipeline gets real depth.
    )(x_nhwc, w1_taps, b1, w2_taps, b2)


# ------------------------------ param / glue -------------------------------- #

def prepare_conv(w_oihw, b):
    """PyTorch (Cout, Cin, 3, 3) weights -> tap-major (9, Cin, Cout) bf16.

    Done once at setup so no per-forward weight relayout appears in the graph.
    The bf16 weight / bf16 conv-input precision (f32 accumulate, f32 residual)
    is intentional; validated against the f32 reference below.
    """
    cout, cin = w_oihw.shape[0], w_oihw.shape[1]
    w_taps = jnp.transpose(w_oihw, (2, 3, 1, 0)).reshape(9, cin, cout)
    return w_taps.astype(jnp.bfloat16), b.reshape(1, cout).astype(jnp.float32)


def make_resblock_params(key, channels, res_scale):
    k1w, k1b, k2w, k2b = jax.random.split(key, 4)
    w1 = jax.random.normal(k1w, (channels, channels, 3, 3), jnp.float32) * 0.05
    b1 = jax.random.normal(k1b, (channels,), jnp.float32) * 0.05
    w2 = jax.random.normal(k2w, (channels, channels, 3, 3), jnp.float32) * 0.05
    b2 = jax.random.normal(k2b, (channels,), jnp.float32) * 0.05
    w1_taps, b1_row = prepare_conv(w1, b1)
    w2_taps, b2_row = prepare_conv(w2, b2)
    return {
        "raw": (w1, b1, w2, b2),
        "w1_taps": w1_taps, "b1": b1_row,
        "w2_taps": w2_taps, "b2": b2_row,
        "res_scale": res_scale,
    }


def resblock_forward(params, x_nchw):
    """Matches ResBlock.forward: x + res_scale * conv(relu(conv(x))) (NCHW I/O)."""
    x = jnp.transpose(x_nchw, (0, 2, 3, 1)).astype(jnp.float32)   # NCHW -> NHWC
    out = resblock_pallas(x, params["w1_taps"], params["b1"],
                          params["w2_taps"], params["b2"],
                          params["res_scale"])
    return jnp.transpose(out, (0, 3, 1, 2))                        # NHWC -> NCHW


def resblock_reference(params, x_nchw):
    """Pure-JAX f32 reference (PyTorch Conv2d semantics) for verification."""
    w1, b1, w2, b2 = params["raw"]

    def conv(x, w, b):
        y = lax.conv_general_dilated(
            x, w, window_strides=(1, 1), padding=((1, 1), (1, 1)),
            dimension_numbers=("NCHW", "OIHW", "NCHW"))
        return y + b[None, :, None, None]

    r = jnp.maximum(conv(x_nchw, w1, b1), 0.0)
    r = conv(r, w2, b2)
    return x_nchw + params["res_scale"] * r


# ----------------------------------- main ------------------------------------ #

if __name__ == "__main__":
    # Small but lane-dense configuration: C = 128 (realistic EDSR width, fills
    # all 128 lanes), 16x16 spatial, batch 2.
    B, C, H, W = 2, 128, 16, 16
    res_scale = 0.1

    key = jax.random.PRNGKey(0)
    kx, kp = jax.random.split(key)
    x = jax.random.normal(kx, (B, C, H, W), jnp.float32)   # NCHW, like PyTorch
    params = make_resblock_params(kp, C, res_scale)

    fwd = jax.jit(lambda inp: resblock_forward(params, inp))
    out = fwd(x)
    jax.block_until_ready(out)

    assert out.shape == (B, C, H, W), out.shape
    ref = resblock_reference(params, x)
    err = float(jnp.max(jnp.abs(out - ref)))
    assert err < 5e-2, f"max abs error vs reference: {err}"
    print("KERNEL_OK")
</pallas_src>

<mosaic_0001>
module attributes {stable_mosaic.version = 11 : i64} {
  func.func @_resblock_kernel(%arg0: i32, %arg1: memref<1x16x16x128xf32, #tpu.memory_space<vmem>>, %arg2: memref<9x128x128xbf16, #tpu.memory_space<vmem>>, %arg3: memref<1x128xf32, #tpu.memory_space<vmem>>, %arg4: memref<9x128x128xbf16, #tpu.memory_space<vmem>>, %arg5: memref<1x128xf32, #tpu.memory_space<vmem>>, %arg6: memref<1x16x16x128xf32, #tpu.memory_space<vmem>>, %arg7: memref<336x128xbf16, #tpu.memory_space<vmem>>, %arg8: memref<336x128xbf16, #tpu.memory_space<vmem>>) attributes {dimension_semantics = [#tpu.dimension_semantics<parallel>], iteration_bounds = array<i64: 2>, scalar_prefetch = 0 : i64, scratch_operands = 2 : i64, tpu.core_type = #tpu.core_type<tc>, window_params = [{transform_indices = @transform_0, window_bounds = array<i64: 1, 16, 16, 128>}, {pipeline_mode = #tpu.pipeline_mode<synchronous>, transform_indices = @transform_1, window_bounds = array<i64: 9, 128, 128>}, {pipeline_mode = #tpu.pipeline_mode<synchronous>, transform_indices = @transform_2, window_bounds = array<i64: 1, 128>}, {pipeline_mode = #tpu.pipeline_mode<synchronous>, transform_indices = @transform_3, window_bounds = array<i64: 9, 128, 128>}, {pipeline_mode = #tpu.pipeline_mode<synchronous>, transform_indices = @transform_4, window_bounds = array<i64: 1, 128>}, {transform_indices = @transform_5, window_bounds = array<i64: 1, 16, 16, 128>}]} {
    %c0 = arith.constant 0 : index
    %c0_0 = arith.constant 0 : index
    %c0_1 = arith.constant 0 : index
    %c0_2 = arith.constant 0 : index
    %0 = vector.load %arg1[%c0, %c0_0, %c0_1, %c0_2] : memref<1x16x16x128xf32, #tpu.memory_space<vmem>>, vector<1x16x16x128xf32>
    %1 = vector.shape_cast %0 : vector<1x16x16x128xf32> to vector<16x16x128xf32>
    %cst = arith.constant 0.000000e+00 : f32
    %2 = vector.broadcast %cst : f32 to vector<16x1x128xf32>
    %3 = tpu.concatenate %2, %1, %2 in 1 : vector<16x1x128xf32>, vector<16x16x128xf32>, vector<16x1x128xf32> -> vector<16x18x128xf32>
    %4 = vector.shape_cast %3 : vector<16x18x128xf32> to vector<288x128xf32>
    %5 = arith.truncf %4 : vector<288x128xf32> to vector<288x128xbf16>
    %c18 = arith.constant 18 : index
    %c0_3 = arith.constant 0 : index
    %6 = vector.load %arg7[%c18, %c0_3] : memref<336x128xbf16, #tpu.memory_space<vmem>>, vector<288x128xbf16>
    tpu.vector_store %arg7[%c18, %c0_3], %5 {strides = array<i32>} : memref<336x128xbf16, #tpu.memory_space<vmem>>, vector<288x128xbf16>,
    %cst_4 = arith.constant 0.000000e+00 : bf16
    %7 = vector.broadcast %cst_4 : bf16 to vector<18x128xbf16>
    %c0_5 = arith.constant 0 : index
    %c0_6 = arith.constant 0 : index
    %8 = vector.load %arg7[%c0_5, %c0_6] : memref<336x128xbf16, #tpu.memory_space<vmem>>, vector<18x128xbf16>
    tpu.vector_store %arg7[%c0_5, %c0_6], %7 {strides = array<i32>} : memref<336x128xbf16, #tpu.memory_space<vmem>>, vector<18x128xbf16>,
    %cst_7 = arith.constant 0.000000e+00 : bf16
    %9 = vector.broadcast %cst_7 : bf16 to vector<30x128xbf16>
    %c306 = arith.constant 306 : index
    %c0_8 = arith.constant 0 : index
    %10 = vector.load %arg7[%c306, %c0_8] : memref<336x128xbf16, #tpu.memory_space<vmem>>, vector<30x128xbf16>
    tpu.vector_store %arg7[%c306, %c0_8], %9 {strides = array<i32>} : memref<336x128xbf16, #tpu.memory_space<vmem>>, vector<30x128xbf16>,
    %cst_9 = arith.constant 0.000000e+00 : bf16
    %11 = vector.broadcast %cst_9 : bf16 to vector<19x128xbf16>
    %c0_10 = arith.constant 0 : index
    %c0_11 = arith.constant 0 : index
    %12 = vector.load %arg8[%c0_10, %c0_11] : memref<336x128xbf16, #tpu.memory_space<vmem>>, vector<19x128xbf16>
    tpu.vector_store %arg8[%c0_10, %c0_11], %11 {strides = array<i32>} : memref<336x128xbf16, #tpu.memory_space<vmem>>, vector<19x128xbf16>,
    %cst_12 = arith.constant 0.000000e+00 : bf16
    %13 = vector.broadcast %cst_12 : bf16 to vector<30x128xbf16>
    %c306_13 = arith.constant 306 : index
    %c0_14 = arith.constant 0 : index
    %14 = vector.load %arg8[%c306_13, %c0_14] : memref<336x128xbf16, #tpu.memory_space<vmem>>, vector<30x128xbf16>
    tpu.vector_store %arg8[%c306_13, %c0_14], %13 {strides = array<i32>} : memref<336x128xbf16, #tpu.memory_space<vmem>>, vector<30x128xbf16>,
    %15 = tpu.iota {dimensions = array<i32: 0>} : vector<288x1xi32>
    %c18_i32 = arith.constant 18 : i32
    %c0_i32 = arith.constant 0 : i32
    %16 = arith.cmpi eq, %c18_i32, %c0_i32 : i32
    %c1_i32 = arith.constant 1 : i32
    %17 = arith.select %16, %c1_i32, %c18_i32 : i32
    %18 = vector.broadcast %17 : i32 to vector<288x1xi32>
    %19 = arith.remsi %15, %18 : vector<288x1xi32>
    %c0_i32_15 = arith.constant 0 : i32
    %20 = vector.broadcast %c0_i32_15 : i32 to vector<288x1xi32>
    %21 = arith.cmpi ne, %19, %20 : vector<288x1xi32>
    %c0_i32_16 = arith.constant 0 : i32
    %22 = vector.broadcast %c0_i32_16 : i32 to vector<288x1xi32>
    %23 = arith.cmpi slt, %19, %22 : vector<288x1xi32>
    %c0_i32_17 = arith.constant 0 : i32
    %24 = arith.cmpi slt, %17, %c0_i32_17 : i32
    %25 = vector.broadcast %24 : i1 to vector<288x1xi1>
    %26 = vector.broadcast %25 : vector<288x1xi1> to vector<288x1xi1>
    %27 = arith.xori %23, %26 : vector<288x1xi1>
    %28 = arith.andi %27, %21 : vector<288x1xi1>
    %29 = vector.broadcast %17 : i32 to vector<288x1xi32>
    %30 = arith.addi %19, %29 : vector<288x1xi32>
    %31 = arith.select %28, %30, %19 : vector<288x1xi1>, vector<288x1xi32>
    %c16_i32 = arith.constant 16 : i32
    %32 = vector.broadcast %c16_i32 : i32 to vector<288x1xi32>
    %33 = arith.cmpi slt, %31, %32 : vector<288x1xi32>
    %c0_18 = arith.constant 0 : index
    %c0_19 = arith.constant 0 : index
    %34 = vector.load %arg3[%c0_18, %c0_19] : memref<1x128xf32, #tpu.memory_space<vmem>>, vector<1x128xf32>
    %35 = vector.shape_cast %34 : vector<1x128xf32> to vector<1x128xf32>
    %36 = vector.broadcast %35 : vector<1x128xf32> to vector<288x128xf32>
    %c0_20 = arith.constant 0 : index
    %c0_21 = arith.constant 0 : index
    %37 = vector.load %arg7[%c0_20, %c0_21] : memref<336x128xbf16, #tpu.memory_space<vmem>>, vector<288x128xbf16>
    %c0_22 = arith.constant 0 : index
    %c0_23 = arith.constant 0 : index
    %c0_24 = arith.constant 0 : index
    %38 = vector.load %arg2[%c0_22, %c0_23, %c0_24] : memref<9x128x128xbf16, #tpu.memory_space<vmem>>, vector<1x128x128xbf16>
    %39 = vector.shape_cast %38 : vector<1x128x128xbf16> to vector<128x128xbf16>
    %cst_25 = arith.constant dense<0.000000e+00> : vector<288x128xf32>
    %40 = tpu.matmul %37, %39, %cst_25 {dimension_numbers = #tpu.dot_dimension_numbers<[1], [0], [0], [1], [0, 0, 1, 1], [], []>} : vector<288x128xbf16>, vector<128x128xbf16>, vector<288x128xf32> -> vector<288x128xf32>
    %41 = arith.addf %36, %40 : vector<288x128xf32>
    %c1 = arith.constant 1 : index
    %c0_26 = arith.constant 0 : index
    %42 = vector.load %arg7[%c1, %c0_26] : memref<336x128xbf16, #tpu.memory_space<vmem>>, vector<288x128xbf16>
    %c1_27 = arith.constant 1 : index
    %c0_28 = arith.constant 0 : index
    %c0_29 = arith.constant 0 : index
    %43 = vector.load %arg2[%c1_27, %c0_28, %c0_29] : memref<9x128x128xbf16, #tpu.memory_space<vmem>>, vector<1x128x128xbf16>
    %44 = vector.shape_cast %43 : vector<1x128x128xbf16> to vector<128x128xbf16>
    %cst_30 = arith.constant dense<0.000000e+00> : vector<288x128xf32>
    %45 = tpu.matmul %42, %44, %cst_30 {dimension_numbers = #tpu.dot_dimension_numbers<[1], [0], [0], [1], [0, 0, 1, 1], [], []>} : vector<288x128xbf16>, vector<128x128xbf16>, vector<288x128xf32> -> vector<288x128xf32>
    %46 = arith.addf %41, %45 : vector<288x128xf32>
    %c2 = arith.constant 2 : index
    %c0_31 = arith.constant 0 : index
    %47 = vector.load %arg7[%c2, %c0_31] : memref<336x128xbf16, #tpu.memory_space<vmem>>, vector<288x128xbf16>
    %c2_32 = arith.constant 2 : index
    %c0_33 = arith.constant 0 : index
    %c0_34 = arith.constant 0 : index
    %48 = vector.load %arg2[%c2_32, %c0_33, %c0_34] : memref<9x128x128xbf16, #tpu.memory_space<vmem>>, vector<1x128x128xbf16>
    %49 = vector.shape_cast %48 : vector<1x128x128xbf16> to vector<128x128xbf16>
    %cst_35 = arith.constant dense<0.000000e+00> : vector<288x128xf32>
    %50 = tpu.matmul %47, %49, %cst_35 {dimension_numbers = #tpu.dot_dimension_numbers<[1], [0], [0], [1], [0, 0, 1, 1], [], []>} : vector<288x128xbf16>, vector<128x128xbf16>, vector<288x128xf32> -> vector<288x128xf32>
    %51 = arith.addf %46, %50 : vector<288x128xf32>
    %c18_36 = arith.constant 18 : index
    %c0_37 = arith.constant 0 : index
    %52 = vector.load %arg7[%c18_36, %c0_37] : memref<336x128xbf16, #tpu.memory_space<vmem>>, vector<288x128xbf16>
    %c3 = arith.constant 3 : index
    %c0_38 = arith.constant 0 : index
    %c0_39 = arith.constant 0 : index
    %53 = vector.load %arg2[%c3, %c0_38, %c0_39] : memref<9x128x128xbf16, #tpu.memory_space<vmem>>, vector<1x128x128xbf16>
    %54 = vector.shape_cast %53 : vector<1x128x128xbf16> to vector<128x128xbf16>
    %cst_40 = arith.constant dense<0.000000e+00> : vector<288x128xf32>
    %55 = tpu.matmul %52, %54, %cst_40 {dimension_numbers = #tpu.dot_dimension_numbers<[1], [0], [0], [1], [0, 0, 1, 1], [], []>} : vector<288x128xbf16>, vector<128x128xbf16>, vector<288x128xf32> -> vector<288x128xf32>
    %56 = arith.addf %51, %55 : vector<288x128xf32>
    %c19 = arith.constant 19 : index
    %c0_41 = arith.constant 0 : index
    %57 = vector.load %arg7[%c19, %c0_41] : memref<336x128xbf16, #tpu.memory_space<vmem>>, vector<288x128xbf16>
    %c4 = arith.constant 4 : index
    %c0_42 = arith.constant 0 : index
    %c0_43 = arith.constant 0 : index
    %58 = vector.load %arg2[%c4, %c0_42, %c0_43] : memref<9x128x128xbf16, #tpu.memory_space<vmem>>, vector<1x128x128xbf16>
    %59 = vector.shape_cast %58 : vector<1x128x128xbf16> to vector<128x128xbf16>
    %cst_44 = arith.constant dense<0.000000e+00> : vector<288x128xf32>
    %60 = tpu.matmul %57, %59, %cst_44 {dimension_numbers = #tpu.dot_dimension_numbers<[1], [0], [0], [1], [0, 0, 1, 1], [], []>} : vector<288x128xbf16>, vector<128x128xbf16>, vector<288x128xf32> -> vector<288x128xf32>
    %61 = arith.addf %56, %60 : vector<288x128xf32>
    %c20 = arith.constant 20 : index
    %c0_45 = arith.constant 0 : index
    %62 = vector.load %arg7[%c20, %c0_45] : memref<336x128xbf16, #tpu.memory_space<vmem>>, vector<288x128xbf16>
    %c5 = arith.constant 5 : index
    %c0_46 = arith.constant 0 : index
    %c0_47 = arith.constant 0 : index
    %63 = vector.load %arg2[%c5, %c0_46, %c0_47] : memref<9x128x128xbf16, #tpu.memory_space<vmem>>, vector<1x128x128xbf16>
    %64 = vector.shape_cast %63 : vector<1x128x128xbf16> to vector<128x128xbf16>
    %cst_48 = arith.constant dense<0.000000e+00> : vector<288x128xf32>
    %65 = tpu.matmul %62, %64, %cst_48 {dimension_numbers = #tpu.dot_dimension_numbers<[1], [0], [0], [1], [0, 0, 1, 1], [], []>} : vector<288x128xbf16>, vector<128x128xbf16>, vector<288x128xf32> -> vector<288x128xf32>
    %66 = arith.addf %61, %65 : vector<288x128xf32>
    %c36 = arith.constant 36 : index
    %c0_49 = arith.constant 0 : index
    %67 = vector.load %arg7[%c36, %c0_49] : memref<336x128xbf16, #tpu.memory_space<vmem>>, vector<288x128xbf16>
    %c6 = arith.constant 6 : index
    %c0_50 = arith.constant 0 : index
    %c0_51 = arith.constant 0 : index
    %68 = vector.load %arg2[%c6, %c0_50, %c0_51] : memref<9x128x128xbf16, #tpu.memory_space<vmem>>, vector<1x128x128xbf16>
    %69 = vector.shape_cast %68 : vector<1x128x128xbf16> to vector<128x128xbf16>
    %cst_52 = arith.constant dense<0.000000e+00> : vector<288x128xf32>
    %70 = tpu.matmul %67, %69, %cst_52 {dimension_numbers = #tpu.dot_dimension_numbers<[1], [0], [0], [1], [0, 0, 1, 1], [], []>} : vector<288x128xbf16>, vector<128x128xbf16>, vector<288x128xf32> -> vector<288x128xf32>
    %71 = arith.addf %66, %70 : vector<288x128xf32>
    %c37 = arith.constant 37 : index
    %c0_53 = arith.constant 0 : index
    %72 = vector.load %arg7[%c37, %c0_53] : memref<336x128xbf16, #tpu.memory_space<vmem>>, vector<288x128xbf16>
    %c7 = arith.constant 7 : index
    %c0_54 = arith.constant 0 : index
    %c0_55 = arith.constant 0 : index
    %73 = vector.load %arg2[%c7, %c0_54, %c0_55] : memref<9x128x128xbf16, #tpu.memory_space<vmem>>, vector<1x128x128xbf16>
    %74 = vector.shape_cast %73 : vector<1x128x128xbf16> to vector<128x128xbf16>
    %cst_56 = arith.constant dense<0.000000e+00> : vector<288x128xf32>
    %75 = tpu.matmul %72, %74, %cst_56 {dimension_numbers = #tpu.dot_dimension_numbers<[1], [0], [0], [1], [0, 0, 1, 1], [], []>} : vector<288x128xbf16>, vector<128x128xbf16>, vector<288x128xf32> -> vector<288x128xf32>
    %76 = arith.addf %71, %75 : vector<288x128xf32>
    %c38 = arith.constant 38 : index
    %c0_57 = arith.constant 0 : index
    %77 = vector.load %arg7[%c38, %c0_57] : memref<336x128xbf16, #tpu.memory_space<vmem>>, vector<288x128xbf16>
    %c8 = arith.constant 8 : index
    %c0_58 = arith.constant 0 : index
    %c0_59 = arith.constant 0 : index
    %78 = vector.load %arg2[%c8, %c0_58, %c0_59] : memref<9x128x128xbf16, #tpu.memory_space<vmem>>, vector<1x128x128xbf16>
    %79 = vector.shape_cast %78 : vector<1x128x128xbf16> to vector<128x128xbf16>
    %cst_60 = arith.constant dense<0.000000e+00> : vector<288x128xf32>
    %80 = tpu.matmul %77, %79, %cst_60 {dimension_numbers = #tpu.dot_dimension_numbers<[1], [0], [0], [1], [0, 0, 1, 1], [], []>} : vector<288x128xbf16>, vector<128x128xbf16>, vector<288x128xf32> -> vector<288x128xf32>
    %81 = arith.addf %76, %80 : vector<288x128xf32>
    %cst_61 = arith.constant 0.000000e+00 : f32
    %82 = vector.broadcast %cst_61 : f32 to vector<288x128xf32>
    %83 = arith.maximumf %81, %82 : vector<288x128xf32>
    %cst_62 = arith.constant 0.000000e+00 : f32
    %84 = vector.shape_cast %33 : vector<288x1xi1> to vector<288x1xi1>
    %85 = vector.broadcast %84 : vector<288x1xi1> to vector<288x128xi1>
    %86 = vector.broadcast %cst_62 : f32 to vector<288x128xf32>
    %87 = arith.select %85, %83, %86 : vector<288x128xi1>, vector<288x128xf32>
    %88 = arith.truncf %87 : vector<288x128xf32> to vector<288x128xbf16>
    %c19_63 = arith.constant 19 : index
    %c0_64 = arith.constant 0 : index
    %89 = vector.load %arg8[%c19_63, %c0_64] : memref<336x128xbf16, #tpu.memory_space<vmem>>, vector<288x128xbf16>
    tpu.vector_store %arg8[%c19_63, %c0_64], %88 {strides = array<i32>} : memref<336x128xbf16, #tpu.memory_space<vmem>>, vector<288x128xbf16>,
    %c0_65 = arith.constant 0 : index
    %c0_66 = arith.constant 0 : index
    %90 = vector.load %arg5[%c0_65, %c0_66] : memref<1x128xf32, #tpu.memory_space<vmem>>, vector<1x128xf32>
    %91 = vector.shape_cast %90 : vector<1x128xf32> to vector<1x128xf32>
    %92 = vector.broadcast %91 : vector<1x128xf32> to vector<288x128xf32>
    %c0_67 = arith.constant 0 : index
    %c0_68 = arith.constant 0 : index
    %93 = vector.load %arg8[%c0_67, %c0_68] : memref<336x128xbf16, #tpu.memory_space<vmem>>, vector<288x128xbf16>
    %c0_69 = arith.constant 0 : index
    %c0_70 = arith.constant 0 : index
    %c0_71 = arith.constant 0 : index
    %94 = vector.load %arg4[%c0_69, %c0_70, %c0_71] : memref<9x128x128xbf16, #tpu.memory_space<vmem>>, vector<1x128x128xbf16>
    %95 = vector.shape_cast %94 : vector<1x128x128xbf16> to vector<128x128xbf16>
    %cst_72 = arith.constant dense<0.000000e+00> : vector<288x128xf32>
    %96 = tpu.matmul %93, %95, %cst_72 {dimension_numbers = #tpu.dot_dimension_numbers<[1], [0], [0], [1], [0, 0, 1, 1], [], []>} : vector<288x128xbf16>, vector<128x128xbf16>, vector<288x128xf32> -> vector<288x128xf32>
    %97 = arith.addf %92, %96 : vector<288x128xf32>
    %c1_73 = arith.constant 1 : index
    %c0_74 = arith.constant 0 : index
    %98 = vector.load %arg8[%c1_73, %c0_74] : memref<336x128xbf16, #tpu.memory_space<vmem>>, vector<288x128xbf16>
    %c1_75 = arith.constant 1 : index
    %c0_76 = arith.constant 0 : index
    %c0_77 = arith.constant 0 : index
    %99 = vector.load %arg4[%c1_75, %c0_76, %c0_77] : memref<9x128x128xbf16, #tpu.memory_space<vmem>>, vector<1x128x128xbf16>
    %100 = vector.shape_cast %99 : vector<1x128x128xbf16> to vector<128x128xbf16>
    %cst_78 = arith.constant dense<0.000000e+00> : vector<288x128xf32>
    %101 = tpu.matmul %98, %100, %cst_78 {dimension_numbers = #tpu.dot_dimension_numbers<[1], [0], [0], [1], [0, 0, 1, 1], [], []>} : vector<288x128xbf16>, vector<128x128xbf16>, vector<288x128xf32> -> vector<288x128xf32>
    %102 = arith.addf %97, %101 : vector<288x128xf32>
    %c2_79 = arith.constant 2 : index
    %c0_80 = arith.constant 0 : index
    %103 = vector.load %arg8[%c2_79, %c0_80] : memref<336x128xbf16, #tpu.memory_space<vmem>>, vector<288x128xbf16>
    %c2_81 = arith.constant 2 : index
    %c0_82 = arith.constant 0 : index
    %c0_83 = arith.constant 0 : index
    %104 = vector.load %arg4[%c2_81, %c0_82, %c0_83] : memref<9x128x128xbf16, #tpu.memory_space<vmem>>, vector<1x128x128xbf16>
    %105 = vector.shape_cast %104 : vector<1x128x128xbf16> to vector<128x128xbf16>
    %cst_84 = arith.constant dense<0.000000e+00> : vector<288x128xf32>
    %106 = tpu.matmul %103, %105, %cst_84 {dimension_numbers = #tpu.dot_dimension_numbers<[1], [0], [0], [1], [0, 0, 1, 1], [], []>} : vector<288x128xbf16>, vector<128x128xbf16>, vector<288x128xf32> -> vector<288x128xf32>
    %107 = arith.addf %102, %106 : vector<288x128xf32>
    %c18_85 = arith.constant 18 : index
    %c0_86 = arith.constant 0 : index
    %108 = vector.load %arg8[%c18_85, %c0_86] : memref<336x128xbf16, #tpu.memory_space<vmem>>, vector<288x128xbf16>
    %c3_87 = arith.constant 3 : index
    %c0_88 = arith.constant 0 : index
    %c0_89 = arith.constant 0 : index
    %109 = vector.load %arg4[%c3_87, %c0_88, %c0_89] : memref<9x128x128xbf16, #tpu.memory_space<vmem>>, vector<1x128x128xbf16>
    %110 = vector.shape_cast %109 : vector<1x128x128xbf16> to vector<128x128xbf16>
    %cst_90 = arith.constant dense<0.000000e+00> : vector<288x128xf32>
    %111 = tpu.matmul %108, %110, %cst_90 {dimension_numbers = #tpu.dot_dimension_numbers<[1], [0], [0], [1], [0, 0, 1, 1], [], []>} : vector<288x128xbf16>, vector<128x128xbf16>, vector<288x128xf32> -> vector<288x128xf32>
    %112 = arith.addf %107, %111 : vector<288x128xf32>
    %c19_91 = arith.constant 19 : index
    %c0_92 = arith.constant 0 : index
    %113 = vector.load %arg8[%c19_91, %c0_92] : memref<336x128xbf16, #tpu.memory_space<vmem>>, vector<288x128xbf16>
    %c4_93 = arith.constant 4 : index
    %c0_94 = arith.constant 0 : index
    %c0_95 = arith.constant 0 : index
    %114 = vector.load %arg4[%c4_93, %c0_94, %c0_95] : memref<9x128x128xbf16, #tpu.memory_space<vmem>>, vector<1x128x128xbf16>
    %115 = vector.shape_cast %114 : vector<1x128x128xbf16> to vector<128x128xbf16>
    %cst_96 = arith.constant dense<0.000000e+00> : vector<288x128xf32>
    %116 = tpu.matmul %113, %115, %cst_96 {dimension_numbers = #tpu.dot_dimension_numbers<[1], [0], [0], [1], [0, 0, 1, 1], [], []>} : vector<288x128xbf16>, vector<128x128xbf16>, vector<288x128xf32> -> vector<288x128xf32>
    %117 = arith.addf %112, %116 : vector<288x128xf32>
    %c20_97 = arith.constant 20 : index
    %c0_98 = arith.constant 0 : index
    %118 = vector.load %arg8[%c20_97, %c0_98] : memref<336x128xbf16, #tpu.memory_space<vmem>>, vector<288x128xbf16>
    %c5_99 = arith.constant 5 : index
    %c0_100 = arith.constant 0 : index
    %c0_101 = arith.constant 0 : index
    %119 = vector.load %arg4[%c5_99, %c0_100, %c0_101] : memref<9x128x128xbf16, #tpu.memory_space<vmem>>, vector<1x128x128xbf16>
    %120 = vector.shape_cast %119 : vector<1x128x128xbf16> to vector<128x128xbf16>
    %cst_102 = arith.constant dense<0.000000e+00> : vector<288x128xf32>
    %121 = tpu.matmul %118, %120, %cst_102 {dimension_numbers = #tpu.dot_dimension_numbers<[1], [0], [0], [1], [0, 0, 1, 1], [], []>} : vector<288x128xbf16>, vector<128x128xbf16>, vector<288x128xf32> -> vector<288x128xf32>
    %122 = arith.addf %117, %121 : vector<288x128xf32>
    %c36_103 = arith.constant 36 : index
    %c0_104 = arith.constant 0 : index
    %123 = vector.load %arg8[%c36_103, %c0_104] : memref<336x128xbf16, #tpu.memory_space<vmem>>, vector<288x128xbf16>
    %c6_105 = arith.constant 6 : index
    %c0_106 = arith.constant 0 : index
    %c0_107 = arith.constant 0 : index
    %124 = vector.load %arg4[%c6_105, %c0_106, %c0_107] : memref<9x128x128xbf16, #tpu.memory_space<vmem>>, vector<1x128x128xbf16>
    %125 = vector.shape_cast %124 : vector<1x128x128xbf16> to vector<128x128xbf16>
    %cst_108 = arith.constant dense<0.000000e+00> : vector<288x128xf32>
    %126 = tpu.matmul %123, %125, %cst_108 {dimension_numbers = #tpu.dot_dimension_numbers<[1], [0], [0], [1], [0, 0, 1, 1], [], []>} : vector<288x128xbf16>, vector<128x128xbf16>, vector<288x128xf32> -> vector<288x128xf32>
    %127 = arith.addf %122, %126 : vector<288x128xf32>
    %c37_109 = arith.constant 37 : index
    %c0_110 = arith.constant 0 : index
    %128 = vector.load %arg8[%c37_109, %c0_110] : memref<336x128xbf16, #tpu.memory_space<vmem>>, vector<288x128xbf16>
    %c7_111 = arith.constant 7 : index
    %c0_112 = arith.constant 0 : index
    %c0_113 = arith.constant 0 : index
    %129 = vector.load %arg4[%c7_111, %c0_112, %c0_113] : memref<9x128x128xbf16, #tpu.memory_space<vmem>>, vector<1x128x128xbf16>
    %130 = vector.shape_cast %129 : vector<1x128x128xbf16> to vector<128x128xbf16>
    %cst_114 = arith.constant dense<0.000000e+00> : vector<288x128xf32>
    %131 = tpu.matmul %128, %130, %cst_114 {dimension_numbers = #tpu.dot_dimension_numbers<[1], [0], [0], [1], [0, 0, 1, 1], [], []>} : vector<288x128xbf16>, vector<128x128xbf16>, vector<288x128xf32> -> vector<288x128xf32>
    %132 = arith.addf %127, %131 : vector<288x128xf32>
    %c38_115 = arith.constant 38 : index
    %c0_116 = arith.constant 0 : index
    %133 = vector.load %arg8[%c38_115, %c0_116] : memref<336x128xbf16, #tpu.memory_space<vmem>>, vector<288x128xbf16>
    %c8_117 = arith.constant 8 : index
    %c0_118 = arith.constant 0 : index
    %c0_119 = arith.constant 0 : index
    %134 = vector.load %arg4[%c8_117, %c0_118, %c0_119] : memref<9x128x128xbf16, #tpu.memory_space<vmem>>, vector<1x128x128xbf16>
    %135 = vector.shape_cast %134 : vector<1x128x128xbf16> to vector<128x128xbf16>
    %cst_120 = arith.constant dense<0.000000e+00> : vector<288x128xf32>
    %136 = tpu.matmul %133, %135, %cst_120 {dimension_numbers = #tpu.dot_dimension_numbers<[1], [0], [0], [1], [0, 0, 1, 1], [], []>} : vector<288x128xbf16>, vector<128x128xbf16>, vector<288x128xf32> -> vector<288x128xf32>
    %137 = arith.addf %132, %136 : vector<288x128xf32>
    %138 = vector.shape_cast %137 : vector<288x128xf32> to vector<16x18x128xf32>
    %139 = vector.extract_strided_slice %138 {offsets = [0, 0, 0], sizes = [16, 16, 128], strides = [1, 1, 1]} : vector<16x18x128xf32> to vector<16x16x128xf32>
    %cst_121 = arith.constant 1.000000e-01 : f32
    %140 = vector.broadcast %cst_121 : f32 to vector<16x16x128xf32>
    %141 = arith.mulf %140, %139 : vector<16x16x128xf32>
    %142 = arith.addf %1, %141 : vector<16x16x128xf32>
    %c0_122 = arith.constant 0 : index
    %c0_123 = arith.constant 0 : index
    %c0_124 = arith.constant 0 : index
    %c0_125 = arith.constant 0 : index
    %143 = vector.load %arg6[%c0_122, %c0_123, %c0_124, %c0_125] : memref<1x16x16x128xf32, #tpu.memory_space<vmem>>, vector<1x16x16x128xf32>
    %144 = vector.shape_cast %143 : vector<1x16x16x128xf32> to vector<16x16x128xf32>
    %145 = vector.shape_cast %142 : vector<16x16x128xf32> to vector<1x16x16x128xf32>
    tpu.vector_store %arg6[%c0_122, %c0_123, %c0_124, %c0_125], %145 {strides = array<i32>} : memref<1x16x16x128xf32, #tpu.memory_space<vmem>>, vector<1x16x16x128xf32>,
    return
  }
  func.func @transform_0(%arg0: i32) -> (i32, i32, i32, i32) {
    %c0_i32 = arith.constant 0 : i32
    %c0_i32_0 = arith.constant 0 : i32
    %c0_i32_1 = arith.constant 0 : i32
    %c0_i32_2 = arith.constant 0 : i32
    return %arg0, %c0_i32, %c0_i32_0, %c0_i32_1 : i32, i32, i32, i32
  }
  func.func @transform_1(%arg0: i32) -> (i32, i32, i32) {
    %c0_i32 = arith.constant 0 : i32
    %c0_i32_0 = arith.constant 0 : i32
    %c0_i32_1 = arith.constant 0 : i32
    %c0_i32_2 = arith.constant 0 : i32
    return %c0_i32, %c0_i32_0, %c0_i32_1 : i32, i32, i32
  }
  func.func @transform_2(%arg0: i32) -> (i32, i32) {
    %c0_i32 = arith.constant 0 : i32
    %c0_i32_0 = arith.constant 0 : i32
    %c0_i32_1 = arith.constant 0 : i32
    return %c0_i32, %c0_i32_0 : i32, i32
  }
  func.func @transform_3(%arg0: i32) -> (i32, i32, i32) {
    %c0_i32 = arith.constant 0 : i32
    %c0_i32_0 = arith.constant 0 : i32
    %c0_i32_1 = arith.constant 0 : i32
    %c0_i32_2 = arith.constant 0 : i32
    return %c0_i32, %c0_i32_0, %c0_i32_1 : i32, i32, i32
  }
  func.func @transform_4(%arg0: i32) -> (i32, i32) {
    %c0_i32 = arith.constant 0 : i32
    %c0_i32_0 = arith.constant 0 : i32
    %c0_i32_1 = arith.constant 0 : i32
    return %c0_i32, %c0_i32_0 : i32, i32
  }
  func.func @transform_5(%arg0: i32) -> (i32, i32, i32, i32) {
    %c0_i32 = arith.constant 0 : i32
    %c0_i32_0 = arith.constant 0 : i32
    %c0_i32_1 = arith.constant 0 : i32
    %c0_i32_2 = arith.constant 0 : i32
    return %arg0, %c0_i32, %c0_i32_0, %c0_i32_1 : i32, i32, i32, i32
  }
}

</mosaic_0001>

<llo_original>
// kernel: _lambda_.1
$region0: #{_lambda_.1}
  #allocation0 [shape = 'u32[]', space=smem, size = 0x4, offset = 0x4, fixed_abs, tag = 'smem constant byte address 0x4 - core index']
  #allocation1 [shape = 'u32[144,128]{1,0:T(1,128)}', space=vmem, size = 0x12000, scoped, tag = 'internal scratch']
  #allocation2 [shape = 'bf16[336,128]{1,0:T(16,128)(2,1)}', space=vmem, size = 0x15000, scoped, tag = 'scratch operand']
  #allocation3 [shape = 'bf16[336,128]{1,0:T(16,128)(2,1)}', space=vmem, size = 0x15000, scoped, tag = 'scratch operand']
  %s0 = inlined_call_operand.hbm [shape: f32[2,16,16,128], index: 0, kind: input, shape index: {}]
  %s1 = inlined_call_operand.hbm [shape: bf16[9,128,128], index: 1, kind: input, shape index: {}]
  %s2 = inlined_call_operand.vmem [shape: f32[1,128], index: 2, kind: input, shape index: {}]
  %s3 = inlined_call_operand.hbm [shape: bf16[9,128,128], index: 3, kind: input, shape index: {}]
  %s4 = inlined_call_operand.vmem [shape: f32[1,128], index: 4, kind: input, shape index: {}]
  %s5 = inlined_call_operand.hbm [shape: f32[2,16,16,128], index: 5, kind: output, shape index: {}]
  %s6 = sld [smem:[#allocation0]]
  $region65: #{_lambda_.1} parent=0
    _
  %s8 = ssub.s32 1, %s6
  %s9 = scalar_select 0, %s8, %s6
  $region1: #{_lambda_.1} parent=0
    #allocation4 [shape = 'u8[262144]{0}', space=vmem, size = 0x40000, scoped, tag = 'input window, operand 0']
    #allocation5 [shape = 's32[2]{0}', space=sflag, size = 0x8, scoped, tag = 'scoped memory for _lambda_.1']
    #allocation6 [shape = 's32[2]{0}', space=sflag, size = 0x8, scoped, tag = 'scoped memory for _lambda_.1']
    #allocation7 [shape = 'u8[294912]{0}', space=vmem, size = 0x48000, scoped, tag = 'input window, operand 1, single buffered']
    #allocation8 [shape = 's32[1]{0}', space=sflag, size = 0x4, scoped, tag = 'scoped memory for _lambda_.1']
    #allocation9 [shape = 'u8[294912]{0}', space=vmem, size = 0x48000, scoped, tag = 'input window, operand 3, single buffered']
    #allocation10 [shape = 'u8[262144]{0}', space=vmem, size = 0x40000, scoped, tag = 'output window, operand 0']
    %10 = vsyncpa [#allocation5], 0
    %s11 = scalar_lea.sflag [#allocation5], 1
    %12 = vsyncpa %s11, 0
    %13 = vsyncpa [#allocation8], 0
    %14 = vsyncpa [#allocation6], 0
    %s15 = scalar_lea.sflag [#allocation6], 1
    %16 = vsyncpa %s15, 0
    loop: start=0, step=1, limit=4
    $region2: #{_lambda_.1} parent=1 // loop_pre_header
      _
    $region3: #{_lambda_.1} parent=1 // loop_header
      %s18 = sphi 0, %s22
      %p19 = scmp.ge.s32.totalorder %s18, 4
      %s28 = sphi 0, %s30
      %s31 = sphi 0, %s28
      %s32 = sphi 0, %s31
      %s48 = sphi 0, %s32
      %s52 = sphi 0, %s52
      %s54 = sphi 0, %s52
      %s55 = sphi 0, %s54
      %s69 = sphi 0, %s55
      %s73 = sphi 0, %s73
      %s75 = sphi 0, %s73
      %s76 = sphi 0, %s75
      %s90 = sphi 0, %s76
      %s94 = sphi 0, %s94
      %s96 = sphi 0, %s94
      %s97 = sphi 0, %s96
      %s111 = sphi 0, %s97
      %s115 = sphi 0, %s115
      %s117 = sphi 0, %s115
      %s118 = sphi 0, %s117
      %s132 = sphi 0, %s118
      %s138 = sphi 0, %s140
      %s141 = sphi 0, %s138
      %s142 = sphi 0, %s141
      %s158 = sphi 0, %s142
    $region4: #{_lambda_.1} parent=1 // loop_header_branch
      %21 = sbr.rel (%p19) target = $region8
    $region5: #{_lambda_.1} parent=1 // loop_body
      %s23 = ssub.s32 %s18, 1
      %s24 = ssub.s32 %s18, 2
      %s25 = sadd.s32 %s18, 1
      %s26 = ssub.s32 %s18, %s25
      %p27 = scmp.eq.s32.totalorder %s26, 0
      %s29 = sadd.s32 %s28, 1
      %s30 = scalar_select %p27, %s28, %s29
      %p33 = pneg %p27
      %p34 = scmp.eq.s32.totalorder %s18, 1
      %p35 = por %p33, %p34
      %p36 = scmp.ne.s32.totalorder %s28, %s31
      %p37 = scmp.eq.s32.totalorder %s18, 0
      %p38 = por %p36, %p37
      %p39 = scmp.ne.s32.totalorder %s28, %s31
      %p40 = scmp.eq.s32.totalorder %s23, 1
      %p41 = por %p39, %p40
      %p42 = scmp.ne.s32.totalorder %s31, %s32
      %p43 = scmp.eq.s32.totalorder %s23, 0
      %p44 = por %p42, %p43
      %p45 = scmp.ne.s32.totalorder %s31, %s32
      %p46 = scmp.eq.s32.totalorder %s24, 1
      %p47 = por %p45, %p46
      %p49 = scmp.ne.s32.totalorder %s32, %s48
      %p50 = scmp.eq.s32.totalorder %s24, 0
      %p51 = por %p49, %p50
      %s53 = sadd.s32 %s52, 1
      %p56 = scmp.eq.s32.totalorder %s18, 1
      %p57 = scmp.ne.s32.totalorder %s52, %s54
      %p58 = scmp.eq.s32.totalorder %s18, 0
      %p59 = por %p57, %p58
      %p60 = scmp.ne.s32.totalorder %s52, %s54
      %p61 = scmp.eq.s32.totalorder %s23, 1
      %p62 = por %p60, %p61
      %p63 = scmp.ne.s32.totalorder %s54, %s55
      %p64 = scmp.eq.s32.totalorder %s23, 0
      %p65 = por %p63, %p64
      %p66 = scmp.ne.s32.totalorder %s54, %s55
      %p67 = scmp.eq.s32.totalorder %s24, 1
      %p68 = por %p66, %p67
      %p70 = scmp.ne.s32.totalorder %s55, %s69
      %p71 = scmp.eq.s32.totalorder %s24, 0
      %p72 = por %p70, %p71
      %s74 = sadd.s32 %s73, 1
      %p77 = scmp.eq.s32.totalorder %s18, 1
      %p78 = scmp.ne.s32.totalorder %s73, %s75
      %p79 = scmp.eq.s32.totalorder %s18, 0
      %p80 = por %p78, %p79
      %p81 = scmp.ne.s32.totalorder %s73, %s75
      %p82 = scmp.eq.s32.totalorder %s23, 1
      %p83 = por %p81, %p82
      %p84 = scmp.ne.s32.totalorder %s75, %s76
      %p85 = scmp.eq.s32.totalorder %s23, 0
      %p86 = por %p84, %p85
      %p87 = scmp.ne.s32.totalorder %s75, %s76
      %p88 = scmp.eq.s32.totalorder %s24, 1
      %p89 = por %p87, %p88
      %p91 = scmp.ne.s32.totalorder %s76, %s90
      %p92 = scmp.eq.s32.totalorder %s24, 0
      %p93 = por %p91, %p92
      %s95 = sadd.s32 %s94, 1
      %p98 = scmp.eq.s32.totalorder %s18, 1
      %p99 = scmp.ne.s32.totalorder %s94, %s96
      %p100 = scmp.eq.s32.totalorder %s18, 0
      %p101 = por %p99, %p100
      %p102 = scmp.ne.s32.totalorder %s94, %s96
      %p103 = scmp.eq.s32.totalorder %s23, 1
      %p104 = por %p102, %p103
      %p105 = scmp.ne.s32.totalorder %s96, %s97
      %p106 = scmp.eq.s32.totalorder %s23, 0
      %p107 = por %p105, %p106
      %p108 = scmp.ne.s32.totalorder %s96, %s97
      %p109 = scmp.eq.s32.totalorder %s24, 1
      %p110 = por %p108, %p109
      %p112 = scmp.ne.s32.totalorder %s97, %s111
      %p113 = scmp.eq.s32.totalorder %s24, 0
      %p114 = por %p112, %p113
      %s116 = sadd.s32 %s115, 1
      %p119 = scmp.eq.s32.totalorder %s18, 1
      %p120 = scmp.ne.s32.totalorder %s115, %s117
      %p121 = scmp.eq.s32.totalorder %s18, 0
      %p122 = por %p120, %p121
      %p123 = scmp.ne.s32.totalorder %s115, %s117
      %p124 = scmp.eq.s32.totalorder %s23, 1
      %p125 = por %p123, %p124
      %p126 = scmp.ne.s32.totalorder %s117, %s118
      %p127 = scmp.eq.s32.totalorder %s23, 0
      %p128 = por %p126, %p127
      %p129 = scmp.ne.s32.totalorder %s117, %s118
      %p130 = scmp.eq.s32.totalorder %s24, 1
      %p131 = por %p129, %p130
      %p133 = scmp.ne.s32.totalorder %s118, %s132
      %p134 = scmp.eq.s32.totalorder %s24, 0
      %p135 = por %p133, %p134
      %s136 = ssub.s32 %s18, %s25
      %p137 = scmp.eq.s32.totalorder %s136, 0
      %s139 = sadd.s32 %s138, 1
      %s140 = scalar_select %p137, %s138, %s139
      %p143 = pneg %p137
      %p144 = scmp.eq.s32.totalorder %s18, 1
      %p145 = por %p143, %p144
      %p146 = scmp.ne.s32.totalorder %s138, %s141
      %p147 = scmp.eq.s32.totalorder %s18, 0
      %p148 = por %p146, %p147
      %p149 = scmp.ne.s32.totalorder %s138, %s141
      %p150 = scmp.eq.s32.totalorder %s23, 1
      %p151 = por %p149, %p150
      %p152 = scmp.ne.s32.totalorder %s141, %s142
      %p153 = scmp.eq.s32.totalorder %s23, 0
      %p154 = por %p152, %p153
      %p155 = scmp.ne.s32.totalorder %s141, %s142
      %p156 = scmp.eq.s32.totalorder %s24, 1
      %p157 = por %p155, %p156
      %p159 = scmp.ne.s32.totalorder %s142, %s158
      %p160 = scmp.eq.s32.totalorder %s24, 0
      %p161 = por %p159, %p160
      %p162 = scmp.le.s32.totalorder 1, %s18
      %p163 = scmp.lt.s32.totalorder %s18, 3
      %p164 = pnand %p162, %p163
      %p165 = pneg %p164
      // Predicated region
      $region9: #{_lambda_.1} parent=5 // pred_check
        _
      $region10: #{_lambda_.1} parent=5 // pred_check_branch
        %167 = sbr.rel (%p164) target = $region12
      $region11: #{_lambda_.1} parent=5 // pred_region
        %s168 = ssub.s32 %s18, 1
        // Predicated region
        $region13: #{_lambda_.1} parent=11 // pred_check
          %p169 = pneg %p65
        $region14: #{_lambda_.1} parent=11 // pred_check_branch
          %171 = sbr.rel (%p169) target = $region16
        $region15: #{_lambda_.1} parent=11 // pred_region
          %s173 = ssub.s32 9216, 9216
          %174 = vsyncadd [#allocation8], %s173
          %s175 = sshll.u32 [#allocation7], 4
          %s176 = int_to_ptr.vmem [resolvable:$true] %s175
          %181 = dma.hbm_to_vmem [thread:$0]  %s1, 9216, %s176, [#allocation8], 64, 64, 4
        $region16: #{_lambda_.1} parent=11 // pred_fallthru
          _
        // Predicated region
        $region17: #{_lambda_.1} parent=11 // pred_check
          %p182 = pneg %p86
        $region18: #{_lambda_.1} parent=11 // pred_check_branch
          %184 = sbr.rel (%p182) target = $region20
        $region19: #{_lambda_.1} parent=11 // pred_region
          _
        $region20: #{_lambda_.1} parent=11 // pred_fallthru
          _
        // Predicated region
        $region21: #{_lambda_.1} parent=11 // pred_check
          %p185 = pneg %p107
        $region22: #{_lambda_.1} parent=11 // pred_check_branch
          %187 = sbr.rel (%p185) target = $region24
        $region23: #{_lambda_.1} parent=11 // pred_region
          %s189 = ssub.s32 9216, 9216
          %190 = vsyncadd [#allocation8], %s189
          %s191 = sshll.u32 [#allocation9], 4
          %s192 = int_to_ptr.vmem [resolvable:$true] %s191
          %197 = dma.hbm_to_vmem [thread:$0]  %s3, 9216, %s192, [#allocation8], 64, 64, 4
        $region24: #{_lambda_.1} parent=11 // pred_fallthru
          _
        // Predicated region
        $region25: #{_lambda_.1} parent=11 // pred_check
          %p198 = pneg %p128
        $region26: #{_lambda_.1} parent=11 // pred_check_branch
          %200 = sbr.rel (%p198) target = $region28
        $region27: #{_lambda_.1} parent=11 // pred_region
          _
        $region28: #{_lambda_.1} parent=11 // pred_fallthru
          _
      $region12: #{_lambda_.1} parent=5 // pred_fallthru
        _
      %p201 = scmp.lt.s32.totalorder %s18, 2
      // Predicated region
      $region29: #{_lambda_.1} parent=5 // pred_check
        %p202 = pneg %p201
      $region30: #{_lambda_.1} parent=5 // pred_check_branch
        %204 = sbr.rel (%p202) target = $region32
      $region31: #{_lambda_.1} parent=5 // pred_region
        // Predicated region
        $region33: #{_lambda_.1} parent=31 // pred_check
          %p205 = pneg %p38
        $region34: #{_lambda_.1} parent=31 // pred_check_branch
          %207 = sbr.rel (%p205) target = $region36
        $region35: #{_lambda_.1} parent=31 // pred_region
          %s208 = sand.u32 %s28, 1
          %s209 = scalar_lea.sflag [#allocation5], %s208
          %s210 = sand.u32 %s28, 1
          %s211 = smul.addr %s210, 256
          %s212 = scalar_lea.vmem [#allocation4], %s211
          %s214 = ssub.s32 4096, 4096
          %215 = vsyncadd %s209, %s214
          %s216 = smul.addr %s18, 32
          %s217 = smul.addr %s216, 128
          %s218 = scalar_lea.hbm %s0, %s217
          %s219 = sshll.u32 %s212, 4
          %s220 = int_to_ptr.vmem [resolvable:$true] %s219
          %225 = dma.hbm_to_vmem [thread:$0]  %s218, 4096, %s220, %s209, 128, 128, 8
        $region36: #{_lambda_.1} parent=31 // pred_fallthru
          _
      $region32: #{_lambda_.1} parent=5 // pred_fallthru
        _
      %p226 = scmp.le.s32.totalorder 1, %s18
      %p227 = scmp.lt.s32.totalorder %s18, 3
      %p228 = pnand %p226, %p227
      %p229 = pneg %p228
      // Predicated region
      $region37: #{_lambda_.1} parent=5 // pred_check
        _
      $region38: #{_lambda_.1} parent=5 // pred_check_branch
        %231 = sbr.rel (%p228) target = $region40
      $region39: #{_lambda_.1} parent=5 // pred_region
        %s232 = ssub.s32 %s18, 1
        %s233 = sand.u32 %s31, 1
        %s234 = scalar_lea.sflag [#allocation5], %s233
        %s235 = sand.u32 %s31, 1
        %s236 = smul.addr %s235, 256
        %s237 = scalar_lea.vmem [#allocation4], %s236
        // Predicated region
        $region41: #{_lambda_.1} parent=39 // pred_check
          %p238 = pneg %p44
        $region42: #{_lambda_.1} parent=39 // pred_check_branch
          %240 = sbr.rel (%p238) target = $region44
        $region43: #{_lambda_.1} parent=39 // pred_region
          %241 = dma.done %s234, 4096
        $region44: #{_lambda_.1} parent=39 // pred_fallthru
          _
        // Predicated region
        $region45: #{_lambda_.1} parent=39 // pred_check
          %p242 = pneg %p65
        $region46: #{_lambda_.1} parent=39 // pred_check_branch
          %244 = sbr.rel (%p242) target = $region48
        $region47: #{_lambda_.1} parent=39 // pred_region
          %245 = dma.done [#allocation8], 9216
        $region48: #{_lambda_.1} parent=39 // pred_fallthru
          _
        // Predicated region
        $region49: #{_lambda_.1} parent=39 // pred_check
          %p246 = pneg %p107
        $region50: #{_lambda_.1} parent=39 // pred_check_branch
          %248 = sbr.rel (%p246) target = $region52
        $region51: #{_lambda_.1} parent=39 // pred_region
          %249 = dma.done [#allocation8], 9216
        $region52: #{_lambda_.1} parent=39 // pred_fallthru
          _
        %s250 = sand.u32 %s31, 1
        %s251 = scalar_lea.sflag [#allocation5], %s250
        %s252 = sand.u32 %s31, 1
        %s253 = smul.addr %s252, 256
        %s254 = scalar_lea.vmem [#allocation4], %s253
        %p255 = pneg %p44
        %p256 = pneg %p41
        %p257 = pneg %p65
        %p258 = pneg %p62
        %p259 = pneg %p86
        %p260 = pneg %p83
        %p261 = pneg %p107
        %p262 = pneg %p104
        %p263 = pneg %p128
        %p264 = pneg %p125
        %p265 = pneg %p154
        %p266 = pneg %p151
        %s267 = sand.u32 %s141, 1
        %s268 = scalar_lea.sflag [#allocation6], %s267
        %s269 = sand.u32 %s141, 1
        %s270 = smul.addr %s269, 256
        %s271 = scalar_lea.vmem [#allocation10], %s270
        %v273 = vld [vmem:[%s237] sm:$0xff]
        %v274 = vld [vmem:[%s237 + $0x8] sm:$0xff]
        %v275 = vld [vmem:[%s237 + $0x10] sm:$0xff]
        %v276 = vld [vmem:[%s237 + $0x18] sm:$0xff]
        %v277 = vld [vmem:[%s237 + $0x20] sm:$0xff]
        %v278 = vld [vmem:[%s237 + $0x28] sm:$0xff]
        %v279 = vld [vmem:[%s237 + $0x30] sm:$0xff]
        %v280 = vld [vmem:[%s237 + $0x38] sm:$0xff]
        %v281 = vld [vmem:[%s237 + $0x40] sm:$0xff]
        %v282 = vld [vmem:[%s237 + $0x48] sm:$0xff]
        %v283 = vld [vmem:[%s237 + $0x50] sm:$0xff]
        %v284 = vld [vmem:[%s237 + $0x58] sm:$0xff]
        %v285 = vld [vmem:[%s237 + $0x60] sm:$0xff]
        %v286 = vld [vmem:[%s237 + $0x68] sm:$0xff]
        %v287 = vld [vmem:[%s237 + $0x70] sm:$0xff]
        %v288 = vld [vmem:[%s237 + $0x78] sm:$0xff]
        %v289 = vld [vmem:[%s237 + $0x80] sm:$0xff]
        %v290 = vld [vmem:[%s237 + $0x88] sm:$0xff]
        %v291 = vld [vmem:[%s237 + $0x90] sm:$0xff]
        %v292 = vld [vmem:[%s237 + $0x98] sm:$0xff]
        %v293 = vld [vmem:[%s237 + $0xa0] sm:$0xff]
        %v294 = vld [vmem:[%s237 + $0xa8] sm:$0xff]
        %v295 = vld [vmem:[%s237 + $0xb0] sm:$0xff]
        %v296 = vld [vmem:[%s237 + $0xb8] sm:$0xff]
        %v297 = vld [vmem:[%s237 + $0xc0] sm:$0xff]
        %v298 = vld [vmem:[%s237 + $0xc8] sm:$0xff]
        %v299 = vld [vmem:[%s237 + $0xd0] sm:$0xff]
        %v300 = vld [vmem:[%s237 + $0xd8] sm:$0xff]
        %v301 = vld [vmem:[%s237 + $0xe0] sm:$0xff]
        %v302 = vld [vmem:[%s237 + $0xe8] sm:$0xff]
        %v303 = vld [vmem:[%s237 + $0xf0] sm:$0xff]
        %v304 = vld [vmem:[%s237 + $0xf8] sm:$0xff]
        %vm337 = vcmask 1040384
        %v338 = vrot.slane %v273, 7
        %v339 = vrot.slane %v274, 7
        %v340 = vsel %vm337, %v338, %v339
        %v341 = vrot.slane %v275, 7
        %v342 = vrot.slane %v276, 7
        %v343 = vsel %vm337, %v341, %v342
        %v344 = vrot.slane %v277, 7
        %v345 = vrot.slane %v278, 7
        %v346 = vsel %vm337, %v344, %v345
        %v347 = vrot.slane %v279, 7
        %v348 = vrot.slane %v280, 7
        %v349 = vsel %vm337, %v347, %v348
        %v350 = vrot.slane %v281, 7
        %v351 = vrot.slane %v282, 7
        %v352 = vsel %vm337, %v350, %v351
        %v353 = vrot.slane %v283, 7
        %v354 = vrot.slane %v284, 7
        %v355 = vsel %vm337, %v353, %v354
        %v356 = vrot.slane %v285, 7
        %v357 = vrot.slane %v286, 7
        %v358 = vsel %vm337, %v356, %v357
        %v359 = vrot.slane %v287, 7
        %v360 = vrot.slane %v288, 7
        %v361 = vsel %vm337, %v359, %v360
        %v362 = vrot.slane %v289, 7
        %v363 = vrot.slane %v290, 7
        %v364 = vsel %vm337, %v362, %v363
        %v365 = vrot.slane %v291, 7
        %v366 = vrot.slane %v292, 7
        %v367 = vsel %vm337, %v365, %v366
        %v368 = vrot.slane %v293, 7
        %v369 = vrot.slane %v294, 7
        %v370 = vsel %vm337, %v368, %v369
        %v371 = vrot.slane %v295, 7
        %v372 = vrot.slane %v296, 7
        %v373 = vsel %vm337, %v371, %v372
        %v374 = vrot.slane %v297, 7
        %v375 = vrot.slane %v298, 7
        %v376 = vsel %vm337, %v374, %v375
        %v377 = vrot.slane %v299, 7
        %v378 = vrot.slane %v300, 7
        %v379 = vsel %vm337, %v377, %v378
        %v380 = vrot.slane %v301, 7
        %v381 = vrot.slane %v302, 7
        %v382 = vsel %vm337, %v380, %v381
        %v383 = vrot.slane %v303, 7
        %v384 = vrot.slane %v304, 7
        %v385 = vsel %vm337, %v383, %v384
        %v418 = vsel %vm337, 0.0, %v338
        %v419 = vsel %vm337, 0.0, %v341
        %v420 = vsel %vm337, 0.0, %v344
        %v421 = vsel %vm337, 0.0, %v347
        %v422 = vsel %vm337, 0.0, %v350
        %v423 = vsel %vm337, 0.0, %v353
        %v424 = vsel %vm337, 0.0, %v356
        %v425 = vsel %vm337, 0.0, %v359
        %v426 = vsel %vm337, 0.0, %v362
        %v427 = vsel %vm337, 0.0, %v365
        %v428 = vsel %vm337, 0.0, %v368
        %v429 = vsel %vm337, 0.0, %v371
        %v430 = vsel %vm337, 0.0, %v374
        %v431 = vsel %vm337, 0.0, %v377
        %v432 = vsel %vm337, 0.0, %v380
        %v433 = vsel %vm337, 0.0, %v383
        %v434 = vsel %vm337, %v339, 0.0
        %v435 = vsel %vm337, %v342, 0.0
        %v436 = vsel %vm337, %v345, 0.0
        %v437 = vsel %vm337, %v348, 0.0
        %v438 = vsel %vm337, %v351, 0.0
        %v439 = vsel %vm337, %v354, 0.0
        %v440 = vsel %vm337, %v357, 0.0
        %v441 = vsel %vm337, %v360, 0.0
        %v442 = vsel %vm337, %v363, 0.0
        %v443 = vsel %vm337, %v366, 0.0
        %v444 = vsel %vm337, %v369, 0.0
        %v445 = vsel %vm337, %v372, 0.0
        %v446 = vsel %vm337, %v375, 0.0
        %v447 = vsel %vm337, %v378, 0.0
        %v448 = vsel %vm337, %v381, 0.0
        %v449 = vsel %vm337, %v384, 0.0
        %v482 = vcombine.high %v418, %v418
        %v484 = vunpack.c.l.s4 1983009808
        %v485 = vunpack.c.0.s8 %v484
        %v486 = vlaneseq
        %v487 = vshrl.u32 %v486, 7
        %v488 = vsub.s32 %v485, %v487
        %v489 = vrot.slane %v418, %v488
        %v491 = vunpack.c.l.s4 1983009808
        %v492 = vunpack.c.0.s8 %v491
        %v493 = vlaneseq
        %v494 = vshrl.u32 %v493, 7
        %v495 = vsub.s32 %v492, %v494
        %v496 = vrot.slane %v482, %v495
        %v497 = vcombine.high %v489, %v489
        %v498 = vcombine.high %v496, %v496
        %v499 = vcombine.high %v340, %v340
        %v501 = vunpack.c.l.s4 1983009808
        %v502 = vunpack.c.0.s8 %v501
        %v503 = vlaneseq
        %v504 = vshrl.u32 %v503, 7
        %v505 = vsub.s32 %v502, %v504
        %v506 = vrot.slane %v340, %v505
        %v508 = vunpack.c.l.s4 1983009808
        %v509 = vunpack.c.0.s8 %v508
        %v510 = vlaneseq
        %v511 = vshrl.u32 %v510, 7
        %v512 = vsub.s32 %v509, %v511
        %v513 = vrot.slane %v499, %v512
        %v514 = vcombine.high %v506, %v506
        %v515 = vcombine.high %v513, %v513
        %v517 = vunpack.c.l.s4 1983009808
        %v518 = vunpack.c.0.s8 %v517
        %v519 = vlaneseq
        %v520 = vshrl.u32 %v519, 7
        %v521 = vsub.s32 %v518, %v520
        %v522 = vrot.slane %v434, %v521
        %v523 = vcombine.high %v419, %v419
        %v525 = vunpack.c.l.s4 1983009808
        %v526 = vunpack.c.0.s8 %v525
        %v527 = vlaneseq
        %v528 = vshrl.u32 %v527, 7
        %v529 = vsub.s32 %v526, %v528
        %v530 = vrot.slane %v419, %v529
        %v532 = vunpack.c.l.s4 1983009808
        %v533 = vunpack.c.0.s8 %v532
        %v534 = vlaneseq
        %v535 = vshrl.u32 %v534, 7
        %v536 = vsub.s32 %v533, %v535
        %v537 = vrot.slane %v523, %v536
        %v538 = vcombine.high %v530, %v530
        %v539 = vcombine.high %v537, %v537
        %v540 = vcombine.high %v343, %v343
        %v542 = vunpack.c.l.s4 1983009808
        %v543 = vunpack.c.0.s8 %v542
        %v544 = vlaneseq
        %v545 = vshrl.u32 %v544, 7
        %v546 = vsub.s32 %v543, %v545
        %v547 = vrot.slane %v343, %v546
        %v549 = vunpack.c.l.s4 1983009808
        %v550 = vunpack.c.0.s8 %v549
        %v551 = vlaneseq
        %v552 = vshrl.u32 %v551, 7
        %v553 = vsub.s32 %v550, %v552
        %v554 = vrot.slane %v540, %v553
        %v555 = vcombine.high %v547, %v547
        %v556 = vcombine.high %v554, %v554
        %v558 = vunpack.c.l.s4 1983009808
        %v559 = vunpack.c.0.s8 %v558
        %v560 = vlaneseq
        %v561 = vshrl.u32 %v560, 7
        %v562 = vsub.s32 %v559, %v561
        %v563 = vrot.slane %v435, %v562
        %v564 = vcombine.high %v420, %v420
        %v566 = vunpack.c.l.s4 1983009808
        %v567 = vunpack.c.0.s8 %v566
        %v568 = vlaneseq
        %v569 = vshrl.u32 %v568, 7
        %v570 = vsub.s32 %v567, %v569
        %v571 = vrot.slane %v420, %v570
        %v573 = vunpack.c.l.s4 1983009808
        %v574 = vunpack.c.0.s8 %v573
        %v575 = vlaneseq
        %v576 = vshrl.u32 %v575, 7
        %v577 = vsub.s32 %v574, %v576
        %v578 = vrot.slane %v564, %v577
        %v579 = vcombine.high %v571, %v571
        %v580 = vcombine.high %v578, %v578
        %v581 = vcombine.high %v346, %v346
        %v583 = vunpack.c.l.s4 1983009808
        %v584 = vunpack.c.0.s8 %v583
        %v585 = vlaneseq
        %v586 = vshrl.u32 %v585, 7
        %v587 = vsub.s32 %v584, %v586
        %v588 = vrot.slane %v346, %v587
        %v590 = vunpack.c.l.s4 1983009808
        %v591 = vunpack.c.0.s8 %v590
        %v592 = vlaneseq
        %v593 = vshrl.u32 %v592, 7
        %v594 = vsub.s32 %v591, %v593
        %v595 = vrot.slane %v581, %v594
        %v596 = vcombine.high %v588, %v588
        %v597 = vcombine.high %v595, %v595
        %v599 = vunpack.c.l.s4 1983009808
        %v600 = vunpack.c.0.s8 %v599
        %v601 = vlaneseq
        %v602 = vshrl.u32 %v601, 7
        %v603 = vsub.s32 %v600, %v602
        %v604 = vrot.slane %v436, %v603
        %v605 = vcombine.high %v421, %v421
        %v607 = vunpack.c.l.s4 1983009808
        %v608 = vunpack.c.0.s8 %v607
        %v609 = vlaneseq
        %v610 = vshrl.u32 %v609, 7
        %v611 = vsub.s32 %v608, %v610
        %v612 = vrot.slane %v421, %v611
        %v614 = vunpack.c.l.s4 1983009808
        %v615 = vunpack.c.0.s8 %v614
        %v616 = vlaneseq
        %v617 = vshrl.u32 %v616, 7
        %v618 = vsub.s32 %v615, %v617
        %v619 = vrot.slane %v605, %v618
        %v620 = vcombine.high %v612, %v612
        %v621 = vcombine.high %v619, %v619
        %v622 = vcombine.high %v349, %v349
        %v624 = vunpack.c.l.s4 1983009808
        %v625 = vunpack.c.0.s8 %v624
        %v626 = vlaneseq
        %v627 = vshrl.u32 %v626, 7
        %v628 = vsub.s32 %v625, %v627
        %v629 = vrot.slane %v349, %v628
        %v631 = vunpack.c.l.s4 1983009808
        %v632 = vunpack.c.0.s8 %v631
        %v633 = vlaneseq
        %v634 = vshrl.u32 %v633, 7
        %v635 = vsub.s32 %v632, %v634
        %v636 = vrot.slane %v622, %v635
        %v637 = vcombine.high %v629, %v629
        %v638 = vcombine.high %v636, %v636
        %v640 = vunpack.c.l.s4 1983009808
        %v641 = vunpack.c.0.s8 %v640
        %v642 = vlaneseq
        %v643 = vshrl.u32 %v642, 7
        %v644 = vsub.s32 %v641, %v643
        %v645 = vrot.slane %v437, %v644
        %v646 = vcombine.high %v422, %v422
        %v648 = vunpack.c.l.s4 1983009808
        %v649 = vunpack.c.0.s8 %v648
        %v650 = vlaneseq
        %v651 = vshrl.u32 %v650, 7
        %v652 = vsub.s32 %v649, %v651
        %v653 = vrot.slane %v422, %v652
        %v655 = vunpack.c.l.s4 1983009808
        %v656 = vunpack.c.0.s8 %v655
        %v657 = vlaneseq
        %v658 = vshrl.u32 %v657, 7
        %v659 = vsub.s32 %v656, %v658
        %v660 = vrot.slane %v646, %v659
        %v661 = vcombine.high %v653, %v653
        %v662 = vcombine.high %v660, %v660
        %v663 = vcombine.high %v352, %v352
        %v665 = vunpack.c.l.s4 1983009808
        %v666 = vunpack.c.0.s8 %v665
        %v667 = vlaneseq
        %v668 = vshrl.u32 %v667, 7
        %v669 = vsub.s32 %v666, %v668
        %v670 = vrot.slane %v352, %v669
        %v672 = vunpack.c.l.s4 1983009808
        %v673 = vunpack.c.0.s8 %v672
        %v674 = vlaneseq
        %v675 = vshrl.u32 %v674, 7
        %v676 = vsub.s32 %v673, %v675
        %v677 = vrot.slane %v663, %v676
        %v678 = vcombine.high %v670, %v670
        %v679 = vcombine.high %v677, %v677
        %v681 = vunpack.c.l.s4 1983009808
        %v682 = vunpack.c.0.s8 %v681
        %v683 = vlaneseq
        %v684 = vshrl.u32 %v683, 7
        %v685 = vsub.s32 %v682, %v684
        %v686 = vrot.slane %v438, %v685
        %v687 = vcombine.high %v423, %v423
        %v689 = vunpack.c.l.s4 1983009808
        %v690 = vunpack.c.0.s8 %v689
        %v691 = vlaneseq
        %v692 = vshrl.u32 %v691, 7
        %v693 = vsub.s32 %v690, %v692
        %v694 = vrot.slane %v423, %v693
        %v696 = vunpack.c.l.s4 1983009808
        %v697 = vunpack.c.0.s8 %v696
        %v698 = vlaneseq
        %v699 = vshrl.u32 %v698, 7
        %v700 = vsub.s32 %v697, %v699
        %v701 = vrot.slane %v687, %v700
        %v702 = vcombine.high %v694, %v694
        %v703 = vcombine.high %v701, %v701
        %v704 = vcombine.high %v355, %v355
        %v706 = vunpack.c.l.s4 1983009808
        %v707 = vunpack.c.0.s8 %v706
        %v708 = vlaneseq
        %v709 = vshrl.u32 %v708, 7
        %v710 = vsub.s32 %v707, %v709
        %v711 = vrot.slane %v355, %v710
        %v713 = vunpack.c.l.s4 1983009808
        %v714 = vunpack.c.0.s8 %v713
        %v715 = vlaneseq
        %v716 = vshrl.u32 %v715, 7
        %v717 = vsub.s32 %v714, %v716
        %v718 = vrot.slane %v704, %v717
        %v719 = vcombine.high %v711, %v711
        %v720 = vcombine.high %v718, %v718
        %v722 = vunpack.c.l.s4 1983009808
        %v723 = vunpack.c.0.s8 %v722
        %v724 = vlaneseq
        %v725 = vshrl.u32 %v724, 7
        %v726 = vsub.s32 %v723, %v725
        %v727 = vrot.slane %v439, %v726
        %v728 = vcombine.high %v424, %v424
        %v730 = vunpack.c.l.s4 1983009808
        %v731 = vunpack.c.0.s8 %v730
        %v732 = vlaneseq
        %v733 = vshrl.u32 %v732, 7
        %v734 = vsub.s32 %v731, %v733
        %v735 = vrot.slane %v424, %v734
        %v737 = vunpack.c.l.s4 1983009808
        %v738 = vunpack.c.0.s8 %v737
        %v739 = vlaneseq
        %v740 = vshrl.u32 %v739, 7
        %v741 = vsub.s32 %v738, %v740
        %v742 = vrot.slane %v728, %v741
        %v743 = vcombine.high %v735, %v735
        %v744 = vcombine.high %v742, %v742
        %v745 = vcombine.high %v358, %v358
        %v747 = vunpack.c.l.s4 1983009808
        %v748 = vunpack.c.0.s8 %v747
        %v749 = vlaneseq
        %v750 = vshrl.u32 %v749, 7
        %v751 = vsub.s32 %v748, %v750
        %v752 = vrot.slane %v358, %v751
        %v754 = vunpack.c.l.s4 1983009808
        %v755 = vunpack.c.0.s8 %v754
        %v756 = vlaneseq
        %v757 = vshrl.u32 %v756, 7
        %v758 = vsub.s32 %v755, %v757
        %v759 = vrot.slane %v745, %v758
        %v760 = vcombine.high %v752, %v752
        %v761 = vcombine.high %v759, %v759
        %v763 = vunpack.c.l.s4 1983009808
        %v764 = vunpack.c.0.s8 %v763
        %v765 = vlaneseq
        %v766 = vshrl.u32 %v765, 7
        %v767 = vsub.s32 %v764, %v766
        %v768 = vrot.slane %v440, %v767
        %v769 = vcombine.high %v425, %v425
        %v771 = vunpack.c.l.s4 1983009808
        %v772 = vunpack.c.0.s8 %v771
        %v773 = vlaneseq
        %v774 = vshrl.u32 %v773, 7
        %v775 = vsub.s32 %v772, %v774
        %v776 = vrot.slane %v425, %v775
        %v778 = vunpack.c.l.s4 1983009808
        %v779 = vunpack.c.0.s8 %v778
        %v780 = vlaneseq
        %v781 = vshrl.u32 %v780, 7
        %v782 = vsub.s32 %v779, %v781
        %v783 = vrot.slane %v769, %v782
        %v784 = vcombine.high %v776, %v776
        %v785 = vcombine.high %v783, %v783
        %v786 = vcombine.high %v361, %v361
        %v788 = vunpack.c.l.s4 1983009808
        %v789 = vunpack.c.0.s8 %v788
        %v790 = vlaneseq
        %v791 = vshrl.u32 %v790, 7
        %v792 = vsub.s32 %v789, %v791
        %v793 = vrot.slane %v361, %v792
        %v795 = vunpack.c.l.s4 1983009808
        %v796 = vunpack.c.0.s8 %v795
        %v797 = vlaneseq
        %v798 = vshrl.u32 %v797, 7
        %v799 = vsub.s32 %v796, %v798
        %v800 = vrot.slane %v786, %v799
        %v801 = vcombine.high %v793, %v793
        %v802 = vcombine.high %v800, %v800
        %v804 = vunpack.c.l.s4 1983009808
        %v805 = vunpack.c.0.s8 %v804
        %v806 = vlaneseq
        %v807 = vshrl.u32 %v806, 7
        %v808 = vsub.s32 %v805, %v807
        %v809 = vrot.slane %v441, %v808
        %v810 = vcombine.high %v426, %v426
        %v812 = vunpack.c.l.s4 1983009808
        %v813 = vunpack.c.0.s8 %v812
        %v814 = vlaneseq
        %v815 = vshrl.u32 %v814, 7
        %v816 = vsub.s32 %v813, %v815
        %v817 = vrot.slane %v426, %v816
        %v819 = vunpack.c.l.s4 1983009808
        %v820 = vunpack.c.0.s8 %v819
        %v821 = vlaneseq
        %v822 = vshrl.u32 %v821, 7
        %v823 = vsub.s32 %v820, %v822
        %v824 = vrot.slane %v810, %v823
        %v825 = vcombine.high %v817, %v817
        %v826 = vcombine.high %v824, %v824
        %v827 = vcombine.high %v364, %v364
        %v829 = vunpack.c.l.s4 1983009808
        %v830 = vunpack.c.0.s8 %v829
        %v831 = vlaneseq
        %v832 = vshrl.u32 %v831, 7
        %v833 = vsub.s32 %v830, %v832
        %v834 = vrot.slane %v364, %v833
        %v836 = vunpack.c.l.s4 1983009808
        %v837 = vunpack.c.0.s8 %v836
        %v838 = vlaneseq
        %v839 = vshrl.u32 %v838, 7
        %v840 = vsub.s32 %v837, %v839
        %v841 = vrot.slane %v827, %v840
        %v842 = vcombine.high %v834, %v834
        %v843 = vcombine.high %v841, %v841
        %v845 = vunpack.c.l.s4 1983009808
        %v846 = vunpack.c.0.s8 %v845
        %v847 = vlaneseq
        %v848 = vshrl.u32 %v847, 7
        %v849 = vsub.s32 %v846, %v848
        %v850 = vrot.slane %v442, %v849
        %v851 = vcombine.high %v427, %v427
        %v853 = vunpack.c.l.s4 1983009808
        %v854 = vunpack.c.0.s8 %v853
        %v855 = vlaneseq
        %v856 = vshrl.u32 %v855, 7
        %v857 = vsub.s32 %v854, %v856
        %v858 = vrot.slane %v427, %v857
        %v860 = vunpack.c.l.s4 1983009808
        %v861 = vunpack.c.0.s8 %v860
        %v862 = vlaneseq
        %v863 = vshrl.u32 %v862, 7
        %v864 = vsub.s32 %v861, %v863
        %v865 = vrot.slane %v851, %v864
        %v866 = vcombine.high %v858, %v858
        %v867 = vcombine.high %v865, %v865
        %v868 = vcombine.high %v367, %v367
        %v870 = vunpack.c.l.s4 1983009808
        %v871 = vunpack.c.0.s8 %v870
        %v872 = vlaneseq
        %v873 = vshrl.u32 %v872, 7
        %v874 = vsub.s32 %v871, %v873
        %v875 = vrot.slane %v367, %v874
        %v877 = vunpack.c.l.s4 1983009808
        %v878 = vunpack.c.0.s8 %v877
        %v879 = vlaneseq
        %v880 = vshrl.u32 %v879, 7
        %v881 = vsub.s32 %v878, %v880
        %v882 = vrot.slane %v868, %v881
        %v883 = vcombine.high %v875, %v875
        %v884 = vcombine.high %v882, %v882
        %v886 = vunpack.c.l.s4 1983009808
        %v887 = vunpack.c.0.s8 %v886
        %v888 = vlaneseq
        %v889 = vshrl.u32 %v888, 7
        %v890 = vsub.s32 %v887, %v889
        %v891 = vrot.slane %v443, %v890
        %v892 = vcombine.high %v428, %v428
        %v894 = vunpack.c.l.s4 1983009808
        %v895 = vunpack.c.0.s8 %v894
        %v896 = vlaneseq
        %v897 = vshrl.u32 %v896, 7
        %v898 = vsub.s32 %v895, %v897
        %v899 = vrot.slane %v428, %v898
        %v901 = vunpack.c.l.s4 1983009808
        %v902 = vunpack.c.0.s8 %v901
        %v903 = vlaneseq
        %v904 = vshrl.u32 %v903, 7
        %v905 = vsub.s32 %v902, %v904
        %v906 = vrot.slane %v892, %v905
        %v907 = vcombine.high %v899, %v899
        %v908 = vcombine.high %v906, %v906
        %v909 = vcombine.high %v370, %v370
        %v911 = vunpack.c.l.s4 1983009808
        %v912 = vunpack.c.0.s8 %v911
        %v913 = vlaneseq
        %v914 = vshrl.u32 %v913, 7
        %v915 = vsub.s32 %v912, %v914
        %v916 = vrot.slane %v370, %v915
        %v918 = vunpack.c.l.s4 1983009808
        %v919 = vunpack.c.0.s8 %v918
        %v920 = vlaneseq
        %v921 = vshrl.u32 %v920, 7
        %v922 = vsub.s32 %v919, %v921
        %v923 = vrot.slane %v909, %v922
        %v924 = vcombine.high %v916, %v916
        %v925 = vcombine.high %v923, %v923
        %v927 = vunpack.c.l.s4 1983009808
        %v928 = vunpack.c.0.s8 %v927
        %v929 = vlaneseq
        %v930 = vshrl.u32 %v929, 7
        %v931 = vsub.s32 %v928, %v930
        %v932 = vrot.slane %v444, %v931
        %v933 = vcombine.high %v429, %v429
        %v935 = vunpack.c.l.s4 1983009808
        %v936 = vunpack.c.0.s8 %v935
        %v937 = vlaneseq
        %v938 = vshrl.u32 %v937, 7
        %v939 = vsub.s32 %v936, %v938
        %v940 = vrot.slane %v429, %v939
        %v942 = vunpack.c.l.s4 1983009808
        %v943 = vunpack.c.0.s8 %v942
        %v944 = vlaneseq
        %v945 = vshrl.u32 %v944, 7
        %v946 = vsub.s32 %v943, %v945
        %v947 = vrot.slane %v933, %v946
        %v948 = vcombine.high %v940, %v940
        %v949 = vcombine.high %v947, %v947
        %v950 = vcombine.high %v373, %v373
        %v952 = vunpack.c.l.s4 1983009808
        %v953 = vunpack.c.0.s8 %v952
        %v954 = vlaneseq
        %v955 = vshrl.u32 %v954, 7
        %v956 = vsub.s32 %v953, %v955
        %v957 = vrot.slane %v373, %v956
        %v959 = vunpack.c.l.s4 1983009808
        %v960 = vunpack.c.0.s8 %v959
        %v961 = vlaneseq
        %v962 = vshrl.u32 %v961, 7
        %v963 = vsub.s32 %v960, %v962
        %v964 = vrot.slane %v950, %v963
        %v965 = vcombine.high %v957, %v957
        %v966 = vcombine.high %v964, %v964
        %v968 = vunpack.c.l.s4 1983009808
        %v969 = vunpack.c.0.s8 %v968
        %v970 = vlaneseq
        %v971 = vshrl.u32 %v970, 7
        %v972 = vsub.s32 %v969, %v971
        %v973 = vrot.slane %v445, %v972
        %v974 = vcombine.high %v430, %v430
        %v976 = vunpack.c.l.s4 1983009808
        %v977 = vunpack.c.0.s8 %v976
        %v978 = vlaneseq
        %v979 = vshrl.u32 %v978, 7
        %v980 = vsub.s32 %v977, %v979
        %v981 = vrot.slane %v430, %v980
        %v983 = vunpack.c.l.s4 1983009808
        %v984 = vunpack.c.0.s8 %v983
        %v985 = vlaneseq
        %v986 = vshrl.u32 %v985, 7
        %v987 = vsub.s32 %v984, %v986
        %v988 = vrot.slane %v974, %v987
        %v989 = vcombine.high %v981, %v981
        %v990 = vcombine.high %v988, %v988
        %v991 = vcombine.high %v376, %v376
        %v993 = vunpack.c.l.s4 1983009808
        %v994 = vunpack.c.0.s8 %v993
        %v995 = vlaneseq
        %v996 = vshrl.u32 %v995, 7
        %v997 = vsub.s32 %v994, %v996
        %v998 = vrot.slane %v376, %v997
        %v1000 = vunpack.c.l.s4 1983009808
        %v1001 = vunpack.c.0.s8 %v1000
        %v1002 = vlaneseq
        %v1003 = vshrl.u32 %v1002, 7
        %v1004 = vsub.s32 %v1001, %v1003
        %v1005 = vrot.slane %v991, %v1004
        %v1006 = vcombine.high %v998, %v998
        %v1007 = vcombine.high %v1005, %v1005
        %v1009 = vunpack.c.l.s4 1983009808
        %v1010 = vunpack.c.0.s8 %v1009
        %v1011 = vlaneseq
        %v1012 = vshrl.u32 %v1011, 7
        %v1013 = vsub.s32 %v1010, %v1012
        %v1014 = vrot.slane %v446, %v1013
        %v1015 = vcombine.high %v431, %v431
        %v1017 = vunpack.c.l.s4 1983009808
        %v1018 = vunpack.c.0.s8 %v1017
        %v1019 = vlaneseq
        %v1020 = vshrl.u32 %v1019, 7
        %v1021 = vsub.s32 %v1018, %v1020
        %v1022 = vrot.slane %v431, %v1021
        %v1024 = vunpack.c.l.s4 1983009808
        %v1025 = vunpack.c.0.s8 %v1024
        %v1026 = vlaneseq
        %v1027 = vshrl.u32 %v1026, 7
        %v1028 = vsub.s32 %v1025, %v1027
        %v1029 = vrot.slane %v1015, %v1028
        %v1030 = vcombine.high %v1022, %v1022
        %v1031 = vcombine.high %v1029, %v1029
        %v1032 = vcombine.high %v379, %v379
        %v1034 = vunpack.c.l.s4 1983009808
        %v1035 = vunpack.c.0.s8 %v1034
        %v1036 = vlaneseq
        %v1037 = vshrl.u32 %v1036, 7
        %v1038 = vsub.s32 %v1035, %v1037
        %v1039 = vrot.slane %v379, %v1038
        %v1041 = vunpack.c.l.s4 1983009808
        %v1042 = vunpack.c.0.s8 %v1041
        %v1043 = vlaneseq
        %v1044 = vshrl.u32 %v1043, 7
        %v1045 = vsub.s32 %v1042, %v1044
        %v1046 = vrot.slane %v1032, %v1045
        %v1047 = vcombine.high %v1039, %v1039
        %v1048 = vcombine.high %v1046, %v1046
        %v1050 = vunpack.c.l.s4 1983009808
        %v1051 = vunpack.c.0.s8 %v1050
        %v1052 = vlaneseq
        %v1053 = vshrl.u32 %v1052, 7
        %v1054 = vsub.s32 %v1051, %v1053
        %v1055 = vrot.slane %v447, %v1054
        %v1056 = vcombine.high %v432, %v432
        %v1058 = vunpack.c.l.s4 1983009808
        %v1059 = vunpack.c.0.s8 %v1058
        %v1060 = vlaneseq
        %v1061 = vshrl.u32 %v1060, 7
        %v1062 = vsub.s32 %v1059, %v1061
        %v1063 = vrot.slane %v432, %v1062
        %v1065 = vunpack.c.l.s4 1983009808
        %v1066 = vunpack.c.0.s8 %v1065
        %v1067 = vlaneseq
        %v1068 = vshrl.u32 %v1067, 7
        %v1069 = vsub.s32 %v1066, %v1068
        %v1070 = vrot.slane %v1056, %v1069
        %v1071 = vcombine.high %v1063, %v1063
        %v1072 = vcombine.high %v1070, %v1070
        %v1073 = vcombine.high %v382, %v382
        %v1075 = vunpack.c.l.s4 1983009808
        %v1076 = vunpack.c.0.s8 %v1075
        %v1077 = vlaneseq
        %v1078 = vshrl.u32 %v1077, 7
        %v1079 = vsub.s32 %v1076, %v1078
        %v1080 = vrot.slane %v382, %v1079
        %v1082 = vunpack.c.l.s4 1983009808
        %v1083 = vunpack.c.0.s8 %v1082
        %v1084 = vlaneseq
        %v1085 = vshrl.u32 %v1084, 7
        %v1086 = vsub.s32 %v1083, %v1085
        %v1087 = vrot.slane %v1073, %v1086
        %v1088 = vcombine.high %v1080, %v1080
        %v1089 = vcombine.high %v1087, %v1087
        %v1091 = vunpack.c.l.s4 1983009808
        %v1092 = vunpack.c.0.s8 %v1091
        %v1093 = vlaneseq
        %v1094 = vshrl.u32 %v1093, 7
        %v1095 = vsub.s32 %v1092, %v1094
        %v1096 = vrot.slane %v448, %v1095
        %v1097 = vcombine.high %v433, %v433
        %v1099 = vunpack.c.l.s4 1983009808
        %v1100 = vunpack.c.0.s8 %v1099
        %v1101 = vlaneseq
        %v1102 = vshrl.u32 %v1101, 7
        %v1103 = vsub.s32 %v1100, %v1102
        %v1104 = vrot.slane %v433, %v1103
        %v1106 = vunpack.c.l.s4 1983009808
        %v1107 = vunpack.c.0.s8 %v1106
        %v1108 = vlaneseq
        %v1109 = vshrl.u32 %v1108, 7
        %v1110 = vsub.s32 %v1107, %v1109
        %v1111 = vrot.slane %v1097, %v1110
        %v1112 = vcombine.high %v1104, %v1104
        %v1113 = vcombine.high %v1111, %v1111
        %v1114 = vcombine.high %v385, %v385
        %v1116 = vunpack.c.l.s4 1983009808
        %v1117 = vunpack.c.0.s8 %v1116
        %v1118 = vlaneseq
        %v1119 = vshrl.u32 %v1118, 7
        %v1120 = vsub.s32 %v1117, %v1119
        %v1121 = vrot.slane %v385, %v1120
        %v1123 = vunpack.c.l.s4 1983009808
        %v1124 = vunpack.c.0.s8 %v1123
        %v1125 = vlaneseq
        %v1126 = vshrl.u32 %v1125, 7
        %v1127 = vsub.s32 %v1124, %v1126
        %v1128 = vrot.slane %v1114, %v1127
        %v1129 = vcombine.high %v1121, %v1121
        %v1130 = vcombine.high %v1128, %v1128
        %v1132 = vunpack.c.l.s4 1983009808
        %v1133 = vunpack.c.0.s8 %v1132
        %v1134 = vlaneseq
        %v1135 = vshrl.u32 %v1134, 7
        %v1136 = vsub.s32 %v1133, %v1135
        %v1137 = vrot.slane %v449, %v1136
        %v1138 = vcombine.low %v489, %v497
        %v1139 = vcombine.low %v496, %v498
        %v1141 = vunpack.c.l.s4 1983009808
        %v1142 = vunpack.c.0.s8 %v1141
        %v1143 = vlaneseq
        %v1144 = vshrl.u32 %v1143, 7
        %v1145 = vsub.s32 %v1142, %v1144
        %v1146 = vrot.slane %v1138, %v1145
        %v1148 = vunpack.c.l.s4 1983009808
        %v1149 = vunpack.c.0.s8 %v1148
        %v1150 = vlaneseq
        %v1151 = vshrl.u32 %v1150, 7
        %v1152 = vsub.s32 %v1149, %v1151
        %v1153 = vrot.slane %v1139, %v1152
        %v1154 = vcombine.low %v1146, %v1153
        %v1155 = vcombine.low %v506, %v514
        %v1156 = vcombine.low %v513, %v515
        %v1158 = vunpack.c.l.s4 1983009808
        %v1159 = vunpack.c.0.s8 %v1158
        %v1160 = vlaneseq
        %v1161 = vshrl.u32 %v1160, 7
        %v1162 = vsub.s32 %v1159, %v1161
        %v1163 = vrot.slane %v1155, %v1162
        %v1165 = vunpack.c.l.s4 1983009808
        %v1166 = vunpack.c.0.s8 %v1165
        %v1167 = vlaneseq
        %v1168 = vshrl.u32 %v1167, 7
        %v1169 = vsub.s32 %v1166, %v1168
        %v1170 = vrot.slane %v1156, %v1169
        %v1171 = vcombine.low %v1163, %v1170
        %v1172 = vcombine.low %v522, %v530
        %v1173 = vcombine.low %v538, %v537
        %v1175 = vunpack.c.l.s4 1983009808
        %v1176 = vunpack.c.0.s8 %v1175
        %v1177 = vlaneseq
        %v1178 = vshrl.u32 %v1177, 7
        %v1179 = vsub.s32 %v1176, %v1178
        %v1180 = vrot.slane %v1172, %v1179
        %v1182 = vunpack.c.l.s4 1983009808
        %v1183 = vunpack.c.0.s8 %v1182
        %v1184 = vlaneseq
        %v1185 = vshrl.u32 %v1184, 7
        %v1186 = vsub.s32 %v1183, %v1185
        %v1187 = vrot.slane %v1173, %v1186
        %v1188 = vcombine.low %v1180, %v1187
        %v1189 = vcombine.low %v539, %v547
        %v1190 = vcombine.low %v555, %v554
        %v1192 = vunpack.c.l.s4 1983009808
        %v1193 = vunpack.c.0.s8 %v1192
        %v1194 = vlaneseq
        %v1195 = vshrl.u32 %v1194, 7
        %v1196 = vsub.s32 %v1193, %v1195
        %v1197 = vrot.slane %v1189, %v1196
        %v1199 = vunpack.c.l.s4 1983009808
        %v1200 = vunpack.c.0.s8 %v1199
        %v1201 = vlaneseq
        %v1202 = vshrl.u32 %v1201, 7
        %v1203 = vsub.s32 %v1200, %v1202
        %v1204 = vrot.slane %v1190, %v1203
        %v1205 = vcombine.low %v1197, %v1204
        %v1206 = vcombine.low %v556, %v563
        %v1207 = vcombine.low %v571, %v579
        %v1209 = vunpack.c.l.s4 1983009808
        %v1210 = vunpack.c.0.s8 %v1209
        %v1211 = vlaneseq
        %v1212 = vshrl.u32 %v1211, 7
        %v1213 = vsub.s32 %v1210, %v1212
        %v1214 = vrot.slane %v1206, %v1213
        %v1216 = vunpack.c.l.s4 1983009808
        %v1217 = vunpack.c.0.s8 %v1216
        %v1218 = vlaneseq
        %v1219 = vshrl.u32 %v1218, 7
        %v1220 = vsub.s32 %v1217, %v1219
        %v1221 = vrot.slane %v1207, %v1220
        %v1222 = vcombine.low %v1214, %v1221
        %v1223 = vcombine.low %v578, %v580
        %v1224 = vcombine.low %v588, %v596
        %v1226 = vunpack.c.l.s4 1983009808
        %v1227 = vunpack.c.0.s8 %v1226
        %v1228 = vlaneseq
        %v1229 = vshrl.u32 %v1228, 7
        %v1230 = vsub.s32 %v1227, %v1229
        %v1231 = vrot.slane %v1223, %v1230
        %v1233 = vunpack.c.l.s4 1983009808
        %v1234 = vunpack.c.0.s8 %v1233
        %v1235 = vlaneseq
        %v1236 = vshrl.u32 %v1235, 7
        %v1237 = vsub.s32 %v1234, %v1236
        %v1238 = vrot.slane %v1224, %v1237
        %v1239 = vcombine.low %v1231, %v1238
        %v1240 = vcombine.low %v595, %v597
        %v1241 = vcombine.low %v604, %v612
        %v1243 = vunpack.c.l.s4 1983009808
        %v1244 = vunpack.c.0.s8 %v1243
        %v1245 = vlaneseq
        %v1246 = vshrl.u32 %v1245, 7
        %v1247 = vsub.s32 %v1244, %v1246
        %v1248 = vrot.slane %v1240, %v1247
        %v1250 = vunpack.c.l.s4 1983009808
        %v1251 = vunpack.c.0.s8 %v1250
        %v1252 = vlaneseq
        %v1253 = vshrl.u32 %v1252, 7
        %v1254 = vsub.s32 %v1251, %v1253
        %v1255 = vrot.slane %v1241, %v1254
        %v1256 = vcombine.low %v1248, %v1255
        %v1257 = vcombine.low %v620, %v619
        %v1258 = vcombine.low %v621, %v629
        %v1260 = vunpack.c.l.s4 1983009808
        %v1261 = vunpack.c.0.s8 %v1260
        %v1262 = vlaneseq
        %v1263 = vshrl.u32 %v1262, 7
        %v1264 = vsub.s32 %v1261, %v1263
        %v1265 = vrot.slane %v1257, %v1264
        %v1267 = vunpack.c.l.s4 1983009808
        %v1268 = vunpack.c.0.s8 %v1267
        %v1269 = vlaneseq
        %v1270 = vshrl.u32 %v1269, 7
        %v1271 = vsub.s32 %v1268, %v1270
        %v1272 = vrot.slane %v1258, %v1271
        %v1273 = vcombine.low %v1265, %v1272
        %v1274 = vcombine.low %v637, %v636
        %v1275 = vcombine.low %v638, %v645
        %v1277 = vunpack.c.l.s4 1983009808
        %v1278 = vunpack.c.0.s8 %v1277
        %v1279 = vlaneseq
        %v1280 = vshrl.u32 %v1279, 7
        %v1281 = vsub.s32 %v1278, %v1280
        %v1282 = vrot.slane %v1274, %v1281
        %v1284 = vunpack.c.l.s4 1983009808
        %v1285 = vunpack.c.0.s8 %v1284
        %v1286 = vlaneseq
        %v1287 = vshrl.u32 %v1286, 7
        %v1288 = vsub.s32 %v1285, %v1287
        %v1289 = vrot.slane %v1275, %v1288
        %v1290 = vcombine.low %v1282, %v1289
        %v1291 = vcombine.low %v653, %v661
        %v1292 = vcombine.low %v660, %v662
        %v1294 = vunpack.c.l.s4 1983009808
        %v1295 = vunpack.c.0.s8 %v1294
        %v1296 = vlaneseq
        %v1297 = vshrl.u32 %v1296, 7
        %v1298 = vsub.s32 %v1295, %v1297
        %v1299 = vrot.slane %v1291, %v1298
        %v1301 = vunpack.c.l.s4 1983009808
        %v1302 = vunpack.c.0.s8 %v1301
        %v1303 = vlaneseq
        %v1304 = vshrl.u32 %v1303, 7
        %v1305 = vsub.s32 %v1302, %v1304
        %v1306 = vrot.slane %v1292, %v1305
        %v1307 = vcombine.low %v1299, %v1306
        %v1308 = vcombine.low %v670, %v678
        %v1309 = vcombine.low %v677, %v679
        %v1311 = vunpack.c.l.s4 1983009808
        %v1312 = vunpack.c.0.s8 %v1311
        %v1313 = vlaneseq
        %v1314 = vshrl.u32 %v1313, 7
        %v1315 = vsub.s32 %v1312, %v1314
        %v1316 = vrot.slane %v1308, %v1315
        %v1318 = vunpack.c.l.s4 1983009808
        %v1319 = vunpack.c.0.s8 %v1318
        %v1320 = vlaneseq
        %v1321 = vshrl.u32 %v1320, 7
        %v1322 = vsub.s32 %v1319, %v1321
        %v1323 = vrot.slane %v1309, %v1322
        %v1324 = vcombine.low %v1316, %v1323
        %v1325 = vcombine.low %v686, %v694
        %v1326 = vcombine.low %v702, %v701
        %v1328 = vunpack.c.l.s4 1983009808
        %v1329 = vunpack.c.0.s8 %v1328
        %v1330 = vlaneseq
        %v1331 = vshrl.u32 %v1330, 7
        %v1332 = vsub.s32 %v1329, %v1331
        %v1333 = vrot.slane %v1325, %v1332
        %v1335 = vunpack.c.l.s4 1983009808
        %v1336 = vunpack.c.0.s8 %v1335
        %v1337 = vlaneseq
        %v1338 = vshrl.u32 %v1337, 7
        %v1339 = vsub.s32 %v1336, %v1338
        %v1340 = vrot.slane %v1326, %v1339
        %v1341 = vcombine.low %v1333, %v1340
        %v1342 = vcombine.low %v703, %v711
        %v1343 = vcombine.low %v719, %v718
        %v1345 = vunpack.c.l.s4 1983009808
        %v1346 = vunpack.c.0.s8 %v1345
        %v1347 = vlaneseq
        %v1348 = vshrl.u32 %v1347, 7
        %v1349 = vsub.s32 %v1346, %v1348
        %v1350 = vrot.slane %v1342, %v1349
        %v1352 = vunpack.c.l.s4 1983009808
        %v1353 = vunpack.c.0.s8 %v1352
        %v1354 = vlaneseq
        %v1355 = vshrl.u32 %v1354, 7
        %v1356 = vsub.s32 %v1353, %v1355
        %v1357 = vrot.slane %v1343, %v1356
        %v1358 = vcombine.low %v1350, %v1357
        %v1359 = vcombine.low %v720, %v727
        %v1360 = vcombine.low %v735, %v743
        %v1362 = vunpack.c.l.s4 1983009808
        %v1363 = vunpack.c.0.s8 %v1362
        %v1364 = vlaneseq
        %v1365 = vshrl.u32 %v1364, 7
        %v1366 = vsub.s32 %v1363, %v1365
        %v1367 = vrot.slane %v1359, %v1366
        %v1369 = vunpack.c.l.s4 1983009808
        %v1370 = vunpack.c.0.s8 %v1369
        %v1371 = vlaneseq
        %v1372 = vshrl.u32 %v1371, 7
        %v1373 = vsub.s32 %v1370, %v1372
        %v1374 = vrot.slane %v1360, %v1373
        %v1375 = vcombine.low %v1367, %v1374
        %v1376 = vcombine.low %v742, %v744
        %v1377 = vcombine.low %v752, %v760
        %v1379 = vunpack.c.l.s4 1983009808
        %v1380 = vunpack.c.0.s8 %v1379
        %v1381 = vlaneseq
        %v1382 = vshrl.u32 %v1381, 7
        %v1383 = vsub.s32 %v1380, %v1382
        %v1384 = vrot.slane %v1376, %v1383
        %v1386 = vunpack.c.l.s4 1983009808
        %v1387 = vunpack.c.0.s8 %v1386
        %v1388 = vlaneseq
        %v1389 = vshrl.u32 %v1388, 7
        %v1390 = vsub.s32 %v1387, %v1389
        %v1391 = vrot.slane %v1377, %v1390
        %v1392 = vcombine.low %v1384, %v1391
        %v1393 = vcombine.low %v759, %v761
        %v1394 = vcombine.low %v768, %v776
        %v1396 = vunpack.c.l.s4 1983009808
        %v1397 = vunpack.c.0.s8 %v1396
        %v1398 = vlaneseq
        %v1399 = vshrl.u32 %v1398, 7
        %v1400 = vsub.s32 %v1397, %v1399
        %v1401 = vrot.slane %v1393, %v1400
        %v1403 = vunpack.c.l.s4 1983009808
        %v1404 = vunpack.c.0.s8 %v1403
        %v1405 = vlaneseq
        %v1406 = vshrl.u32 %v1405, 7
        %v1407 = vsub.s32 %v1404, %v1406
        %v1408 = vrot.slane %v1394, %v1407
        %v1409 = vcombine.low %v1401, %v1408
        %v1410 = vcombine.low %v784, %v783
        %v1411 = vcombine.low %v785, %v793
        %v1413 = vunpack.c.l.s4 1983009808
        %v1414 = vunpack.c.0.s8 %v1413
        %v1415 = vlaneseq
        %v1416 = vshrl.u32 %v1415, 7
        %v1417 = vsub.s32 %v1414, %v1416
        %v1418 = vrot.slane %v1410, %v1417
        %v1420 = vunpack.c.l.s4 1983009808
        %v1421 = vunpack.c.0.s8 %v1420
        %v1422 = vlaneseq
        %v1423 = vshrl.u32 %v1422, 7
        %v1424 = vsub.s32 %v1421, %v1423
        %v1425 = vrot.slane %v1411, %v1424
        %v1426 = vcombine.low %v1418, %v1425
        %v1427 = vcombine.low %v801, %v800
        %v1428 = vcombine.low %v802, %v809
        %v1430 = vunpack.c.l.s4 1983009808
        %v1431 = vunpack.c.0.s8 %v1430
        %v1432 = vlaneseq
        %v1433 = vshrl.u32 %v1432, 7
        %v1434 = vsub.s32 %v1431, %v1433
        %v1435 = vrot.slane %v1427, %v1434
        %v1437 = vunpack.c.l.s4 1983009808
        %v1438 = vunpack.c.0.s8 %v1437
        %v1439 = vlaneseq
        %v1440 = vshrl.u32 %v1439, 7
        %v1441 = vsub.s32 %v1438, %v1440
        %v1442 = vrot.slane %v1428, %v1441
        %v1443 = vcombine.low %v1435, %v1442
        %v1444 = vcombine.low %v817, %v825
        %v1445 = vcombine.low %v824, %v826
        %v1447 = vunpack.c.l.s4 1983009808
        %v1448 = vunpack.c.0.s8 %v1447
        %v1449 = vlaneseq
        %v1450 = vshrl.u32 %v1449, 7
        %v1451 = vsub.s32 %v1448, %v1450
        %v1452 = vrot.slane %v1444, %v1451
        %v1454 = vunpack.c.l.s4 1983009808
        %v1455 = vunpack.c.0.s8 %v1454
        %v1456 = vlaneseq
        %v1457 = vshrl.u32 %v1456, 7
        %v1458 = vsub.s32 %v1455, %v1457
        %v1459 = vrot.slane %v1445, %v1458
        %v1460 = vcombine.low %v1452, %v1459
        %v1461 = vcombine.low %v834, %v842
        %v1462 = vcombine.low %v841, %v843
        %v1464 = vunpack.c.l.s4 1983009808
        %v1465 = vunpack.c.0.s8 %v1464
        %v1466 = vlaneseq
        %v1467 = vshrl.u32 %v1466, 7
        %v1468 = vsub.s32 %v1465, %v1467
        %v1469 = vrot.slane %v1461, %v1468
        %v1471 = vunpack.c.l.s4 1983009808
        %v1472 = vunpack.c.0.s8 %v1471
        %v1473 = vlaneseq
        %v1474 = vshrl.u32 %v1473, 7
        %v1475 = vsub.s32 %v1472, %v1474
        %v1476 = vrot.slane %v1462, %v1475
        %v1477 = vcombine.low %v1469, %v1476
        %v1478 = vcombine.low %v850, %v858
        %v1479 = vcombine.low %v866, %v865
        %v1481 = vunpack.c.l.s4 1983009808
        %v1482 = vunpack.c.0.s8 %v1481
        %v1483 = vlaneseq
        %v1484 = vshrl.u32 %v1483, 7
        %v1485 = vsub.s32 %v1482, %v1484
        %v1486 = vrot.slane %v1478, %v1485
        %v1488 = vunpack.c.l.s4 1983009808
        %v1489 = vunpack.c.0.s8 %v1488
        %v1490 = vlaneseq
        %v1491 = vshrl.u32 %v1490, 7
        %v1492 = vsub.s32 %v1489, %v1491
        %v1493 = vrot.slane %v1479, %v1492
        %v1494 = vcombine.low %v1486, %v1493
        %v1495 = vcombine.low %v867, %v875
        %v1496 = vcombine.low %v883, %v882
        %v1498 = vunpack.c.l.s4 1983009808
        %v1499 = vunpack.c.0.s8 %v1498
        %v1500 = vlaneseq
        %v1501 = vshrl.u32 %v1500, 7
        %v1502 = vsub.s32 %v1499, %v1501
        %v1503 = vrot.slane %v1495, %v1502
        %v1505 = vunpack.c.l.s4 1983009808
        %v1506 = vunpack.c.0.s8 %v1505
        %v1507 = vlaneseq
        %v1508 = vshrl.u32 %v1507, 7
        %v1509 = vsub.s32 %v1506, %v1508
        %v1510 = vrot.slane %v1496, %v1509
        %v1511 = vcombine.low %v1503, %v1510
        %v1512 = vcombine.low %v884, %v891
        %v1513 = vcombine.low %v899, %v907
        %v1515 = vunpack.c.l.s4 1983009808
        %v1516 = vunpack.c.0.s8 %v1515
        %v1517 = vlaneseq
        %v1518 = vshrl.u32 %v1517, 7
        %v1519 = vsub.s32 %v1516, %v1518
        %v1520 = vrot.slane %v1512, %v1519
        %v1522 = vunpack.c.l.s4 1983009808
        %v1523 = vunpack.c.0.s8 %v1522
        %v1524 = vlaneseq
        %v1525 = vshrl.u32 %v1524, 7
        %v1526 = vsub.s32 %v1523, %v1525
        %v1527 = vrot.slane %v1513, %v1526
        %v1528 = vcombine.low %v1520, %v1527
        %v1529 = vcombine.low %v906, %v908
        %v1530 = vcombine.low %v916, %v924
        %v1532 = vunpack.c.l.s4 1983009808
        %v1533 = vunpack.c.0.s8 %v1532
        %v1534 = vlaneseq
        %v1535 = vshrl.u32 %v1534, 7
        %v1536 = vsub.s32 %v1533, %v1535
        %v1537 = vrot.slane %v1529, %v1536
        %v1539 = vunpack.c.l.s4 1983009808
        %v1540 = vunpack.c.0.s8 %v1539
        %v1541 = vlaneseq
        %v1542 = vshrl.u32 %v1541, 7
        %v1543 = vsub.s32 %v1540, %v1542
        %v1544 = vrot.slane %v1530, %v1543
        %v1545 = vcombine.low %v1537, %v1544
        %v1546 = vcombine.low %v923, %v925
        %v1547 = vcombine.low %v932, %v940
        %v1549 = vunpack.c.l.s4 1983009808
        %v1550 = vunpack.c.0.s8 %v1549
        %v1551 = vlaneseq
        %v1552 = vshrl.u32 %v1551, 7
        %v1553 = vsub.s32 %v1550, %v1552
        %v1554 = vrot.slane %v1546, %v1553
        %v1556 = vunpack.c.l.s4 1983009808
        %v1557 = vunpack.c.0.s8 %v1556
        %v1558 = vlaneseq
        %v1559 = vshrl.u32 %v1558, 7
        %v1560 = vsub.s32 %v1557, %v1559
        %v1561 = vrot.slane %v1547, %v1560
        %v1562 = vcombine.low %v1554, %v1561
        %v1563 = vcombine.low %v948, %v947
        %v1564 = vcombine.low %v949, %v957
        %v1566 = vunpack.c.l.s4 1983009808
        %v1567 = vunpack.c.0.s8 %v1566
        %v1568 = vlaneseq
        %v1569 = vshrl.u32 %v1568, 7
        %v1570 = vsub.s32 %v1567, %v1569
        %v1571 = vrot.slane %v1563, %v1570
        %v1573 = vunpack.c.l.s4 1983009808
        %v1574 = vunpack.c.0.s8 %v1573
        %v1575 = vlaneseq
        %v1576 = vshrl.u32 %v1575, 7
        %v1577 = vsub.s32 %v1574, %v1576
        %v1578 = vrot.slane %v1564, %v1577
        %v1579 = vcombine.low %v1571, %v1578
        %v1580 = vcombine.low %v965, %v964
        %v1581 = vcombine.low %v966, %v973
        %v1583 = vunpack.c.l.s4 1983009808
        %v1584 = vunpack.c.0.s8 %v1583
        %v1585 = vlaneseq
        %v1586 = vshrl.u32 %v1585, 7
        %v1587 = vsub.s32 %v1584, %v1586
        %v1588 = vrot.slane %v1580, %v1587
        %v1590 = vunpack.c.l.s4 1983009808
        %v1591 = vunpack.c.0.s8 %v1590
        %v1592 = vlaneseq
        %v1593 = vshrl.u32 %v1592, 7
        %v1594 = vsub.s32 %v1591, %v1593
        %v1595 = vrot.slane %v1581, %v1594
        %v1596 = vcombine.low %v1588, %v1595
        %v1597 = vcombine.low %v981, %v989
        %v1598 = vcombine.low %v988, %v990
        %v1600 = vunpack.c.l.s4 1983009808
        %v1601 = vunpack.c.0.s8 %v1600
        %v1602 = vlaneseq
        %v1603 = vshrl.u32 %v1602, 7
        %v1604 = vsub.s32 %v1601, %v1603
        %v1605 = vrot.slane %v1597, %v1604
        %v1607 = vunpack.c.l.s4 1983009808
        %v1608 = vunpack.c.0.s8 %v1607
        %v1609 = vlaneseq
        %v1610 = vshrl.u32 %v1609, 7
        %v1611 = vsub.s32 %v1608, %v1610
        %v1612 = vrot.slane %v1598, %v1611
        %v1613 = vcombine.low %v1605, %v1612
        %v1614 = vcombine.low %v998, %v1006
        %v1615 = vcombine.low %v1005, %v1007
        %v1617 = vunpack.c.l.s4 1983009808
        %v1618 = vunpack.c.0.s8 %v1617
        %v1619 = vlaneseq
        %v1620 = vshrl.u32 %v1619, 7
        %v1621 = vsub.s32 %v1618, %v1620
        %v1622 = vrot.slane %v1614, %v1621
        %v1624 = vunpack.c.l.s4 1983009808
        %v1625 = vunpack.c.0.s8 %v1624
        %v1626 = vlaneseq
        %v1627 = vshrl.u32 %v1626, 7
        %v1628 = vsub.s32 %v1625, %v1627
        %v1629 = vrot.slane %v1615, %v1628
        %v1630 = vcombine.low %v1622, %v1629
        %v1631 = vcombine.low %v1014, %v1022
        %v1632 = vcombine.low %v1030, %v1029
        %v1634 = vunpack.c.l.s4 1983009808
        %v1635 = vunpack.c.0.s8 %v1634
        %v1636 = vlaneseq
        %v1637 = vshrl.u32 %v1636, 7
        %v1638 = vsub.s32 %v1635, %v1637
        %v1639 = vrot.slane %v1631, %v1638
        %v1641 = vunpack.c.l.s4 1983009808
        %v1642 = vunpack.c.0.s8 %v1641
        %v1643 = vlaneseq
        %v1644 = vshrl.u32 %v1643, 7
        %v1645 = vsub.s32 %v1642, %v1644
        %v1646 = vrot.slane %v1632, %v1645
        %v1647 = vcombine.low %v1639, %v1646
        %v1648 = vcombine.low %v1031, %v1039
        %v1649 = vcombine.low %v1047, %v1046
        %v1651 = vunpack.c.l.s4 1983009808
        %v1652 = vunpack.c.0.s8 %v1651
        %v1653 = vlaneseq
        %v1654 = vshrl.u32 %v1653, 7
        %v1655 = vsub.s32 %v1652, %v1654
        %v1656 = vrot.slane %v1648, %v1655
        %v1658 = vunpack.c.l.s4 1983009808
        %v1659 = vunpack.c.0.s8 %v1658
        %v1660 = vlaneseq
        %v1661 = vshrl.u32 %v1660, 7
        %v1662 = vsub.s32 %v1659, %v1661
        %v1663 = vrot.slane %v1649, %v1662
        %v1664 = vcombine.low %v1656, %v1663
        %v1665 = vcombine.low %v1048, %v1055
        %v1666 = vcombine.low %v1063, %v1071
        %v1668 = vunpack.c.l.s4 1983009808
        %v1669 = vunpack.c.0.s8 %v1668
        %v1670 = vlaneseq
        %v1671 = vshrl.u32 %v1670, 7
        %v1672 = vsub.s32 %v1669, %v1671
        %v1673 = vrot.slane %v1665, %v1672
        %v1675 = vunpack.c.l.s4 1983009808
        %v1676 = vunpack.c.0.s8 %v1675
        %v1677 = vlaneseq
        %v1678 = vshrl.u32 %v1677, 7
        %v1679 = vsub.s32 %v1676, %v1678
        %v1680 = vrot.slane %v1666, %v1679
        %v1681 = vcombine.low %v1673, %v1680
        %v1682 = vcombine.low %v1070, %v1072
        %v1683 = vcombine.low %v1080, %v1088
        %v1685 = vunpack.c.l.s4 1983009808
        %v1686 = vunpack.c.0.s8 %v1685
        %v1687 = vlaneseq
        %v1688 = vshrl.u32 %v1687, 7
        %v1689 = vsub.s32 %v1686, %v1688
        %v1690 = vrot.slane %v1682, %v1689
        %v1692 = vunpack.c.l.s4 1983009808
        %v1693 = vunpack.c.0.s8 %v1692
        %v1694 = vlaneseq
        %v1695 = vshrl.u32 %v1694, 7
        %v1696 = vsub.s32 %v1693, %v1695
        %v1697 = vrot.slane %v1683, %v1696
        %v1698 = vcombine.low %v1690, %v1697
        %v1699 = vcombine.low %v1087, %v1089
        %v1700 = vcombine.low %v1096, %v1104
        %v1702 = vunpack.c.l.s4 1983009808
        %v1703 = vunpack.c.0.s8 %v1702
        %v1704 = vlaneseq
        %v1705 = vshrl.u32 %v1704, 7
        %v1706 = vsub.s32 %v1703, %v1705
        %v1707 = vrot.slane %v1699, %v1706
        %v1709 = vunpack.c.l.s4 1983009808
        %v1710 = vunpack.c.0.s8 %v1709
        %v1711 = vlaneseq
        %v1712 = vshrl.u32 %v1711, 7
        %v1713 = vsub.s32 %v1710, %v1712
        %v1714 = vrot.slane %v1700, %v1713
        %v1715 = vcombine.low %v1707, %v1714
        %v1716 = vcombine.low %v1112, %v1111
        %v1717 = vcombine.low %v1113, %v1121
        %v1719 = vunpack.c.l.s4 1983009808
        %v1720 = vunpack.c.0.s8 %v1719
        %v1721 = vlaneseq
        %v1722 = vshrl.u32 %v1721, 7
        %v1723 = vsub.s32 %v1720, %v1722
        %v1724 = vrot.slane %v1716, %v1723
        %v1726 = vunpack.c.l.s4 1983009808
        %v1727 = vunpack.c.0.s8 %v1726
        %v1728 = vlaneseq
        %v1729 = vshrl.u32 %v1728, 7
        %v1730 = vsub.s32 %v1727, %v1729
        %v1731 = vrot.slane %v1717, %v1730
        %v1732 = vcombine.low %v1724, %v1731
        %v1733 = vcombine.low %v1129, %v1128
        %v1734 = vcombine.low %v1130, %v1137
        %v1736 = vunpack.c.l.s4 1983009808
        %v1737 = vunpack.c.0.s8 %v1736
        %v1738 = vlaneseq
        %v1739 = vshrl.u32 %v1738, 7
        %v1740 = vsub.s32 %v1737, %v1739
        %v1741 = vrot.slane %v1733, %v1740
        %v1743 = vunpack.c.l.s4 1983009808
        %v1744 = vunpack.c.0.s8 %v1743
        %v1745 = vlaneseq
        %v1746 = vshrl.u32 %v1745, 7
        %v1747 = vsub.s32 %v1744, %v1746
        %v1748 = vrot.slane %v1734, %v1747
        %v1749 = vcombine.low %v1741, %v1748
        %v1786 = vpack.c.bf16 %v1171, %v1154
        %v1787 = vpack.c.bf16 %v1205, %v1188
        %v1788 = vpack.c.bf16 %v1239, %v1222
        %v1789 = vpack.c.bf16 %v1273, %v1256
        %v1790 = vpack.c.bf16 %v1307, %v1290
        %v1791 = vpack.c.bf16 %v1341, %v1324
        %v1792 = vpack.c.bf16 %v1375, %v1358
        %v1793 = vpack.c.bf16 %v1409, %v1392
        %v1794 = vpack.c.bf16 %v1443, %v1426
        %v1795 = vpack.c.bf16 %v1477, %v1460
        %v1796 = vpack.c.bf16 %v1511, %v1494
        %v1797 = vpack.c.bf16 %v1545, %v1528
        %v1798 = vpack.c.bf16 %v1579, %v1562
        %v1799 = vpack.c.bf16 %v1613, %v1596
        %v1800 = vpack.c.bf16 %v1647, %v1630
        %v1801 = vpack.c.bf16 %v1681, %v1664
        %v1802 = vpack.c.bf16 %v1715, %v1698
        %v1803 = vpack.c.bf16 %v1749, %v1732
        %vm1822 = vcmask 1040384
        %v1823 = vrot.slane %v1786, 7
        %v1824 = vrot.slane %v1787, 7
        %v1825 = vsel %vm1822, %v1823, %v1824
        %v1826 = vrot.slane %v1788, 7
        %v1827 = vsel %vm1822, %v1824, %v1826
        %v1828 = vrot.slane %v1789, 7
        %v1829 = vsel %vm1822, %v1826, %v1828
        %v1830 = vrot.slane %v1790, 7
        %v1831 = vsel %vm1822, %v1828, %v1830
        %v1832 = vrot.slane %v1791, 7
        %v1833 = vsel %vm1822, %v1830, %v1832
        %v1834 = vrot.slane %v1792, 7
        %v1835 = vsel %vm1822, %v1832, %v1834
        %v1836 = vrot.slane %v1793, 7
        %v1837 = vsel %vm1822, %v1834, %v1836
        %v1838 = vrot.slane %v1794, 7
        %v1839 = vsel %vm1822, %v1836, %v1838
        %v1840 = vrot.slane %v1795, 7
        %v1841 = vsel %vm1822, %v1838, %v1840
        %v1842 = vrot.slane %v1796, 7
        %v1843 = vsel %vm1822, %v1840, %v1842
        %v1844 = vrot.slane %v1797, 7
        %v1845 = vsel %vm1822, %v1842, %v1844
        %v1846 = vrot.slane %v1798, 7
        %v1847 = vsel %vm1822, %v1844, %v1846
        %v1848 = vrot.slane %v1799, 7
        %v1849 = vsel %vm1822, %v1846, %v1848
        %v1850 = vrot.slane %v1800, 7
        %v1851 = vsel %vm1822, %v1848, %v1850
        %v1852 = vrot.slane %v1801, 7
        %v1853 = vsel %vm1822, %v1850, %v1852
        %v1854 = vrot.slane %v1802, 7
        %v1855 = vsel %vm1822, %v1852, %v1854
        %v1856 = vrot.slane %v1803, 7
        %v1857 = vsel %vm1822, %v1854, %v1856
        %1877 = vst [vmem:[#allocation2 + $0x8] sm:$0xfe] %v1823
        %1878 = vst [vmem:[#allocation2 + $0x10] sm:$0xff] %v1825
        %1879 = vst [vmem:[#allocation2 + $0x18] sm:$0xff] %v1827
        %1880 = vst [vmem:[#allocation2 + $0x20] sm:$0xff] %v1829
        %1881 = vst [vmem:[#allocation2 + $0x28] sm:$0xff] %v1831
        %1882 = vst [vmem:[#allocation2 + $0x30] sm:$0xff] %v1833
        %1883 = vst [vmem:[#allocation2 + $0x38] sm:$0xff] %v1835
        %1884 = vst [vmem:[#allocation2 + $0x40] sm:$0xff] %v1837
        %1885 = vst [vmem:[#allocation2 + $0x48] sm:$0xff] %v1839
        %1886 = vst [vmem:[#allocation2 + $0x50] sm:$0xff] %v1841
        %1887 = vst [vmem:[#allocation2 + $0x58] sm:$0xff] %v1843
        %1888 = vst [vmem:[#allocation2 + $0x60] sm:$0xff] %v1845
        %1889 = vst [vmem:[#allocation2 + $0x68] sm:$0xff] %v1847
        %1890 = vst [vmem:[#allocation2 + $0x70] sm:$0xff] %v1849
        %1891 = vst [vmem:[#allocation2 + $0x78] sm:$0xff] %v1851
        %1892 = vst [vmem:[#allocation2 + $0x80] sm:$0xff] %v1853
        %1893 = vst [vmem:[#allocation2 + $0x88] sm:$0xff] %v1855
        %1894 = vst [vmem:[#allocation2 + $0x90] sm:$0xff] %v1857
        %1895 = vst [vmem:[#allocation2 + $0x98] sm:$0x1] %v1856
        %1896 = vst [vmem:[#allocation2] sm:$0xff] 0
        %1897 = vst [vmem:[#allocation2 + $0x8] sm:$0x1] 0
        %1898 = vst [vmem:[#allocation2 + $0x98] sm:$0xfe] 0
        %1899 = vst [vmem:[#allocation2 + $0xa0] sm:$0xff] 0
        %1900 = vst [vmem:[#allocation3] sm:$0xff] 0
        %vm1901 = vcmask 1041408
        %vm1902 = vsmask.f32 1280
        %vm1903 = vmand %vm1901, %vm1902
        %v1904 = vld [vmem:[#allocation3 + $0x8] sm:$0x3]
        %v1905 = vsel %vm1903, 0, %v1904
        %1906 = vst [vmem:[#allocation3 + $0x8] sm:$0x3] %v1905
        %1907 = vst [vmem:[#allocation3 + $0x98] sm:$0xfe] 0
        %1908 = vst [vmem:[#allocation3 + $0xa0] sm:$0xff] 0
        %v1909 = vlaneseq
        %v1910 = vshrl.u32 %v1909, 7
        %v1911 = vadd.s32 %v1910, 8
        %v1912 = vadd.s32 %v1910, 16
        %v1913 = vadd.s32 %v1910, 24
        %v1914 = vadd.s32 %v1910, 32
        %v1915 = vadd.s32 %v1910, 40
        %v1916 = vadd.s32 %v1910, 48
        %v1917 = vadd.s32 %v1910, 56
        %v1918 = vadd.s32 %v1910, 64
        %v1919 = vadd.s32 %v1910, 72
        %v1920 = vadd.s32 %v1910, 80
        %v1921 = vadd.s32 %v1910, 88
        %v1922 = vadd.s32 %v1910, 96
        %v1923 = vadd.s32 %v1910, 104
        %v1924 = vadd.s32 %v1910, 112
        %v1925 = vadd.s32 %v1910, 120
        %v1926 = vadd.s32 %v1910, 128
        %v1927 = vadd.s32 %v1910, 136
        %v1928 = vadd.s32 %v1910, 144
        %v1929 = vadd.s32 %v1910, 152
        %v1930 = vadd.s32 %v1910, 160
        %v1931 = vadd.s32 %v1910, 168
        %v1932 = vadd.s32 %v1910, 176
        %v1933 = vadd.s32 %v1910, 184
        %v1934 = vadd.s32 %v1910, 192
        %v1935 = vadd.s32 %v1910, 200
        %v1936 = vadd.s32 %v1910, 208
        %v1937 = vadd.s32 %v1910, 216
        %v1938 = vadd.s32 %v1910, 224
        %v1939 = vadd.s32 %v1910, 232
        %v1940 = vadd.s32 %v1910, 240
        %v1941 = vadd.s32 %v1910, 248
        %v1942 = vadd.s32 %v1910, 256
        %v1943 = vadd.s32 %v1910, 264
        %v1944 = vadd.s32 %v1910, 272
        %v1945 = vadd.s32 %v1910, 280
        %vm1946 = vcmp.lt.s32.totalorder %v1910, 0
        %v1947 = vsub.s32 0, %v1910
        %v1948 = vsel %vm1946, %v1947, %v1910
        %v1949 = vmul.u32.u64.compose %v1948, 3817748708
        %v1950 = vextract.low.u32 %v1949
        %v1951 = vextract.high.u32 %v1949
        %v1952 = vshrl.u32 %v1951, 4
        %v1953 = vmul.u32 %v1952, 18
        %v1954 = vsub.s32 %v1948, %v1953
        %v1955 = vsub.s32 0, %v1954
        %v1956 = vsel %vm1946, %v1955, %v1954
        %vm1957 = vcmp.lt.s32.totalorder %v1911, 0
        %v1958 = vsub.s32 0, %v1911
        %v1959 = vsel %vm1957, %v1958, %v1911
        %v1960 = vmul.u32.u64.compose %v1959, 3817748708
        %v1961 = vextract.low.u32 %v1960
        %v1962 = vextract.high.u32 %v1960
        %v1963 = vshrl.u32 %v1962, 4
        %v1964 = vmul.u32 %v1963, 18
        %v1965 = vsub.s32 %v1959, %v1964
        %v1966 = vsub.s32 0, %v1965
        %v1967 = vsel %vm1957, %v1966, %v1965
        %vm1968 = vcmp.lt.s32.totalorder %v1912, 0
        %v1969 = vsub.s32 0, %v1912
        %v1970 = vsel %vm1968, %v1969, %v1912
        %v1971 = vmul.u32.u64.compose %v1970, 3817748708
        %v1972 = vextract.low.u32 %v1971
        %v1973 = vextract.high.u32 %v1971
        %v1974 = vshrl.u32 %v1973, 4
        %v1975 = vmul.u32 %v1974, 18
        %v1976 = vsub.s32 %v1970, %v1975
        %v1977 = vsub.s32 0, %v1976
        %v1978 = vsel %vm1968, %v1977, %v1976
        %vm1979 = vcmp.lt.s32.totalorder %v1913, 0
        %v1980 = vsub.s32 0, %v1913
        %v1981 = vsel %vm1979, %v1980, %v1913
        %v1982 = vmul.u32.u64.compose %v1981, 3817748708
        %v1983 = vextract.low.u32 %v1982
        %v1984 = vextract.high.u32 %v1982
        %v1985 = vshrl.u32 %v1984, 4
        %v1986 = vmul.u32 %v1985, 18
        %v1987 = vsub.s32 %v1981, %v1986
        %v1988 = vsub.s32 0, %v1987
        %v1989 = vsel %vm1979, %v1988, %v1987
        %vm1990 = vcmp.lt.s32.totalorder %v1914, 0
        %v1991 = vsub.s32 0, %v1914
        %v1992 = vsel %vm1990, %v1991, %v1914
        %v1993 = vmul.u32.u64.compose %v1992, 3817748708
        %v1994 = vextract.low.u32 %v1993
        %v1995 = vextract.high.u32 %v1993
        %v1996 = vshrl.u32 %v1995, 4
        %v1997 = vmul.u32 %v1996, 18
        %v1998 = vsub.s32 %v1992, %v1997
        %v1999 = vsub.s32 0, %v1998
        %v2000 = vsel %vm1990, %v1999, %v1998
        %vm2001 = vcmp.lt.s32.totalorder %v1915, 0
        %v2002 = vsub.s32 0, %v1915
        %v2003 = vsel %vm2001, %v2002, %v1915
        %v2004 = vmul.u32.u64.compose %v2003, 3817748708
        %v2005 = vextract.low.u32 %v2004
        %v2006 = vextract.high.u32 %v2004
        %v2007 = vshrl.u32 %v2006, 4
        %v2008 = vmul.u32 %v2007, 18
        %v2009 = vsub.s32 %v2003, %v2008
        %v2010 = vsub.s32 0, %v2009
        %v2011 = vsel %vm2001, %v2010, %v2009
        %vm2012 = vcmp.lt.s32.totalorder %v1916, 0
        %v2013 = vsub.s32 0, %v1916
        %v2014 = vsel %vm2012, %v2013, %v1916
        %v2015 = vmul.u32.u64.compose %v2014, 3817748708
        %v2016 = vextract.low.u32 %v2015
        %v2017 = vextract.high.u32 %v2015
        %v2018 = vshrl.u32 %v2017, 4
        %v2019 = vmul.u32 %v2018, 18
        %v2020 = vsub.s32 %v2014, %v2019
        %v2021 = vsub.s32 0, %v2020
        %v2022 = vsel %vm2012, %v2021, %v2020
        %vm2023 = vcmp.lt.s32.totalorder %v1917, 0
        %v2024 = vsub.s32 0, %v1917
        %v2025 = vsel %vm2023, %v2024, %v1917
        %v2026 = vmul.u32.u64.compose %v2025, 3817748708
        %v2027 = vextract.low.u32 %v2026
        %v2028 = vextract.high.u32 %v2026
        %v2029 = vshrl.u32 %v2028, 4
        %v2030 = vmul.u32 %v2029, 18
        %v2031 = vsub.s32 %v2025, %v2030
        %v2032 = vsub.s32 0, %v2031
        %v2033 = vsel %vm2023, %v2032, %v2031
        %vm2034 = vcmp.lt.s32.totalorder %v1918, 0
        %v2035 = vsub.s32 0, %v1918
        %v2036 = vsel %vm2034, %v2035, %v1918
        %v2037 = vmul.u32.u64.compose %v2036, 3817748708
        %v2038 = vextract.low.u32 %v2037
        %v2039 = vextract.high.u32 %v2037
        %v2040 = vshrl.u32 %v2039, 4
        %v2041 = vmul.u32 %v2040, 18
        %v2042 = vsub.s32 %v2036, %v2041
        %v2043 = vsub.s32 0, %v2042
        %v2044 = vsel %vm2034, %v2043, %v2042
        %vm2045 = vcmp.lt.s32.totalorder %v1919, 0
        %v2046 = vsub.s32 0, %v1919
        %v2047 = vsel %vm2045, %v2046, %v1919
        %v2048 = vmul.u32.u64.compose %v2047, 3817748708
        %v2049 = vextract.low.u32 %v2048
        %v2050 = vextract.high.u32 %v2048
        %v2051 = vshrl.u32 %v2050, 4
        %v2052 = vmul.u32 %v2051, 18
        %v2053 = vsub.s32 %v2047, %v2052
        %v2054 = vsub.s32 0, %v2053
        %v2055 = vsel %vm2045, %v2054, %v2053
        %vm2056 = vcmp.lt.s32.totalorder %v1920, 0
        %v2057 = vsub.s32 0, %v1920
        %v2058 = vsel %vm2056, %v2057, %v1920
        %v2059 = vmul.u32.u64.compose %v2058, 3817748708
        %v2060 = vextract.low.u32 %v2059
        %v2061 = vextract.high.u32 %v2059
        %v2062 = vshrl.u32 %v2061, 4
        %v2063 = vmul.u32 %v2062, 18
        %v2064 = vsub.s32 %v2058, %v2063
        %v2065 = vsub.s32 0, %v2064
        %v2066 = vsel %vm2056, %v2065, %v2064
        %vm2067 = vcmp.lt.s32.totalorder %v1921, 0
        %v2068 = vsub.s32 0, %v1921
        %v2069 = vsel %vm2067, %v2068, %v1921
        %v2070 = vmul.u32.u64.compose %v2069, 3817748708
        %v2071 = vextract.low.u32 %v2070
        %v2072 = vextract.high.u32 %v2070
        %v2073 = vshrl.u32 %v2072, 4
        %v2074 = vmul.u32 %v2073, 18
        %v2075 = vsub.s32 %v2069, %v2074
        %v2076 = vsub.s32 0, %v2075
        %v2077 = vsel %vm2067, %v2076, %v2075
        %vm2078 = vcmp.lt.s32.totalorder %v1922, 0
        %v2079 = vsub.s32 0, %v1922
        %v2080 = vsel %vm2078, %v2079, %v1922
        %v2081 = vmul.u32.u64.compose %v2080, 3817748708
        %v2082 = vextract.low.u32 %v2081
        %v2083 = vextract.high.u32 %v2081
        %v2084 = vshrl.u32 %v2083, 4
        %v2085 = vmul.u32 %v2084, 18
        %v2086 = vsub.s32 %v2080, %v2085
        %v2087 = vsub.s32 0, %v2086
        %v2088 = vsel %vm2078, %v2087, %v2086
        %vm2089 = vcmp.lt.s32.totalorder %v1923, 0
        %v2090 = vsub.s32 0, %v1923
        %v2091 = vsel %vm2089, %v2090, %v1923
        %v2092 = vmul.u32.u64.compose %v2091, 3817748708
        %v2093 = vextract.low.u32 %v2092
        %v2094 = vextract.high.u32 %v2092
        %v2095 = vshrl.u32 %v2094, 4
        %v2096 = vmul.u32 %v2095, 18
        %v2097 = vsub.s32 %v2091, %v2096
        %v2098 = vsub.s32 0, %v2097
        %v2099 = vsel %vm2089, %v2098, %v2097
        %vm2100 = vcmp.lt.s32.totalorder %v1924, 0
        %v2101 = vsub.s32 0, %v1924
        %v2102 = vsel %vm2100, %v2101, %v1924
        %v2103 = vmul.u32.u64.compose %v2102, 3817748708
        %v2104 = vextract.low.u32 %v2103
        %v2105 = vextract.high.u32 %v2103
        %v2106 = vshrl.u32 %v2105, 4
        %v2107 = vmul.u32 %v2106, 18
        %v2108 = vsub.s32 %v2102, %v2107
        %v2109 = vsub.s32 0, %v2108
        %v2110 = vsel %vm2100, %v2109, %v2108
        %vm2111 = vcmp.lt.s32.totalorder %v1925, 0
        %v2112 = vsub.s32 0, %v1925
        %v2113 = vsel %vm2111, %v2112, %v1925
        %v2114 = vmul.u32.u64.compose %v2113, 3817748708
        %v2115 = vextract.low.u32 %v2114
        %v2116 = vextract.high.u32 %v2114
        %v2117 = vshrl.u32 %v2116, 4
        %v2118 = vmul.u32 %v2117, 18
        %v2119 = vsub.s32 %v2113, %v2118
        %v2120 = vsub.s32 0, %v2119
        %v2121 = vsel %vm2111, %v2120, %v2119
        %vm2122 = vcmp.lt.s32.totalorder %v1926, 0
        %v2123 = vsub.s32 0, %v1926
        %v2124 = vsel %vm2122, %v2123, %v1926
        %v2125 = vmul.u32.u64.compose %v2124, 3817748708
        %v2126 = vextract.low.u32 %v2125
        %v2127 = vextract.high.u32 %v2125
        %v2128 = vshrl.u32 %v2127, 4
        %v2129 = vmul.u32 %v2128, 18
        %v2130 = vsub.s32 %v2124, %v2129
        %v2131 = vsub.s32 0, %v2130
        %v2132 = vsel %vm2122, %v2131, %v2130
        %vm2133 = vcmp.lt.s32.totalorder %v1927, 0
        %v2134 = vsub.s32 0, %v1927
        %v2135 = vsel %vm2133, %v2134, %v1927
        %v2136 = vmul.u32.u64.compose %v2135, 3817748708
        %v2137 = vextract.low.u32 %v2136
        %v2138 = vextract.high.u32 %v2136
        %v2139 = vshrl.u32 %v2138, 4
        %v2140 = vmul.u32 %v2139, 18
        %v2141 = vsub.s32 %v2135, %v2140
        %v2142 = vsub.s32 0, %v2141
        %v2143 = vsel %vm2133, %v2142, %v2141
        %vm2144 = vcmp.lt.s32.totalorder %v1928, 0
        %v2145 = vsub.s32 0, %v1928
        %v2146 = vsel %vm2144, %v2145, %v1928
        %v2147 = vmul.u32.u64.compose %v2146, 3817748708
        %v2148 = vextract.low.u32 %v2147
        %v2149 = vextract.high.u32 %v2147
        %v2150 = vshrl.u32 %v2149, 4
        %v2151 = vmul.u32 %v2150, 18
        %v2152 = vsub.s32 %v2146, %v2151
        %v2153 = vsub.s32 0, %v2152
        %v2154 = vsel %vm2144, %v2153, %v2152
        %vm2155 = vcmp.lt.s32.totalorder %v1929, 0
        %v2156 = vsub.s32 0, %v1929
        %v2157 = vsel %vm2155, %v2156, %v1929
        %v2158 = vmul.u32.u64.compose %v2157, 3817748708
        %v2159 = vextract.low.u32 %v2158
        %v2160 = vextract.high.u32 %v2158
        %v2161 = vshrl.u32 %v2160, 4
        %v2162 = vmul.u32 %v2161, 18
        %v2163 = vsub.s32 %v2157, %v2162
        %v2164 = vsub.s32 0, %v2163
        %v2165 = vsel %vm2155, %v2164, %v2163
        %vm2166 = vcmp.lt.s32.totalorder %v1930, 0
        %v2167 = vsub.s32 0, %v1930
        %v2168 = vsel %vm2166, %v2167, %v1930
        %v2169 = vmul.u32.u64.compose %v2168, 3817748708
        %v2170 = vextract.low.u32 %v2169
        %v2171 = vextract.high.u32 %v2169
        %v2172 = vshrl.u32 %v2171, 4
        %v2173 = vmul.u32 %v2172, 18
        %v2174 = vsub.s32 %v2168, %v2173
        %v2175 = vsub.s32 0, %v2174
        %v2176 = vsel %vm2166, %v2175, %v2174
        %vm2177 = vcmp.lt.s32.totalorder %v1931, 0
        %v2178 = vsub.s32 0, %v1931
        %v2179 = vsel %vm2177, %v2178, %v1931
        %v2180 = vmul.u32.u64.compose %v2179, 3817748708
        %v2181 = vextract.low.u32 %v2180
        %v2182 = vextract.high.u32 %v2180
        %v2183 = vshrl.u32 %v2182, 4
        %v2184 = vmul.u32 %v2183, 18
        %v2185 = vsub.s32 %v2179, %v2184
        %v2186 = vsub.s32 0, %v2185
        %v2187 = vsel %vm2177, %v2186, %v2185
        %vm2188 = vcmp.lt.s32.totalorder %v1932, 0
        %v2189 = vsub.s32 0, %v1932
        %v2190 = vsel %vm2188, %v2189, %v1932
        %v2191 = vmul.u32.u64.compose %v2190, 3817748708
        %v2192 = vextract.low.u32 %v2191
        %v2193 = vextract.high.u32 %v2191
        %v2194 = vshrl.u32 %v2193, 4
        %v2195 = vmul.u32 %v2194, 18
        %v2196 = vsub.s32 %v2190, %v2195
        %v2197 = vsub.s32 0, %v2196
        %v2198 = vsel %vm2188, %v2197, %v2196
        %vm2199 = vcmp.lt.s32.totalorder %v1933, 0
        %v2200 = vsub.s32 0, %v1933
        %v2201 = vsel %vm2199, %v2200, %v1933
        %v2202 = vmul.u32.u64.compose %v2201, 3817748708
        %v2203 = vextract.low.u32 %v2202
        %v2204 = vextract.high.u32 %v2202
        %v2205 = vshrl.u32 %v2204, 4
        %v2206 = vmul.u32 %v2205, 18
        %v2207 = vsub.s32 %v2201, %v2206
        %v2208 = vsub.s32 0, %v2207
        %v2209 = vsel %vm2199, %v2208, %v2207
        %vm2210 = vcmp.lt.s32.totalorder %v1934, 0
        %v2211 = vsub.s32 0, %v1934
        %v2212 = vsel %vm2210, %v2211, %v1934
        %v2213 = vmul.u32.u64.compose %v2212, 3817748708
        %v2214 = vextract.low.u32 %v2213
        %v2215 = vextract.high.u32 %v2213
        %v2216 = vshrl.u32 %v2215, 4
        %v2217 = vmul.u32 %v2216, 18
        %v2218 = vsub.s32 %v2212, %v2217
        %v2219 = vsub.s32 0, %v2218
        %v2220 = vsel %vm2210, %v2219, %v2218
        %vm2221 = vcmp.lt.s32.totalorder %v1935, 0
        %v2222 = vsub.s32 0, %v1935
        %v2223 = vsel %vm2221, %v2222, %v1935
        %v2224 = vmul.u32.u64.compose %v2223, 3817748708
        %v2225 = vextract.low.u32 %v2224
        %v2226 = vextract.high.u32 %v2224
        %v2227 = vshrl.u32 %v2226, 4
        %v2228 = vmul.u32 %v2227, 18
        %v2229 = vsub.s32 %v2223, %v2228
        %v2230 = vsub.s32 0, %v2229
        %v2231 = vsel %vm2221, %v2230, %v2229
        %vm2232 = vcmp.lt.s32.totalorder %v1936, 0
        %v2233 = vsub.s32 0, %v1936
        %v2234 = vsel %vm2232, %v2233, %v1936
        %v2235 = vmul.u32.u64.compose %v2234, 3817748708
        %v2236 = vextract.low.u32 %v2235
        %v2237 = vextract.high.u32 %v2235
        %v2238 = vshrl.u32 %v2237, 4
        %v2239 = vmul.u32 %v2238, 18
        %v2240 = vsub.s32 %v2234, %v2239
        %v2241 = vsub.s32 0, %v2240
        %v2242 = vsel %vm2232, %v2241, %v2240
        %vm2243 = vcmp.lt.s32.totalorder %v1937, 0
        %v2244 = vsub.s32 0, %v1937
        %v2245 = vsel %vm2243, %v2244, %v1937
        %v2246 = vmul.u32.u64.compose %v2245, 3817748708
        %v2247 = vextract.low.u32 %v2246
        %v2248 = vextract.high.u32 %v2246
        %v2249 = vshrl.u32 %v2248, 4
        %v2250 = vmul.u32 %v2249, 18
        %v2251 = vsub.s32 %v2245, %v2250
        %v2252 = vsub.s32 0, %v2251
        %v2253 = vsel %vm2243, %v2252, %v2251
        %vm2254 = vcmp.lt.s32.totalorder %v1938, 0
        %v2255 = vsub.s32 0, %v1938
        %v2256 = vsel %vm2254, %v2255, %v1938
        %v2257 = vmul.u32.u64.compose %v2256, 3817748708
        %v2258 = vextract.low.u32 %v2257
        %v2259 = vextract.high.u32 %v2257
        %v2260 = vshrl.u32 %v2259, 4
        %v2261 = vmul.u32 %v2260, 18
        %v2262 = vsub.s32 %v2256, %v2261
        %v2263 = vsub.s32 0, %v2262
        %v2264 = vsel %vm2254, %v2263, %v2262
        %vm2265 = vcmp.lt.s32.totalorder %v1939, 0
        %v2266 = vsub.s32 0, %v1939
        %v2267 = vsel %vm2265, %v2266, %v1939
        %v2268 = vmul.u32.u64.compose %v2267, 3817748708
        %v2269 = vextract.low.u32 %v2268
        %v2270 = vextract.high.u32 %v2268
        %v2271 = vshrl.u32 %v2270, 4
        %v2272 = vmul.u32 %v2271, 18
        %v2273 = vsub.s32 %v2267, %v2272
        %v2274 = vsub.s32 0, %v2273
        %v2275 = vsel %vm2265, %v2274, %v2273
        %vm2276 = vcmp.lt.s32.totalorder %v1940, 0
        %v2277 = vsub.s32 0, %v1940
        %v2278 = vsel %vm2276, %v2277, %v1940
        %v2279 = vmul.u32.u64.compose %v2278, 3817748708
        %v2280 = vextract.low.u32 %v2279
        %v2281 = vextract.high.u32 %v2279
        %v2282 = vshrl.u32 %v2281, 4
        %v2283 = vmul.u32 %v2282, 18
        %v2284 = vsub.s32 %v2278, %v2283
        %v2285 = vsub.s32 0, %v2284
        %v2286 = vsel %vm2276, %v2285, %v2284
        %vm2287 = vcmp.lt.s32.totalorder %v1941, 0
        %v2288 = vsub.s32 0, %v1941
        %v2289 = vsel %vm2287, %v2288, %v1941
        %v2290 = vmul.u32.u64.compose %v2289, 3817748708
        %v2291 = vextract.low.u32 %v2290
        %v2292 = vextract.high.u32 %v2290
        %v2293 = vshrl.u32 %v2292, 4
        %v2294 = vmul.u32 %v2293, 18
        %v2295 = vsub.s32 %v2289, %v2294
        %v2296 = vsub.s32 0, %v2295
        %v2297 = vsel %vm2287, %v2296, %v2295
        %vm2298 = vcmp.lt.s32.totalorder %v1942, 0
        %v2299 = vsub.s32 0, %v1942
        %v2300 = vsel %vm2298, %v2299, %v1942
        %v2301 = vmul.u32.u64.compose %v2300, 3817748708
        %v2302 = vextract.low.u32 %v2301
        %v2303 = vextract.high.u32 %v2301
        %v2304 = vshrl.u32 %v2303, 4
        %v2305 = vmul.u32 %v2304, 18
        %v2306 = vsub.s32 %v2300, %v2305
        %v2307 = vsub.s32 0, %v2306
        %v2308 = vsel %vm2298, %v2307, %v2306
        %vm2309 = vcmp.lt.s32.totalorder %v1943, 0
        %v2310 = vsub.s32 0, %v1943
        %v2311 = vsel %vm2309, %v2310, %v1943
        %v2312 = vmul.u32.u64.compose %v2311, 3817748708
        %v2313 = vextract.low.u32 %v2312
        %v2314 = vextract.high.u32 %v2312
        %v2315 = vshrl.u32 %v2314, 4
        %v2316 = vmul.u32 %v2315, 18
        %v2317 = vsub.s32 %v2311, %v2316
        %v2318 = vsub.s32 0, %v2317
        %v2319 = vsel %vm2309, %v2318, %v2317
        %vm2320 = vcmp.lt.s32.totalorder %v1944, 0
        %v2321 = vsub.s32 0, %v1944
        %v2322 = vsel %vm2320, %v2321, %v1944
        %v2323 = vmul.u32.u64.compose %v2322, 3817748708
        %v2324 = vextract.low.u32 %v2323
        %v2325 = vextract.high.u32 %v2323
        %v2326 = vshrl.u32 %v2325, 4
        %v2327 = vmul.u32 %v2326, 18
        %v2328 = vsub.s32 %v2322, %v2327
        %v2329 = vsub.s32 0, %v2328
        %v2330 = vsel %vm2320, %v2329, %v2328
        %vm2331 = vcmp.lt.s32.totalorder %v1945, 0
        %v2332 = vsub.s32 0, %v1945
        %v2333 = vsel %vm2331, %v2332, %v1945
        %v2334 = vmul.u32.u64.compose %v2333, 3817748708
        %v2335 = vextract.low.u32 %v2334
        %v2336 = vextract.high.u32 %v2334
        %v2337 = vshrl.u32 %v2336, 4
        %v2338 = vmul.u32 %v2337, 18
        %v2339 = vsub.s32 %v2333, %v2338
        %v2340 = vsub.s32 0, %v2339
        %v2341 = vsel %vm2331, %v2340, %v2339
        %vm2342 = vcmp.ne.s32.totalorder %v1956, 0
        %vm2343 = vcmp.ne.s32.totalorder %v1967, 0
        %vm2344 = vcmp.ne.s32.totalorder %v1978, 0
        %vm2345 = vcmp.ne.s32.totalorder %v1989, 0
        %vm2346 = vcmp.ne.s32.totalorder %v2000, 0
        %vm2347 = vcmp.ne.s32.totalorder %v2011, 0
        %vm2348 = vcmp.ne.s32.totalorder %v2022, 0
        %vm2349 = vcmp.ne.s32.totalorder %v2033, 0
        %vm2350 = vcmp.ne.s32.totalorder %v2044, 0
        %vm2351 = vcmp.ne.s32.totalorder %v2055, 0
        %vm2352 = vcmp.ne.s32.totalorder %v2066, 0
        %vm2353 = vcmp.ne.s32.totalorder %v2077, 0
        %vm2354 = vcmp.ne.s32.totalorder %v2088, 0
        %vm2355 = vcmp.ne.s32.totalorder %v2099, 0
        %vm2356 = vcmp.ne.s32.totalorder %v2110, 0
        %vm2357 = vcmp.ne.s32.totalorder %v2121, 0
        %vm2358 = vcmp.ne.s32.totalorder %v2132, 0
        %vm2359 = vcmp.ne.s32.totalorder %v2143, 0
        %vm2360 = vcmp.ne.s32.totalorder %v2154, 0
        %vm2361 = vcmp.ne.s32.totalorder %v2165, 0
        %vm2362 = vcmp.ne.s32.totalorder %v2176, 0
        %vm2363 = vcmp.ne.s32.totalorder %v2187, 0
        %vm2364 = vcmp.ne.s32.totalorder %v2198, 0
        %vm2365 = vcmp.ne.s32.totalorder %v2209, 0
        %vm2366 = vcmp.ne.s32.totalorder %v2220, 0
        %vm2367 = vcmp.ne.s32.totalorder %v2231, 0
        %vm2368 = vcmp.ne.s32.totalorder %v2242, 0
        %vm2369 = vcmp.ne.s32.totalorder %v2253, 0
        %vm2370 = vcmp.ne.s32.totalorder %v2264, 0
        %vm2371 = vcmp.ne.s32.totalorder %v2275, 0
        %vm2372 = vcmp.ne.s32.totalorder %v2286, 0
        %vm2373 = vcmp.ne.s32.totalorder %v2297, 0
        %vm2374 = vcmp.ne.s32.totalorder %v2308, 0
        %vm2375 = vcmp.ne.s32.totalorder %v2319, 0
        %vm2376 = vcmp.ne.s32.totalorder %v2330, 0
        %vm2377 = vcmp.ne.s32.totalorder %v2341, 0
        %vm2378 = vcmp.lt.s32.totalorder %v1956, 0
        %vm2379 = vcmp.lt.s32.totalorder %v1967, 0
        %vm2380 = vcmp.lt.s32.totalorder %v1978, 0
        %vm2381 = vcmp.lt.s32.totalorder %v1989, 0
        %vm2382 = vcmp.lt.s32.totalorder %v2000, 0
        %vm2383 = vcmp.lt.s32.totalorder %v2011, 0
        %vm2384 = vcmp.lt.s32.totalorder %v2022, 0
        %vm2385 = vcmp.lt.s32.totalorder %v2033, 0
        %vm2386 = vcmp.lt.s32.totalorder %v2044, 0
        %vm2387 = vcmp.lt.s32.totalorder %v2055, 0
        %vm2388 = vcmp.lt.s32.totalorder %v2066, 0
        %vm2389 = vcmp.lt.s32.totalorder %v2077, 0
        %vm2390 = vcmp.lt.s32.totalorder %v2088, 0
        %vm2391 = vcmp.lt.s32.totalorder %v2099, 0
        %vm2392 = vcmp.lt.s32.totalorder %v2110, 0
        %vm2393 = vcmp.lt.s32.totalorder %v2121, 0
        %vm2394 = vcmp.lt.s32.totalorder %v2132, 0
        %vm2395 = vcmp.lt.s32.totalorder %v2143, 0
        %vm2396 = vcmp.lt.s32.totalorder %v2154, 0
        %vm2397 = vcmp.lt.s32.totalorder %v2165, 0
        %vm2398 = vcmp.lt.s32.totalorder %v2176, 0
        %vm2399 = vcmp.lt.s32.totalorder %v2187, 0
        %vm2400 = vcmp.lt.s32.totalorder %v2198, 0
        %vm2401 = vcmp.lt.s32.totalorder %v2209, 0
        %vm2402 = vcmp.lt.s32.totalorder %v2220, 0
        %vm2403 = vcmp.lt.s32.totalorder %v2231, 0
        %vm2404 = vcmp.lt.s32.totalorder %v2242, 0
        %vm2405 = vcmp.lt.s32.totalorder %v2253, 0
        %vm2406 = vcmp.lt.s32.totalorder %v2264, 0
        %vm2407 = vcmp.lt.s32.totalorder %v2275, 0
        %vm2408 = vcmp.lt.s32.totalorder %v2286, 0
        %vm2409 = vcmp.lt.s32.totalorder %v2297, 0
        %vm2410 = vcmp.lt.s32.totalorder %v2308, 0
        %vm2411 = vcmp.lt.s32.totalorder %v2319, 0
        %vm2412 = vcmp.lt.s32.totalorder %v2330, 0
        %vm2413 = vcmp.lt.s32.totalorder %v2341, 0
        %vm2414 = vmand %vm2378, %vm2342
        %vm2415 = vmand %vm2379, %vm2343
        %vm2416 = vmand %vm2380, %vm2344
        %vm2417 = vmand %vm2381, %vm2345
        %vm2418 = vmand %vm2382, %vm2346
        %vm2419 = vmand %vm2383, %vm2347
        %vm2420 = vmand %vm2384, %vm2348
        %vm2421 = vmand %vm2385, %vm2349
        %vm2422 = vmand %vm2386, %vm2350
        %vm2423 = vmand %vm2387, %vm2351
        %vm2424 = vmand %vm2388, %vm2352
        %vm2425 = vmand %vm2389, %vm2353
        %vm2426 = vmand %vm2390, %vm2354
        %vm2427 = vmand %vm2391, %vm2355
        %vm2428 = vmand %vm2392, %vm2356
        %vm2429 = vmand %vm2393, %vm2357
        %vm2430 = vmand %vm2394, %vm2358
        %vm2431 = vmand %vm2395, %vm2359
        %vm2432 = vmand %vm2396, %vm2360
        %vm2433 = vmand %vm2397, %vm2361
        %vm2434 = vmand %vm2398, %vm2362
        %vm2435 = vmand %vm2399, %vm2363
        %vm2436 = vmand %vm2400, %vm2364
        %vm2437 = vmand %vm2401, %vm2365
        %vm2438 = vmand %vm2402, %vm2366
        %vm2439 = vmand %vm2403, %vm2367
        %vm2440 = vmand %vm2404, %vm2368
        %vm2441 = vmand %vm2405, %vm2369
        %vm2442 = vmand %vm2406, %vm2370
        %vm2443 = vmand %vm2407, %vm2371
        %vm2444 = vmand %vm2408, %vm2372
        %vm2445 = vmand %vm2409, %vm2373
        %vm2446 = vmand %vm2410, %vm2374
        %vm2447 = vmand %vm2411, %vm2375
        %vm2448 = vmand %vm2412, %vm2376
        %vm2449 = vmand %vm2413, %vm2377
        %v2450 = vadd.s32 %v1956, 18
        %v2451 = vadd.s32 %v1967, 18
        %v2452 = vadd.s32 %v1978, 18
        %v2453 = vadd.s32 %v1989, 18
        %v2454 = vadd.s32 %v2000, 18
        %v2455 = vadd.s32 %v2011, 18
        %v2456 = vadd.s32 %v2022, 18
        %v2457 = vadd.s32 %v2033, 18
        %v2458 = vadd.s32 %v2044, 18
        %v2459 = vadd.s32 %v2055, 18
        %v2460 = vadd.s32 %v2066, 18
        %v2461 = vadd.s32 %v2077, 18
        %v2462 = vadd.s32 %v2088, 18
        %v2463 = vadd.s32 %v2099, 18
        %v2464 = vadd.s32 %v2110, 18
        %v2465 = vadd.s32 %v2121, 18
        %v2466 = vadd.s32 %v2132, 18
        %v2467 = vadd.s32 %v2143, 18
        %v2468 = vadd.s32 %v2154, 18
        %v2469 = vadd.s32 %v2165, 18
        %v2470 = vadd.s32 %v2176, 18
        %v2471 = vadd.s32 %v2187, 18
        %v2472 = vadd.s32 %v2198, 18
        %v2473 = vadd.s32 %v2209, 18
        %v2474 = vadd.s32 %v2220, 18
        %v2475 = vadd.s32 %v2231, 18
        %v2476 = vadd.s32 %v2242, 18
        %v2477 = vadd.s32 %v2253, 18
        %v2478 = vadd.s32 %v2264, 18
        %v2479 = vadd.s32 %v2275, 18
        %v2480 = vadd.s32 %v2286, 18
        %v2481 = vadd.s32 %v2297, 18
        %v2482 = vadd.s32 %v2308, 18
        %v2483 = vadd.s32 %v2319, 18
        %v2484 = vadd.s32 %v2330, 18
        %v2485 = vadd.s32 %v2341, 18
        %v2486 = vsel %vm2414, %v2450, %v1956
        %v2487 = vsel %vm2415, %v2451, %v1967
        %v2488 = vsel %vm2416, %v2452, %v1978
        %v2489 = vsel %vm2417, %v2453, %v1989
        %v2490 = vsel %vm2418, %v2454, %v2000
        %v2491 = vsel %vm2419, %v2455, %v2011
        %v2492 = vsel %vm2420, %v2456, %v2022
        %v2493 = vsel %vm2421, %v2457, %v2033
        %v2494 = vsel %vm2422, %v2458, %v2044
        %v2495 = vsel %vm2423, %v2459, %v2055
        %v2496 = vsel %vm2424, %v2460, %v2066
        %v2497 = vsel %vm2425, %v2461, %v2077
        %v2498 = vsel %vm2426, %v2462, %v2088
        %v2499 = vsel %vm2427, %v2463, %v2099
        %v2500 = vsel %vm2428, %v2464, %v2110
        %v2501 = vsel %vm2429, %v2465, %v2121
        %v2502 = vsel %vm2430, %v2466, %v2132
        %v2503 = vsel %vm2431, %v2467, %v2143
        %v2504 = vsel %vm2432, %v2468, %v2154
        %v2505 = vsel %vm2433, %v2469, %v2165
        %v2506 = vsel %vm2434, %v2470, %v2176
        %v2507 = vsel %vm2435, %v2471, %v2187
        %v2508 = vsel %vm2436, %v2472, %v2198
        %v2509 = vsel %vm2437, %v2473, %v2209
        %v2510 = vsel %vm2438, %v2474, %v2220
        %v2511 = vsel %vm2439, %v2475, %v2231
        %v2512 = vsel %vm2440, %v2476, %v2242
        %v2513 = vsel %vm2441, %v2477, %v2253
        %v2514 = vsel %vm2442, %v2478, %v2264
        %v2515 = vsel %vm2443, %v2479, %v2275
        %v2516 = vsel %vm2444, %v2480, %v2286
        %v2517 = vsel %vm2445, %v2481, %v2297
        %v2518 = vsel %vm2446, %v2482, %v2308
        %v2519 = vsel %vm2447, %v2483, %v2319
        %v2520 = vsel %vm2448, %v2484, %v2330
        %v2521 = vsel %vm2449, %v2485, %v2341
        %vm2522 = vcmp.lt.s32.totalorder %v2486, 16
        %vm2523 = vcmp.lt.s32.totalorder %v2487, 16
        %vm2524 = vcmp.lt.s32.totalorder %v2488, 16
        %vm2525 = vcmp.lt.s32.totalorder %v2489, 16
        %vm2526 = vcmp.lt.s32.totalorder %v2490, 16
        %vm2527 = vcmp.lt.s32.totalorder %v2491, 16
        %vm2528 = vcmp.lt.s32.totalorder %v2492, 16
        %vm2529 = vcmp.lt.s32.totalorder %v2493, 16
        %vm2530 = vcmp.lt.s32.totalorder %v2494, 16
        %vm2531 = vcmp.lt.s32.totalorder %v2495, 16
        %vm2532 = vcmp.lt.s32.totalorder %v2496, 16
        %vm2533 = vcmp.lt.s32.totalorder %v2497, 16
        %vm2534 = vcmp.lt.s32.totalorder %v2498, 16
        %vm2535 = vcmp.lt.s32.totalorder %v2499, 16
        %vm2536 = vcmp.lt.s32.totalorder %v2500, 16
        %vm2537 = vcmp.lt.s32.totalorder %v2501, 16
        %vm2538 = vcmp.lt.s32.totalorder %v2502, 16
        %vm2539 = vcmp.lt.s32.totalorder %v2503, 16
        %vm2540 = vcmp.lt.s32.totalorder %v2504, 16
        %vm2541 = vcmp.lt.s32.totalorder %v2505, 16
        %vm2542 = vcmp.lt.s32.totalorder %v2506, 16
        %vm2543 = vcmp.lt.s32.totalorder %v2507, 16
        %vm2544 = vcmp.lt.s32.totalorder %v2508, 16
        %vm2545 = vcmp.lt.s32.totalorder %v2509, 16
        %vm2546 = vcmp.lt.s32.totalorder %v2510, 16
        %vm2547 = vcmp.lt.s32.totalorder %v2511, 16
        %vm2548 = vcmp.lt.s32.totalorder %v2512, 16
        %vm2549 = vcmp.lt.s32.totalorder %v2513, 16
        %vm2550 = vcmp.lt.s32.totalorder %v2514, 16
        %vm2551 = vcmp.lt.s32.totalorder %v2515, 16
        %vm2552 = vcmp.lt.s32.totalorder %v2516, 16
        %vm2553 = vcmp.lt.s32.totalorder %v2517, 16
        %vm2554 = vcmp.lt.s32.totalorder %v2518, 16
        %vm2555 = vcmp.lt.s32.totalorder %v2519, 16
        %vm2556 = vcmp.lt.s32.totalorder %v2520, 16
        %vm2557 = vcmp.lt.s32.totalorder %v2521, 16
        %v2558 = vld [vmem:[%s2] sm:$0x1]
        %v2560 = vlaneseq
        %v2561 = vshrl.u32 %v2560, 7
        %v2562 = vsub.s32 0, %v2561
        %v2563 = vrot.slane %v2558, %v2562
        %v2565 = vld [vmem:[#allocation2] sm:$0xff]
        %v2566 = vld [vmem:[#allocation2 + $0x8] sm:$0xff]
        %v2567 = vld [vmem:[#allocation2 + $0x10] sm:$0xff]
        %v2568 = vld [vmem:[#allocation2 + $0x18] sm:$0xff]
        %v2569 = vld [vmem:[#allocation2 + $0x20] sm:$0xff]
        %v2570 = vld [vmem:[#allocation2 + $0x28] sm:$0xff]
        %v2571 = vld [vmem:[#allocation2 + $0x30] sm:$0xff]
        %v2572 = vld [vmem:[#allocation2 + $0x38] sm:$0xff]
        %v2573 = vld [vmem:[#allocation2 + $0x40] sm:$0xff]
        %v2574 = vld [vmem:[#allocation2 + $0x48] sm:$0xff]
        %v2575 = vld [vmem:[#allocation2 + $0x50] sm:$0xff]
        %v2576 = vld [vmem:[#allocation2 + $0x58] sm:$0xff]
        %v2577 = vld [vmem:[#allocation2 + $0x60] sm:$0xff]
        %v2578 = vld [vmem:[#allocation2 + $0x68] sm:$0xff]
        %v2579 = vld [vmem:[#allocation2 + $0x70] sm:$0xff]
        %v2580 = vld [vmem:[#allocation2 + $0x78] sm:$0xff]
        %v2581 = vld [vmem:[#allocation2 + $0x80] sm:$0xff]
        %v2582 = vld [vmem:[#allocation2 + $0x88] sm:$0xff]
        %v2583 = vld [vmem:[#allocation7] sm:$0xf]
        %v2584 = vld [vmem:[#allocation7 + $0x4] sm:$0xf]
        %v2585 = vld [vmem:[#allocation7 + $0x8] sm:$0xf]
        %v2586 = vld [vmem:[#allocation7 + $0xc] sm:$0xf]
        %v2587 = vld [vmem:[#allocation7 + $0x10] sm:$0xf]
        %v2588 = vld [vmem:[#allocation7 + $0x14] sm:$0xf]
        %v2589 = vld [vmem:[#allocation7 + $0x18] sm:$0xf]
        %v2590 = vld [vmem:[#allocation7 + $0x1c] sm:$0xf]
        %v2591 = vld [vmem:[#allocation7 + $0x20] sm:$0xf]
        %v2592 = vld [vmem:[#allocation7 + $0x24] sm:$0xf]
        %v2593 = vld [vmem:[#allocation7 + $0x28] sm:$0xf]
        %v2594 = vld [vmem:[#allocation7 + $0x2c] sm:$0xf]
        %v2595 = vld [vmem:[#allocation7 + $0x30] sm:$0xf]
        %v2596 = vld [vmem:[#allocation7 + $0x34] sm:$0xf]
        %v2597 = vld [vmem:[#allocation7 + $0x38] sm:$0xf]
        %v2598 = vld [vmem:[#allocation7 + $0x3c] sm:$0xf]
        %v2615 = vunpack.c.l.b16 %v2583
        %v2616 = vunpack.c.l.b16 %v2584
        %v2617 = vunpack.c.l.b16 %v2585
        %v2618 = vunpack.c.l.b16 %v2586
        %v2619 = vunpack.c.l.b16 %v2587
        %v2620 = vunpack.c.l.b16 %v2588
        %v2621 = vunpack.c.l.b16 %v2589
        %v2622 = vunpack.c.l.b16 %v2590
        %v2623 = vunpack.c.l.b16 %v2591
        %v2624 = vunpack.c.l.b16 %v2592
        %v2625 = vunpack.c.l.b16 %v2593
        %v2626 = vunpack.c.l.b16 %v2594
        %v2627 = vunpack.c.l.b16 %v2595
        %v2628 = vunpack.c.l.b16 %v2596
        %v2629 = vunpack.c.l.b16 %v2597
        %v2630 = vunpack.c.l.b16 %v2598
        %v2631 = vpack.c.b16 %v2616, %v2615
        %v2632 = vpack.c.b16 %v2618, %v2617
        %v2633 = vpack.c.b16 %v2620, %v2619
        %v2634 = vpack.c.b16 %v2622, %v2621
        %v2635 = vpack.c.b16 %v2624, %v2623
        %v2636 = vpack.c.b16 %v2626, %v2625
        %v2637 = vpack.c.b16 %v2628, %v2627
        %v2638 = vpack.c.b16 %v2630, %v2629
        %2647 = vmatprep.subr.bf16.mxu0 0
        %2648 = vmatpush1.bf16.msra.mxu0 %v2631
        %2649 = vmatprep.subr.bf16.mxu0 0
        %2650 = vmatpush1.bf16.msra.mxu0 %v2632
        %2651 = vmatprep.subr.bf16.mxu0 0
        %2652 = vmatpush1.bf16.msra.mxu0 %v2633
        %2653 = vmatprep.subr.bf16.mxu0 0
        %2654 = vmatpush1.bf16.msra.mxu0 %v2634
        %2655 = vmatprep.subr.bf16.mxu0 0
        %2656 = vmatpush1.bf16.msra.mxu0 %v2635
        %2657 = vmatprep.subr.bf16.mxu0 0
        %2658 = vmatpush1.bf16.msra.mxu0 %v2636
        %2659 = vmatprep.subr.bf16.mxu0 0
        %2660 = vmatpush1.bf16.msra.mxu0 %v2637
        %2661 = vmatprep.subr.bf16.mxu0 0
        %2662 = vmatpush1.bf16.msra.mxu0 %v2638
        %2663 = vmatprep.subr.bf16.mxu0 0
        %2664 = vmatpush1.bf16.msra.mxu0 0
        %2665 = vmatprep.subr.bf16.mxu0 0
        %2666 = vmatpush1.bf16.msra.mxu0 0
        %2667 = vmatprep.subr.bf16.mxu0 0
        %2668 = vmatpush1.bf16.msra.mxu0 0
        %2669 = vmatprep.subr.bf16.mxu0 0
        %2670 = vmatpush1.bf16.msra.mxu0 0
        %2671 = vmatprep.subr.bf16.mxu0 0
        %2672 = vmatpush1.bf16.msra.mxu0 0
        %2673 = vmatprep.subr.bf16.mxu0 0
        %2674 = vmatpush1.bf16.msra.mxu0 0
        %2675 = vmatprep.subr.bf16.mxu0 0
        %2676 = vmatpush1.bf16.msra.mxu0 0
        %2677 = vmatprep.subr.bf16.mxu0 0
        %2678 = vmatpush1.bf16.msra.mxu0 0
        %2679 = vmatprep.mubr.bf16.mxu0 0
        %2680 = vmatmul.mubr.bf16.gmra.mrb[0].mxu0 %v2565
        %v2681 = vpop.f32.mrb[0].mxu0
        %v2682 = vadd.f32 0.0, %v2681
        %v2683 = vpop.f32.mrb[0].mxu0
        %v2684 = vpop.f32.mrb[0].mxu0
        %v2685 = vadd.f32 0.0, %v2684
        %v2686 = vpop.f32.mrb[0].mxu0
        %2687 = vmatprep.mubr.bf16.mxu0 0
        %2688 = vmatmul.mubr.bf16.gmra.mrb[0].mxu0 %v2566
        %v2689 = vpop.f32.mrb[0].mxu0
        %v2690 = vadd.f32 0.0, %v2689
        %v2691 = vpop.f32.mrb[0].mxu0
        %v2692 = vpop.f32.mrb[0].mxu0
        %v2693 = vadd.f32 0.0, %v2692
        %v2694 = vpop.f32.mrb[0].mxu0
        %2695 = vmatprep.mubr.bf16.mxu0 0
        %2696 = vmatmul.mubr.bf16.gmra.mrb[0].mxu0 %v2567
        %v2697 = vpop.f32.mrb[0].mxu0
        %v2698 = vadd.f32 0.0, %v2697
        %v2699 = vpop.f32.mrb[0].mxu0
        %v2700 = vpop.f32.mrb[0].mxu0
        %v2701 = vadd.f32 0.0, %v2700
        %v2702 = vpop.f32.mrb[0].mxu0
        %2703 = vmatprep.mubr.bf16.mxu0 0
        %2704 = vmatmul.mubr.bf16.gmra.mrb[0].mxu0 %v2568
        %v2705 = vpop.f32.mrb[0].mxu0
        %v2706 = vadd.f32 0.0, %v2705
        %v2707 = vpop.f32.mrb[0].mxu0
        %v2708 = vpop.f32.mrb[0].mxu0
        %v2709 = vadd.f32 0.0, %v2708
        %v2710 = vpop.f32.mrb[0].mxu0
        %2711 = vmatprep.mubr.bf16.mxu0 0
        %2712 = vmatmul.mubr.bf16.gmra.mrb[0].mxu0 %v2569
        %v2713 = vpop.f32.mrb[0].mxu0
        %v2714 = vadd.f32 0.0, %v2713
        %v2715 = vpop.f32.mrb[0].mxu0
        %v2716 = vpop.f32.mrb[0].mxu0
        %v2717 = vadd.f32 0.0, %v2716
        %v2718 = vpop.f32.mrb[0].mxu0
        %2719 = vmatprep.mubr.bf16.mxu0 0
        %2720 = vmatmul.mubr.bf16.gmra.mrb[0].mxu0 %v2570
        %v2721 = vpop.f32.mrb[0].mxu0
        %v2722 = vadd.f32 0.0, %v2721
        %v2723 = vpop.f32.mrb[0].mxu0
        %v2724 = vpop.f32.mrb[0].mxu0
        %v2725 = vadd.f32 0.0, %v2724
        %v2726 = vpop.f32.mrb[0].mxu0
        %2727 = vmatprep.mubr.bf16.mxu0 0
        %2728 = vmatmul.mubr.bf16.gmra.mrb[0].mxu0 %v2571
        %v2729 = vpop.f32.mrb[0].mxu0
        %v2730 = vadd.f32 0.0, %v2729
        %v2731 = vpop.f32.mrb[0].mxu0
        %v2732 = vpop.f32.mrb[0].mxu0
        %v2733 = vadd.f32 0.0, %v2732
        %v2734 = vpop.f32.mrb[0].mxu0
        %2735 = vmatprep.mubr.bf16.mxu0 0
        %2736 = vmatmul.mubr.bf16.gmra.mrb[0].mxu0 %v2572
        %v2737 = vpop.f32.mrb[0].mxu0
        %v2738 = vadd.f32 0.0, %v2737
        %v2739 = vpop.f32.mrb[0].mxu0
        %v2740 = vpop.f32.mrb[0].mxu0
        %v2741 = vadd.f32 0.0, %v2740
        %v2742 = vpop.f32.mrb[0].mxu0
        %2743 = vmatprep.mubr.bf16.mxu0 0
        %2744 = vmatmul.mubr.bf16.gmra.mrb[0].mxu0 %v2573
        %v2745 = vpop.f32.mrb[0].mxu0
        %v2746 = vadd.f32 0.0, %v2745
        %v2747 = vpop.f32.mrb[0].mxu0
        %v2748 = vpop.f32.mrb[0].mxu0
        %v2749 = vadd.f32 0.0, %v2748
        %v2750 = vpop.f32.mrb[0].mxu0
        %2751 = vmatprep.mubr.bf16.mxu0 0
        %2752 = vmatmul.mubr.bf16.gmra.mrb[0].mxu0 %v2574
        %v2753 = vpop.f32.mrb[0].mxu0
        %v2754 = vadd.f32 0.0, %v2753
        %v2755 = vpop.f32.mrb[0].mxu0
        %v2756 = vpop.f32.mrb[0].mxu0
        %v2757 = vadd.f32 0.0, %v2756
        %v2758 = vpop.f32.mrb[0].mxu0
        %2759 = vmatprep.mubr.bf16.mxu0 0
        %2760 = vmatmul.mubr.bf16.gmra.mrb[0].mxu0 %v2575
        %v2761 = vpop.f32.mrb[0].mxu0
        %v2762 = vadd.f32 0.0, %v2761
        %v2763 = vpop.f32.mrb[0].mxu0
        %v2764 = vpop.f32.mrb[0].mxu0
        %v2765 = vadd.f32 0.0, %v2764
        %v2766 = vpop.f32.mrb[0].mxu0
        %2767 = vmatprep.mubr.bf16.mxu0 0
        %2768 = vmatmul.mubr.bf16.gmra.mrb[0].mxu0 %v2576
        %v2769 = vpop.f32.mrb[0].mxu0
        %v2770 = vadd.f32 0.0, %v2769
        %v2771 = vpop.f32.mrb[0].mxu0
        %v2772 = vpop.f32.mrb[0].mxu0
        %v2773 = vadd.f32 0.0, %v2772
        %v2774 = vpop.f32.mrb[0].mxu0
        %2775 = vmatprep.mubr.bf16.mxu0 0
        %2776 = vmatmul.mubr.bf16.gmra.mrb[0].mxu0 %v2577
        %v2777 = vpop.f32.mrb[0].mxu0
        %v2778 = vadd.f32 0.0, %v2777
        %v2779 = vpop.f32.mrb[0].mxu0
        %v2780 = vpop.f32.mrb[0].mxu0
        %v2781 = vadd.f32 0.0, %v2780
        %v2782 = vpop.f32.mrb[0].mxu0
        %2783 = vmatprep.mubr.bf16.mxu0 0
        %2784 = vmatmul.mubr.bf16.gmra.mrb[0].mxu0 %v2578
        %v2785 = vpop.f32.mrb[0].mxu0
        %v2786 = vadd.f32 0.0, %v2785
        %v2787 = vpop.f32.mrb[0].mxu0
        %v2788 = vpop.f32.mrb[0].mxu0
        %v2789 = vadd.f32 0.0, %v2788
        %v2790 = vpop.f32.mrb[0].mxu0
        %2791 = vmatprep.mubr.bf16.mxu0 0
        %2792 = vmatmul.mubr.bf16.gmra.mrb[0].mxu0 %v2579
        %v2793 = vpop.f32.mrb[0].mxu0
        %v2794 = vadd.f32 0.0, %v2793
        %v2795 = vpop.f32.mrb[0].mxu0
        %v2796 = vpop.f32.mrb[0].mxu0
        %v2797 = vadd.f32 0.0, %v2796
        %v2798 = vpop.f32.mrb[0].mxu0
        %2799 = vmatprep.mubr.bf16.mxu0 0
        %2800 = vmatmul.mubr.bf16.gmra.mrb[0].mxu0 %v2580
        %v2801 = vpop.f32.mrb[0].mxu0
        %v2802 = vadd.f32 0.0, %v2801
        %v2803 = vpop.f32.mrb[0].mxu0
        %v2804 = vpop.f32.mrb[0].mxu0
        %v2805 = vadd.f32 0.0, %v2804
        %v2806 = vpop.f32.mrb[0].mxu0
        %2807 = vmatprep.mubr.bf16.mxu0 0
        %2808 = vmatmul.mubr.bf16.gmra.mrb[0].mxu0 %v2581
        %v2809 = vpop.f32.mrb[0].mxu0
        %v2810 = vadd.f32 0.0, %v2809
        %v2811 = vpop.f32.mrb[0].mxu0
        %v2812 = vpop.f32.mrb[0].mxu0
        %v2813 = vadd.f32 0.0, %v2812
        %v2814 = vpop.f32.mrb[0].mxu0
        %2815 = vmatprep.mubr.bf16.mxu0 0
        %2816 = vmatmul.mubr.bf16.gmra.mrb[0].mxu0 %v2582
        %v2817 = vpop.f32.mrb[0].mxu0
        %v2818 = vadd.f32 0.0, %v2817
        %v2819 = vpop.f32.mrb[0].mxu0
        %v2820 = vpop.f32.mrb[0].mxu0
        %v2821 = vadd.f32 0.0, %v2820
        %v2822 = vpop.f32.mrb[0].mxu0
        %2823 = vdwg.mxu0
        %v2824 = vadd.f32 %v2563, %v2682
        %v2825 = vadd.f32 %v2563, %v2685
        %v2826 = vadd.f32 %v2563, %v2690
        %v2827 = vadd.f32 %v2563, %v2693
        %v2828 = vadd.f32 %v2563, %v2698
        %v2829 = vadd.f32 %v2563, %v2701
        %v2830 = vadd.f32 %v2563, %v2706
        %v2831 = vadd.f32 %v2563, %v2709
        %v2832 = vadd.f32 %v2563, %v2714
        %v2833 = vadd.f32 %v2563, %v2717
        %v2834 = vadd.f32 %v2563, %v2722
        %v2835 = vadd.f32 %v2563, %v2725
        %v2836 = vadd.f32 %v2563, %v2730
        %v2837 = vadd.f32 %v2563, %v2733
        %v2838 = vadd.f32 %v2563, %v2738
        %v2839 = vadd.f32 %v2563, %v2741
        %v2840 = vadd.f32 %v2563, %v2746
        %v2841 = vadd.f32 %v2563, %v2749
        %v2842 = vadd.f32 %v2563, %v2754
        %v2843 = vadd.f32 %v2563, %v2757
        %v2844 = vadd.f32 %v2563, %v2762
        %v2845 = vadd.f32 %v2563, %v2765
        %v2846 = vadd.f32 %v2563, %v2770
        %v2847 = vadd.f32 %v2563, %v2773
        %v2848 = vadd.f32 %v2563, %v2778
        %v2849 = vadd.f32 %v2563, %v2781
        %v2850 = vadd.f32 %v2563, %v2786
        %v2851 = vadd.f32 %v2563, %v2789
        %v2852 = vadd.f32 %v2563, %v2794
        %v2853 = vadd.f32 %v2563, %v2797
        %v2854 = vadd.f32 %v2563, %v2802
        %v2855 = vadd.f32 %v2563, %v2805
        %v2856 = vadd.f32 %v2563, %v2810
        %v2857 = vadd.f32 %v2563, %v2813
        %v2858 = vadd.f32 %v2563, %v2818
        %v2859 = vadd.f32 %v2563, %v2821
        %v2860 = vld [vmem:[#allocation2] sm:$0xff]
        %v2861 = vld [vmem:[#allocation2 + $0x8] sm:$0xff]
        %v2862 = vld [vmem:[#allocation2 + $0x10] sm:$0xff]
        %v2863 = vld [vmem:[#allocation2 + $0x18] sm:$0xff]
        %v2864 = vld [vmem:[#allocation2 + $0x20] sm:$0xff]
        %v2865 = vld [vmem:[#allocation2 + $0x28] sm:$0xff]
        %v2866 = vld [vmem:[#allocation2 + $0x30] sm:$0xff]
        %v2867 = vld [vmem:[#allocation2 + $0x38] sm:$0xff]
        %v2868 = vld [vmem:[#allocation2 + $0x40] sm:$0xff]
        %v2869 = vld [vmem:[#allocation2 + $0x48] sm:$0xff]
        %v2870 = vld [vmem:[#allocation2 + $0x50] sm:$0xff]
        %v2871 = vld [vmem:[#allocation2 + $0x58] sm:$0xff]
        %v2872 = vld [vmem:[#allocation2 + $0x60] sm:$0xff]
        %v2873 = vld [vmem:[#allocation2 + $0x68] sm:$0xff]
        %v2874 = vld [vmem:[#allocation2 + $0x70] sm:$0xff]
        %v2875 = vld [vmem:[#allocation2 + $0x78] sm:$0xff]
        %v2876 = vld [vmem:[#allocation2 + $0x80] sm:$0xff]
        %v2877 = vld [vmem:[#allocation2 + $0x88] sm:$0xff]
        %v2878 = vld [vmem:[#allocation2 + $0x90] sm:$0x1]
        %s2879 = scalar_lea.vmem [#allocation7], 64
        %v2880 = vld [vmem:[%s2879] sm:$0xf]
        %v2881 = vld [vmem:[%s2879 + $0x4] sm:$0xf]
        %v2882 = vld [vmem:[%s2879 + $0x8] sm:$0xf]
        %v2883 = vld [vmem:[%s2879 + $0xc] sm:$0xf]
        %v2884 = vld [vmem:[%s2879 + $0x10] sm:$0xf]
        %v2885 = vld [vmem:[%s2879 + $0x14] sm:$0xf]
        %v2886 = vld [vmem:[%s2879 + $0x18] sm:$0xf]
        %v2887 = vld [vmem:[%s2879 + $0x1c] sm:$0xf]
        %v2888 = vld [vmem:[%s2879 + $0x20] sm:$0xf]
        %v2889 = vld [vmem:[%s2879 + $0x24] sm:$0xf]
        %v2890 = vld [vmem:[%s2879 + $0x28] sm:$0xf]
        %v2891 = vld [vmem:[%s2879 + $0x2c] sm:$0xf]
        %v2892 = vld [vmem:[%s2879 + $0x30] sm:$0xf]
        %v2893 = vld [vmem:[%s2879 + $0x34] sm:$0xf]
        %v2894 = vld [vmem:[%s2879 + $0x38] sm:$0xf]
        %v2895 = vld [vmem:[%s2879 + $0x3c] sm:$0xf]
        %vm2896 = vsmask.f32 7424
        %v2898 = vshrl.u32 %v2860, 16
        %v2900 = vshll.u32 %v2860, 16
        %v2902 = vrot.slane %v2900, 1
        %v2903 = vor.u32 %v2898, %v2902
        %v2905 = vshll.u32 %v2861, 16
        %v2907 = vrot.slane %v2905, 1
        %v2908 = vsel %vm2896, %v2903, %v2907
        %v2909 = vshrl.u32 %v2861, 16
        %v2911 = vor.u32 %v2909, %v2907
        %v2913 = vshll.u32 %v2862, 16
        %v2915 = vrot.slane %v2913, 1
        %v2916 = vsel %vm2896, %v2911, %v2915
        %v2917 = vshrl.u32 %v2862, 16
        %v2919 = vor.u32 %v2917, %v2915
        %v2921 = vshll.u32 %v2863, 16
        %v2923 = vrot.slane %v2921, 1
        %v2924 = vsel %vm2896, %v2919, %v2923
        %v2925 = vshrl.u32 %v2863, 16
        %v2927 = vor.u32 %v2925, %v2923
        %v2929 = vshll.u32 %v2864, 16
        %v2931 = vrot.slane %v2929, 1
        %v2932 = vsel %vm2896, %v2927, %v2931
        %v2933 = vshrl.u32 %v2864, 16
        %v2935 = vor.u32 %v2933, %v2931
        %v2937 = vshll.u32 %v2865, 16
        %v2939 = vrot.slane %v2937, 1
        %v2940 = vsel %vm2896, %v2935, %v2939
        %v2941 = vshrl.u32 %v2865, 16
        %v2943 = vor.u32 %v2941, %v2939
        %v2945 = vshll.u32 %v2866, 16
        %v2947 = vrot.slane %v2945, 1
        %v2948 = vsel %vm2896, %v2943, %v2947
        %v2949 = vshrl.u32 %v2866, 16
        %v2951 = vor.u32 %v2949, %v2947
        %v2953 = vshll.u32 %v2867, 16
        %v2955 = vrot.slane %v2953, 1
        %v2956 = vsel %vm2896, %v2951, %v2955
        %v2957 = vshrl.u32 %v2867, 16
        %v2959 = vor.u32 %v2957, %v2955
        %v2961 = vshll.u32 %v2868, 16
        %v2963 = vrot.slane %v2961, 1
        %v2964 = vsel %vm2896, %v2959, %v2963
        %v2965 = vshrl.u32 %v2868, 16
        %v2967 = vor.u32 %v2965, %v2963
        %v2969 = vshll.u32 %v2869, 16
        %v2971 = vrot.slane %v2969, 1
        %v2972 = vsel %vm2896, %v2967, %v2971
        %v2973 = vshrl.u32 %v2869, 16
        %v2975 = vor.u32 %v2973, %v2971
        %v2977 = vshll.u32 %v2870, 16
        %v2979 = vrot.slane %v2977, 1
        %v2980 = vsel %vm2896, %v2975, %v2979
        %v2981 = vshrl.u32 %v2870, 16
        %v2983 = vor.u32 %v2981, %v2979
        %v2985 = vshll.u32 %v2871, 16
        %v2987 = vrot.slane %v2985, 1
        %v2988 = vsel %vm2896, %v2983, %v2987
        %v2989 = vshrl.u32 %v2871, 16
        %v2991 = vor.u32 %v2989, %v2987
        %v2993 = vshll.u32 %v2872, 16
        %v2995 = vrot.slane %v2993, 1
        %v2996 = vsel %vm2896, %v2991, %v2995
        %v2997 = vshrl.u32 %v2872, 16
        %v2999 = vor.u32 %v2997, %v2995
        %v3001 = vshll.u32 %v2873, 16
        %v3003 = vrot.slane %v3001, 1
        %v3004 = vsel %vm2896, %v2999, %v3003
        %v3005 = vshrl.u32 %v2873, 16
        %v3007 = vor.u32 %v3005, %v3003
        %v3009 = vshll.u32 %v2874, 16
        %v3011 = vrot.slane %v3009, 1
        %v3012 = vsel %vm2896, %v3007, %v3011
        %v3013 = vshrl.u32 %v2874, 16
        %v3015 = vor.u32 %v3013, %v3011
        %v3017 = vshll.u32 %v2875, 16
        %v3019 = vrot.slane %v3017, 1
        %v3020 = vsel %vm2896, %v3015, %v3019
        %v3021 = vshrl.u32 %v2875, 16
        %v3023 = vor.u32 %v3021, %v3019
        %v3025 = vshll.u32 %v2876, 16
        %v3027 = vrot.slane %v3025, 1
        %v3028 = vsel %vm2896, %v3023, %v3027
        %v3029 = vshrl.u32 %v2876, 16
        %v3031 = vor.u32 %v3029, %v3027
        %v3033 = vshll.u32 %v2877, 16
        %v3035 = vrot.slane %v3033, 1
        %v3036 = vsel %vm2896, %v3031, %v3035
        %v3037 = vshrl.u32 %v2877, 16
        %v3039 = vor.u32 %v3037, %v3035
        %v3041 = vshll.u32 %v2878, 16
        %v3043 = vrot.slane %v3041, 1
        %v3044 = vsel %vm2896, %v3039, %v3043
        %v3079 = vunpack.c.l.b16 %v2880
        %v3080 = vunpack.c.l.b16 %v2881
        %v3081 = vunpack.c.l.b16 %v2882
        %v3082 = vunpack.c.l.b16 %v2883
        %v3083 = vunpack.c.l.b16 %v2884
        %v3084 = vunpack.c.l.b16 %v2885
        %v3085 = vunpack.c.l.b16 %v2886
        %v3086 = vunpack.c.l.b16 %v2887
        %v3087 = vunpack.c.l.b16 %v2888
        %v3088 = vunpack.c.l.b16 %v2889
        %v3089 = vunpack.c.l.b16 %v2890
        %v3090 = vunpack.c.l.b16 %v2891
        %v3091 = vunpack.c.l.b16 %v2892
        %v3092 = vunpack.c.l.b16 %v2893
        %v3093 = vunpack.c.l.b16 %v2894
        %v3094 = vunpack.c.l.b16 %v2895
        %v3095 = vpack.c.b16 %v3080, %v3079
        %v3096 = vpack.c.b16 %v3082, %v3081
        %v3097 = vpack.c.b16 %v3084, %v3083
        %v3098 = vpack.c.b16 %v3086, %v3085
        %v3099 = vpack.c.b16 %v3088, %v3087
        %v3100 = vpack.c.b16 %v3090, %v3089
        %v3101 = vpack.c.b16 %v3092, %v3091
        %v3102 = vpack.c.b16 %v3094, %v3093
        %3111 = vmatprep.subr.bf16.mxu0 0
        %3112 = vmatpush1.bf16.msra.mxu0 %v3095
        %3113 = vmatprep.subr.bf16.mxu0 0
        %3114 = vmatpush1.bf16.msra.mxu0 %v3096
        %3115 = vmatprep.subr.bf16.mxu0 0
        %3116 = vmatpush1.bf16.msra.mxu0 %v3097
        %3117 = vmatprep.subr.bf16.mxu0 0
        %3118 = vmatpush1.bf16.msra.mxu0 %v3098
        %3119 = vmatprep.subr.bf16.mxu0 0
        %3120 = vmatpush1.bf16.msra.mxu0 %v3099
        %3121 = vmatprep.subr.bf16.mxu0 0
        %3122 = vmatpush1.bf16.msra.mxu0 %v3100
        %3123 = vmatprep.subr.bf16.mxu0 0
        %3124 = vmatpush1.bf16.msra.mxu0 %v3101
        %3125 = vmatprep.subr.bf16.mxu0 0
        %3126 = vmatpush1.bf16.msra.mxu0 %v3102
        %3127 = vmatprep.subr.bf16.mxu0 0
        %3128 = vmatpush1.bf16.msra.mxu0 0
        %3129 = vmatprep.subr.bf16.mxu0 0
        %3130 = vmatpush1.bf16.msra.mxu0 0
        %3131 = vmatprep.subr.bf16.mxu0 0
        %3132 = vmatpush1.bf16.msra.mxu0 0
        %3133 = vmatprep.subr.bf16.mxu0 0
        %3134 = vmatpush1.bf16.msra.mxu0 0
        %3135 = vmatprep.subr.bf16.mxu0 0
        %3136 = vmatpush1.bf16.msra.mxu0 0
        %3137 = vmatprep.subr.bf16.mxu0 0
        %3138 = vmatpush1.bf16.msra.mxu0 0
        %3139 = vmatprep.subr.bf16.mxu0 0
        %3140 = vmatpush1.bf16.msra.mxu0 0
        %3141 = vmatprep.subr.bf16.mxu0 0
        %3142 = vmatpush1.bf16.msra.mxu0 0
        %3143 = vmatprep.mubr.bf16.mxu0 0
        %3144 = vmatmul.mubr.bf16.gmra.mrb[0].mxu0 %v2908
        %v3145 = vpop.f32.mrb[0].mxu0
        %v3146 = vadd.f32 0.0, %v3145
        %v3147 = vpop.f32.mrb[0].mxu0
        %v3148 = vpop.f32.mrb[0].mxu0
        %v3149 = vadd.f32 0.0, %v3148
        %v3150 = vpop.f32.mrb[0].mxu0
        %3151 = vmatprep.mubr.bf16.mxu0 0
        %3152 = vmatmul.mubr.bf16.gmra.mrb[0].mxu0 %v2916
        %v3153 = vpop.f32.mrb[0].mxu0
        %v3154 = vadd.f32 0.0, %v3153
        %v3155 = vpop.f32.mrb[0].mxu0
        %v3156 = vpop.f32.mrb[0].mxu0
        %v3157 = vadd.f32 0.0, %v3156
        %v3158 = vpop.f32.mrb[0].mxu0
        %3159 = vmatprep.mubr.bf16.mxu0 0
        %3160 = vmatmul.mubr.bf16.gmra.mrb[0].mxu0 %v2924
        %v3161 = vpop.f32.mrb[0].mxu0
        %v3162 = vadd.f32 0.0, %v3161
        %v3163 = vpop.f32.mrb[0].mxu0
        %v3164 = vpop.f32.mrb[0].mxu0
        %v3165 = vadd.f32 0.0, %v3164
        %v3166 = vpop.f32.mrb[0].mxu0
        %3167 = vmatprep.mubr.bf16.mxu0 0
        %3168 = vmatmul.mubr.bf16.gmra.mrb[0].mxu0 %v2932
        %v3169 = vpop.f32.mrb[0].mxu0
        %v3170 = vadd.f32 0.0, %v3169
        %v3171 = vpop.f32.mrb[0].mxu0
        %v3172 = vpop.f32.mrb[0].mxu0
        %v3173 = vadd.f32 0.0, %v3172
        %v3174 = vpop.f32.mrb[0].mxu0
        %3175 = vmatprep.mubr.bf16.mxu0 0
        %3176 = vmatmul.mubr.bf16.gmra.mrb[0].mxu0 %v2940
        %v3177 = vpop.f32.mrb[0].mxu0
        %v3178 = vadd.f32 0.0, %v3177
        %v3179 = vpop.f32.mrb[0].mxu0
        %v3180 = vpop.f32.mrb[0].mxu0
        %v3181 = vadd.f32 0.0, %v3180
        %v3182 = vpop.f32.mrb[0].mxu0
        %3183 = vmatprep.mubr.bf16.mxu0 0
        %3184 = vmatmul.mubr.bf16.gmra.mrb[0].mxu0 %v2948
        %v3185 = vpop.f32.mrb[0].mxu0
        %v3186 = vadd.f32 0.0, %v3185
        %v3187 = vpop.f32.mrb[0].mxu0
        %v3188 = vpop.f32.mrb[0].mxu0
        %v3189 = vadd.f32 0.0, %v3188
        %v3190 = vpop.f32.mrb[0].mxu0
        %3191 = vmatprep.mubr.bf16.mxu0 0
        %3192 = vmatmul.mubr.bf16.gmra.mrb[0].mxu0 %v2956
        %v3193 = vpop.f32.mrb[0].mxu0
        %v3194 = vadd.f32 0.0, %v3193
        %v3195 = vpop.f32.mrb[0].mxu0
        %v3196 = vpop.f32.mrb[0].mxu0
        %v3197 = vadd.f32 0.0, %v3196
        %v3198 = vpop.f32.mrb[0].mxu0
        %3199 = vmatprep.mubr.bf16.mxu0 0
        %3200 = vmatmul.mubr.bf16.gmra.mrb[0].mxu0 %v2964
        %v3201 = vpop.f32.mrb[0].mxu0
        %v3202 = vadd.f32 0.0, %v3201
        %v3203 = vpop.f32.mrb[0].mxu0
        %v3204 = vpop.f32.mrb[0].mxu0
        %v3205 = vadd.f32 0.0, %v3204
        %v3206 = vpop.f32.mrb[0].mxu0
        %3207 = vmatprep.mubr.bf16.mxu0 0
        %3208 = vmatmul.mubr.bf16.gmra.mrb[0].mxu0 %v2972
        %v3209 = vpop.f32.mrb[0].mxu0
        %v3210 = vadd.f32 0.0, %v3209
        %v3211 = vpop.f32.mrb[0].mxu0
        %v3212 = vpop.f32.mrb[0].mxu0
        %v3213 = vadd.f32 0.0, %v3212
        %v3214 = vpop.f32.mrb[0].mxu0
        %3215 = vmatprep.mubr.bf16.mxu0 0
        %3216 = vmatmul.mubr.bf16.gmra.mrb[0].mxu0 %v2980
        %v3217 = vpop.f32.mrb[0].mxu0
        %v3218 = vadd.f32 0.0, %v3217
        %v3219 = vpop.f32.mrb[0].mxu0
        %v3220 = vpop.f32.mrb[0].mxu0
        %v3221 = vadd.f32 0.0, %v3220
        %v3222 = vpop.f32.mrb[0].mxu0
        %3223 = vmatprep.mubr.bf16.mxu0 0
        %3224 = vmatmul.mubr.bf16.gmra.mrb[0].mxu0 %v2988
        %v3225 = vpop.f32.mrb[0].mxu0
        %v3226 = vadd.f32 0.0, %v3225
        %v3227 = vpop.f32.mrb[0].mxu0
        %v3228 = vpop.f32.mrb[0].mxu0
        %v3229 = vadd.f32 0.0, %v3228
        %v3230 = vpop.f32.mrb[0].mxu0
        %3231 = vmatprep.mubr.bf16.mxu0 0
        %3232 = vmatmul.mubr.bf16.gmra.mrb[0].mxu0 %v2996
        %v3233 = vpop.f32.mrb[0].mxu0
        %v3234 = vadd.f32 0.0, %v3233
        %v3235 = vpop.f32.mrb[0].mxu0
        %v3236 = vpop.f32.mrb[0].mxu0
        %v3237 = vadd.f32 0.0, %v3236
        %v3238 = vpop.f32.mrb[0].mxu0
        %3239 = vmatprep.mubr.bf16.mxu0 0
        %3240 = vmatmul.mubr.bf16.gmra.mrb[0].mxu0 %v3004
        %v3241 = vpop.f32.mrb[0].mxu0
        %v3242 = vadd.f32 0.0, %v3241
        %v3243 = vpop.f32.mrb[0].mxu0
        %v3244 = vpop.f32.mrb[0].mxu0
        %v3245 = vadd.f32 0.0, %v3244
        %v3246 = vpop.f32.mrb[0].mxu0
        %3247 = vmatprep.mubr.bf16.mxu0 0
        %3248 = vmatmul.mubr.bf16.gmra.mrb[0].mxu0 %v3012
        %v3249 = vpop.f32.mrb[0].mxu0
        %v3250 = vadd.f32 0.0, %v3249
        %v3251 = vpop.f32.mrb[0].mxu0
        %v3252 = vpop.f32.mrb[0].mxu0
        %v3253 = vadd.f32 0.0, %v3252
        %v3254 = vpop.f32.mrb[0].mxu0
        %3255 = vmatprep.mubr.bf16.mxu0 0
        %3256 = vmatmul.mubr.bf16.gmra.mrb[0].mxu0 %v3020
        %v3257 = vpop.f32.mrb[0].mxu0
        %v3258 = vadd.f32 0.0, %v3257
        %v3259 = vpop.f32.mrb[0].mxu0
        %v3260 = vpop.f32.mrb[0].mxu0
        %v3261 = vadd.f32 0.0, %v3260
        %v3262 = vpop.f32.mrb[0].mxu0
        %3263 = vmatprep.mubr.bf16.mxu0 0
        %3264 = vmatmul.mubr.bf16.gmra.mrb[0].mxu0 %v3028
        %v3265 = vpop.f32.mrb[0].mxu0
        %v3266 = vadd.f32 0.0, %v3265
        %v3267 = vpop.f32.mrb[0].mxu0
        %v3268 = vpop.f32.mrb[0].mxu0
        %v3269 = vadd.f32 0.0, %v3268
        %v3270 = vpop.f32.mrb[0].mxu0
        %3271 = vmatprep.mubr.bf16.mxu0 0
        %3272 = vmatmul.mubr.bf16.gmra.mrb[0].mxu0 %v3036
        %v3273 = vpop.f32.mrb[0].mxu0
        %v3274 = vadd.f32 0.0, %v3273
        %v3275 = vpop.f32.mrb[0].mxu0
        %v3276 = vpop.f32.mrb[0].mxu0
        %v3277 = vadd.f32 0.0, %v3276
        %v3278 = vpop.f32.mrb[0].mxu0
        %3279 = vmatprep.mubr.bf16.mxu0 0
        %3280 = vmatmul.mubr.bf16.gmra.mrb[0].mxu0 %v3044
        %v3281 = vpop.f32.mrb[0].mxu0
        %v3282 = vadd.f32 0.0, %v3281
        %v3283 = vpop.f32.mrb[0].mxu0
        %v3284 = vpop.f32.mrb[0].mxu0
        %v3285 = vadd.f32 0.0, %v3284
        %v3286 = vpop.f32.mrb[0].mxu0
        %3287 = vdwg.mxu0
        %v3288 = vadd.f32 %v2824, %v3146
        %v3289 = vadd.f32 %v2825, %v3149
        %v3290 = vadd.f32 %v2826, %v3154
        %v3291 = vadd.f32 %v2827, %v3157
        %v3292 = vadd.f32 %v2828, %v3162
        %v3293 = vadd.f32 %v2829, %v3165
        %v3294 = vadd.f32 %v2830, %v3170
        %v3295 = vadd.f32 %v2831, %v3173
        %v3296 = vadd.f32 %v2832, %v3178
        %v3297 = vadd.f32 %v2833, %v3181
        %v3298 = vadd.f32 %v2834, %v3186
        %v3299 = vadd.f32 %v2835, %v3189
        %v3300 = vadd.f32 %v2836, %v3194
        %v3301 = vadd.f32 %v2837, %v3197
        %v3302 = vadd.f32 %v2838, %v3202
        %v3303 = vadd.f32 %v2839, %v3205
        %v3304 = vadd.f32 %v2840, %v3210
        %v3305 = vadd.f32 %v2841, %v3213
        %v3306 = vadd.f32 %v2842, %v3218
        %v3307 = vadd.f32 %v2843, %v3221
        %v3308 = vadd.f32 %v2844, %v3226
        %v3309 = vadd.f32 %v2845, %v3229
        %v3310 = vadd.f32 %v2846, %v3234
        %v3311 = vadd.f32 %v2847, %v3237
        %v3312 = vadd.f32 %v2848, %v3242
        %v3313 = vadd.f32 %v2849, %v3245
        %v3314 = vadd.f32 %v2850, %v3250
        %v3315 = vadd.f32 %v2851, %v3253
        %v3316 = vadd.f32 %v2852, %v3258
        %v3317 = vadd.f32 %v2853, %v3261
        %v3318 = vadd.f32 %v2854, %v3266
        %v3319 = vadd.f32 %v2855, %v3269
        %v3320 = vadd.f32 %v2856, %v3274
        %v3321 = vadd.f32 %v2857, %v3277
        %v3322 = vadd.f32 %v2858, %v3282
        %v3323 = vadd.f32 %v2859, %v3285
        %v3324 = vld [vmem:[#allocation2] sm:$0xfe]
        %s3325 = scalar_lea.vmem [#allocation7], 128
        %v3326 = vld [vmem:[%s3325] sm:$0xf]
        %v3327 = vld [vmem:[%s3325 + $0x4] sm:$0xf]
        %v3328 = vld [vmem:[%s3325 + $0x8] sm:$0xf]
        %v3329 = vld [vmem:[%s3325 + $0xc] sm:$0xf]
        %v3330 = vld [vmem:[%s3325 + $0x10] sm:$0xf]
        %v3331 = vld [vmem:[%s3325 + $0x14] sm:$0xf]
        %v3332 = vld [vmem:[%s3325 + $0x18] sm:$0xf]
        %v3333 = vld [vmem:[%s3325 + $0x1c] sm:$0xf]
        %v3334 = vld [vmem:[%s3325 + $0x20] sm:$0xf]
        %v3335 = vld [vmem:[%s3325 + $0x24] sm:$0xf]
        %v3336 = vld [vmem:[%s3325 + $0x28] sm:$0xf]
        %v3337 = vld [vmem:[%s3325 + $0x2c] sm:$0xf]
        %v3338 = vld [vmem:[%s3325 + $0x30] sm:$0xf]
        %v3339 = vld [vmem:[%s3325 + $0x34] sm:$0xf]
        %v3340 = vld [vmem:[%s3325 + $0x38] sm:$0xf]
        %v3341 = vld [vmem:[%s3325 + $0x3c] sm:$0xf]
        %vm3361 = vcmask 1046528
        %v3362 = vrot.slane %v3324, 1
        %v3363 = vrot.slane %v2861, 1
        %v3364 = vsel %vm3361, %v3362, %v3363
        %v3365 = vrot.slane %v2862, 1
        %v3366 = vsel %vm3361, %v3363, %v3365
        %v3367 = vrot.slane %v2863, 1
        %v3368 = vsel %vm3361, %v3365, %v3367
        %v3369 = vrot.slane %v2864, 1
        %v3370 = vsel %vm3361, %v3367, %v3369
        %v3371 = vrot.slane %v2865, 1
        %v3372 = vsel %vm3361, %v3369, %v3371
        %v3373 = vrot.slane %v2866, 1
        %v3374 = vsel %vm3361, %v3371, %v3373
        %v3375 = vrot.slane %v2867, 1
        %v3376 = vsel %vm3361, %v3373, %v3375
        %v3377 = vrot.slane %v2868, 1
        %v3378 = vsel %vm3361, %v3375, %v3377
        %v3379 = vrot.slane %v2869, 1
        %v3380 = vsel %vm3361, %v3377, %v3379
        %v3381 = vrot.slane %v2870, 1
        %v3382 = vsel %vm3361, %v3379, %v3381
        %v3383 = vrot.slane %v2871, 1
        %v3384 = vsel %vm3361, %v3381, %v3383
        %v3385 = vrot.slane %v2872, 1
        %v3386 = vsel %vm3361, %v3383, %v3385
        %v3387 = vrot.slane %v2873, 1
        %v3388 = vsel %vm3361, %v3385, %v3387
        %v3389 = vrot.slane %v2874, 1
        %v3390 = vsel %vm3361, %v3387, %v3389
        %v3391 = vrot.slane %v2875, 1
        %v3392 = vsel %vm3361, %v3389, %v3391
        %v3393 = vrot.slane %v2876, 1
        %v3394 = vsel %vm3361, %v3391, %v3393
        %v3395 = vrot.slane %v2877, 1
        %v3396 = vsel %vm3361, %v3393, %v3395
        %v3397 = vrot.slane %v2878, 1
        %v3398 = vsel %vm3361, %v3395, %v3397
        %v3433 = vunpack.c.l.b16 %v3326
        %v3434 = vunpack.c.l.b16 %v3327
        %v3435 = vunpack.c.l.b16 %v3328
        %v3436 = vunpack.c.l.b16 %v3329
        %v3437 = vunpack.c.l.b16 %v3330
        %v3438 = vunpack.c.l.b16 %v3331
        %v3439 = vunpack.c.l.b16 %v3332
        %v3440 = vunpack.c.l.b16 %v3333
        %v3441 = vunpack.c.l.b16 %v3334
        %v3442 = vunpack.c.l.b16 %v3335
        %v3443 = vunpack.c.l.b16 %v3336
        %v3444 = vunpack.c.l.b16 %v3337
        %v3445 = vunpack.c.l.b16 %v3338
        %v3446 = vunpack.c.l.b16 %v3339
        %v3447 = vunpack.c.l.b16 %v3340
        %v3448 = vunpack.c.l.b16 %v3341
        %v3449 = vpack.c.b16 %v3434, %v3433
        %v3450 = vpack.c.b16 %v3436, %v3435
        %v3451 = vpack.c.b16 %v3438, %v3437
        %v3452 = vpack.c.b16 %v3440, %v3439
        %v3453 = vpack.c.b16 %v3442, %v3441
        %v3454 = vpack.c.b16 %v3444, %v3443
        %v3455 = vpack.c.b16 %v3446, %v3445
        %v3456 = vpack.c.b16 %v3448, %v3447
        %3465 = vmatprep.subr.bf16.mxu0 0
        %3466 = vmatpush1.bf16.msra.mxu0 %v3449
        %3467 = vmatprep.subr.bf16.mxu0 0
        %3468 = vmatpush1.bf16.msra.mxu0 %v3450
        %3469 = vmatprep.subr.bf16.mxu0 0
        %3470 = vmatpush1.bf16.msra.mxu0 %v3451
        %3471 = vmatprep.subr.bf16.mxu0 0
        %3472 = vmatpush1.bf16.msra.mxu0 %v3452
        %3473 = vmatprep.subr.bf16.mxu0 0
        %3474 = vmatpush1.bf16.msra.mxu0 %v3453
        %3475 = vmatprep.subr.bf16.mxu0 0
        %3476 = vmatpush1.bf16.msra.mxu0 %v3454
        %3477 = vmatprep.subr.bf16.mxu0 0
        %3478 = vmatpush1.bf16.msra.mxu0 %v3455
        %3479 = vmatprep.subr.bf16.mxu0 0
        %3480 = vmatpush1.bf16.msra.mxu0 %v3456
        %3481 = vmatprep.subr.bf16.mxu0 0
        %3482 = vmatpush1.bf16.msra.mxu0 0
        %3483 = vmatprep.subr.bf16.mxu0 0
        %3484 = vmatpush1.bf16.msra.mxu0 0
        %3485 = vmatprep.subr.bf16.mxu0 0
        %3486 = vmatpush1.bf16.msra.mxu0 0
        %3487 = vmatprep.subr.bf16.mxu0 0
        %3488 = vmatpush1.bf16.msra.mxu0 0
        %3489 = vmatprep.subr.bf16.mxu0 0
        %3490 = vmatpush1.bf16.msra.mxu0 0
        %3491 = vmatprep.subr.bf16.mxu0 0
        %3492 = vmatpush1.bf16.msra.mxu0 0
        %3493 = vmatprep.subr.bf16.mxu0 0
        %3494 = vmatpush1.bf16.msra.mxu0 0
        %3495 = vmatprep.subr.bf16.mxu0 0
        %3496 = vmatpush1.bf16.msra.mxu0 0
        %3497 = vmatprep.mubr.bf16.mxu0 0
        %3498 = vmatmul.mubr.bf16.gmra.mrb[0].mxu0 %v3364
        %v3499 = vpop.f32.mrb[0].mxu0
        %v3500 = vadd.f32 0.0, %v3499
        %v3501 = vpop.f32.mrb[0].mxu0
        %v3502 = vpop.f32.mrb[0].mxu0
        %v3503 = vadd.f32 0.0, %v3502
        %v3504 = vpop.f32.mrb[0].mxu0
        %3505 = vmatprep.mubr.bf16.mxu0 0
        %3506 = vmatmul.mubr.bf16.gmra.mrb[0].mxu0 %v3366
        %v3507 = vpop.f32.mrb[0].mxu0
        %v3508 = vadd.f32 0.0, %v3507
        %v3509 = vpop.f32.mrb[0].mxu0
        %v3510 = vpop.f32.mrb[0].mxu0
        %v3511 = vadd.f32 0.0, %v3510
        %v3512 = vpop.f32.mrb[0].mxu0
        %3513 = vmatprep.mubr.bf16.mxu0 0
        %3514 = vmatmul.mubr.bf16.gmra.mrb[0].mxu0 %v3368
        %v3515 = vpop.f32.mrb[0].mxu0
        %v3516 = vadd.f32 0.0, %v3515
        %v3517 = vpop.f32.mrb[0].mxu0
        %v3518 = vpop.f32.mrb[0].mxu0
        %v3519 = vadd.f32 0.0, %v3518
        %v3520 = vpop.f32.mrb[0].mxu0
        %3521 = vmatprep.mubr.bf16.mxu0 0
        %3522 = vmatmul.mubr.bf16.gmra.mrb[0].mxu0 %v3370
        %v3523 = vpop.f32.mrb[0].mxu0
        %v3524 = vadd.f32 0.0, %v3523
        %v3525 = vpop.f32.mrb[0].mxu0
        %v3526 = vpop.f32.mrb[0].mxu0
        %v3527 = vadd.f32 0.0, %v3526
        %v3528 = vpop.f32.mrb[0].mxu0
        %3529 = vmatprep.mubr.bf16.mxu0 0
        %3530 = vmatmul.mubr.bf16.gmra.mrb[0].mxu0 %v3372
        %v3531 = vpop.f32.mrb[0].mxu0
        %v3532 = vadd.f32 0.0, %v3531
        %v3533 = vpop.f32.mrb[0].mxu0
        %v3534 = vpop.f32.mrb[0].mxu0
        %v3535 = vadd.f32 0.0, %v3534
        %v3536 = vpop.f32.mrb[0].mxu0
        %3537 = vmatprep.mubr.bf16.mxu0 0
        %3538 = vmatmul.mubr.bf16.gmra.mrb[0].mxu0 %v3374
        %v3539 = vpop.f32.mrb[0].mxu0
        %v3540 = vadd.f32 0.0, %v3539
        %v3541 = vpop.f32.mrb[0].mxu0
        %v3542 = vpop.f32.mrb[0].mxu0
        %v3543 = vadd.f32 0.0, %v3542
        %v3544 = vpop.f32.mrb[0].mxu0
        %3545 = vmatprep.mubr.bf16.mxu0 0
        %3546 = vmatmul.mubr.bf16.gmra.mrb[0].mxu0 %v3376
        %v3547 = vpop.f32.mrb[0].mxu0
        %v3548 = vadd.f32 0.0, %v3547
        %v3549 = vpop.f32.mrb[0].mxu0
        %v3550 = vpop.f32.mrb[0].mxu0
        %v3551 = vadd.f32 0.0, %v3550
        %v3552 = vpop.f32.mrb[0].mxu0
        %3553 = vmatprep.mubr.bf16.mxu0 0
        %3554 = vmatmul.mubr.bf16.gmra.mrb[0].mxu0 %v3378
        %v3555 = vpop.f32.mrb[0].mxu0
        %v3556 = vadd.f32 0.0, %v3555
        %v3557 = vpop.f32.mrb[0].mxu0
        %v3558 = vpop.f32.mrb[0].mxu0
        %v3559 = vadd.f32 0.0, %v3558
        %v3560 = vpop.f32.mrb[0].mxu0
        %3561 = vmatprep.mubr.bf16.mxu0 0
        %3562 = vmatmul.mubr.bf16.gmra.mrb[0].mxu0 %v3380
        %v3563 = vpop.f32.mrb[0].mxu0
        %v3564 = vadd.f32 0.0, %v3563
        %v3565 = vpop.f32.mrb[0].mxu0
        %v3566 = vpop.f32.mrb[0].mxu0
        %v3567 = vadd.f32 0.0, %v3566
        %v3568 = vpop.f32.mrb[0].mxu0
        %3569 = vmatprep.mubr.bf16.mxu0 0
        %3570 = vmatmul.mubr.bf16.gmra.mrb[0].mxu0 %v3382
        %v3571 = vpop.f32.mrb[0].mxu0
        %v3572 = vadd.f32 0.0, %v3571
        %v3573 = vpop.f32.mrb[0].mxu0
        %v3574 = vpop.f32.mrb[0].mxu0
        %v3575 = vadd.f32 0.0, %v3574
        %v3576 = vpop.f32.mrb[0].mxu0
        %3577 = vmatprep.mubr.bf16.mxu0 0
        %3578 = vmatmul.mubr.bf16.gmra.mrb[0].mxu0 %v3384
        %v3579 = vpop.f32.mrb[0].mxu0
        %v3580 = vadd.f32 0.0, %v3579
        %v3581 = vpop.f32.mrb[0].mxu0
        %v3582 = vpop.f32.mrb[0].mxu0
        %v3583 = vadd.f32 0.0, %v3582
        %v3584 = vpop.f32.mrb[0].mxu0
        %3585 = vmatprep.mubr.bf16.mxu0 0
        %3586 = vmatmul.mubr.bf16.gmra.mrb[0].mxu0 %v3386
        %v3587 = vpop.f32.mrb[0].mxu0
        %v3588 = vadd.f32 0.0, %v3587
        %v3589 = vpop.f32.mrb[0].mxu0
        %v3590 = vpop.f32.mrb[0].mxu0
        %v3591 = vadd.f32 0.0, %v3590
        %v3592 = vpop.f32.mrb[0].mxu0
        %3593 = vmatprep.mubr.bf16.mxu0 0
        %3594 = vmatmul.mubr.bf16.gmra.mrb[0].mxu0 %v3388
        %v3595 = vpop.f32.mrb[0].mxu0
        %v3596 = vadd.f32 0.0, %v3595
        %v3597 = vpop.f32.mrb[0].mxu0
        %v3598 = vpop.f32.mrb[0].mxu0
        %v3599 = vadd.f32 0.0, %v3598
        %v3600 = vpop.f32.mrb[0].mxu0
        %3601 = vmatprep.mubr.bf16.mxu0 0
        %3602 = vmatmul.mubr.bf16.gmra.mrb[0].mxu0 %v3390
        %v3603 = vpop.f32.mrb[0].mxu0
        %v3604 = vadd.f32 0.0, %v3603
        %v3605 = vpop.f32.mrb[0].mxu0
        %v3606 = vpop.f32.mrb[0].mxu0
        %v3607 = vadd.f32 0.0, %v3606
        %v3608 = vpop.f32.mrb[0].mxu0
        %3609 = vmatprep.mubr.bf16.mxu0 0
        %3610 = vmatmul.mubr.bf16.gmra.mrb[0].mxu0 %v3392
        %v3611 = vpop.f32.mrb[0].mxu0
        %v3612 = vadd.f32 0.0, %v3611
        %v3613 = vpop.f32.mrb[0].mxu0
        %v3614 = vpop.f32.mrb[0].mxu0
        %v3615 = vadd.f32 0.0, %v3614
        %v3616 = vpop.f32.mrb[0].mxu0
        %3617 = vmatprep.mubr.bf16.mxu0 0
        %3618 = vmatmul.mubr.bf16.gmra.mrb[0].mxu0 %v3394
        %v3619 = vpop.f32.mrb[0].mxu0
        %v3620 = vadd.f32 0.0, %v3619
        %v3621 = vpop.f32.mrb[0].mxu0
        %v3622 = vpop.f32.mrb[0].mxu0
        %v3623 = vadd.f32 0.0, %v3622
        %v3624 = vpop.f32.mrb[0].mxu0
        %3625 = vmatprep.mubr.bf16.mxu0 0
        %3626 = vmatmul.mubr.bf16.gmra.mrb[0].mxu0 %v3396
        %v3627 = vpop.f32.mrb[0].mxu0
        %v3628 = vadd.f32 0.0, %v3627
        %v3629 = vpop.f32.mrb[0].mxu0
        %v3630 = vpop.f32.mrb[0].mxu0
        %v3631 = vadd.f32 0.0, %v3630
        %v3632 = vpop.f32.mrb[0].mxu0
        %3633 = vmatprep.mubr.bf16.mxu0 0
        %3634 = vmatmul.mubr.bf16.gmra.mrb[0].mxu0 %v3398
        %v3635 = vpop.f32.mrb[0].mxu0
        %v3636 = vadd.f32 0.0, %v3635
        %v3637 = vpop.f32.mrb[0].mxu0
        %v3638 = vpop.f32.mrb[0].mxu0
        %v3639 = vadd.f32 0.0, %v3638
        %v3640 = vpop.f32.mrb[0].mxu0
        %3641 = vdwg.mxu0
        %v3642 = vadd.f32 %v3288, %v3500
        %v3643 = vadd.f32 %v3289, %v3503
        %v3644 = vadd.f32 %v3290, %v3508
        %v3645 = vadd.f32 %v3291, %v3511
        %v3646 = vadd.f32 %v3292, %v3516
        %v3647 = vadd.f32 %v3293, %v3519
        %v3648 = vadd.f32 %v3294, %v3524
        %v3649 = vadd.f32 %v3295, %v3527
        %v3650 = vadd.f32 %v3296, %v3532
        %v3651 = vadd.f32 %v3297, %v3535
        %v3652 = vadd.f32 %v3298, %v3540
        %v3653 = vadd.f32 %v3299, %v3543
        %v3654 = vadd.f32 %v3300, %v3548
        %v3655 = vadd.f32 %v3301, %v3551
        %v3656 = vadd.f32 %v3302, %v3556
        %v3657 = vadd.f32 %v3303, %v3559
        %v3658 = vadd.f32 %v3304, %v3564
        %v3659 = vadd.f32 %v3305, %v3567
        %v3660 = vadd.f32 %v3306, %v3572
        %v3661 = vadd.f32 %v3307, %v3575
        %v3662 = vadd.f32 %v3308, %v3580
        %v3663 = vadd.f32 %v3309, %v3583
        %v3664 = vadd.f32 %v3310, %v3588
        %v3665 = vadd.f32 %v3311, %v3591
        %v3666 = vadd.f32 %v3312, %v3596
        %v3667 = vadd.f32 %v3313, %v3599
        %v3668 = vadd.f32 %v3314, %v3604
        %v3669 = vadd.f32 %v3315, %v3607
        %v3670 = vadd.f32 %v3316, %v3612
        %v3671 = vadd.f32 %v3317, %v3615
        %v3672 = vadd.f32 %v3318, %v3620
        %v3673 = vadd.f32 %v3319, %v3623
        %v3674 = vadd.f32 %v3320, %v3628
        %v3675 = vadd.f32 %v3321, %v3631
        %v3676 = vadd.f32 %v3322, %v3636
        %v3677 = vadd.f32 %v3323, %v3639
        %v3678 = vld [vmem:[#allocation2 + $0x8] sm:$0xfe]
        %v3679 = vld [vmem:[#allocation2 + $0x10] sm:$0xff]
        %v3680 = vld [vmem:[#allocation2 + $0x18] sm:$0xff]
        %v3681 = vld [vmem:[#allocation2 + $0x20] sm:$0xff]
        %v3682 = vld [vmem:[#allocation2 + $0x28] sm:$0xff]
        %v3683 = vld [vmem:[#allocation2 + $0x30] sm:$0xff]
        %v3684 = vld [vmem:[#allocation2 + $0x38] sm:$0xff]
        %v3685 = vld [vmem:[#allocation2 + $0x40] sm:$0xff]
        %v3686 = vld [vmem:[#allocation2 + $0x48] sm:$0xff]
        %v3687 = vld [vmem:[#allocation2 + $0x50] sm:$0xff]
        %v3688 = vld [vmem:[#allocation2 + $0x58] sm:$0xff]
        %v3689 = vld [vmem:[#allocation2 + $0x60] sm:$0xff]
        %v3690 = vld [vmem:[#allocation2 + $0x68] sm:$0xff]
        %v3691 = vld [vmem:[#allocation2 + $0x70] sm:$0xff]
        %v3692 = vld [vmem:[#allocation2 + $0x78] sm:$0xff]
        %v3693 = vld [vmem:[#allocation2 + $0x80] sm:$0xff]
        %v3694 = vld [vmem:[#allocation2 + $0x88] sm:$0xff]
        %v3695 = vld [vmem:[#allocation2 + $0x90] sm:$0xff]
        %v3696 = vld [vmem:[#allocation2 + $0x98] sm:$0x1]
        %s3697 = scalar_lea.vmem [#allocation7], 192
        %v3698 = vld [vmem:[%s3697] sm:$0xf]
        %v3699 = vld [vmem:[%s3697 + $0x4] sm:$0xf]
        %v3700 = vld [vmem:[%s3697 + $0x8] sm:$0xf]
        %v3701 = vld [vmem:[%s3697 + $0xc] sm:$0xf]
        %v3702 = vld [vmem:[%s3697 + $0x10] sm:$0xf]
        %v3703 = vld [vmem:[%s3697 + $0x14] sm:$0xf]
        %v3704 = vld [vmem:[%s3697 + $0x18] sm:$0xf]
        %v3705 = vld [vmem:[%s3697 + $0x1c] sm:$0xf]
        %v3706 = vld [vmem:[%s3697 + $0x20] sm:$0xf]
        %v3707 = vld [vmem:[%s3697 + $0x24] sm:$0xf]
        %v3708 = vld [vmem:[%s3697 + $0x28] sm:$0xf]
        %v3709 = vld [vmem:[%s3697 + $0x2c] sm:$0xf]
        %v3710 = vld [vmem:[%s3697 + $0x30] sm:$0xf]
        %v3711 = vld [vmem:[%s3697 + $0x34] sm:$0xf]
        %v3712 = vld [vmem:[%s3697 + $0x38] sm:$0xf]
        %v3713 = vld [vmem:[%s3697 + $0x3c] sm:$0xf]
        %v3733 = vrot.slane %v3678, 1
        %v3734 = vrot.slane %v3679, 1
        %v3735 = vsel %vm3361, %v3733, %v3734
        %v3736 = vrot.slane %v3680, 1
        %v3737 = vsel %vm3361, %v3734, %v3736
        %v3738 = vrot.slane %v3681, 1
        %v3739 = vsel %vm3361, %v3736, %v3738
        %v3740 = vrot.slane %v3682, 1
        %v3741 = vsel %vm3361, %v3738, %v3740
        %v3742 = vrot.slane %v3683, 1
        %v3743 = vsel %vm3361, %v3740, %v3742
        %v3744 = vrot.slane %v3684, 1
        %v3745 = vsel %vm3361, %v3742, %v3744
        %v3746 = vrot.slane %v3685, 1
        %v3747 = vsel %vm3361, %v3744, %v3746
        %v3748 = vrot.slane %v3686, 1
        %v3749 = vsel %vm3361, %v3746, %v3748
        %v3750 = vrot.slane %v3687, 1
        %v3751 = vsel %vm3361, %v3748, %v3750
        %v3752 = vrot.slane %v3688, 1
        %v3753 = vsel %vm3361, %v3750, %v3752
        %v3754 = vrot.slane %v3689, 1
        %v3755 = vsel %vm3361, %v3752, %v3754
        %v3756 = vrot.slane %v3690, 1
        %v3757 = vsel %vm3361, %v3754, %v3756
        %v3758 = vrot.slane %v3691, 1
        %v3759 = vsel %vm3361, %v3756, %v3758
        %v3760 = vrot.slane %v3692, 1
        %v3761 = vsel %vm3361, %v3758, %v3760
        %v3762 = vrot.slane %v3693, 1
        %v3763 = vsel %vm3361, %v3760, %v3762
        %v3764 = vrot.slane %v3694, 1
        %v3765 = vsel %vm3361, %v3762, %v3764
        %v3766 = vrot.slane %v3695, 1
        %v3767 = vsel %vm3361, %v3764, %v3766
        %v3768 = vrot.slane %v3696, 1
        %v3769 = vsel %vm3361, %v3766, %v3768
        %v3804 = vunpack.c.l.b16 %v3698
        %v3805 = vunpack.c.l.b16 %v3699
        %v3806 = vunpack.c.l.b16 %v3700
        %v3807 = vunpack.c.l.b16 %v3701
        %v3808 = vunpack.c.l.b16 %v3702
        %v3809 = vunpack.c.l.b16 %v3703
        %v3810 = vunpack.c.l.b16 %v3704
        %v3811 = vunpack.c.l.b16 %v3705
        %v3812 = vunpack.c.l.b16 %v3706
        %v3813 = vunpack.c.l.b16 %v3707
        %v3814 = vunpack.c.l.b16 %v3708
        %v3815 = vunpack.c.l.b16 %v3709
        %v3816 = vunpack.c.l.b16 %v3710
        %v3817 = vunpack.c.l.b16 %v3711
        %v3818 = vunpack.c.l.b16 %v3712
        %v3819 = vunpack.c.l.b16 %v3713
        %v3820 = vpack.c.b16 %v3805, %v3804
        %v3821 = vpack.c.b16 %v3807, %v3806
        %v3822 = vpack.c.b16 %v3809, %v3808
        %v3823 = vpack.c.b16 %v3811, %v3810
        %v3824 = vpack.c.b16 %v3813, %v3812
        %v3825 = vpack.c.b16 %v3815, %v3814
        %v3826 = vpack.c.b16 %v3817, %v3816
        %v3827 = vpack.c.b16 %v3819, %v3818
        %3836 = vmatprep.subr.bf16.mxu0 0
        %3837 = vmatpush1.bf16.msra.mxu0 %v3820
        %3838 = vmatprep.subr.bf16.mxu0 0
        %3839 = vmatpush1.bf16.msra.mxu0 %v3821
        %3840 = vmatprep.subr.bf16.mxu0 0
        %3841 = vmatpush1.bf16.msra.mxu0 %v3822
        %3842 = vmatprep.subr.bf16.mxu0 0
        %3843 = vmatpush1.bf16.msra.mxu0 %v3823
        %3844 = vmatprep.subr.bf16.mxu0 0
        %3845 = vmatpush1.bf16.msra.mxu0 %v3824
        %3846 = vmatprep.subr.bf16.mxu0 0
        %3847 = vmatpush1.bf16.msra.mxu0 %v3825
        %3848 = vmatprep.subr.bf16.mxu0 0
        %3849 = vmatpush1.bf16.msra.mxu0 %v3826
        %3850 = vmatprep.subr.bf16.mxu0 0
        %3851 = vmatpush1.bf16.msra.mxu0 %v3827
        %3852 = vmatprep.subr.bf16.mxu0 0
        %3853 = vmatpush1.bf16.msra.mxu0 0
        %3854 = vmatprep.subr.bf16.mxu0 0
        %3855 = vmatpush1.bf16.msra.mxu0 0
        %3856 = vmatprep.subr.bf16.mxu0 0
        %3857 = vmatpush1.bf16.msra.mxu0 0
        %3858 = vmatprep.subr.bf16.mxu0 0
        %3859 = vmatpush1.bf16.msra.mxu0 0
        %3860 = vmatprep.subr.bf16.mxu0 0
        %3861 = vmatpush1.bf16.msra.mxu0 0
        %3862 = vmatprep.subr.bf16.mxu0 0
        %3863 = vmatpush1.bf16.msra.mxu0 0
        %3864 = vmatprep.subr.bf16.mxu0 0
        %3865 = vmatpush1.bf16.msra.mxu0 0
        %3866 = vmatprep.subr.bf16.mxu0 0
        %3867 = vmatpush1.bf16.msra.mxu0 0
        %3868 = vmatprep.mubr.bf16.mxu0 0
        %3869 = vmatmul.mubr.bf16.gmra.mrb[0].mxu0 %v3735
        %v3870 = vpop.f32.mrb[0].mxu0
        %v3871 = vadd.f32 0.0, %v3870
        %v3872 = vpop.f32.mrb[0].mxu0
        %v3873 = vpop.f32.mrb[0].mxu0
        %v3874 = vadd.f32 0.0, %v3873
        %v3875 = vpop.f32.mrb[0].mxu0
        %3876 = vmatprep.mubr.bf16.mxu0 0
        %3877 = vmatmul.mubr.bf16.gmra.mrb[0].mxu0 %v3737
        %v3878 = vpop.f32.mrb[0].mxu0
        %v3879 = vadd.f32 0.0, %v3878
        %v3880 = vpop.f32.mrb[0].mxu0
        %v3881 = vpop.f32.mrb[0].mxu0
        %v3882 = vadd.f32 0.0, %v3881
        %v3883 = vpop.f32.mrb[0].mxu0
        %3884 = vmatprep.mubr.bf16.mxu0 0
        %3885 = vmatmul.mubr.bf16.gmra.mrb[0].mxu0 %v3739
        %v3886 = vpop.f32.mrb[0].mxu0
        %v3887 = vadd.f32 0.0, %v3886
        %v3888 = vpop.f32.mrb[0].mxu0
        %v3889 = vpop.f32.mrb[0].mxu0
        %v3890 = vadd.f32 0.0, %v3889
        %v3891 = vpop.f32.mrb[0].mxu0
        %3892 = vmatprep.mubr.bf16.mxu0 0
        %3893 = vmatmul.mubr.bf16.gmra.mrb[0].mxu0 %v3741
        %v3894 = vpop.f32.mrb[0].mxu0
        %v3895 = vadd.f32 0.0, %v3894
        %v3896 = vpop.f32.mrb[0].mxu0
        %v3897 = vpop.f32.mrb[0].mxu0
        %v3898 = vadd.f32 0.0, %v3897
        %v3899 = vpop.f32.mrb[0].mxu0
        %3900 = vmatprep.mubr.bf16.mxu0 0
        %3901 = vmatmul.mubr.bf16.gmra.mrb[0].mxu0 %v3743
        %v3902 = vpop.f32.mrb[0].mxu0
        %v3903 = vadd.f32 0.0, %v3902
        %v3904 = vpop.f32.mrb[0].mxu0
        %v3905 = vpop.f32.mrb[0].mxu0
        %v3906 = vadd.f32 0.0, %v3905
        %v3907 = vpop.f32.mrb[0].mxu0
        %3908 = vmatprep.mubr.bf16.mxu0 0
        %3909 = vmatmul.mubr.bf16.gmra.mrb[0].mxu0 %v3745
        %v3910 = vpop.f32.mrb[0].mxu0
        %v3911 = vadd.f32 0.0, %v3910
        %v3912 = vpop.f32.mrb[0].mxu0
        %v3913 = vpop.f32.mrb[0].mxu0
        %v3914 = vadd.f32 0.0, %v3913
        %v3915 = vpop.f32.mrb[0].mxu0
        %3916 = vmatprep.mubr.bf16.mxu0 0
        %3917 = vmatmul.mubr.bf16.gmra.mrb[0].mxu0 %v3747
        %v3918 = vpop.f32.mrb[0].mxu0
        %v3919 = vadd.f32 0.0, %v3918
        %v3920 = vpop.f32.mrb[0].mxu0
        %v3921 = vpop.f32.mrb[0].mxu0
        %v3922 = vadd.f32 0.0, %v3921
        %v3923 = vpop.f32.mrb[0].mxu0
        %3924 = vmatprep.mubr.bf16.mxu0 0
        %3925 = vmatmul.mubr.bf16.gmra.mrb[0].mxu0 %v3749
        %v3926 = vpop.f32.mrb[0].mxu0
        %v3927 = vadd.f32 0.0, %v3926
        %v3928 = vpop.f32.mrb[0].mxu0
        %v3929 = vpop.f32.mrb[0].mxu0
        %v3930 = vadd.f32 0.0, %v3929
        %v3931 = vpop.f32.mrb[0].mxu0
        %3932 = vmatprep.mubr.bf16.mxu0 0
        %3933 = vmatmul.mubr.bf16.gmra.mrb[0].mxu0 %v3751
        %v3934 = vpop.f32.mrb[0].mxu0
        %v3935 = vadd.f32 0.0, %v3934
        %v3936 = vpop.f32.mrb[0].mxu0
        %v3937 = vpop.f32.mrb[0].mxu0
        %v3938 = vadd.f32 0.0, %v3937
        %v3939 = vpop.f32.mrb[0].mxu0
        %3940 = vmatprep.mubr.bf16.mxu0 0
        %3941 = vmatmul.mubr.bf16.gmra.mrb[0].mxu0 %v3753
        %v3942 = vpop.f32.mrb[0].mxu0
        %v3943 = vadd.f32 0.0, %v3942
        %v3944 = vpop.f32.mrb[0].mxu0
        %v3945 = vpop.f32.mrb[0].mxu0
        %v3946 = vadd.f32 0.0, %v3945
        %v3947 = vpop.f32.mrb[0].mxu0
        %3948 = vmatprep.mubr.bf16.mxu0 0
        %3949 = vmatmul.mubr.bf16.gmra.mrb[0].mxu0 %v3755
        %v3950 = vpop.f32.mrb[0].mxu0
        %v3951 = vadd.f32 0.0, %v3950
        %v3952 = vpop.f32.mrb[0].mxu0
        %v3953 = vpop.f32.mrb[0].mxu0
        %v3954 = vadd.f32 0.0, %v3953
        %v3955 = vpop.f32.mrb[0].mxu0
        %3956 = vmatprep.mubr.bf16.mxu0 0
        %3957 = vmatmul.mubr.bf16.gmra.mrb[0].mxu0 %v3757
        %v3958 = vpop.f32.mrb[0].mxu0
        %v3959 = vadd.f32 0.0, %v3958
        %v3960 = vpop.f32.mrb[0].mxu0
        %v3961 = vpop.f32.mrb[0].mxu0
        %v3962 = vadd.f32 0.0, %v3961
        %v3963 = vpop.f32.mrb[0].mxu0
        %3964 = vmatprep.mubr.bf16.mxu0 0
        %3965 = vmatmul.mubr.bf16.gmra.mrb[0].mxu0 %v3759
        %v3966 = vpop.f32.mrb[0].mxu0
        %v3967 = vadd.f32 0.0, %v3966
        %v3968 = vpop.f32.mrb[0].mxu0
        %v3969 = vpop.f32.mrb[0].mxu0
        %v3970 = vadd.f32 0.0, %v3969
        %v3971 = vpop.f32.mrb[0].mxu0
        %3972 = vmatprep.mubr.bf16.mxu0 0
        %3973 = vmatmul.mubr.bf16.gmra.mrb[0].mxu0 %v3761
        %v3974 = vpop.f32.mrb[0].mxu0
        %v3975 = vadd.f32 0.0, %v3974
        %v3976 = vpop.f32.mrb[0].mxu0
        %v3977 = vpop.f32.mrb[0].mxu0
        %v3978 = vadd.f32 0.0, %v3977
        %v3979 = vpop.f32.mrb[0].mxu0
        %3980 = vmatprep.mubr.bf16.mxu0 0
        %3981 = vmatmul.mubr.bf16.gmra.mrb[0].mxu0 %v3763
        %v3982 = vpop.f32.mrb[0].mxu0
        %v3983 = vadd.f32 0.0, %v3982
        %v3984 = vpop.f32.mrb[0].mxu0
        %v3985 = vpop.f32.mrb[0].mxu0
        %v3986 = vadd.f32 0.0, %v3985
        %v3987 = vpop.f32.mrb[0].mxu0
        %3988 = vmatprep.mubr.bf16.mxu0 0
        %3989 = vmatmul.mubr.bf16.gmra.mrb[0].mxu0 %v3765
        %v3990 = vpop.f32.mrb[0].mxu0
        %v3991 = vadd.f32 0.0, %v3990
        %v3992 = vpop.f32.mrb[0].mxu0
        %v3993 = vpop.f32.mrb[0].mxu0
        %v3994 = vadd.f32 0.0, %v3993
        %v3995 = vpop.f32.mrb[0].mxu0
        %3996 = vmatprep.mubr.bf16.mxu0 0
        %3997 = vmatmul.mubr.bf16.gmra.mrb[0].mxu0 %v3767
        %v3998 = vpop.f32.mrb[0].mxu0
        %v3999 = vadd.f32 0.0, %v3998
        %v4000 = vpop.f32.mrb[0].mxu0
        %v4001 = vpop.f32.mrb[0].mxu0
        %v4002 = vadd.f32 0.0, %v4001
        %v4003 = vpop.f32.mrb[0].mxu0
        %4004 = vmatprep.mubr.bf16.mxu0 0
        %4005 = vmatmul.mubr.bf16.gmra.mrb[0].mxu0 %v3769
        %v4006 = vpop.f32.mrb[0].mxu0
        %v4007 = vadd.f32 0.0, %v4006
        %v4008 = vpop.f32.mrb[0].mxu0
        %v4009 = vpop.f32.mrb[0].mxu0
        %v4010 = vadd.f32 0.0, %v4009
        %v4011 = vpop.f32.mrb[0].mxu0
        %4012 = vdwg.mxu0
        %v4013 = vadd.f32 %v3642, %v3871
        %v4014 = vadd.f32 %v3643, %v3874
        %v4015 = vadd.f32 %v3644, %v3879
        %v4016 = vadd.f32 %v3645, %v3882
        %v4017 = vadd.f32 %v3646, %v3887
        %v4018 = vadd.f32 %v3647, %v3890
        %v4019 = vadd.f32 %v3648, %v3895
        %v4020 = vadd.f32 %v3649, %v3898
        %v4021 = vadd.f32 %v3650, %v3903
        %v4022 = vadd.f32 %v3651, %v3906
        %v4023 = vadd.f32 %v3652, %v3911
        %v4024 = vadd.f32 %v3653, %v3914
        %v4025 = vadd.f32 %v3654, %v3919
        %v4026 = vadd.f32 %v3655, %v3922
        %v4027 = vadd.f32 %v3656, %v3927
        %v4028 = vadd.f32 %v3657, %v3930
        %v4029 = vadd.f32 %v3658, %v3935
        %v4030 = vadd.f32 %v3659, %v3938
        %v4031 = vadd.f32 %v3660, %v3943
        %v4032 = vadd.f32 %v3661, %v3946
        %v4033 = vadd.f32 %v3662, %v3951
        %v4034 = vadd.f32 %v3663, %v3954
        %v4035 = vadd.f32 %v3664, %v3959
        %v4036 = vadd.f32 %v3665, %v3962
        %v4037 = vadd.f32 %v3666, %v3967
        %v4038 = vadd.f32 %v3667, %v3970
        %v4039 = vadd.f32 %v3668, %v3975
        %v4040 = vadd.f32 %v3669, %v3978
        %v4041 = vadd.f32 %v3670, %v3983
        %v4042 = vadd.f32 %v3671, %v3986
        %v4043 = vadd.f32 %v3672, %v3991
        %v4044 = vadd.f32 %v3673, %v3994
        %v4045 = vadd.f32 %v3674, %v3999
        %v4046 = vadd.f32 %v3675, %v4002
        %v4047 = vadd.f32 %v3676, %v4007
        %v4048 = vadd.f32 %v3677, %v4010
        %v4049 = vld [vmem:[#allocation2 + $0x98] sm:$0x3]
        %s4050 = scalar_lea.vmem [#allocation7], 256
        %v4051 = vld [vmem:[%s4050] sm:$0xf]
        %v4052 = vld [vmem:[%s4050 + $0x4] sm:$0xf]
        %v4053 = vld [vmem:[%s4050 + $0x8] sm:$0xf]
        %v4054 = vld [vmem:[%s4050 + $0xc] sm:$0xf]
        %v4055 = vld [vmem:[%s4050 + $0x10] sm:$0xf]
        %v4056 = vld [vmem:[%s4050 + $0x14] sm:$0xf]
        %v4057 = vld [vmem:[%s4050 + $0x18] sm:$0xf]
        %v4058 = vld [vmem:[%s4050 + $0x1c] sm:$0xf]
        %v4059 = vld [vmem:[%s4050 + $0x20] sm:$0xf]
        %v4060 = vld [vmem:[%s4050 + $0x24] sm:$0xf]
        %v4061 = vld [vmem:[%s4050 + $0x28] sm:$0xf]
        %v4062 = vld [vmem:[%s4050 + $0x2c] sm:$0xf]
        %v4063 = vld [vmem:[%s4050 + $0x30] sm:$0xf]
        %v4064 = vld [vmem:[%s4050 + $0x34] sm:$0xf]
        %v4065 = vld [vmem:[%s4050 + $0x38] sm:$0xf]
        %v4066 = vld [vmem:[%s4050 + $0x3c] sm:$0xf]
        %vm4067 = vsmask.f32 6400
        %v4069 = vshrl.u32 %v3678, 16
        %v4071 = vrot.slane %v4069, 1
        %v4072 = vshll.u32 %v3678, 16
        %v4074 = vrot.slane %v4072, 2
        %v4075 = vor.u32 %v4071, %v4074
        %v4077 = vshrl.u32 %v3679, 16
        %v4079 = vrot.slane %v4077, 1
        %v4080 = vshll.u32 %v3679, 16
        %v4082 = vrot.slane %v4080, 2
        %v4083 = vor.u32 %v4079, %v4082
        %v4084 = vsel %vm4067, %v4075, %v4083
        %v4086 = vshrl.u32 %v3680, 16
        %v4088 = vrot.slane %v4086, 1
        %v4089 = vshll.u32 %v3680, 16
        %v4091 = vrot.slane %v4089, 2
        %v4092 = vor.u32 %v4088, %v4091
        %v4093 = vsel %vm4067, %v4083, %v4092
        %v4095 = vshrl.u32 %v3681, 16
        %v4097 = vrot.slane %v4095, 1
        %v4098 = vshll.u32 %v3681, 16
        %v4100 = vrot.slane %v4098, 2
        %v4101 = vor.u32 %v4097, %v4100
        %v4102 = vsel %vm4067, %v4092, %v4101
        %v4104 = vshrl.u32 %v3682, 16
        %v4106 = vrot.slane %v4104, 1
        %v4107 = vshll.u32 %v3682, 16
        %v4109 = vrot.slane %v4107, 2
        %v4110 = vor.u32 %v4106, %v4109
        %v4111 = vsel %vm4067, %v4101, %v4110
        %v4113 = vshrl.u32 %v3683, 16
        %v4115 = vrot.slane %v4113, 1
        %v4116 = vshll.u32 %v3683, 16
        %v4118 = vrot.slane %v4116, 2
        %v4119 = vor.u32 %v4115, %v4118
        %v4120 = vsel %vm4067, %v4110, %v4119
        %v4122 = vshrl.u32 %v3684, 16
        %v4124 = vrot.slane %v4122, 1
        %v4125 = vshll.u32 %v3684, 16
        %v4127 = vrot.slane %v4125, 2
        %v4128 = vor.u32 %v4124, %v4127
        %v4129 = vsel %vm4067, %v4119, %v4128
        %v4131 = vshrl.u32 %v3685, 16
        %v4133 = vrot.slane %v4131, 1
        %v4134 = vshll.u32 %v3685, 16
        %v4136 = vrot.slane %v4134, 2
        %v4137 = vor.u32 %v4133, %v4136
        %v4138 = vsel %vm4067, %v4128, %v4137
        %v4140 = vshrl.u32 %v3686, 16
        %v4142 = vrot.slane %v4140, 1
        %v4143 = vshll.u32 %v3686, 16
        %v4145 = vrot.slane %v4143, 2
        %v4146 = vor.u32 %v4142, %v4145
        %v4147 = vsel %vm4067, %v4137, %v4146
        %v4149 = vshrl.u32 %v3687, 16
        %v4151 = vrot.slane %v4149, 1
        %v4152 = vshll.u32 %v3687, 16
        %v4154 = vrot.slane %v4152, 2
        %v4155 = vor.u32 %v4151, %v4154
        %v4156 = vsel %vm4067, %v4146, %v4155
        %v4158 = vshrl.u32 %v3688, 16
        %v4160 = vrot.slane %v4158, 1
        %v4161 = vshll.u32 %v3688, 16
        %v4163 = vrot.slane %v4161, 2
        %v4164 = vor.u32 %v4160, %v4163
        %v4165 = vsel %vm4067, %v4155, %v4164
        %v4167 = vshrl.u32 %v3689, 16
        %v4169 = vrot.slane %v4167, 1
        %v4170 = vshll.u32 %v3689, 16
        %v4172 = vrot.slane %v4170, 2
        %v4173 = vor.u32 %v4169, %v4172
        %v4174 = vsel %vm4067, %v4164, %v4173
        %v4176 = vshrl.u32 %v3690, 16
        %v4178 = vrot.slane %v4176, 1
        %v4179 = vshll.u32 %v3690, 16
        %v4181 = vrot.slane %v4179, 2
        %v4182 = vor.u32 %v4178, %v4181
        %v4183 = vsel %vm4067, %v4173, %v4182
        %v4185 = vshrl.u32 %v3691, 16
        %v4187 = vrot.slane %v4185, 1
        %v4188 = vshll.u32 %v3691, 16
        %v4190 = vrot.slane %v4188, 2
        %v4191 = vor.u32 %v4187, %v4190
        %v4192 = vsel %vm4067, %v4182, %v4191
        %v4194 = vshrl.u32 %v3692, 16
        %v4196 = vrot.slane %v4194, 1
        %v4197 = vshll.u32 %v3692, 16
        %v4199 = vrot.slane %v4197, 2
        %v4200 = vor.u32 %v4196, %v4199
        %v4201 = vsel %vm4067, %v4191, %v4200
        %v4203 = vshrl.u32 %v3693, 16
        %v4205 = vrot.slane %v4203, 1
        %v4206 = vshll.u32 %v3693, 16
        %v4208 = vrot.slane %v4206, 2
        %v4209 = vor.u32 %v4205, %v4208
        %v4210 = vsel %vm4067, %v4200, %v4209
        %v4212 = vshrl.u32 %v3694, 16
        %v4214 = vrot.slane %v4212, 1
        %v4215 = vshll.u32 %v3694, 16
        %v4217 = vrot.slane %v4215, 2
        %v4218 = vor.u32 %v4214, %v4217
        %v4219 = vsel %vm4067, %v4209, %v4218
        %v4221 = vshrl.u32 %v3695, 16
        %v4223 = vrot.slane %v4221, 1
        %v4224 = vshll.u32 %v3695, 16
        %v4226 = vrot.slane %v4224, 2
        %v4227 = vor.u32 %v4223, %v4226
        %v4228 = vsel %vm4067, %v4218, %v4227
        %v4230 = vshrl.u32 %v4049, 16
        %v4232 = vrot.slane %v4230, 1
        %v4233 = vshll.u32 %v4049, 16
        %v4235 = vrot.slane %v4233, 2
        %v4236 = vor.u32 %v4232, %v4235
        %v4237 = vsel %vm4067, %v4227, %v4236
        %v4272 = vunpack.c.l.b16 %v4051
        %v4273 = vunpack.c.l.b16 %v4052
        %v4274 = vunpack.c.l.b16 %v4053
        %v4275 = vunpack.c.l.b16 %v4054
        %v4276 = vunpack.c.l.b16 %v4055
        %v4277 = vunpack.c.l.b16 %v4056
        %v4278 = vunpack.c.l.b16 %v4057
        %v4279 = vunpack.c.l.b16 %v4058
        %v4280 = vunpack.c.l.b16 %v4059
        %v4281 = vunpack.c.l.b16 %v4060
        %v4282 = vunpack.c.l.b16 %v4061
        %v4283 = vunpack.c.l.b16 %v4062
        %v4284 = vunpack.c.l.b16 %v4063
        %v4285 = vunpack.c.l.b16 %v4064
        %v4286 = vunpack.c.l.b16 %v4065
        %v4287 = vunpack.c.l.b16 %v4066
        %v4288 = vpack.c.b16 %v4273, %v4272
        %v4289 = vpack.c.b16 %v4275, %v4274
        %v4290 = vpack.c.b16 %v4277, %v4276
        %v4291 = vpack.c.b16 %v4279, %v4278
        %v4292 = vpack.c.b16 %v4281, %v4280
        %v4293 = vpack.c.b16 %v4283, %v4282
        %v4294 = vpack.c.b16 %v4285, %v4284
        %v4295 = vpack.c.b16 %v4287, %v4286
        %4304 = vmatprep.subr.bf16.mxu0 0
        %4305 = vmatpush1.bf16.msra.mxu0 %v4288
        %4306 = vmatprep.subr.bf16.mxu0 0
        %4307 = vmatpush1.bf16.msra.mxu0 %v4289
        %4308 = vmatprep.subr.bf16.mxu0 0
        %4309 = vmatpush1.bf16.msra.mxu0 %v4290
        %4310 = vmatprep.subr.bf16.mxu0 0
        %4311 = vmatpush1.bf16.msra.mxu0 %v4291
        %4312 = vmatprep.subr.bf16.mxu0 0
        %4313 = vmatpush1.bf16.msra.mxu0 %v4292
        %4314 = vmatprep.subr.bf16.mxu0 0
        %4315 = vmatpush1.bf16.msra.mxu0 %v4293
        %4316 = vmatprep.subr.bf16.mxu0 0
        %4317 = vmatpush1.bf16.msra.mxu0 %v4294
        %4318 = vmatprep.subr.bf16.mxu0 0
        %4319 = vmatpush1.bf16.msra.mxu0 %v4295
        %4320 = vmatprep.subr.bf16.mxu0 0
        %4321 = vmatpush1.bf16.msra.mxu0 0
        %4322 = vmatprep.subr.bf16.mxu0 0
        %4323 = vmatpush1.bf16.msra.mxu0 0
        %4324 = vmatprep.subr.bf16.mxu0 0
        %4325 = vmatpush1.bf16.msra.mxu0 0
        %4326 = vmatprep.subr.bf16.mxu0 0
        %4327 = vmatpush1.bf16.msra.mxu0 0
        %4328 = vmatprep.subr.bf16.mxu0 0
        %4329 = vmatpush1.bf16.msra.mxu0 0
        %4330 = vmatprep.subr.bf16.mxu0 0
        %4331 = vmatpush1.bf16.msra.mxu0 0
        %4332 = vmatprep.subr.bf16.mxu0 0
        %4333 = vmatpush1.bf16.msra.mxu0 0
        %4334 = vmatprep.subr.bf16.mxu0 0
        %4335 = vmatpush1.bf16.msra.mxu0 0
        %4336 = vmatprep.mubr.bf16.mxu0 0
        %4337 = vmatmul.mubr.bf16.gmra.mrb[0].mxu0 %v4084
        %v4338 = vpop.f32.mrb[0].mxu0
        %v4339 = vadd.f32 0.0, %v4338
        %v4340 = vpop.f32.mrb[0].mxu0
        %v4341 = vpop.f32.mrb[0].mxu0
        %v4342 = vadd.f32 0.0, %v4341
        %v4343 = vpop.f32.mrb[0].mxu0
        %4344 = vmatprep.mubr.bf16.mxu0 0
        %4345 = vmatmul.mubr.bf16.gmra.mrb[0].mxu0 %v4093
        %v4346 = vpop.f32.mrb[0].mxu0
        %v4347 = vadd.f32 0.0, %v4346
        %v4348 = vpop.f32.mrb[0].mxu0
        %v4349 = vpop.f32.mrb[0].mxu0
        %v4350 = vadd.f32 0.0, %v4349
        %v4351 = vpop.f32.mrb[0].mxu0
        %4352 = vmatprep.mubr.bf16.mxu0 0
        %4353 = vmatmul.mubr.bf16.gmra.mrb[0].mxu0 %v4102
        %v4354 = vpop.f32.mrb[0].mxu0
        %v4355 = vadd.f32 0.0, %v4354
        %v4356 = vpop.f32.mrb[0].mxu0
        %v4357 = vpop.f32.mrb[0].mxu0
        %v4358 = vadd.f32 0.0, %v4357
        %v4359 = vpop.f32.mrb[0].mxu0
        %4360 = vmatprep.mubr.bf16.mxu0 0
        %4361 = vmatmul.mubr.bf16.gmra.mrb[0].mxu0 %v4111
        %v4362 = vpop.f32.mrb[0].mxu0
        %v4363 = vadd.f32 0.0, %v4362
        %v4364 = vpop.f32.mrb[0].mxu0
        %v4365 = vpop.f32.mrb[0].mxu0
        %v4366 = vadd.f32 0.0, %v4365
        %v4367 = vpop.f32.mrb[0].mxu0
        %4368 = vmatprep.mubr.bf16.mxu0 0
        %4369 = vmatmul.mubr.bf16.gmra.mrb[0].mxu0 %v4120
        %v4370 = vpop.f32.mrb[0].mxu0
        %v4371 = vadd.f32 0.0, %v4370
        %v4372 = vpop.f32.mrb[0].mxu0
        %v4373 = vpop.f32.mrb[0].mxu0
        %v4374 = vadd.f32 0.0, %v4373
        %v4375 = vpop.f32.mrb[0].mxu0
        %4376 = vmatprep.mubr.bf16.mxu0 0
        %4377 = vmatmul.mubr.bf16.gmra.mrb[0].mxu0 %v4129
        %v4378 = vpop.f32.mrb[0].mxu0
        %v4379 = vadd.f32 0.0, %v4378
        %v4380 = vpop.f32.mrb[0].mxu0
        %v4381 = vpop.f32.mrb[0].mxu0
        %v4382 = vadd.f32 0.0, %v4381
        %v4383 = vpop.f32.mrb[0].mxu0
        %4384 = vmatprep.mubr.bf16.mxu0 0
        %4385 = vmatmul.mubr.bf16.gmra.mrb[0].mxu0 %v4138
        %v4386 = vpop.f32.mrb[0].mxu0
        %v4387 = vadd.f32 0.0, %v4386
        %v4388 = vpop.f32.mrb[0].mxu0
        %v4389 = vpop.f32.mrb[0].mxu0
        %v4390 = vadd.f32 0.0, %v4389
        %v4391 = vpop.f32.mrb[0].mxu0
        %4392 = vmatprep.mubr.bf16.mxu0 0
        %4393 = vmatmul.mubr.bf16.gmra.mrb[0].mxu0 %v4147
        %v4394 = vpop.f32.mrb[0].mxu0
        %v4395 = vadd.f32 0.0, %v4394
        %v4396 = vpop.f32.mrb[0].mxu0
        %v4397 = vpop.f32.mrb[0].mxu0
        %v4398 = vadd.f32 0.0, %v4397
        %v4399 = vpop.f32.mrb[0].mxu0
        %4400 = vmatprep.mubr.bf16.mxu0 0
        %4401 = vmatmul.mubr.bf16.gmra.mrb[0].mxu0 %v4156
        %v4402 = vpop.f32.mrb[0].mxu0
        %v4403 = vadd.f32 0.0, %v4402
        %v4404 = vpop.f32.mrb[0].mxu0
        %v4405 = vpop.f32.mrb[0].mxu0
        %v4406 = vadd.f32 0.0, %v4405
        %v4407 = vpop.f32.mrb[0].mxu0
        %4408 = vmatprep.mubr.bf16.mxu0 0
        %4409 = vmatmul.mubr.bf16.gmra.mrb[0].mxu0 %v4165
        %v4410 = vpop.f32.mrb[0].mxu0
        %v4411 = vadd.f32 0.0, %v4410
        %v4412 = vpop.f32.mrb[0].mxu0
        %v4413 = vpop.f32.mrb[0].mxu0
        %v4414 = vadd.f32 0.0, %v4413
        %v4415 = vpop.f32.mrb[0].mxu0
        %4416 = vmatprep.mubr.bf16.mxu0 0
        %4417 = vmatmul.mubr.bf16.gmra.mrb[0].mxu0 %v4174
        %v4418 = vpop.f32.mrb[0].mxu0
        %v4419 = vadd.f32 0.0, %v4418
        %v4420 = vpop.f32.mrb[0].mxu0
        %v4421 = vpop.f32.mrb[0].mxu0
        %v4422 = vadd.f32 0.0, %v4421
        %v4423 = vpop.f32.mrb[0].mxu0
        %4424 = vmatprep.mubr.bf16.mxu0 0
        %4425 = vmatmul.mubr.bf16.gmra.mrb[0].mxu0 %v4183
        %v4426 = vpop.f32.mrb[0].mxu0
        %v4427 = vadd.f32 0.0, %v4426
        %v4428 = vpop.f32.mrb[0].mxu0
        %v4429 = vpop.f32.mrb[0].mxu0
        %v4430 = vadd.f32 0.0, %v4429
        %v4431 = vpop.f32.mrb[0].mxu0
        %4432 = vmatprep.mubr.bf16.mxu0 0
        %4433 = vmatmul.mubr.bf16.gmra.mrb[0].mxu0 %v4192
        %v4434 = vpop.f32.mrb[0].mxu0
        %v4435 = vadd.f32 0.0, %v4434
        %v4436 = vpop.f32.mrb[0].mxu0
        %v4437 = vpop.f32.mrb[0].mxu0
        %v4438 = vadd.f32 0.0, %v4437
        %v4439 = vpop.f32.mrb[0].mxu0
        %4440 = vmatprep.mubr.bf16.mxu0 0
        %4441 = vmatmul.mubr.bf16.gmra.mrb[0].mxu0 %v4201
        %v4442 = vpop.f32.mrb[0].mxu0
        %v4443 = vadd.f32 0.0, %v4442
        %v4444 = vpop.f32.mrb[0].mxu0
        %v4445 = vpop.f32.mrb[0].mxu0
        %v4446 = vadd.f32 0.0, %v4445
        %v4447 = vpop.f32.mrb[0].mxu0
        %4448 = vmatprep.mubr.bf16.mxu0 0
        %4449 = vmatmul.mubr.bf16.gmra.mrb[0].mxu0 %v4210
        %v4450 = vpop.f32.mrb[0].mxu0
        %v4451 = vadd.f32 0.0, %v4450
        %v4452 = vpop.f32.mrb[0].mxu0
        %v4453 = vpop.f32.mrb[0].mxu0
        %v4454 = vadd.f32 0.0, %v4453
        %v4455 = vpop.f32.mrb[0].mxu0
        %4456 = vmatprep.mubr.bf16.mxu0 0
        %4457 = vmatmul.mubr.bf16.gmra.mrb[0].mxu0 %v4219
        %v4458 = vpop.f32.mrb[0].mxu0
        %v4459 = vadd.f32 0.0, %v4458
        %v4460 = vpop.f32.mrb[0].mxu0
        %v4461 = vpop.f32.mrb[0].mxu0
        %v4462 = vadd.f32 0.0, %v4461
        %v4463 = vpop.f32.mrb[0].mxu0
        %4464 = vmatprep.mubr.bf16.mxu0 0
        %4465 = vmatmul.mubr.bf16.gmra.mrb[0].mxu0 %v4228
        %v4466 = vpop.f32.mrb[0].mxu0
        %v4467 = vadd.f32 0.0, %v4466
        %v4468 = vpop.f32.mrb[0].mxu0
        %v4469 = vpop.f32.mrb[0].mxu0
        %v4470 = vadd.f32 0.0, %v4469
        %v4471 = vpop.f32.mrb[0].mxu0
        %4472 = vmatprep.mubr.bf16.mxu0 0
        %4473 = vmatmul.mubr.bf16.gmra.mrb[0].mxu0 %v4237
        %v4474 = vpop.f32.mrb[0].mxu0
        %v4475 = vadd.f32 0.0, %v4474
        %v4476 = vpop.f32.mrb[0].mxu0
        %v4477 = vpop.f32.mrb[0].mxu0
        %v4478 = vadd.f32 0.0, %v4477
        %v4479 = vpop.f32.mrb[0].mxu0
        %4480 = vdwg.mxu0
        %v4481 = vadd.f32 %v4013, %v4339
        %v4482 = vadd.f32 %v4014, %v4342
        %v4483 = vadd.f32 %v4015, %v4347
        %v4484 = vadd.f32 %v4016, %v4350
        %v4485 = vadd.f32 %v4017, %v4355
        %v4486 = vadd.f32 %v4018, %v4358
        %v4487 = vadd.f32 %v4019, %v4363
        %v4488 = vadd.f32 %v4020, %v4366
        %v4489 = vadd.f32 %v4021, %v4371
        %v4490 = vadd.f32 %v4022, %v4374
        %v4491 = vadd.f32 %v4023, %v4379
        %v4492 = vadd.f32 %v4024, %v4382
        %v4493 = vadd.f32 %v4025, %v4387
        %v4494 = vadd.f32 %v4026, %v4390
        %v4495 = vadd.f32 %v4027, %v4395
        %v4496 = vadd.f32 %v4028, %v4398
        %v4497 = vadd.f32 %v4029, %v4403
        %v4498 = vadd.f32 %v4030, %v4406
        %v4499 = vadd.f32 %v4031, %v4411
        %v4500 = vadd.f32 %v4032, %v4414
        %v4501 = vadd.f32 %v4033, %v4419
        %v4502 = vadd.f32 %v4034, %v4422
        %v4503 = vadd.f32 %v4035, %v4427
        %v4504 = vadd.f32 %v4036, %v4430
        %v4505 = vadd.f32 %v4037, %v4435
        %v4506 = vadd.f32 %v4038, %v4438
        %v4507 = vadd.f32 %v4039, %v4443
        %v4508 = vadd.f32 %v4040, %v4446
        %v4509 = vadd.f32 %v4041, %v4451
        %v4510 = vadd.f32 %v4042, %v4454
        %v4511 = vadd.f32 %v4043, %v4459
        %v4512 = vadd.f32 %v4044, %v4462
        %v4513 = vadd.f32 %v4045, %v4467
        %v4514 = vadd.f32 %v4046, %v4470
        %v4515 = vadd.f32 %v4047, %v4475
        %v4516 = vadd.f32 %v4048, %v4478
        %v4517 = vld [vmem:[#allocation2 + $0x8] sm:$0xfc]
        %s4518 = scalar_lea.vmem [#allocation7], 320
        %v4519 = vld [vmem:[%s4518] sm:$0xf]
        %v4520 = vld [vmem:[%s4518 + $0x4] sm:$0xf]
        %v4521 = vld [vmem:[%s4518 + $0x8] sm:$0xf]
        %v4522 = vld [vmem:[%s4518 + $0xc] sm:$0xf]
        %v4523 = vld [vmem:[%s4518 + $0x10] sm:$0xf]
        %v4524 = vld [vmem:[%s4518 + $0x14] sm:$0xf]
        %v4525 = vld [vmem:[%s4518 + $0x18] sm:$0xf]
        %v4526 = vld [vmem:[%s4518 + $0x1c] sm:$0xf]
        %v4527 = vld [vmem:[%s4518 + $0x20] sm:$0xf]
        %v4528 = vld [vmem:[%s4518 + $0x24] sm:$0xf]
        %v4529 = vld [vmem:[%s4518 + $0x28] sm:$0xf]
        %v4530 = vld [vmem:[%s4518 + $0x2c] sm:$0xf]
        %v4531 = vld [vmem:[%s4518 + $0x30] sm:$0xf]
        %v4532 = vld [vmem:[%s4518 + $0x34] sm:$0xf]
        %v4533 = vld [vmem:[%s4518 + $0x38] sm:$0xf]
        %v4534 = vld [vmem:[%s4518 + $0x3c] sm:$0xf]
        %vm4537 = vcmask 1045504
        %v4538 = vrot.slane %v4517, 2
        %v4539 = vrot.slane %v3679, 2
        %v4540 = vsel %vm4537, %v4538, %v4539
        %v4541 = vrot.slane %v3680, 2
        %v4542 = vsel %vm4537, %v4539, %v4541
        %v4543 = vrot.slane %v3681, 2
        %v4544 = vsel %vm4537, %v4541, %v4543
        %v4545 = vrot.slane %v3682, 2
        %v4546 = vsel %vm4537, %v4543, %v4545
        %v4547 = vrot.slane %v3683, 2
        %v4548 = vsel %vm4537, %v4545, %v4547
        %v4549 = vrot.slane %v3684, 2
        %v4550 = vsel %vm4537, %v4547, %v4549
        %v4551 = vrot.slane %v3685, 2
        %v4552 = vsel %vm4537, %v4549, %v4551
        %v4553 = vrot.slane %v3686, 2
        %v4554 = vsel %vm4537, %v4551, %v4553
        %v4555 = vrot.slane %v3687, 2
        %v4556 = vsel %vm4537, %v4553, %v4555
        %v4557 = vrot.slane %v3688, 2
        %v4558 = vsel %vm4537, %v4555, %v4557
        %v4559 = vrot.slane %v3689, 2
        %v4560 = vsel %vm4537, %v4557, %v4559
        %v4561 = vrot.slane %v3690, 2
        %v4562 = vsel %vm4537, %v4559, %v4561
        %v4563 = vrot.slane %v3691, 2
        %v4564 = vsel %vm4537, %v4561, %v4563
        %v4565 = vrot.slane %v3692, 2
        %v4566 = vsel %vm4537, %v4563, %v4565
        %v4567 = vrot.slane %v3693, 2
        %v4568 = vsel %vm4537, %v4565, %v4567
        %v4569 = vrot.slane %v3694, 2
        %v4570 = vsel %vm4537, %v4567, %v4569
        %v4571 = vrot.slane %v3695, 2
        %v4572 = vsel %vm4537, %v4569, %v4571
        %v4573 = vrot.slane %v4049, 2
        %v4574 = vsel %vm4537, %v4571, %v4573
        %v4609 = vunpack.c.l.b16 %v4519
        %v4610 = vunpack.c.l.b16 %v4520
        %v4611 = vunpack.c.l.b16 %v4521
        %v4612 = vunpack.c.l.b16 %v4522
        %v4613 = vunpack.c.l.b16 %v4523
        %v4614 = vunpack.c.l.b16 %v4524
        %v4615 = vunpack.c.l.b16 %v4525
        %v4616 = vunpack.c.l.b16 %v4526
        %v4617 = vunpack.c.l.b16 %v4527
        %v4618 = vunpack.c.l.b16 %v4528
        %v4619 = vunpack.c.l.b16 %v4529
        %v4620 = vunpack.c.l.b16 %v4530
        %v4621 = vunpack.c.l.b16 %v4531
        %v4622 = vunpack.c.l.b16 %v4532
        %v4623 = vunpack.c.l.b16 %v4533
        %v4624 = vunpack.c.l.b16 %v4534
        %v4625 = vpack.c.b16 %v4610, %v4609
        %v4626 = vpack.c.b16 %v4612, %v4611
        %v4627 = vpack.c.b16 %v4614, %v4613
        %v4628 = vpack.c.b16 %v4616, %v4615
        %v4629 = vpack.c.b16 %v4618, %v4617
        %v4630 = vpack.c.b16 %v4620, %v4619
        %v4631 = vpack.c.b16 %v4622, %v4621
        %v4632 = vpack.c.b16 %v4624, %v4623
        %4641 = vmatprep.subr.bf16.mxu0 0
        %4642 = vmatpush1.bf16.msra.mxu0 %v4625
        %4643 = vmatprep.subr.bf16.mxu0 0
        %4644 = vmatpush1.bf16.msra.mxu0 %v4626
        %4645 = vmatprep.subr.bf16.mxu0 0
        %4646 = vmatpush1.bf16.msra.mxu0 %v4627
        %4647 = vmatprep.subr.bf16.mxu0 0
        %4648 = vmatpush1.bf16.msra.mxu0 %v4628
        %4649 = vmatprep.subr.bf16.mxu0 0
        %4650 = vmatpush1.bf16.msra.mxu0 %v4629
        %4651 = vmatprep.subr.bf16.mxu0 0
        %4652 = vmatpush1.bf16.msra.mxu0 %v4630
        %4653 = vmatprep.subr.bf16.mxu0 0
        %4654 = vmatpush1.bf16.msra.mxu0 %v4631
        %4655 = vmatprep.subr.bf16.mxu0 0
        %4656 = vmatpush1.bf16.msra.mxu0 %v4632
        %4657 = vmatprep.subr.bf16.mxu0 0
        %4658 = vmatpush1.bf16.msra.mxu0 0
        %4659 = vmatprep.subr.bf16.mxu0 0
        %4660 = vmatpush1.bf16.msra.mxu0 0
        %4661 = vmatprep.subr.bf16.mxu0 0
        %4662 = vmatpush1.bf16.msra.mxu0 0
        %4663 = vmatprep.subr.bf16.mxu0 0
        %4664 = vmatpush1.bf16.msra.mxu0 0
        %4665 = vmatprep.subr.bf16.mxu0 0
        %4666 = vmatpush1.bf16.msra.mxu0 0
        %4667 = vmatprep.subr.bf16.mxu0 0
        %4668 = vmatpush1.bf16.msra.mxu0 0
        %4669 = vmatprep.subr.bf16.mxu0 0
        %4670 = vmatpush1.bf16.msra.mxu0 0
        %4671 = vmatprep.subr.bf16.mxu0 0
        %4672 = vmatpush1.bf16.msra.mxu0 0
        %4673 = vmatprep.mubr.bf16.mxu0 0
        %4674 = vmatmul.mubr.bf16.gmra.mrb[0].mxu0 %v4540
        %v4675 = vpop.f32.mrb[0].mxu0
        %v4676 = vadd.f32 0.0, %v4675
        %v4677 = vpop.f32.mrb[0].mxu0
        %v4678 = vpop.f32.mrb[0].mxu0
        %v4679 = vadd.f32 0.0, %v4678
        %v4680 = vpop.f32.mrb[0].mxu0
        %4681 = vmatprep.mubr.bf16.mxu0 0
        %4682 = vmatmul.mubr.bf16.gmra.mrb[0].mxu0 %v4542
        %v4683 = vpop.f32.mrb[0].mxu0
        %v4684 = vadd.f32 0.0, %v4683
        %v4685 = vpop.f32.mrb[0].mxu0
        %v4686 = vpop.f32.mrb[0].mxu0
        %v4687 = vadd.f32 0.0, %v4686
        %v4688 = vpop.f32.mrb[0].mxu0
        %4689 = vmatprep.mubr.bf16.mxu0 0
        %4690 = vmatmul.mubr.bf16.gmra.mrb[0].mxu0 %v4544
        %v4691 = vpop.f32.mrb[0].mxu0
        %v4692 = vadd.f32 0.0, %v4691
        %v4693 = vpop.f32.mrb[0].mxu0
        %v4694 = vpop.f32.mrb[0].mxu0
        %v4695 = vadd.f32 0.0, %v4694
        %v4696 = vpop.f32.mrb[0].mxu0
        %4697 = vmatprep.mubr.bf16.mxu0 0
        %4698 = vmatmul.mubr.bf16.gmra.mrb[0].mxu0 %v4546
        %v4699 = vpop.f32.mrb[0].mxu0
        %v4700 = vadd.f32 0.0, %v4699
        %v4701 = vpop.f32.mrb[0].mxu0
        %v4702 = vpop.f32.mrb[0].mxu0
        %v4703 = vadd.f32 0.0, %v4702
        %v4704 = vpop.f32.mrb[0].mxu0
        %4705 = vmatprep.mubr.bf16.mxu0 0
        %4706 = vmatmul.mubr.bf16.gmra.mrb[0].mxu0 %v4548
        %v4707 = vpop.f32.mrb[0].mxu0
        %v4708 = vadd.f32 0.0, %v4707
        %v4709 = vpop.f32.mrb[0].mxu0
        %v4710 = vpop.f32.mrb[0].mxu0
        %v4711 = vadd.f32 0.0, %v4710
        %v4712 = vpop.f32.mrb[0].mxu0
        %4713 = vmatprep.mubr.bf16.mxu0 0
        %4714 = vmatmul.mubr.bf16.gmra.mrb[0].mxu0 %v4550
        %v4715 = vpop.f32.mrb[0].mxu0
        %v4716 = vadd.f32 0.0, %v4715
        %v4717 = vpop.f32.mrb[0].mxu0
        %v4718 = vpop.f32.mrb[0].mxu0
        %v4719 = vadd.f32 0.0, %v4718
        %v4720 = vpop.f32.mrb[0].mxu0
        %4721 = vmatprep.mubr.bf16.mxu0 0
        %4722 = vmatmul.mubr.bf16.gmra.mrb[0].mxu0 %v4552
        %v4723 = vpop.f32.mrb[0].mxu0
        %v4724 = vadd.f32 0.0, %v4723
        %v4725 = vpop.f32.mrb[0].mxu0
        %v4726 = vpop.f32.mrb[0].mxu0
        %v4727 = vadd.f32 0.0, %v4726
        %v4728 = vpop.f32.mrb[0].mxu0
        %4729 = vmatprep.mubr.bf16.mxu0 0
        %4730 = vmatmul.mubr.bf16.gmra.mrb[0].mxu0 %v4554
        %v4731 = vpop.f32.mrb[0].mxu0
        %v4732 = vadd.f32 0.0, %v4731
        %v4733 = vpop.f32.mrb[0].mxu0
        %v4734 = vpop.f32.mrb[0].mxu0
        %v4735 = vadd.f32 0.0, %v4734
        %v4736 = vpop.f32.mrb[0].mxu0
        %4737 = vmatprep.mubr.bf16.mxu0 0
        %4738 = vmatmul.mubr.bf16.gmra.mrb[0].mxu0 %v4556
        %v4739 = vpop.f32.mrb[0].mxu0
        %v4740 = vadd.f32 0.0, %v4739
        %v4741 = vpop.f32.mrb[0].mxu0
        %v4742 = vpop.f32.mrb[0].mxu0
        %v4743 = vadd.f32 0.0, %v4742
        %v4744 = vpop.f32.mrb[0].mxu0
        %4745 = vmatprep.mubr.bf16.mxu0 0
        %4746 = vmatmul.mubr.bf16.gmra.mrb[0].mxu0 %v4558
        %v4747 = vpop.f32.mrb[0].mxu0
        %v4748 = vadd.f32 0.0, %v4747
        %v4749 = vpop.f32.mrb[0].mxu0
        %v4750 = vpop.f32.mrb[0].mxu0
        %v4751 = vadd.f32 0.0, %v4750
        %v4752 = vpop.f32.mrb[0].mxu0
        %4753 = vmatprep.mubr.bf16.mxu0 0
        %4754 = vmatmul.mubr.bf16.gmra.mrb[0].mxu0 %v4560
        %v4755 = vpop.f32.mrb[0].mxu0
        %v4756 = vadd.f32 0.0, %v4755
        %v4757 = vpop.f32.mrb[0].mxu0
        %v4758 = vpop.f32.mrb[0].mxu0
        %v4759 = vadd.f32 0.0, %v4758
        %v4760 = vpop.f32.mrb[0].mxu0
        %4761 = vmatprep.mubr.bf16.mxu0 0
        %4762 = vmatmul.mubr.bf16.gmra.mrb[0].mxu0 %v4562
        %v4763 = vpop.f32.mrb[0].mxu0
        %v4764 = vadd.f32 0.0, %v4763
        %v4765 = vpop.f32.mrb[0].mxu0
        %v4766 = vpop.f32.mrb[0].mxu0
        %v4767 = vadd.f32 0.0, %v4766
        %v4768 = vpop.f32.mrb[0].mxu0
        %4769 = vmatprep.mubr.bf16.mxu0 0
        %4770 = vmatmul.mubr.bf16.gmra.mrb[0].mxu0 %v4564
        %v4771 = vpop.f32.mrb[0].mxu0
        %v4772 = vadd.f32 0.0, %v4771
        %v4773 = vpop.f32.mrb[0].mxu0
        %v4774 = vpop.f32.mrb[0].mxu0
        %v4775 = vadd.f32 0.0, %v4774
        %v4776 = vpop.f32.mrb[0].mxu0
        %4777 = vmatprep.mubr.bf16.mxu0 0
        %4778 = vmatmul.mubr.bf16.gmra.mrb[0].mxu0 %v4566
        %v4779 = vpop.f32.mrb[0].mxu0
        %v4780 = vadd.f32 0.0, %v4779
        %v4781 = vpop.f32.mrb[0].mxu0
        %v4782 = vpop.f32.mrb[0].mxu0
        %v4783 = vadd.f32 0.0, %v4782
        %v4784 = vpop.f32.mrb[0].mxu0
        %4785 = vmatprep.mubr.bf16.mxu0 0
        %4786 = vmatmul.mubr.bf16.gmra.mrb[0].mxu0 %v4568
        %v4787 = vpop.f32.mrb[0].mxu0
        %v4788 = vadd.f32 0.0, %v4787
        %v4789 = vpop.f32.mrb[0].mxu0
        %v4790 = vpop.f32.mrb[0].mxu0
        %v4791 = vadd.f32 0.0, %v4790
        %v4792 = vpop.f32.mrb[0].mxu0
        %4793 = vmatprep.mubr.bf16.mxu0 0
        %4794 = vmatmul.mubr.bf16.gmra.mrb[0].mxu0 %v4570
        %v4795 = vpop.f32.mrb[0].mxu0
        %v4796 = vadd.f32 0.0, %v4795
        %v4797 = vpop.f32.mrb[0].mxu0
        %v4798 = vpop.f32.mrb[0].mxu0
        %v4799 = vadd.f32 0.0, %v4798
        %v4800 = vpop.f32.mrb[0].mxu0
        %4801 = vmatprep.mubr.bf16.mxu0 0
        %4802 = vmatmul.mubr.bf16.gmra.mrb[0].mxu0 %v4572
        %v4803 = vpop.f32.mrb[0].mxu0
        %v4804 = vadd.f32 0.0, %v4803
        %v4805 = vpop.f32.mrb[0].mxu0
        %v4806 = vpop.f32.mrb[0].mxu0
        %v4807 = vadd.f32 0.0, %v4806
        %v4808 = vpop.f32.mrb[0].mxu0
        %4809 = vmatprep.mubr.bf16.mxu0 0
        %4810 = vmatmul.mubr.bf16.gmra.mrb[0].mxu0 %v4574
        %v4811 = vpop.f32.mrb[0].mxu0
        %v4812 = vadd.f32 0.0, %v4811
        %v4813 = vpop.f32.mrb[0].mxu0
        %v4814 = vpop.f32.mrb[0].mxu0
        %v4815 = vadd.f32 0.0, %v4814
        %v4816 = vpop.f32.mrb[0].mxu0
        %4817 = vdwg.mxu0
        %v4818 = vadd.f32 %v4481, %v4676
        %v4819 = vadd.f32 %v4482, %v4679
        %v4820 = vadd.f32 %v4483, %v4684
        %v4821 = vadd.f32 %v4484, %v4687
        %v4822 = vadd.f32 %v4485, %v4692
        %v4823 = vadd.f32 %v4486, %v4695
        %v4824 = vadd.f32 %v4487, %v4700
        %v4825 = vadd.f32 %v4488, %v4703
        %v4826 = vadd.f32 %v4489, %v4708
        %v4827 = vadd.f32 %v4490, %v4711
        %v4828 = vadd.f32 %v4491, %v4716
        %v4829 = vadd.f32 %v4492, %v4719
        %v4830 = vadd.f32 %v4493, %v4724
        %v4831 = vadd.f32 %v4494, %v4727
        %v4832 = vadd.f32 %v4495, %v4732
        %v4833 = vadd.f32 %v4496, %v4735
        %v4834 = vadd.f32 %v4497, %v4740
        %v4835 = vadd.f32 %v4498, %v4743
        %v4836 = vadd.f32 %v4499, %v4748
        %v4837 = vadd.f32 %v4500, %v4751
        %v4838 = vadd.f32 %v4501, %v4756
        %v4839 = vadd.f32 %v4502, %v4759
        %v4840 = vadd.f32 %v4503, %v4764
        %v4841 = vadd.f32 %v4504, %v4767
        %v4842 = vadd.f32 %v4505, %v4772
        %v4843 = vadd.f32 %v4506, %v4775
        %v4844 = vadd.f32 %v4507, %v4780
        %v4845 = vadd.f32 %v4508, %v4783
        %v4846 = vadd.f32 %v4509, %v4788
        %v4847 = vadd.f32 %v4510, %v4791
        %v4848 = vadd.f32 %v4511, %v4796
        %v4849 = vadd.f32 %v4512, %v4799
        %v4850 = vadd.f32 %v4513, %v4804
        %v4851 = vadd.f32 %v4514, %v4807
        %v4852 = vadd.f32 %v4515, %v4812
        %v4853 = vadd.f32 %v4516, %v4815
        %v4854 = vld [vmem:[#allocation2 + $0x10] sm:$0xfc]
        %v4855 = vld [vmem:[#allocation2 + $0x18] sm:$0xff]
        %v4856 = vld [vmem:[#allocation2 + $0x20] sm:$0xff]
        %v4857 = vld [vmem:[#allocation2 + $0x28] sm:$0xff]
        %v4858 = vld [vmem:[#allocation2 + $0x30] sm:$0xff]
        %v4859 = vld [vmem:[#allocation2 + $0x38] sm:$0xff]
        %v4860 = vld [vmem:[#allocation2 + $0x40] sm:$0xff]
        %v4861 = vld [vmem:[#allocation2 + $0x48] sm:$0xff]
        %v4862 = vld [vmem:[#allocation2 + $0x50] sm:$0xff]
        %v4863 = vld [vmem:[#allocation2 + $0x58] sm:$0xff]
        %v4864 = vld [vmem:[#allocation2 + $0x60] sm:$0xff]
        %v4865 = vld [vmem:[#allocation2 + $0x68] sm:$0xff]
        %v4866 = vld [vmem:[#allocation2 + $0x70] sm:$0xff]
        %v4867 = vld [vmem:[#allocation2 + $0x78] sm:$0xff]
        %v4868 = vld [vmem:[#allocation2 + $0x80] sm:$0xff]
        %v4869 = vld [vmem:[#allocation2 + $0x88] sm:$0xff]
        %v4870 = vld [vmem:[#allocation2 + $0x90] sm:$0xff]
        %v4871 = vld [vmem:[#allocation2 + $0x98] sm:$0xff]
        %v4872 = vld [vmem:[#allocation2 + $0xa0] sm:$0x3]
        %s4873 = scalar_lea.vmem [#allocation7], 384
        %v4874 = vld [vmem:[%s4873] sm:$0xf]
        %v4875 = vld [vmem:[%s4873 + $0x4] sm:$0xf]
        %v4876 = vld [vmem:[%s4873 + $0x8] sm:$0xf]
        %v4877 = vld [vmem:[%s4873 + $0xc] sm:$0xf]
        %v4878 = vld [vmem:[%s4873 + $0x10] sm:$0xf]
        %v4879 = vld [vmem:[%s4873 + $0x14] sm:$0xf]
        %v4880 = vld [vmem:[%s4873 + $0x18] sm:$0xf]
        %v4881 = vld [vmem:[%s4873 + $0x1c] sm:$0xf]
        %v4882 = vld [vmem:[%s4873 + $0x20] sm:$0xf]
        %v4883 = vld [vmem:[%s4873 + $0x24] sm:$0xf]
        %v4884 = vld [vmem:[%s4873 + $0x28] sm:$0xf]
        %v4885 = vld [vmem:[%s4873 + $0x2c] sm:$0xf]
        %v4886 = vld [vmem:[%s4873 + $0x30] sm:$0xf]
        %v4887 = vld [vmem:[%s4873 + $0x34] sm:$0xf]
        %v4888 = vld [vmem:[%s4873 + $0x38] sm:$0xf]
        %v4889 = vld [vmem:[%s4873 + $0x3c] sm:$0xf]
        %v4909 = vrot.slane %v4854, 2
        %v4910 = vrot.slane %v4855, 2
        %v4911 = vsel %vm4537, %v4909, %v4910
        %v4912 = vrot.slane %v4856, 2
        %v4913 = vsel %vm4537, %v4910, %v4912
        %v4914 = vrot.slane %v4857, 2
        %v4915 = vsel %vm4537, %v4912, %v4914
        %v4916 = vrot.slane %v4858, 2
        %v4917 = vsel %vm4537, %v4914, %v4916
        %v4918 = vrot.slane %v4859, 2
        %v4919 = vsel %vm4537, %v4916, %v4918
        %v4920 = vrot.slane %v4860, 2
        %v4921 = vsel %vm4537, %v4918, %v4920
        %v4922 = vrot.slane %v4861, 2
        %v4923 = vsel %vm4537, %v4920, %v4922
        %v4924 = vrot.slane %v4862, 2
        %v4925 = vsel %vm4537, %v4922, %v4924
        %v4926 = vrot.slane %v4863, 2
        %v4927 = vsel %vm4537, %v4924, %v4926
        %v4928 = vrot.slane %v4864, 2
        %v4929 = vsel %vm4537, %v4926, %v4928
        %v4930 = vrot.slane %v4865, 2
        %v4931 = vsel %vm4537, %v4928, %v4930
        %v4932 = vrot.slane %v4866, 2
        %v4933 = vsel %vm4537, %v4930, %v4932
        %v4934 = vrot.slane %v4867, 2
        %v4935 = vsel %vm4537, %v4932, %v4934
        %v4936 = vrot.slane %v4868, 2
        %v4937 = vsel %vm4537, %v4934, %v4936
        %v4938 = vrot.slane %v4869, 2
        %v4939 = vsel %vm4537, %v4936, %v4938
        %v4940 = vrot.slane %v4870, 2
        %v4941 = vsel %vm4537, %v4938, %v4940
        %v4942 = vrot.slane %v4871, 2
        %v4943 = vsel %vm4537, %v4940, %v4942
        %v4944 = vrot.slane %v4872, 2
        %v4945 = vsel %vm4537, %v4942, %v4944
        %v4980 = vunpack.c.l.b16 %v4874
        %v4981 = vunpack.c.l.b16 %v4875
        %v4982 = vunpack.c.l.b16 %v4876
        %v4983 = vunpack.c.l.b16 %v4877
        %v4984 = vunpack.c.l.b16 %v4878
        %v4985 = vunpack.c.l.b16 %v4879
        %v4986 = vunpack.c.l.b16 %v4880
        %v4987 = vunpack.c.l.b16 %v4881
        %v4988 = vunpack.c.l.b16 %v4882
        %v4989 = vunpack.c.l.b16 %v4883
        %v4990 = vunpack.c.l.b16 %v4884
        %v4991 = vunpack.c.l.b16 %v4885
        %v4992 = vunpack.c.l.b16 %v4886
        %v4993 = vunpack.c.l.b16 %v4887
        %v4994 = vunpack.c.l.b16 %v4888
        %v4995 = vunpack.c.l.b16 %v4889
        %v4996 = vpack.c.b16 %v4981, %v4980
        %v4997 = vpack.c.b16 %v4983, %v4982
        %v4998 = vpack.c.b16 %v4985, %v4984
        %v4999 = vpack.c.b16 %v4987, %v4986
        %v5000 = vpack.c.b16 %v4989, %v4988
        %v5001 = vpack.c.b16 %v4991, %v4990
        %v5002 = vpack.c.b16 %v4993, %v4992
        %v5003 = vpack.c.b16 %v4995, %v4994
        %5012 = vmatprep.subr.bf16.mxu0 0
        %5013 = vmatpush1.bf16.msra.mxu0 %v4996
        %5014 = vmatprep.subr.bf16.mxu0 0
        %5015 = vmatpush1.bf16.msra.mxu0 %v4997
        %5016 = vmatprep.subr.bf16.mxu0 0
        %5017 = vmatpush1.bf16.msra.mxu0 %v4998
        %5018 = vmatprep.subr.bf16.mxu0 0
        %5019 = vmatpush1.bf16.msra.mxu0 %v4999
        %5020 = vmatprep.subr.bf16.mxu0 0
        %5021 = vmatpush1.bf16.msra.mxu0 %v5000
        %5022 = vmatprep.subr.bf16.mxu0 0
        %5023 = vmatpush1.bf16.msra.mxu0 %v5001
        %5024 = vmatprep.subr.bf16.mxu0 0
        %5025 = vmatpush1.bf16.msra.mxu0 %v5002
        %5026 = vmatprep.subr.bf16.mxu0 0
        %5027 = vmatpush1.bf16.msra.mxu0 %v5003
        %5028 = vmatprep.subr.bf16.mxu0 0
        %5029 = vmatpush1.bf16.msra.mxu0 0
        %5030 = vmatprep.subr.bf16.mxu0 0
        %5031 = vmatpush1.bf16.msra.mxu0 0
        %5032 = vmatprep.subr.bf16.mxu0 0
        %5033 = vmatpush1.bf16.msra.mxu0 0
        %5034 = vmatprep.subr.bf16.mxu0 0
        %5035 = vmatpush1.bf16.msra.mxu0 0
        %5036 = vmatprep.subr.bf16.mxu0 0
        %5037 = vmatpush1.bf16.msra.mxu0 0
        %5038 = vmatprep.subr.bf16.mxu0 0
        %5039 = vmatpush1.bf16.msra.mxu0 0
        %5040 = vmatprep.subr.bf16.mxu0 0
        %5041 = vmatpush1.bf16.msra.mxu0 0
        %5042 = vmatprep.subr.bf16.mxu0 0
        %5043 = vmatpush1.bf16.msra.mxu0 0
        %5044 = vmatprep.mubr.bf16.mxu0 0
        %5045 = vmatmul.mubr.bf16.gmra.mrb[0].mxu0 %v4911
        %v5046 = vpop.f32.mrb[0].mxu0
        %v5047 = vadd.f32 0.0, %v5046
        %v5048 = vpop.f32.mrb[0].mxu0
        %v5049 = vpop.f32.mrb[0].mxu0
        %v5050 = vadd.f32 0.0, %v5049
        %v5051 = vpop.f32.mrb[0].mxu0
        %5052 = vmatprep.mubr.bf16.mxu0 0
        %5053 = vmatmul.mubr.bf16.gmra.mrb[0].mxu0 %v4913
        %v5054 = vpop.f32.mrb[0].mxu0
        %v5055 = vadd.f32 0.0, %v5054
        %v5056 = vpop.f32.mrb[0].mxu0
        %v5057 = vpop.f32.mrb[0].mxu0
        %v5058 = vadd.f32 0.0, %v5057
        %v5059 = vpop.f32.mrb[0].mxu0
        %5060 = vmatprep.mubr.bf16.mxu0 0
        %5061 = vmatmul.mubr.bf16.gmra.mrb[0].mxu0 %v4915
        %v5062 = vpop.f32.mrb[0].mxu0
        %v5063 = vadd.f32 0.0, %v5062
        %v5064 = vpop.f32.mrb[0].mxu0
        %v5065 = vpop.f32.mrb[0].mxu0
        %v5066 = vadd.f32 0.0, %v5065
        %v5067 = vpop.f32.mrb[0].mxu0
        %5068 = vmatprep.mubr.bf16.mxu0 0
        %5069 = vmatmul.mubr.bf16.gmra.mrb[0].mxu0 %v4917
        %v5070 = vpop.f32.mrb[0].mxu0
        %v5071 = vadd.f32 0.0, %v5070
        %v5072 = vpop.f32.mrb[0].mxu0
        %v5073 = vpop.f32.mrb[0].mxu0
        %v5074 = vadd.f32 0.0, %v5073
        %v5075 = vpop.f32.mrb[0].mxu0
        %5076 = vmatprep.mubr.bf16.mxu0 0
        %5077 = vmatmul.mubr.bf16.gmra.mrb[0].mxu0 %v4919
        %v5078 = vpop.f32.mrb[0].mxu0
        %v5079 = vadd.f32 0.0, %v5078
        %v5080 = vpop.f32.mrb[0].mxu0
        %v5081 = vpop.f32.mrb[0].mxu0
        %v5082 = vadd.f32 0.0, %v5081
        %v5083 = vpop.f32.mrb[0].mxu0
        %5084 = vmatprep.mubr.bf16.mxu0 0
        %5085 = vmatmul.mubr.bf16.gmra.mrb[0].mxu0 %v4921
        %v5086 = vpop.f32.mrb[0].mxu0
        %v5087 = vadd.f32 0.0, %v5086
        %v5088 = vpop.f32.mrb[0].mxu0
        %v5089 = vpop.f32.mrb[0].mxu0
        %v5090 = vadd.f32 0.0, %v5089
        %v5091 = vpop.f32.mrb[0].mxu0
        %5092 = vmatprep.mubr.bf16.mxu0 0
        %5093 = vmatmul.mubr.bf16.gmra.mrb[0].mxu0 %v4923
        %v5094 = vpop.f32.mrb[0].mxu0
        %v5095 = vadd.f32 0.0, %v5094
        %v5096 = vpop.f32.mrb[0].mxu0
        %v5097 = vpop.f32.mrb[0].mxu0
        %v5098 = vadd.f32 0.0, %v5097
        %v5099 = vpop.f32.mrb[0].mxu0
        %5100 = vmatprep.mubr.bf16.mxu0 0
        %5101 = vmatmul.mubr.bf16.gmra.mrb[0].mxu0 %v4925
        %v5102 = vpop.f32.mrb[0].mxu0
        %v5103 = vadd.f32 0.0, %v5102
        %v5104 = vpop.f32.mrb[0].mxu0
        %v5105 = vpop.f32.mrb[0].mxu0
        %v5106 = vadd.f32 0.0, %v5105
        %v5107 = vpop.f32.mrb[0].mxu0
        %5108 = vmatprep.mubr.bf16.mxu0 0
        %5109 = vmatmul.mubr.bf16.gmra.mrb[0].mxu0 %v4927
        %v5110 = vpop.f32.mrb[0].mxu0
        %v5111 = vadd.f32 0.0, %v5110
        %v5112 = vpop.f32.mrb[0].mxu0
        %v5113 = vpop.f32.mrb[0].mxu0
        %v5114 = vadd.f32 0.0, %v5113
        %v5115 = vpop.f32.mrb[0].mxu0
        %5116 = vmatprep.mubr.bf16.mxu0 0
        %5117 = vmatmul.mubr.bf16.gmra.mrb[0].mxu0 %v4929
        %v5118 = vpop.f32.mrb[0].mxu0
        %v5119 = vadd.f32 0.0, %v5118
        %v5120 = vpop.f32.mrb[0].mxu0
        %v5121 = vpop.f32.mrb[0].mxu0
        %v5122 = vadd.f32 0.0, %v5121
        %v5123 = vpop.f32.mrb[0].mxu0
        %5124 = vmatprep.mubr.bf16.mxu0 0
        %5125 = vmatmul.mubr.bf16.gmra.mrb[0].mxu0 %v4931
        %v5126 = vpop.f32.mrb[0].mxu0
        %v5127 = vadd.f32 0.0, %v5126
        %v5128 = vpop.f32.mrb[0].mxu0
        %v5129 = vpop.f32.mrb[0].mxu0
        %v5130 = vadd.f32 0.0, %v5129
        %v5131 = vpop.f32.mrb[0].mxu0
        %5132 = vmatprep.mubr.bf16.mxu0 0
        %5133 = vmatmul.mubr.bf16.gmra.mrb[0].mxu0 %v4933
        %v5134 = vpop.f32.mrb[0].mxu0
        %v5135 = vadd.f32 0.0, %v5134
        %v5136 = vpop.f32.mrb[0].mxu0
        %v5137 = vpop.f32.mrb[0].mxu0
        %v5138 = vadd.f32 0.0, %v5137
        %v5139 = vpop.f32.mrb[0].mxu0
        %5140 = vmatprep.mubr.bf16.mxu0 0
        %5141 = vmatmul.mubr.bf16.gmra.mrb[0].mxu0 %v4935
        %v5142 = vpop.f32.mrb[0].mxu0
        %v5143 = vadd.f32 0.0, %v5142
        %v5144 = vpop.f32.mrb[0].mxu0
        %v5145 = vpop.f32.mrb[0].mxu0
        %v5146 = vadd.f32 0.0, %v5145
        %v5147 = vpop.f32.mrb[0].mxu0
        %5148 = vmatprep.mubr.bf16.mxu0 0
        %5149 = vmatmul.mubr.bf16.gmra.mrb[0].mxu0 %v4937
        %v5150 = vpop.f32.mrb[0].mxu0
        %v5151 = vadd.f32 0.0, %v5150
        %v5152 = vpop.f32.mrb[0].mxu0
        %v5153 = vpop.f32.mrb[0].mxu0
        %v5154 = vadd.f32 0.0, %v5153
        %v5155 = vpop.f32.mrb[0].mxu0
        %5156 = vmatprep.mubr.bf16.mxu0 0
        %5157 = vmatmul.mubr.bf16.gmra.mrb[0].mxu0 %v4939
        %v5158 = vpop.f32.mrb[0].mxu0
        %v5159 = vadd.f32 0.0, %v5158
        %v5160 = vpop.f32.mrb[0].mxu0
        %v5161 = vpop.f32.mrb[0].mxu0
        %v5162 = vadd.f32 0.0, %v5161
        %v5163 = vpop.f32.mrb[0].mxu0
        %5164 = vmatprep.mubr.bf16.mxu0 0
        %5165 = vmatmul.mubr.bf16.gmra.mrb[0].mxu0 %v4941
        %v5166 = vpop.f32.mrb[0].mxu0
        %v5167 = vadd.f32 0.0, %v5166
        %v5168 = vpop.f32.mrb[0].mxu0
        %v5169 = vpop.f32.mrb[0].mxu0
        %v5170 = vadd.f32 0.0, %v5169
        %v5171 = vpop.f32.mrb[0].mxu0
        %5172 = vmatprep.mubr.bf16.mxu0 0
        %5173 = vmatmul.mubr.bf16.gmra.mrb[0].mxu0 %v4943
        %v5174 = vpop.f32.mrb[0].mxu0
        %v5175 = vadd.f32 0.0, %v5174
        %v5176 = vpop.f32.mrb[0].mxu0
        %v5177 = vpop.f32.mrb[0].mxu0
        %v5178 = vadd.f32 0.0, %v5177
        %v5179 = vpop.f32.mrb[0].mxu0
        %5180 = vmatprep.mubr.bf16.mxu0 0
        %5181 = vmatmul.mubr.bf16.gmra.mrb[0].mxu0 %v4945
        %v5182 = vpop.f32.mrb[0].mxu0
        %v5183 = vadd.f32 0.0, %v5182
        %v5184 = vpop.f32.mrb[0].mxu0
        %v5185 = vpop.f32.mrb[0].mxu0
        %v5186 = vadd.f32 0.0, %v5185
        %v5187 = vpop.f32.mrb[0].mxu0
        %5188 = vdwg.mxu0
        %v5189 = vadd.f32 %v4818, %v5047
        %v5190 = vadd.f32 %v4819, %v5050
        %v5191 = vadd.f32 %v4820, %v5055
        %v5192 = vadd.f32 %v4821, %v5058
        %v5193 = vadd.f32 %v4822, %v5063
        %v5194 = vadd.f32 %v4823, %v5066
        %v5195 = vadd.f32 %v4824, %v5071
        %v5196 = vadd.f32 %v4825, %v5074
        %v5197 = vadd.f32 %v4826, %v5079
        %v5198 = vadd.f32 %v4827, %v5082
        %v5199 = vadd.f32 %v4828, %v5087
        %v5200 = vadd.f32 %v4829, %v5090
        %v5201 = vadd.f32 %v4830, %v5095
        %v5202 = vadd.f32 %v4831, %v5098
        %v5203 = vadd.f32 %v4832, %v5103
        %v5204 = vadd.f32 %v4833, %v5106
        %v5205 = vadd.f32 %v4834, %v5111
        %v5206 = vadd.f32 %v4835, %v5114
        %v5207 = vadd.f32 %v4836, %v5119
        %v5208 = vadd.f32 %v4837, %v5122
        %v5209 = vadd.f32 %v4838, %v5127
        %v5210 = vadd.f32 %v4839, %v5130
        %v5211 = vadd.f32 %v4840, %v5135
        %v5212 = vadd.f32 %v4841, %v5138
        %v5213 = vadd.f32 %v4842, %v5143
        %v5214 = vadd.f32 %v4843, %v5146
        %v5215 = vadd.f32 %v4844, %v5151
        %v5216 = vadd.f32 %v4845, %v5154
        %v5217 = vadd.f32 %v4846, %v5159
        %v5218 = vadd.f32 %v4847, %v5162
        %v5219 = vadd.f32 %v4848, %v5167
        %v5220 = vadd.f32 %v4849, %v5170
        %v5221 = vadd.f32 %v4850, %v5175
        %v5222 = vadd.f32 %v4851, %v5178
        %v5223 = vadd.f32 %v4852, %v5183
        %v5224 = vadd.f32 %v4853, %v5186
        %v5225 = vld [vmem:[#allocation2 + $0xa0] sm:$0x7]
        %s5226 = scalar_lea.vmem [#allocation7], 448
        %v5227 = vld [vmem:[%s5226] sm:$0xf]
        %v5228 = vld [vmem:[%s5226 + $0x4] sm:$0xf]
        %v5229 = vld [vmem:[%s5226 + $0x8] sm:$0xf]
        %v5230 = vld [vmem:[%s5226 + $0xc] sm:$0xf]
        %v5231 = vld [vmem:[%s5226 + $0x10] sm:$0xf]
        %v5232 = vld [vmem:[%s5226 + $0x14] sm:$0xf]
        %v5233 = vld [vmem:[%s5226 + $0x18] sm:$0xf]
        %v5234 = vld [vmem:[%s5226 + $0x1c] sm:$0xf]
        %v5235 = vld [vmem:[%s5226 + $0x20] sm:$0xf]
        %v5236 = vld [vmem:[%s5226 + $0x24] sm:$0xf]
        %v5237 = vld [vmem:[%s5226 + $0x28] sm:$0xf]
        %v5238 = vld [vmem:[%s5226 + $0x2c] sm:$0xf]
        %v5239 = vld [vmem:[%s5226 + $0x30] sm:$0xf]
        %v5240 = vld [vmem:[%s5226 + $0x34] sm:$0xf]
        %v5241 = vld [vmem:[%s5226 + $0x38] sm:$0xf]
        %v5242 = vld [vmem:[%s5226 + $0x3c] sm:$0xf]
        %vm5243 = vsmask.f32 5376
        %v5245 = vshrl.u32 %v4854, 16
        %v5247 = vrot.slane %v5245, 2
        %v5248 = vshll.u32 %v4854, 16
        %v5250 = vrot.slane %v5248, 3
        %v5251 = vor.u32 %v5247, %v5250
        %v5253 = vshrl.u32 %v4855, 16
        %v5255 = vrot.slane %v5253, 2
        %v5256 = vshll.u32 %v4855, 16
        %v5258 = vrot.slane %v5256, 3
        %v5259 = vor.u32 %v5255, %v5258
        %v5260 = vsel %vm5243, %v5251, %v5259
        %v5262 = vshrl.u32 %v4856, 16
        %v5264 = vrot.slane %v5262, 2
        %v5265 = vshll.u32 %v4856, 16
        %v5267 = vrot.slane %v5265, 3
        %v5268 = vor.u32 %v5264, %v5267
        %v5269 = vsel %vm5243, %v5259, %v5268
        %v5271 = vshrl.u32 %v4857, 16
        %v5273 = vrot.slane %v5271, 2
        %v5274 = vshll.u32 %v4857, 16
        %v5276 = vrot.slane %v5274, 3
        %v5277 = vor.u32 %v5273, %v5276
        %v5278 = vsel %vm5243, %v5268, %v5277
        %v5280 = vshrl.u32 %v4858, 16
        %v5282 = vrot.slane %v5280, 2
        %v5283 = vshll.u32 %v4858, 16
        %v5285 = vrot.slane %v5283, 3
        %v5286 = vor.u32 %v5282, %v5285
        %v5287 = vsel %vm5243, %v5277, %v5286
        %v5289 = vshrl.u32 %v4859, 16
        %v5291 = vrot.slane %v5289, 2
        %v5292 = vshll.u32 %v4859, 16
        %v5294 = vrot.slane %v5292, 3
        %v5295 = vor.u32 %v5291, %v5294
        %v5296 = vsel %vm5243, %v5286, %v5295
        %v5298 = vshrl.u32 %v4860, 16
        %v5300 = vrot.slane %v5298, 2
        %v5301 = vshll.u32 %v4860, 16
        %v5303 = vrot.slane %v5301, 3
        %v5304 = vor.u32 %v5300, %v5303
        %v5305 = vsel %vm5243, %v5295, %v5304
        %v5307 = vshrl.u32 %v4861, 16
        %v5309 = vrot.slane %v5307, 2
        %v5310 = vshll.u32 %v4861, 16
        %v5312 = vrot.slane %v5310, 3
        %v5313 = vor.u32 %v5309, %v5312
        %v5314 = vsel %vm5243, %v5304, %v5313
        %v5316 = vshrl.u32 %v4862, 16
        %v5318 = vrot.slane %v5316, 2
        %v5319 = vshll.u32 %v4862, 16
        %v5321 = vrot.slane %v5319, 3
        %v5322 = vor.u32 %v5318, %v5321
        %v5323 = vsel %vm5243, %v5313, %v5322
        %v5325 = vshrl.u32 %v4863, 16
        %v5327 = vrot.slane %v5325, 2
        %v5328 = vshll.u32 %v4863, 16
        %v5330 = vrot.slane %v5328, 3
        %v5331 = vor.u32 %v5327, %v5330
        %v5332 = vsel %vm5243, %v5322, %v5331
        %v5334 = vshrl.u32 %v4864, 16
        %v5336 = vrot.slane %v5334, 2
        %v5337 = vshll.u32 %v4864, 16
        %v5339 = vrot.slane %v5337, 3
        %v5340 = vor.u32 %v5336, %v5339
        %v5341 = vsel %vm5243, %v5331, %v5340
        %v5343 = vshrl.u32 %v4865, 16
        %v5345 = vrot.slane %v5343, 2
        %v5346 = vshll.u32 %v4865, 16
        %v5348 = vrot.slane %v5346, 3
        %v5349 = vor.u32 %v5345, %v5348
        %v5350 = vsel %vm5243, %v5340, %v5349
        %v5352 = vshrl.u32 %v4866, 16
        %v5354 = vrot.slane %v5352, 2
        %v5355 = vshll.u32 %v4866, 16
        %v5357 = vrot.slane %v5355, 3
        %v5358 = vor.u32 %v5354, %v5357
        %v5359 = vsel %vm5243, %v5349, %v5358
        %v5361 = vshrl.u32 %v4867, 16
        %v5363 = vrot.slane %v5361, 2
        %v5364 = vshll.u32 %v4867, 16
        %v5366 = vrot.slane %v5364, 3
        %v5367 = vor.u32 %v5363, %v5366
        %v5368 = vsel %vm5243, %v5358, %v5367
        %v5370 = vshrl.u32 %v4868, 16
        %v5372 = vrot.slane %v5370, 2
        %v5373 = vshll.u32 %v4868, 16
        %v5375 = vrot.slane %v5373, 3
        %v5376 = vor.u32 %v5372, %v5375
        %v5377 = vsel %vm5243, %v5367, %v5376
        %v5379 = vshrl.u32 %v4869, 16
        %v5381 = vrot.slane %v5379, 2
        %v5382 = vshll.u32 %v4869, 16
        %v5384 = vrot.slane %v5382, 3
        %v5385 = vor.u32 %v5381, %v5384
        %v5386 = vsel %vm5243, %v5376, %v5385
        %v5388 = vshrl.u32 %v4870, 16
        %v5390 = vrot.slane %v5388, 2
        %v5391 = vshll.u32 %v4870, 16
        %v5393 = vrot.slane %v5391, 3
        %v5394 = vor.u32 %v5390, %v5393
        %v5395 = vsel %vm5243, %v5385, %v5394
        %v5397 = vshrl.u32 %v4871, 16
        %v5399 = vrot.slane %v5397, 2
        %v5400 = vshll.u32 %v4871, 16
        %v5402 = vrot.slane %v5400, 3
        %v5403 = vor.u32 %v5399, %v5402
        %v5404 = vsel %vm5243, %v5394, %v5403
        %v5406 = vshrl.u32 %v5225, 16
        %v5408 = vrot.slane %v5406, 2
        %v5409 = vshll.u32 %v5225, 16
        %v5411 = vrot.slane %v5409, 3
        %v5412 = vor.u32 %v5408, %v5411
        %v5413 = vsel %vm5243, %v5403, %v5412
        %v5448 = vunpack.c.l.b16 %v5227
        %v5449 = vunpack.c.l.b16 %v5228
        %v5450 = vunpack.c.l.b16 %v5229
        %v5451 = vunpack.c.l.b16 %v5230
        %v5452 = vunpack.c.l.b16 %v5231
        %v5453 = vunpack.c.l.b16 %v5232
        %v5454 = vunpack.c.l.b16 %v5233
        %v5455 = vunpack.c.l.b16 %v5234
        %v5456 = vunpack.c.l.b16 %v5235
        %v5457 = vunpack.c.l.b16 %v5236
        %v5458 = vunpack.c.l.b16 %v5237
        %v5459 = vunpack.c.l.b16 %v5238
        %v5460 = vunpack.c.l.b16 %v5239
        %v5461 = vunpack.c.l.b16 %v5240
        %v5462 = vunpack.c.l.b16 %v5241
        %v5463 = vunpack.c.l.b16 %v5242
        %v5464 = vpack.c.b16 %v5449, %v5448
        %v5465 = vpack.c.b16 %v5451, %v5450
        %v5466 = vpack.c.b16 %v5453, %v5452
        %v5467 = vpack.c.b16 %v5455, %v5454
        %v5468 = vpack.c.b16 %v5457, %v5456
        %v5469 = vpack.c.b16 %v5459, %v5458
        %v5470 = vpack.c.b16 %v5461, %v5460
        %v5471 = vpack.c.b16 %v5463, %v5462
        %5480 = vmatprep.subr.bf16.mxu0 0
        %5481 = vmatpush1.bf16.msra.mxu0 %v5464
        %5482 = vmatprep.subr.bf16.mxu0 0
        %5483 = vmatpush1.bf16.msra.mxu0 %v5465
        %5484 = vmatprep.subr.bf16.mxu0 0
        %5485 = vmatpush1.bf16.msra.mxu0 %v5466
        %5486 = vmatprep.subr.bf16.mxu0 0
        %5487 = vmatpush1.bf16.msra.mxu0 %v5467
        %5488 = vmatprep.subr.bf16.mxu0 0
        %5489 = vmatpush1.bf16.msra.mxu0 %v5468
        %5490 = vmatprep.subr.bf16.mxu0 0
        %5491 = vmatpush1.bf16.msra.mxu0 %v5469
        %5492 = vmatprep.subr.bf16.mxu0 0
        %5493 = vmatpush1.bf16.msra.mxu0 %v5470
        %5494 = vmatprep.subr.bf16.mxu0 0
        %5495 = vmatpush1.bf16.msra.mxu0 %v5471
        %5496 = vmatprep.subr.bf16.mxu0 0
        %5497 = vmatpush1.bf16.msra.mxu0 0
        %5498 = vmatprep.subr.bf16.mxu0 0
        %5499 = vmatpush1.bf16.msra.mxu0 0
        %5500 = vmatprep.subr.bf16.mxu0 0
        %5501 = vmatpush1.bf16.msra.mxu0 0
        %5502 = vmatprep.subr.bf16.mxu0 0
        %5503 = vmatpush1.bf16.msra.mxu0 0
        %5504 = vmatprep.subr.bf16.mxu0 0
        %5505 = vmatpush1.bf16.msra.mxu0 0
        %5506 = vmatprep.subr.bf16.mxu0 0
        %5507 = vmatpush1.bf16.msra.mxu0 0
        %5508 = vmatprep.subr.bf16.mxu0 0
        %5509 = vmatpush1.bf16.msra.mxu0 0
        %5510 = vmatprep.subr.bf16.mxu0 0
        %5511 = vmatpush1.bf16.msra.mxu0 0
        %5512 = vmatprep.mubr.bf16.mxu0 0
        %5513 = vmatmul.mubr.bf16.gmra.mrb[0].mxu0 %v5260
        %v5514 = vpop.f32.mrb[0].mxu0
        %v5515 = vadd.f32 0.0, %v5514
        %v5516 = vpop.f32.mrb[0].mxu0
        %v5517 = vpop.f32.mrb[0].mxu0
        %v5518 = vadd.f32 0.0, %v5517
        %v5519 = vpop.f32.mrb[0].mxu0
        %5520 = vmatprep.mubr.bf16.mxu0 0
        %5521 = vmatmul.mubr.bf16.gmra.mrb[0].mxu0 %v5269
        %v5522 = vpop.f32.mrb[0].mxu0
        %v5523 = vadd.f32 0.0, %v5522
        %v5524 = vpop.f32.mrb[0].mxu0
        %v5525 = vpop.f32.mrb[0].mxu0
        %v5526 = vadd.f32 0.0, %v5525
        %v5527 = vpop.f32.mrb[0].mxu0
        %5528 = vmatprep.mubr.bf16.mxu0 0
        %5529 = vmatmul.mubr.bf16.gmra.mrb[0].mxu0 %v5278
        %v5530 = vpop.f32.mrb[0].mxu0
        %v5531 = vadd.f32 0.0, %v5530
        %v5532 = vpop.f32.mrb[0].mxu0
        %v5533 = vpop.f32.mrb[0].mxu0
        %v5534 = vadd.f32 0.0, %v5533
        %v5535 = vpop.f32.mrb[0].mxu0
        %5536 = vmatprep.mubr.bf16.mxu0 0
        %5537 = vmatmul.mubr.bf16.gmra.mrb[0].mxu0 %v5287
        %v5538 = vpop.f32.mrb[0].mxu0
        %v5539 = vadd.f32 0.0, %v5538
        %v5540 = vpop.f32.mrb[0].mxu0
        %v5541 = vpop.f32.mrb[0].mxu0
        %v5542 = vadd.f32 0.0, %v5541
        %v5543 = vpop.f32.mrb[0].mxu0
        %5544 = vmatprep.mubr.bf16.mxu0 0
        %5545 = vmatmul.mubr.bf16.gmra.mrb[0].mxu0 %v5296
        %v5546 = vpop.f32.mrb[0].mxu0
        %v5547 = vadd.f32 0.0, %v5546
        %v5548 = vpop.f32.mrb[0].mxu0
        %v5549 = vpop.f32.mrb[0].mxu0
        %v5550 = vadd.f32 0.0, %v5549
        %v5551 = vpop.f32.mrb[0].mxu0
        %5552 = vmatprep.mubr.bf16.mxu0 0
        %5553 = vmatmul.mubr.bf16.gmra.mrb[0].mxu0 %v5305
        %v5554 = vpop.f32.mrb[0].mxu0
        %v5555 = vadd.f32 0.0, %v5554
        %v5556 = vpop.f32.mrb[0].mxu0
        %v5557 = vpop.f32.mrb[0].mxu0
        %v5558 = vadd.f32 0.0, %v5557
        %v5559 = vpop.f32.mrb[0].mxu0
        %5560 = vmatprep.mubr.bf16.mxu0 0
        %5561 = vmatmul.mubr.bf16.gmra.mrb[0].mxu0 %v5314
        %v5562 = vpop.f32.mrb[0].mxu0
        %v5563 = vadd.f32 0.0, %v5562
        %v5564 = vpop.f32.mrb[0].mxu0
        %v5565 = vpop.f32.mrb[0].mxu0
        %v5566 = vadd.f32 0.0, %v5565
        %v5567 = vpop.f32.mrb[0].mxu0
        %5568 = vmatprep.mubr.bf16.mxu0 0
        %5569 = vmatmul.mubr.bf16.gmra.mrb[0].mxu0 %v5323
        %v5570 = vpop.f32.mrb[0].mxu0
        %v5571 = vadd.f32 0.0, %v5570
        %v5572 = vpop.f32.mrb[0].mxu0
        %v5573 = vpop.f32.mrb[0].mxu0
        %v5574 = vadd.f32 0.0, %v5573
        %v5575 = vpop.f32.mrb[0].mxu0
        %5576 = vmatprep.mubr.bf16.mxu0 0
        %5577 = vmatmul.mubr.bf16.gmra.mrb[0].mxu0 %v5332
        %v5578 = vpop.f32.mrb[0].mxu0
        %v5579 = vadd.f32 0.0, %v5578
        %v5580 = vpop.f32.mrb[0].mxu0
        %v5581 = vpop.f32.mrb[0].mxu0
        %v5582 = vadd.f32 0.0, %v5581
        %v5583 = vpop.f32.mrb[0].mxu0
        %5584 = vmatprep.mubr.bf16.mxu0 0
        %5585 = vmatmul.mubr.bf16.gmra.mrb[0].mxu0 %v5341
        %v5586 = vpop.f32.mrb[0].mxu0
        %v5587 = vadd.f32 0.0, %v5586
        %v5588 = vpop.f32.mrb[0].mxu0
        %v5589 = vpop.f32.mrb[0].mxu0
        %v5590 = vadd.f32 0.0, %v5589
        %v5591 = vpop.f32.mrb[0].mxu0
        %5592 = vmatprep.mubr.bf16.mxu0 0
        %5593 = vmatmul.mubr.bf16.gmra.mrb[0].mxu0 %v5350
        %v5594 = vpop.f32.mrb[0].mxu0
        %v5595 = vadd.f32 0.0, %v5594
        %v5596 = vpop.f32.mrb[0].mxu0
        %v5597 = vpop.f32.mrb[0].mxu0
        %v5598 = vadd.f32 0.0, %v5597
        %v5599 = vpop.f32.mrb[0].mxu0
        %5600 = vmatprep.mubr.bf16.mxu0 0
        %5601 = vmatmul.mubr.bf16.gmra.mrb[0].mxu0 %v5359
        %v5602 = vpop.f32.mrb[0].mxu0
        %v5603 = vadd.f32 0.0, %v5602
        %v5604 = vpop.f32.mrb[0].mxu0
        %v5605 = vpop.f32.mrb[0].mxu0
        %v5606 = vadd.f32 0.0, %v5605
        %v5607 = vpop.f32.mrb[0].mxu0
        %5608 = vmatprep.mubr.bf16.mxu0 0
        %5609 = vmatmul.mubr.bf16.gmra.mrb[0].mxu0 %v5368
        %v5610 = vpop.f32.mrb[0].mxu0
        %v5611 = vadd.f32 0.0, %v5610
        %v5612 = vpop.f32.mrb[0].mxu0
        %v5613 = vpop.f32.mrb[0].mxu0
        %v5614 = vadd.f32 0.0, %v5613
        %v5615 = vpop.f32.mrb[0].mxu0
        %5616 = vmatprep.mubr.bf16.mxu0 0
        %5617 = vmatmul.mubr.bf16.gmra.mrb[0].mxu0 %v5377
        %v5618 = vpop.f32.mrb[0].mxu0
        %v5619 = vadd.f32 0.0, %v5618
        %v5620 = vpop.f32.mrb[0].mxu0
        %v5621 = vpop.f32.mrb[0].mxu0
        %v5622 = vadd.f32 0.0, %v5621
        %v5623 = vpop.f32.mrb[0].mxu0
        %5624 = vmatprep.mubr.bf16.mxu0 0
        %5625 = vmatmul.mubr.bf16.gmra.mrb[0].mxu0 %v5386
        %v5626 = vpop.f32.mrb[0].mxu0
        %v5627 = vadd.f32 0.0, %v5626
        %v5628 = vpop.f32.mrb[0].mxu0
        %v5629 = vpop.f32.mrb[0].mxu0
        %v5630 = vadd.f32 0.0, %v5629
        %v5631 = vpop.f32.mrb[0].mxu0
        %5632 = vmatprep.mubr.bf16.mxu0 0
        %5633 = vmatmul.mubr.bf16.gmra.mrb[0].mxu0 %v5395
        %v5634 = vpop.f32.mrb[0].mxu0
        %v5635 = vadd.f32 0.0, %v5634
        %v5636 = vpop.f32.mrb[0].mxu0
        %v5637 = vpop.f32.mrb[0].mxu0
        %v5638 = vadd.f32 0.0, %v5637
        %v5639 = vpop.f32.mrb[0].mxu0
        %5640 = vmatprep.mubr.bf16.mxu0 0
        %5641 = vmatmul.mubr.bf16.gmra.mrb[0].mxu0 %v5404
        %v5642 = vpop.f32.mrb[0].mxu0
        %v5643 = vadd.f32 0.0, %v5642
        %v5644 = vpop.f32.mrb[0].mxu0
        %v5645 = vpop.f32.mrb[0].mxu0
        %v5646 = vadd.f32 0.0, %v5645
        %v5647 = vpop.f32.mrb[0].mxu0
        %5648 = vmatprep.mubr.bf16.mxu0 0
        %5649 = vmatmul.mubr.bf16.gmra.mrb[0].mxu0 %v5413
        %v5650 = vpop.f32.mrb[0].mxu0
        %v5651 = vadd.f32 0.0, %v5650
        %v5652 = vpop.f32.mrb[0].mxu0
        %v5653 = vpop.f32.mrb[0].mxu0
        %v5654 = vadd.f32 0.0, %v5653
        %v5655 = vpop.f32.mrb[0].mxu0
        %5656 = vdwg.mxu0
        %v5657 = vadd.f32 %v5189, %v5515
        %v5658 = vadd.f32 %v5190, %v5518
        %v5659 = vadd.f32 %v5191, %v5523
        %v5660 = vadd.f32 %v5192, %v5526
        %v5661 = vadd.f32 %v5193, %v5531
        %v5662 = vadd.f32 %v5194, %v5534
        %v5663 = vadd.f32 %v5195, %v5539
        %v5664 = vadd.f32 %v5196, %v5542
        %v5665 = vadd.f32 %v5197, %v5547
        %v5666 = vadd.f32 %v5198, %v5550
        %v5667 = vadd.f32 %v5199, %v5555
        %v5668 = vadd.f32 %v5200, %v5558
        %v5669 = vadd.f32 %v5201, %v5563
        %v5670 = vadd.f32 %v5202, %v5566
        %v5671 = vadd.f32 %v5203, %v5571
        %v5672 = vadd.f32 %v5204, %v5574
        %v5673 = vadd.f32 %v5205, %v5579
        %v5674 = vadd.f32 %v5206, %v5582
        %v5675 = vadd.f32 %v5207, %v5587
        %v5676 = vadd.f32 %v5208, %v5590
        %v5677 = vadd.f32 %v5209, %v5595
        %v5678 = vadd.f32 %v5210, %v5598
        %v5679 = vadd.f32 %v5211, %v5603
        %v5680 = vadd.f32 %v5212, %v5606
        %v5681 = vadd.f32 %v5213, %v5611
        %v5682 = vadd.f32 %v5214, %v5614
        %v5683 = vadd.f32 %v5215, %v5619
        %v5684 = vadd.f32 %v5216, %v5622
        %v5685 = vadd.f32 %v5217, %v5627
        %v5686 = vadd.f32 %v5218, %v5630
        %v5687 = vadd.f32 %v5219, %v5635
        %v5688 = vadd.f32 %v5220, %v5638
        %v5689 = vadd.f32 %v5221, %v5643
        %v5690 = vadd.f32 %v5222, %v5646
        %v5691 = vadd.f32 %v5223, %v5651
        %v5692 = vadd.f32 %v5224, %v5654
        %v5693 = vld [vmem:[#allocation2 + $0x10] sm:$0xf8]
        %s5694 = scalar_lea.vmem [#allocation7], 512
        %v5695 = vld [vmem:[%s5694] sm:$0xf]
        %v5696 = vld [vmem:[%s5694 + $0x4] sm:$0xf]
        %v5697 = vld [vmem:[%s5694 + $0x8] sm:$0xf]
        %v5698 = vld [vmem:[%s5694 + $0xc] sm:$0xf]
        %v5699 = vld [vmem:[%s5694 + $0x10] sm:$0xf]
        %v5700 = vld [vmem:[%s5694 + $0x14] sm:$0xf]
        %v5701 = vld [vmem:[%s5694 + $0x18] sm:$0xf]
        %v5702 = vld [vmem:[%s5694 + $0x1c] sm:$0xf]
        %v5703 = vld [vmem:[%s5694 + $0x20] sm:$0xf]
        %v5704 = vld [vmem:[%s5694 + $0x24] sm:$0xf]
        %v5705 = vld [vmem:[%s5694 + $0x28] sm:$0xf]
        %v5706 = vld [vmem:[%s5694 + $0x2c] sm:$0xf]
        %v5707 = vld [vmem:[%s5694 + $0x30] sm:$0xf]
        %v5708 = vld [vmem:[%s5694 + $0x34] sm:$0xf]
        %v5709 = vld [vmem:[%s5694 + $0x38] sm:$0xf]
        %v5710 = vld [vmem:[%s5694 + $0x3c] sm:$0xf]
        %vm5713 = vcmask 1044480
        %v5714 = vrot.slane %v5693, 3
        %v5715 = vrot.slane %v4855, 3
        %v5716 = vsel %vm5713, %v5714, %v5715
        %v5717 = vrot.slane %v4856, 3
        %v5718 = vsel %vm5713, %v5715, %v5717
        %v5719 = vrot.slane %v4857, 3
        %v5720 = vsel %vm5713, %v5717, %v5719
        %v5721 = vrot.slane %v4858, 3
        %v5722 = vsel %vm5713, %v5719, %v5721
        %v5723 = vrot.slane %v4859, 3
        %v5724 = vsel %vm5713, %v5721, %v5723
        %v5725 = vrot.slane %v4860, 3
        %v5726 = vsel %vm5713, %v5723, %v5725
        %v5727 = vrot.slane %v4861, 3
        %v5728 = vsel %vm5713, %v5725, %v5727
        %v5729 = vrot.slane %v4862, 3
        %v5730 = vsel %vm5713, %v5727, %v5729
        %v5731 = vrot.slane %v4863, 3
        %v5732 = vsel %vm5713, %v5729, %v5731
        %v5733 = vrot.slane %v4864, 3
        %v5734 = vsel %vm5713, %v5731, %v5733
        %v5735 = vrot.slane %v4865, 3
        %v5736 = vsel %vm5713, %v5733, %v5735
        %v5737 = vrot.slane %v4866, 3
        %v5738 = vsel %vm5713, %v5735, %v5737
        %v5739 = vrot.slane %v4867, 3
        %v5740 = vsel %vm5713, %v5737, %v5739
        %v5741 = vrot.slane %v4868, 3
        %v5742 = vsel %vm5713, %v5739, %v5741
        %v5743 = vrot.slane %v4869, 3
        %v5744 = vsel %vm5713, %v5741, %v5743
        %v5745 = vrot.slane %v4870, 3
        %v5746 = vsel %vm5713, %v5743, %v5745
        %v5747 = vrot.slane %v4871, 3
        %v5748 = vsel %vm5713, %v5745, %v5747
        %v5749 = vrot.slane %v5225, 3
        %v5750 = vsel %vm5713, %v5747, %v5749
        %v5785 = vunpack.c.l.b16 %v5695
        %v5786 = vunpack.c.l.b16 %v5696
        %v5787 = vunpack.c.l.b16 %v5697
        %v5788 = vunpack.c.l.b16 %v5698
        %v5789 = vunpack.c.l.b16 %v5699
        %v5790 = vunpack.c.l.b16 %v5700
        %v5791 = vunpack.c.l.b16 %v5701
        %v5792 = vunpack.c.l.b16 %v5702
        %v5793 = vunpack.c.l.b16 %v5703
        %v5794 = vunpack.c.l.b16 %v5704
        %v5795 = vunpack.c.l.b16 %v5705
        %v5796 = vunpack.c.l.b16 %v5706
        %v5797 = vunpack.c.l.b16 %v5707
        %v5798 = vunpack.c.l.b16 %v5708
        %v5799 = vunpack.c.l.b16 %v5709
        %v5800 = vunpack.c.l.b16 %v5710
        %v5801 = vpack.c.b16 %v5786, %v5785
        %v5802 = vpack.c.b16 %v5788, %v5787
        %v5803 = vpack.c.b16 %v5790, %v5789
        %v5804 = vpack.c.b16 %v5792, %v5791
        %v5805 = vpack.c.b16 %v5794, %v5793
        %v5806 = vpack.c.b16 %v5796, %v5795
        %v5807 = vpack.c.b16 %v5798, %v5797
        %v5808 = vpack.c.b16 %v5800, %v5799
        %5817 = vmatprep.subr.bf16.mxu0 0
        %5818 = vmatpush1.bf16.msra.mxu0 %v5801
        %5819 = vmatprep.subr.bf16.mxu0 0
        %5820 = vmatpush1.bf16.msra.mxu0 %v5802
        %5821 = vmatprep.subr.bf16.mxu0 0
        %5822 = vmatpush1.bf16.msra.mxu0 %v5803
        %5823 = vmatprep.subr.bf16.mxu0 0
        %5824 = vmatpush1.bf16.msra.mxu0 %v5804
        %5825 = vmatprep.subr.bf16.mxu0 0
        %5826 = vmatpush1.bf16.msra.mxu0 %v5805
        %5827 = vmatprep.subr.bf16.mxu0 0
        %5828 = vmatpush1.bf16.msra.mxu0 %v5806
        %5829 = vmatprep.subr.bf16.mxu0 0
        %5830 = vmatpush1.bf16.msra.mxu0 %v5807
        %5831 = vmatprep.subr.bf16.mxu0 0
        %5832 = vmatpush1.bf16.msra.mxu0 %v5808
        %5833 = vmatprep.subr.bf16.mxu0 0
        %5834 = vmatpush1.bf16.msra.mxu0 0
        %5835 = vmatprep.subr.bf16.mxu0 0
        %5836 = vmatpush1.bf16.msra.mxu0 0
        %5837 = vmatprep.subr.bf16.mxu0 0
        %5838 = vmatpush1.bf16.msra.mxu0 0
        %5839 = vmatprep.subr.bf16.mxu0 0
        %5840 = vmatpush1.bf16.msra.mxu0 0
        %5841 = vmatprep.subr.bf16.mxu0 0
        %5842 = vmatpush1.bf16.msra.mxu0 0
        %5843 = vmatprep.subr.bf16.mxu0 0
        %5844 = vmatpush1.bf16.msra.mxu0 0
        %5845 = vmatprep.subr.bf16.mxu0 0
        %5846 = vmatpush1.bf16.msra.mxu0 0
        %5847 = vmatprep.subr.bf16.mxu0 0
        %5848 = vmatpush1.bf16.msra.mxu0 0
        %5849 = vmatprep.mubr.bf16.mxu0 0
        %5850 = vmatmul.mubr.bf16.gmra.mrb[0].mxu0 %v5716
        %v5851 = vpop.f32.mrb[0].mxu0
        %v5852 = vadd.f32 0.0, %v5851
        %v5853 = vpop.f32.mrb[0].mxu0
        %v5854 = vpop.f32.mrb[0].mxu0
        %v5855 = vadd.f32 0.0, %v5854
        %v5856 = vpop.f32.mrb[0].mxu0
        %5857 = vmatprep.mubr.bf16.mxu0 0
        %5858 = vmatmul.mubr.bf16.gmra.mrb[0].mxu0 %v5718
        %v5859 = vpop.f32.mrb[0].mxu0
        %v5860 = vadd.f32 0.0, %v5859
        %v5861 = vpop.f32.mrb[0].mxu0
        %v5862 = vpop.f32.mrb[0].mxu0
        %v5863 = vadd.f32 0.0, %v5862
        %v5864 = vpop.f32.mrb[0].mxu0
        %5865 = vmatprep.mubr.bf16.mxu0 0
        %5866 = vmatmul.mubr.bf16.gmra.mrb[0].mxu0 %v5720
        %v5867 = vpop.f32.mrb[0].mxu0
        %v5868 = vadd.f32 0.0, %v5867
        %v5869 = vpop.f32.mrb[0].mxu0
        %v5870 = vpop.f32.mrb[0].mxu0
        %v5871 = vadd.f32 0.0, %v5870
        %v5872 = vpop.f32.mrb[0].mxu0
        %5873 = vmatprep.mubr.bf16.mxu0 0
        %5874 = vmatmul.mubr.bf16.gmra.mrb[0].mxu0 %v5722
        %v5875 = vpop.f32.mrb[0].mxu0
        %v5876 = vadd.f32 0.0, %v5875
        %v5877 = vpop.f32.mrb[0].mxu0
        %v5878 = vpop.f32.mrb[0].mxu0
        %v5879 = vadd.f32 0.0, %v5878
        %v5880 = vpop.f32.mrb[0].mxu0
        %5881 = vmatprep.mubr.bf16.mxu0 0
        %5882 = vmatmul.mubr.bf16.gmra.mrb[0].mxu0 %v5724
        %v5883 = vpop.f32.mrb[0].mxu0
        %v5884 = vadd.f32 0.0, %v5883
        %v5885 = vpop.f32.mrb[0].mxu0
        %v5886 = vpop.f32.mrb[0].mxu0
        %v5887 = vadd.f32 0.0, %v5886
        %v5888 = vpop.f32.mrb[0].mxu0
        %5889 = vmatprep.mubr.bf16.mxu0 0
        %5890 = vmatmul.mubr.bf16.gmra.mrb[0].mxu0 %v5726
        %v5891 = vpop.f32.mrb[0].mxu0
        %v5892 = vadd.f32 0.0, %v5891
        %v5893 = vpop.f32.mrb[0].mxu0
        %v5894 = vpop.f32.mrb[0].mxu0
        %v5895 = vadd.f32 0.0, %v5894
        %v5896 = vpop.f32.mrb[0].mxu0
        %5897 = vmatprep.mubr.bf16.mxu0 0
        %5898 = vmatmul.mubr.bf16.gmra.mrb[0].mxu0 %v5728
        %v5899 = vpop.f32.mrb[0].mxu0
        %v5900 = vadd.f32 0.0, %v5899
        %v5901 = vpop.f32.mrb[0].mxu0
        %v5902 = vpop.f32.mrb[0].mxu0
        %v5903 = vadd.f32 0.0, %v5902
        %v5904 = vpop.f32.mrb[0].mxu0
        %5905 = vmatprep.mubr.bf16.mxu0 0
        %5906 = vmatmul.mubr.bf16.gmra.mrb[0].mxu0 %v5730
        %v5907 = vpop.f32.mrb[0].mxu0
        %v5908 = vadd.f32 0.0, %v5907
        %v5909 = vpop.f32.mrb[0].mxu0
        %v5910 = vpop.f32.mrb[0].mxu0
        %v5911 = vadd.f32 0.0, %v5910
        %v5912 = vpop.f32.mrb[0].mxu0
        %5913 = vmatprep.mubr.bf16.mxu0 0
        %5914 = vmatmul.mubr.bf16.gmra.mrb[0].mxu0 %v5732
        %v5915 = vpop.f32.mrb[0].mxu0
        %v5916 = vadd.f32 0.0, %v5915
        %v5917 = vpop.f32.mrb[0].mxu0
        %v5918 = vpop.f32.mrb[0].mxu0
        %v5919 = vadd.f32 0.0, %v5918
        %v5920 = vpop.f32.mrb[0].mxu0
        %5921 = vmatprep.mubr.bf16.mxu0 0
        %5922 = vmatmul.mubr.bf16.gmra.mrb[0].mxu0 %v5734
        %v5923 = vpop.f32.mrb[0].mxu0
        %v5924 = vadd.f32 0.0, %v5923
        %v5925 = vpop.f32.mrb[0].mxu0
        %v5926 = vpop.f32.mrb[0].mxu0
        %v5927 = vadd.f32 0.0, %v5926
        %v5928 = vpop.f32.mrb[0].mxu0
        %5929 = vmatprep.mubr.bf16.mxu0 0
        %5930 = vmatmul.mubr.bf16.gmra.mrb[0].mxu0 %v5736
        %v5931 = vpop.f32.mrb[0].mxu0
        %v5932 = vadd.f32 0.0, %v5931
        %v5933 = vpop.f32.mrb[0].mxu0
        %v5934 = vpop.f32.mrb[0].mxu0
        %v5935 = vadd.f32 0.0, %v5934
        %v5936 = vpop.f32.mrb[0].mxu0
        %5937 = vmatprep.mubr.bf16.mxu0 0
        %5938 = vmatmul.mubr.bf16.gmra.mrb[0].mxu0 %v5738
        %v5939 = vpop.f32.mrb[0].mxu0
        %v5940 = vadd.f32 0.0, %v5939
        %v5941 = vpop.f32.mrb[0].mxu0
        %v5942 = vpop.f32.mrb[0].mxu0
        %v5943 = vadd.f32 0.0, %v5942
        %v5944 = vpop.f32.mrb[0].mxu0
        %5945 = vmatprep.mubr.bf16.mxu0 0
        %5946 = vmatmul.mubr.bf16.gmra.mrb[0].mxu0 %v5740
        %v5947 = vpop.f32.mrb[0].mxu0
        %v5948 = vadd.f32 0.0, %v5947
        %v5949 = vpop.f32.mrb[0].mxu0
        %v5950 = vpop.f32.mrb[0].mxu0
        %v5951 = vadd.f32 0.0, %v5950
        %v5952 = vpop.f32.mrb[0].mxu0
        %5953 = vmatprep.mubr.bf16.mxu0 0
        %5954 = vmatmul.mubr.bf16.gmra.mrb[0].mxu0 %v5742
        %v5955 = vpop.f32.mrb[0].mxu0
        %v5956 = vadd.f32 0.0, %v5955
        %v5957 = vpop.f32.mrb[0].mxu0
        %v5958 = vpop.f32.mrb[0].mxu0
        %v5959 = vadd.f32 0.0, %v5958
        %v5960 = vpop.f32.mrb[0].mxu0
        %5961 = vmatprep.mubr.bf16.mxu0 0
        %5962 = vmatmul.mubr.bf16.gmra.mrb[0].mxu0 %v5744
        %v5963 = vpop.f32.mrb[0].mxu0
        %v5964 = vadd.f32 0.0, %v5963
        %v5965 = vpop.f32.mrb[0].mxu0
        %v5966 = vpop.f32.mrb[0].mxu0
        %v5967 = vadd.f32 0.0, %v5966
        %v5968 = vpop.f32.mrb[0].mxu0
        %5969 = vmatprep.mubr.bf16.mxu0 0
        %5970 = vmatmul.mubr.bf16.gmra.mrb[0].mxu0 %v5746
        %v5971 = vpop.f32.mrb[0].mxu0
        %v5972 = vadd.f32 0.0, %v5971
        %v5973 = vpop.f32.mrb[0].mxu0
        %v5974 = vpop.f32.mrb[0].mxu0
        %v5975 = vadd.f32 0.0, %v5974
        %v5976 = vpop.f32.mrb[0].mxu0
        %5977 = vmatprep.mubr.bf16.mxu0 0
        %5978 = vmatmul.mubr.bf16.gmra.mrb[0].mxu0 %v5748
        %v5979 = vpop.f32.mrb[0].mxu0
        %v5980 = vadd.f32 0.0, %v5979
        %v5981 = vpop.f32.mrb[0].mxu0
        %v5982 = vpop.f32.mrb[0].mxu0
        %v5983 = vadd.f32 0.0, %v5982
        %v5984 = vpop.f32.mrb[0].mxu0
        %5985 = vmatprep.mubr.bf16.mxu0 0
        %5986 = vmatmul.mubr.bf16.gmra.mrb[0].mxu0 %v5750
        %v5987 = vpop.f32.mrb[0].mxu0
        %v5988 = vadd.f32 0.0, %v5987
        %v5989 = vpop.f32.mrb[0].mxu0
        %v5990 = vpop.f32.mrb[0].mxu0
        %v5991 = vadd.f32 0.0, %v5990
        %v5992 = vpop.f32.mrb[0].mxu0
        %5993 = vdwg.mxu0
        %v5994 = vadd.f32 %v5657, %v5852
        %v5995 = vadd.f32 %v5658, %v5855
        %v5996 = vadd.f32 %v5659, %v5860
        %v5997 = vadd.f32 %v5660, %v5863
        %v5998 = vadd.f32 %v5661, %v5868
        %v5999 = vadd.f32 %v5662, %v5871
        %v6000 = vadd.f32 %v5663, %v5876
        %v6001 = vadd.f32 %v5664, %v5879
        %v6002 = vadd.f32 %v5665, %v5884
        %v6003 = vadd.f32 %v5666, %v5887
        %v6004 = vadd.f32 %v5667, %v5892
        %v6005 = vadd.f32 %v5668, %v5895
        %v6006 = vadd.f32 %v5669, %v5900
        %v6007 = vadd.f32 %v5670, %v5903
        %v6008 = vadd.f32 %v5671, %v5908
        %v6009 = vadd.f32 %v5672, %v5911
        %v6010 = vadd.f32 %v5673, %v5916
        %v6011 = vadd.f32 %v5674, %v5919
        %v6012 = vadd.f32 %v5675, %v5924
        %v6013 = vadd.f32 %v5676, %v5927
        %v6014 = vadd.f32 %v5677, %v5932
        %v6015 = vadd.f32 %v5678, %v5935
        %v6016 = vadd.f32 %v5679, %v5940
        %v6017 = vadd.f32 %v5680, %v5943
        %v6018 = vadd.f32 %v5681, %v5948
        %v6019 = vadd.f32 %v5682, %v5951
        %v6020 = vadd.f32 %v5683, %v5956
        %v6021 = vadd.f32 %v5684, %v5959
        %v6022 = vadd.f32 %v5685, %v5964
        %v6023 = vadd.f32 %v5686, %v5967
        %v6024 = vadd.f32 %v5687, %v5972
        %v6025 = vadd.f32 %v5688, %v5975
        %v6026 = vadd.f32 %v5689, %v5980
        %v6027 = vadd.f32 %v5690, %v5983
        %v6028 = vadd.f32 %v5691, %v5988
        %v6029 = vadd.f32 %v5692, %v5991
        %v6030 = vmax.f32 %v5994, 0.0
        %v6031 = vmax.f32 %v5995, 0.0
        %v6032 = vmax.f32 %v5996, 0.0
        %v6033 = vmax.f32 %v5997, 0.0
        %v6034 = vmax.f32 %v5998, 0.0
        %v6035 = vmax.f32 %v5999, 0.0
        %v6036 = vmax.f32 %v6000, 0.0
        %v6037 = vmax.f32 %v6001, 0.0
        %v6038 = vmax.f32 %v6002, 0.0
        %v6039 = vmax.f32 %v6003, 0.0
        %v6040 = vmax.f32 %v6004, 0.0
        %v6041 = vmax.f32 %v6005, 0.0
        %v6042 = vmax.f32 %v6006, 0.0
        %v6043 = vmax.f32 %v6007, 0.0
        %v6044 = vmax.f32 %v6008, 0.0
        %v6045 = vmax.f32 %v6009, 0.0
        %v6046 = vmax.f32 %v6010, 0.0
        %v6047 = vmax.f32 %v6011, 0.0
        %v6048 = vmax.f32 %v6012, 0.0
        %v6049 = vmax.f32 %v6013, 0.0
        %v6050 = vmax.f32 %v6014, 0.0
        %v6051 = vmax.f32 %v6015, 0.0
        %v6052 = vmax.f32 %v6016, 0.0
        %v6053 = vmax.f32 %v6017, 0.0
        %v6054 = vmax.f32 %v6018, 0.0
        %v6055 = vmax.f32 %v6019, 0.0
        %v6056 = vmax.f32 %v6020, 0.0
        %v6057 = vmax.f32 %v6021, 0.0
        %v6058 = vmax.f32 %v6022, 0.0
        %v6059 = vmax.f32 %v6023, 0.0
        %v6060 = vmax.f32 %v6024, 0.0
        %v6061 = vmax.f32 %v6025, 0.0
        %v6062 = vmax.f32 %v6026, 0.0
        %v6063 = vmax.f32 %v6027, 0.0
        %v6064 = vmax.f32 %v6028, 0.0
        %v6065 = vmax.f32 %v6029, 0.0
        %v6066 = vsel %vm2522, 1, 0
        %v6067 = vsel %vm2523, 1, 0
        %v6068 = vsel %vm2524, 1, 0
        %v6069 = vsel %vm2525, 1, 0
        %v6070 = vsel %vm2526, 1, 0
        %v6071 = vsel %vm2527, 1, 0
        %v6072 = vsel %vm2528, 1, 0
        %v6073 = vsel %vm2529, 1, 0
        %v6074 = vsel %vm2530, 1, 0
        %v6075 = vsel %vm2531, 1, 0
        %v6076 = vsel %vm2532, 1, 0
        %v6077 = vsel %vm2533, 1, 0
        %v6078 = vsel %vm2534, 1, 0
        %v6079 = vsel %vm2535, 1, 0
        %v6080 = vsel %vm2536, 1, 0
        %v6081 = vsel %vm2537, 1, 0
        %v6082 = vsel %vm2538, 1, 0
        %v6083 = vsel %vm2539, 1, 0
        %v6084 = vsel %vm2540, 1, 0
        %v6085 = vsel %vm2541, 1, 0
        %v6086 = vsel %vm2542, 1, 0
        %v6087 = vsel %vm2543, 1, 0
        %v6088 = vsel %vm2544, 1, 0
        %v6089 = vsel %vm2545, 1, 0
        %v6090 = vsel %vm2546, 1, 0
        %v6091 = vsel %vm2547, 1, 0
        %v6092 = vsel %vm2548, 1, 0
        %v6093 = vsel %vm2549, 1, 0
        %v6094 = vsel %vm2550, 1, 0
        %v6095 = vsel %vm2551, 1, 0
        %v6096 = vsel %vm2552, 1, 0
        %v6097 = vsel %vm2553, 1, 0
        %v6098 = vsel %vm2554, 1, 0
        %v6099 = vsel %vm2555, 1, 0
        %v6100 = vsel %vm2556, 1, 0
        %v6101 = vsel %vm2557, 1, 0
        %vm6102 = vcmp.eq.s32.totalorder %v6066, 1
        %vm6103 = vcmp.eq.s32.totalorder %v6067, 1
        %vm6104 = vcmp.eq.s32.totalorder %v6068, 1
        %vm6105 = vcmp.eq.s32.totalorder %v6069, 1
        %vm6106 = vcmp.eq.s32.totalorder %v6070, 1
        %vm6107 = vcmp.eq.s32.totalorder %v6071, 1
        %vm6108 = vcmp.eq.s32.totalorder %v6072, 1
        %vm6109 = vcmp.eq.s32.totalorder %v6073, 1
        %vm6110 = vcmp.eq.s32.totalorder %v6074, 1
        %vm6111 = vcmp.eq.s32.totalorder %v6075, 1
        %vm6112 = vcmp.eq.s32.totalorder %v6076, 1
        %vm6113 = vcmp.eq.s32.totalorder %v6077, 1
        %vm6114 = vcmp.eq.s32.totalorder %v6078, 1
        %vm6115 = vcmp.eq.s32.totalorder %v6079, 1
        %vm6116 = vcmp.eq.s32.totalorder %v6080, 1
        %vm6117 = vcmp.eq.s32.totalorder %v6081, 1
        %vm6118 = vcmp.eq.s32.totalorder %v6082, 1
        %vm6119 = vcmp.eq.s32.totalorder %v6083, 1
        %vm6120 = vcmp.eq.s32.totalorder %v6084, 1
        %vm6121 = vcmp.eq.s32.totalorder %v6085, 1
        %vm6122 = vcmp.eq.s32.totalorder %v6086, 1
        %vm6123 = vcmp.eq.s32.totalorder %v6087, 1
        %vm6124 = vcmp.eq.s32.totalorder %v6088, 1
        %vm6125 = vcmp.eq.s32.totalorder %v6089, 1
        %vm6126 = vcmp.eq.s32.totalorder %v6090, 1
        %vm6127 = vcmp.eq.s32.totalorder %v6091, 1
        %vm6128 = vcmp.eq.s32.totalorder %v6092, 1
        %vm6129 = vcmp.eq.s32.totalorder %v6093, 1
        %vm6130 = vcmp.eq.s32.totalorder %v6094, 1
        %vm6131 = vcmp.eq.s32.totalorder %v6095, 1
        %vm6132 = vcmp.eq.s32.totalorder %v6096, 1
        %vm6133 = vcmp.eq.s32.totalorder %v6097, 1
        %vm6134 = vcmp.eq.s32.totalorder %v6098, 1
        %vm6135 = vcmp.eq.s32.totalorder %v6099, 1
        %vm6136 = vcmp.eq.s32.totalorder %v6100, 1
        %vm6137 = vcmp.eq.s32.totalorder %v6101, 1
        %v6138 = vsel %vm6102, %v6030, 0.0
        %v6139 = vsel %vm6103, %v6031, 0.0
        %v6140 = vsel %vm6104, %v6032, 0.0
        %v6141 = vsel %vm6105, %v6033, 0.0
        %v6142 = vsel %vm6106, %v6034, 0.0
        %v6143 = vsel %vm6107, %v6035, 0.0
        %v6144 = vsel %vm6108, %v6036, 0.0
        %v6145 = vsel %vm6109, %v6037, 0.0
        %v6146 = vsel %vm6110, %v6038, 0.0
        %v6147 = vsel %vm6111, %v6039, 0.0
        %v6148 = vsel %vm6112, %v6040, 0.0
        %v6149 = vsel %vm6113, %v6041, 0.0
        %v6150 = vsel %vm6114, %v6042, 0.0
        %v6151 = vsel %vm6115, %v6043, 0.0
        %v6152 = vsel %vm6116, %v6044, 0.0
        %v6153 = vsel %vm6117, %v6045, 0.0
        %v6154 = vsel %vm6118, %v6046, 0.0
        %v6155 = vsel %vm6119, %v6047, 0.0
        %v6156 = vsel %vm6120, %v6048, 0.0
        %v6157 = vsel %vm6121, %v6049, 0.0
        %v6158 = vsel %vm6122, %v6050, 0.0
        %v6159 = vsel %vm6123, %v6051, 0.0
        %v6160 = vsel %vm6124, %v6052, 0.0
        %v6161 = vsel %vm6125, %v6053, 0.0
        %v6162 = vsel %vm6126, %v6054, 0.0
        %v6163 = vsel %vm6127, %v6055, 0.0
        %v6164 = vsel %vm6128, %v6056, 0.0
        %v6165 = vsel %vm6129, %v6057, 0.0
        %v6166 = vsel %vm6130, %v6058, 0.0
        %v6167 = vsel %vm6131, %v6059, 0.0
        %v6168 = vsel %vm6132, %v6060, 0.0
        %v6169 = vsel %vm6133, %v6061, 0.0
        %v6170 = vsel %vm6134, %v6062, 0.0
        %v6171 = vsel %vm6135, %v6063, 0.0
        %v6172 = vsel %vm6136, %v6064, 0.0
        %v6173 = vsel %vm6137, %v6065, 0.0
        %v6174 = vpack.c.bf16 %v6139, %v6138
        %v6175 = vpack.c.bf16 %v6141, %v6140
        %v6176 = vpack.c.bf16 %v6143, %v6142
        %v6177 = vpack.c.bf16 %v6145, %v6144
        %v6178 = vpack.c.bf16 %v6147, %v6146
        %v6179 = vpack.c.bf16 %v6149, %v6148
        %v6180 = vpack.c.bf16 %v6151, %v6150
        %v6181 = vpack.c.bf16 %v6153, %v6152
        %v6182 = vpack.c.bf16 %v6155, %v6154
        %v6183 = vpack.c.bf16 %v6157, %v6156
        %v6184 = vpack.c.bf16 %v6159, %v6158
        %v6185 = vpack.c.bf16 %v6161, %v6160
        %v6186 = vpack.c.bf16 %v6163, %v6162
        %v6187 = vpack.c.bf16 %v6165, %v6164
        %v6188 = vpack.c.bf16 %v6167, %v6166
        %v6189 = vpack.c.bf16 %v6169, %v6168
        %v6190 = vpack.c.bf16 %v6171, %v6170
        %v6191 = vpack.c.bf16 %v6173, %v6172
        %v6193 = vshrl.u32 %v6174, 16
        %v6195 = vrot.slane %v6193, 6
        %v6196 = vshll.u32 %v6174, 16
        %v6198 = vrot.slane %v6196, 7
        %v6199 = vor.u32 %v6195, %v6198
        %v6201 = vshrl.u32 %v6175, 16
        %v6203 = vrot.slane %v6201, 6
        %v6204 = vshll.u32 %v6175, 16
        %v6206 = vrot.slane %v6204, 7
        %v6207 = vor.u32 %v6203, %v6206
        %v6208 = vsel %vm1902, %v6199, %v6207
        %v6210 = vshrl.u32 %v6176, 16
        %v6212 = vrot.slane %v6210, 6
        %v6213 = vshll.u32 %v6176, 16
        %v6215 = vrot.slane %v6213, 7
        %v6216 = vor.u32 %v6212, %v6215
        %v6217 = vsel %vm1902, %v6207, %v6216
        %v6219 = vshrl.u32 %v6177, 16
        %v6221 = vrot.slane %v6219, 6
        %v6222 = vshll.u32 %v6177, 16
        %v6224 = vrot.slane %v6222, 7
        %v6225 = vor.u32 %v6221, %v6224
        %v6226 = vsel %vm1902, %v6216, %v6225
        %v6228 = vshrl.u32 %v6178, 16
        %v6230 = vrot.slane %v6228, 6
        %v6231 = vshll.u32 %v6178, 16
        %v6233 = vrot.slane %v6231, 7
        %v6234 = vor.u32 %v6230, %v6233
        %v6235 = vsel %vm1902, %v6225, %v6234
        %v6237 = vshrl.u32 %v6179, 16
        %v6239 = vrot.slane %v6237, 6
        %v6240 = vshll.u32 %v6179, 16
        %v6242 = vrot.slane %v6240, 7
        %v6243 = vor.u32 %v6239, %v6242
        %v6244 = vsel %vm1902, %v6234, %v6243
        %v6246 = vshrl.u32 %v6180, 16
        %v6248 = vrot.slane %v6246, 6
        %v6249 = vshll.u32 %v6180, 16
        %v6251 = vrot.slane %v6249, 7
        %v6252 = vor.u32 %v6248, %v6251
        %v6253 = vsel %vm1902, %v6243, %v6252
        %v6255 = vshrl.u32 %v6181, 16
        %v6257 = vrot.slane %v6255, 6
        %v6258 = vshll.u32 %v6181, 16
        %v6260 = vrot.slane %v6258, 7
        %v6261 = vor.u32 %v6257, %v6260
        %v6262 = vsel %vm1902, %v6252, %v6261
        %v6264 = vshrl.u32 %v6182, 16
        %v6266 = vrot.slane %v6264, 6
        %v6267 = vshll.u32 %v6182, 16
        %v6269 = vrot.slane %v6267, 7
        %v6270 = vor.u32 %v6266, %v6269
        %v6271 = vsel %vm1902, %v6261, %v6270
        %v6273 = vshrl.u32 %v6183, 16
        %v6275 = vrot.slane %v6273, 6
        %v6276 = vshll.u32 %v6183, 16
        %v6278 = vrot.slane %v6276, 7
        %v6279 = vor.u32 %v6275, %v6278
        %v6280 = vsel %vm1902, %v6270, %v6279
        %v6282 = vshrl.u32 %v6184, 16
        %v6284 = vrot.slane %v6282, 6
        %v6285 = vshll.u32 %v6184, 16
        %v6287 = vrot.slane %v6285, 7
        %v6288 = vor.u32 %v6284, %v6287
        %v6289 = vsel %vm1902, %v6279, %v6288
        %v6291 = vshrl.u32 %v6185, 16
        %v6293 = vrot.slane %v6291, 6
        %v6294 = vshll.u32 %v6185, 16
        %v6296 = vrot.slane %v6294, 7
        %v6297 = vor.u32 %v6293, %v6296
        %v6298 = vsel %vm1902, %v6288, %v6297
        %v6300 = vshrl.u32 %v6186, 16
        %v6302 = vrot.slane %v6300, 6
        %v6303 = vshll.u32 %v6186, 16
        %v6305 = vrot.slane %v6303, 7
        %v6306 = vor.u32 %v6302, %v6305
        %v6307 = vsel %vm1902, %v6297, %v6306
        %v6309 = vshrl.u32 %v6187, 16
        %v6311 = vrot.slane %v6309, 6
        %v6312 = vshll.u32 %v6187, 16
        %v6314 = vrot.slane %v6312, 7
        %v6315 = vor.u32 %v6311, %v6314
        %v6316 = vsel %vm1902, %v6306, %v6315
        %v6318 = vshrl.u32 %v6188, 16
        %v6320 = vrot.slane %v6318, 6
        %v6321 = vshll.u32 %v6188, 16
        %v6323 = vrot.slane %v6321, 7
        %v6324 = vor.u32 %v6320, %v6323
        %v6325 = vsel %vm1902, %v6315, %v6324
        %v6327 = vshrl.u32 %v6189, 16
        %v6329 = vrot.slane %v6327, 6
        %v6330 = vshll.u32 %v6189, 16
        %v6332 = vrot.slane %v6330, 7
        %v6333 = vor.u32 %v6329, %v6332
        %v6334 = vsel %vm1902, %v6324, %v6333
        %v6336 = vshrl.u32 %v6190, 16
        %v6338 = vrot.slane %v6336, 6
        %v6339 = vshll.u32 %v6190, 16
        %v6341 = vrot.slane %v6339, 7
        %v6342 = vor.u32 %v6338, %v6341
        %v6343 = vsel %vm1902, %v6333, %v6342
        %v6345 = vshrl.u32 %v6191, 16
        %v6347 = vrot.slane %v6345, 6
        %v6348 = vshll.u32 %v6191, 16
        %v6350 = vrot.slane %v6348, 7
        %v6351 = vor.u32 %v6347, %v6350
        %v6352 = vsel %vm1902, %v6342, %v6351
        %vm6372 = vcmask 1047553
        %vm6373 = vsmask.f32 7942
        %vm6374 = vmand %vm6372, %vm6373
        %v6375 = vld [vmem:[#allocation3 + $0x8] sm:$0xfe]
        %v6376 = vsel %vm6374, %v6199, %v6375
        %6377 = vst [vmem:[#allocation3 + $0x8] sm:$0xfe] %v6376
        %6378 = vst [vmem:[#allocation3 + $0x10] sm:$0xff] %v6208
        %6379 = vst [vmem:[#allocation3 + $0x18] sm:$0xff] %v6217
        %6380 = vst [vmem:[#allocation3 + $0x20] sm:$0xff] %v6226
        %6381 = vst [vmem:[#allocation3 + $0x28] sm:$0xff] %v6235
        %6382 = vst [vmem:[#allocation3 + $0x30] sm:$0xff] %v6244
        %6383 = vst [vmem:[#allocation3 + $0x38] sm:$0xff] %v6253
        %6384 = vst [vmem:[#allocation3 + $0x40] sm:$0xff] %v6262
        %6385 = vst [vmem:[#allocation3 + $0x48] sm:$0xff] %v6271
        %6386 = vst [vmem:[#allocation3 + $0x50] sm:$0xff] %v6280
        %6387 = vst [vmem:[#allocation3 + $0x58] sm:$0xff] %v6289
        %6388 = vst [vmem:[#allocation3 + $0x60] sm:$0xff] %v6298
        %6389 = vst [vmem:[#allocation3 + $0x68] sm:$0xff] %v6307
        %6390 = vst [vmem:[#allocation3 + $0x70] sm:$0xff] %v6316
        %6391 = vst [vmem:[#allocation3 + $0x78] sm:$0xff] %v6325
        %6392 = vst [vmem:[#allocation3 + $0x80] sm:$0xff] %v6334
        %6393 = vst [vmem:[#allocation3 + $0x88] sm:$0xff] %v6343
        %6394 = vst [vmem:[#allocation3 + $0x90] sm:$0xff] %v6352
        %v6395 = vld [vmem:[#allocation3 + $0x98] sm:$0x3]
        %v6396 = vsel %vm1903, %v6351, %v6395
        %6397 = vst [vmem:[#allocation3 + $0x98] sm:$0x3] %v6396
        %v6398 = vld [vmem:[%s4] sm:$0x1]
        %v6400 = vlaneseq
        %v6401 = vshrl.u32 %v6400, 7
        %v6402 = vsub.s32 0, %v6401
        %v6403 = vrot.slane %v6398, %v6402
        %v6405 = vld [vmem:[#allocation3] sm:$0xff]
        %v6406 = vld [vmem:[#allocation3 + $0x8] sm:$0xff]
        %v6407 = vld [vmem:[#allocation3 + $0x10] sm:$0xff]
        %v6408 = vld [vmem:[#allocation3 + $0x18] sm:$0xff]
        %v6409 = vld [vmem:[#allocation3 + $0x20] sm:$0xff]
        %v6410 = vld [vmem:[#allocation3 + $0x28] sm:$0xff]
        %v6411 = vld [vmem:[#allocation3 + $0x30] sm:$0xff]
        %v6412 = vld [vmem:[#allocation3 + $0x38] sm:$0xff]
        %v6413 = vld [vmem:[#allocation3 + $0x40] sm:$0xff]
        %v6414 = vld [vmem:[#allocation3 + $0x48] sm:$0xff]
        %v6415 = vld [vmem:[#allocation3 + $0x50] sm:$0xff]
        %v6416 = vld [vmem:[#allocation3 + $0x58] sm:$0xff]
        %v6417 = vld [vmem:[#allocation3 + $0x60] sm:$0xff]
        %v6418 = vld [vmem:[#allocation3 + $0x68] sm:$0xff]
        %v6419 = vld [vmem:[#allocation3 + $0x70] sm:$0xff]
        %v6420 = vld [vmem:[#allocation3 + $0x78] sm:$0xff]
        %v6421 = vld [vmem:[#allocation3 + $0x80] sm:$0xff]
        %v6422 = vld [vmem:[#allocation3 + $0x88] sm:$0xff]
        %v6423 = vld [vmem:[#allocation9] sm:$0xf]
        %v6424 = vld [vmem:[#allocation9 + $0x4] sm:$0xf]
        %v6425 = vld [vmem:[#allocation9 + $0x8] sm:$0xf]
        %v6426 = vld [vmem:[#allocation9 + $0xc] sm:$0xf]
        %v6427 = vld [vmem:[#allocation9 + $0x10] sm:$0xf]
        %v6428 = vld [vmem:[#allocation9 + $0x14] sm:$0xf]
        %v6429 = vld [vmem:[#allocation9 + $0x18] sm:$0xf]
        %v6430 = vld [vmem:[#allocation9 + $0x1c] sm:$0xf]
        %v6431 = vld [vmem:[#allocation9 + $0x20] sm:$0xf]
        %v6432 = vld [vmem:[#allocation9 + $0x24] sm:$0xf]
        %v6433 = vld [vmem:[#allocation9 + $0x28] sm:$0xf]
        %v6434 = vld [vmem:[#allocation9 + $0x2c] sm:$0xf]
        %v6435 = vld [vmem:[#allocation9 + $0x30] sm:$0xf]
        %v6436 = vld [vmem:[#allocation9 + $0x34] sm:$0xf]
        %v6437 = vld [vmem:[#allocation9 + $0x38] sm:$0xf]
        %v6438 = vld [vmem:[#allocation9 + $0x3c] sm:$0xf]
        %v6455 = vunpack.c.l.b16 %v6423
        %v6456 = vunpack.c.l.b16 %v6424
        %v6457 = vunpack.c.l.b16 %v6425
        %v6458 = vunpack.c.l.b16 %v6426
        %v6459 = vunpack.c.l.b16 %v6427
        %v6460 = vunpack.c.l.b16 %v6428
        %v6461 = vunpack.c.l.b16 %v6429
        %v6462 = vunpack.c.l.b16 %v6430
        %v6463 = vunpack.c.l.b16 %v6431
        %v6464 = vunpack.c.l.b16 %v6432
        %v6465 = vunpack.c.l.b16 %v6433
        %v6466 = vunpack.c.l.b16 %v6434
        %v6467 = vunpack.c.l.b16 %v6435
        %v6468 = vunpack.c.l.b16 %v6436
        %v6469 = vunpack.c.l.b16 %v6437
        %v6470 = vunpack.c.l.b16 %v6438
        %v6471 = vpack.c.b16 %v6456, %v6455
        %v6472 = vpack.c.b16 %v6458, %v6457
        %v6473 = vpack.c.b16 %v6460, %v6459
        %v6474 = vpack.c.b16 %v6462, %v6461
        %v6475 = vpack.c.b16 %v6464, %v6463
        %v6476 = vpack.c.b16 %v6466, %v6465
        %v6477 = vpack.c.b16 %v6468, %v6467
        %v6478 = vpack.c.b16 %v6470, %v6469
        %6487 = vmatprep.subr.bf16.mxu0 0
        %6488 = vmatpush1.bf16.msra.mxu0 %v6471
        %6489 = vmatprep.subr.bf16.mxu0 0
        %6490 = vmatpush1.bf16.msra.mxu0 %v6472
        %6491 = vmatprep.subr.bf16.mxu0 0
        %6492 = vmatpush1.bf16.msra.mxu0 %v6473
        %6493 = vmatprep.subr.bf16.mxu0 0
        %6494 = vmatpush1.bf16.msra.mxu0 %v6474
        %6495 = vmatprep.subr.bf16.mxu0 0
        %6496 = vmatpush1.bf16.msra.mxu0 %v6475
        %6497 = vmatprep.subr.bf16.mxu0 0
        %6498 = vmatpush1.bf16.msra.mxu0 %v6476
        %6499 = vmatprep.subr.bf16.mxu0 0
        %6500 = vmatpush1.bf16.msra.mxu0 %v6477
        %6501 = vmatprep.subr.bf16.mxu0 0
        %6502 = vmatpush1.bf16.msra.mxu0 %v6478
        %6503 = vmatprep.subr.bf16.mxu0 0
        %6504 = vmatpush1.bf16.msra.mxu0 0
        %6505 = vmatprep.subr.bf16.mxu0 0
        %6506 = vmatpush1.bf16.msra.mxu0 0
        %6507 = vmatprep.subr.bf16.mxu0 0
        %6508 = vmatpush1.bf16.msra.mxu0 0
        %6509 = vmatprep.subr.bf16.mxu0 0
        %6510 = vmatpush1.bf16.msra.mxu0 0
        %6511 = vmatprep.subr.bf16.mxu0 0
        %6512 = vmatpush1.bf16.msra.mxu0 0
        %6513 = vmatprep.subr.bf16.mxu0 0
        %6514 = vmatpush1.bf16.msra.mxu0 0
        %6515 = vmatprep.subr.bf16.mxu0 0
        %6516 = vmatpush1.bf16.msra.mxu0 0
        %6517 = vmatprep.subr.bf16.mxu0 0
        %6518 = vmatpush1.bf16.msra.mxu0 0
        %6519 = vmatprep.mubr.bf16.mxu0 0
        %6520 = vmatmul.mubr.bf16.gmra.mrb[0].mxu0 %v6405
        %v6521 = vpop.f32.mrb[0].mxu0
        %v6522 = vadd.f32 0.0, %v6521
        %v6523 = vpop.f32.mrb[0].mxu0
        %v6524 = vpop.f32.mrb[0].mxu0
        %v6525 = vadd.f32 0.0, %v6524
        %v6526 = vpop.f32.mrb[0].mxu0
        %6527 = vmatprep.mubr.bf16.mxu0 0
        %6528 = vmatmul.mubr.bf16.gmra.mrb[0].mxu0 %v6406
        %v6529 = vpop.f32.mrb[0].mxu0
        %v6530 = vadd.f32 0.0, %v6529
        %v6531 = vpop.f32.mrb[0].mxu0
        %v6532 = vpop.f32.mrb[0].mxu0
        %v6533 = vadd.f32 0.0, %v6532
        %v6534 = vpop.f32.mrb[0].mxu0
        %6535 = vmatprep.mubr.bf16.mxu0 0
        %6536 = vmatmul.mubr.bf16.gmra.mrb[0].mxu0 %v6407
        %v6537 = vpop.f32.mrb[0].mxu0
        %v6538 = vadd.f32 0.0, %v6537
        %v6539 = vpop.f32.mrb[0].mxu0
        %v6540 = vpop.f32.mrb[0].mxu0
        %v6541 = vadd.f32 0.0, %v6540
        %v6542 = vpop.f32.mrb[0].mxu0
        %6543 = vmatprep.mubr.bf16.mxu0 0
        %6544 = vmatmul.mubr.bf16.gmra.mrb[0].mxu0 %v6408
        %v6545 = vpop.f32.mrb[0].mxu0
        %v6546 = vadd.f32 0.0, %v6545
        %v6547 = vpop.f32.mrb[0].mxu0
        %v6548 = vpop.f32.mrb[0].mxu0
        %v6549 = vadd.f32 0.0, %v6548
        %v6550 = vpop.f32.mrb[0].mxu0
        %6551 = vmatprep.mubr.bf16.mxu0 0
        %6552 = vmatmul.mubr.bf16.gmra.mrb[0].mxu0 %v6409
        %v6553 = vpop.f32.mrb[0].mxu0
        %v6554 = vadd.f32 0.0, %v6553
        %v6555 = vpop.f32.mrb[0].mxu0
        %v6556 = vpop.f32.mrb[0].mxu0
        %v6557 = vadd.f32 0.0, %v6556
        %v6558 = vpop.f32.mrb[0].mxu0
        %6559 = vmatprep.mubr.bf16.mxu0 0
        %6560 = vmatmul.mubr.bf16.gmra.mrb[0].mxu0 %v6410
        %v6561 = vpop.f32.mrb[0].mxu0
        %v6562 = vadd.f32 0.0, %v6561
        %v6563 = vpop.f32.mrb[0].mxu0
        %v6564 = vpop.f32.mrb[0].mxu0
        %v6565 = vadd.f32 0.0, %v6564
        %v6566 = vpop.f32.mrb[0].mxu0
        %6567 = vmatprep.mubr.bf16.mxu0 0
        %6568 = vmatmul.mubr.bf16.gmra.mrb[0].mxu0 %v6411
        %v6569 = vpop.f32.mrb[0].mxu0
        %v6570 = vadd.f32 0.0, %v6569
        %v6571 = vpop.f32.mrb[0].mxu0
        %v6572 = vpop.f32.mrb[0].mxu0
        %v6573 = vadd.f32 0.0, %v6572
        %v6574 = vpop.f32.mrb[0].mxu0
        %6575 = vmatprep.mubr.bf16.mxu0 0
        %6576 = vmatmul.mubr.bf16.gmra.mrb[0].mxu0 %v6412
        %v6577 = vpop.f32.mrb[0].mxu0
        %v6578 = vadd.f32 0.0, %v6577
        %v6579 = vpop.f32.mrb[0].mxu0
        %v6580 = vpop.f32.mrb[0].mxu0
        %v6581 = vadd.f32 0.0, %v6580
        %v6582 = vpop.f32.mrb[0].mxu0
        %6583 = vmatprep.mubr.bf16.mxu0 0
        %6584 = vmatmul.mubr.bf16.gmra.mrb[0].mxu0 %v6413
        %v6585 = vpop.f32.mrb[0].mxu0
        %v6586 = vadd.f32 0.0, %v6585
        %v6587 = vpop.f32.mrb[0].mxu0
        %v6588 = vpop.f32.mrb[0].mxu0
        %v6589 = vadd.f32 0.0, %v6588
        %v6590 = vpop.f32.mrb[0].mxu0
        %6591 = vmatprep.mubr.bf16.mxu0 0
        %6592 = vmatmul.mubr.bf16.gmra.mrb[0].mxu0 %v6414
        %v6593 = vpop.f32.mrb[0].mxu0
        %v6594 = vadd.f32 0.0, %v6593
        %v6595 = vpop.f32.mrb[0].mxu0
        %v6596 = vpop.f32.mrb[0].mxu0
        %v6597 = vadd.f32 0.0, %v6596
        %v6598 = vpop.f32.mrb[0].mxu0
        %6599 = vmatprep.mubr.bf16.mxu0 0
        %6600 = vmatmul.mubr.bf16.gmra.mrb[0].mxu0 %v6415
        %v6601 = vpop.f32.mrb[0].mxu0
        %v6602 = vadd.f32 0.0, %v6601
        %v6603 = vpop.f32.mrb[0].mxu0
        %v6604 = vpop.f32.mrb[0].mxu0
        %v6605 = vadd.f32 0.0, %v6604
        %v6606 = vpop.f32.mrb[0].mxu0
        %6607 = vmatprep.mubr.bf16.mxu0 0
        %6608 = vmatmul.mubr.bf16.gmra.mrb[0].mxu0 %v6416
        %v6609 = vpop.f32.mrb[0].mxu0
        %v6610 = vadd.f32 0.0, %v6609
        %v6611 = vpop.f32.mrb[0].mxu0
        %v6612 = vpop.f32.mrb[0].mxu0
        %v6613 = vadd.f32 0.0, %v6612
        %v6614 = vpop.f32.mrb[0].mxu0
        %6615 = vmatprep.mubr.bf16.mxu0 0
        %6616 = vmatmul.mubr.bf16.gmra.mrb[0].mxu0 %v6417
        %v6617 = vpop.f32.mrb[0].mxu0
        %v6618 = vadd.f32 0.0, %v6617
        %v6619 = vpop.f32.mrb[0].mxu0
        %v6620 = vpop.f32.mrb[0].mxu0
        %v6621 = vadd.f32 0.0, %v6620
        %v6622 = vpop.f32.mrb[0].mxu0
        %6623 = vmatprep.mubr.bf16.mxu0 0
        %6624 = vmatmul.mubr.bf16.gmra.mrb[0].mxu0 %v6418
        %v6625 = vpop.f32.mrb[0].mxu0
        %v6626 = vadd.f32 0.0, %v6625
        %v6627 = vpop.f32.mrb[0].mxu0
        %v6628 = vpop.f32.mrb[0].mxu0
        %v6629 = vadd.f32 0.0, %v6628
        %v6630 = vpop.f32.mrb[0].mxu0
        %6631 = vmatprep.mubr.bf16.mxu0 0
        %6632 = vmatmul.mubr.bf16.gmra.mrb[0].mxu0 %v6419
        %v6633 = vpop.f32.mrb[0].mxu0
        %v6634 = vadd.f32 0.0, %v6633
        %v6635 = vpop.f32.mrb[0].mxu0
        %v6636 = vpop.f32.mrb[0].mxu0
        %v6637 = vadd.f32 0.0, %v6636
        %v6638 = vpop.f32.mrb[0].mxu0
        %6639 = vmatprep.mubr.bf16.mxu0 0
        %6640 = vmatmul.mubr.bf16.gmra.mrb[0].mxu0 %v6420
        %v6641 = vpop.f32.mrb[0].mxu0
        %v6642 = vadd.f32 0.0, %v6641
        %v6643 = vpop.f32.mrb[0].mxu0
        %v6644 = vpop.f32.mrb[0].mxu0
        %v6645 = vadd.f32 0.0, %v6644
        %v6646 = vpop.f32.mrb[0].mxu0
        %6647 = vmatprep.mubr.bf16.mxu0 0
        %6648 = vmatmul.mubr.bf16.gmra.mrb[0].mxu0 %v6421
        %v6649 = vpop.f32.mrb[0].mxu0
        %v6650 = vadd.f32 0.0, %v6649
        %v6651 = vpop.f32.mrb[0].mxu0
        %v6652 = vpop.f32.mrb[0].mxu0
        %v6653 = vadd.f32 0.0, %v6652
        %v6654 = vpop.f32.mrb[0].mxu0
        %6655 = vmatprep.mubr.bf16.mxu0 0
        %6656 = vmatmul.mubr.bf16.gmra.mrb[0].mxu0 %v6422
        %v6657 = vpop.f32.mrb[0].mxu0
        %v6658 = vadd.f32 0.0, %v6657
        %v6659 = vpop.f32.mrb[0].mxu0
        %v6660 = vpop.f32.mrb[0].mxu0
        %v6661 = vadd.f32 0.0, %v6660
        %v6662 = vpop.f32.mrb[0].mxu0
        %6663 = vdwg.mxu0
        %v6664 = vadd.f32 %v6403, %v6522
        %v6665 = vadd.f32 %v6403, %v6525
        %v6666 = vadd.f32 %v6403, %v6530
        %v6667 = vadd.f32 %v6403, %v6533
        %v6668 = vadd.f32 %v6403, %v6538
        %v6669 = vadd.f32 %v6403, %v6541
        %v6670 = vadd.f32 %v6403, %v6546
        %v6671 = vadd.f32 %v6403, %v6549
        %v6672 = vadd.f32 %v6403, %v6554
        %v6673 = vadd.f32 %v6403, %v6557
        %v6674 = vadd.f32 %v6403, %v6562
        %v6675 = vadd.f32 %v6403, %v6565
        %v6676 = vadd.f32 %v6403, %v6570
        %v6677 = vadd.f32 %v6403, %v6573
        %v6678 = vadd.f32 %v6403, %v6578
        %v6679 = vadd.f32 %v6403, %v6581
        %v6680 = vadd.f32 %v6403, %v6586
        %v6681 = vadd.f32 %v6403, %v6589
        %v6682 = vadd.f32 %v6403, %v6594
        %v6683 = vadd.f32 %v6403, %v6597
        %v6684 = vadd.f32 %v6403, %v6602
        %v6685 = vadd.f32 %v6403, %v6605
        %v6686 = vadd.f32 %v6403, %v6610
        %v6687 = vadd.f32 %v6403, %v6613
        %v6688 = vadd.f32 %v6403, %v6618
        %v6689 = vadd.f32 %v6403, %v6621
        %v6690 = vadd.f32 %v6403, %v6626
        %v6691 = vadd.f32 %v6403, %v6629
        %v6692 = vadd.f32 %v6403, %v6634
        %v6693 = vadd.f32 %v6403, %v6637
        %v6694 = vadd.f32 %v6403, %v6642
        %v6695 = vadd.f32 %v6403, %v6645
        %v6696 = vadd.f32 %v6403, %v6650
        %v6697 = vadd.f32 %v6403, %v6653
        %v6698 = vadd.f32 %v6403, %v6658
        %v6699 = vadd.f32 %v6403, %v6661
        %v6700 = vld [vmem:[#allocation3] sm:$0xff]
        %v6701 = vld [vmem:[#allocation3 + $0x8] sm:$0xff]
        %v6702 = vld [vmem:[#allocation3 + $0x10] sm:$0xff]
        %v6703 = vld [vmem:[#allocation3 + $0x18] sm:$0xff]
        %v6704 = vld [vmem:[#allocation3 + $0x20] sm:$0xff]
        %v6705 = vld [vmem:[#allocation3 + $0x28] sm:$0xff]
        %v6706 = vld [vmem:[#allocation3 + $0x30] sm:$0xff]
        %v6707 = vld [vmem:[#allocation3 + $0x38] sm:$0xff]
        %v6708 = vld [vmem:[#allocation3 + $0x40] sm:$0xff]
        %v6709 = vld [vmem:[#allocation3 + $0x48] sm:$0xff]
        %v6710 = vld [vmem:[#allocation3 + $0x50] sm:$0xff]
        %v6711 = vld [vmem:[#allocation3 + $0x58] sm:$0xff]
        %v6712 = vld [vmem:[#allocation3 + $0x60] sm:$0xff]
        %v6713 = vld [vmem:[#allocation3 + $0x68] sm:$0xff]
        %v6714 = vld [vmem:[#allocation3 + $0x70] sm:$0xff]
        %v6715 = vld [vmem:[#allocation3 + $0x78] sm:$0xff]
        %v6716 = vld [vmem:[#allocation3 + $0x80] sm:$0xff]
        %v6717 = vld [vmem:[#allocation3 + $0x88] sm:$0xff]
        %v6718 = vld [vmem:[#allocation3 + $0x90] sm:$0x1]
        %s6719 = scalar_lea.vmem [#allocation9], 64
        %v6720 = vld [vmem:[%s6719] sm:$0xf]
        %v6721 = vld [vmem:[%s6719 + $0x4] sm:$0xf]
        %v6722 = vld [vmem:[%s6719 + $0x8] sm:$0xf]
        %v6723 = vld [vmem:[%s6719 + $0xc] sm:$0xf]
        %v6724 = vld [vmem:[%s6719 + $0x10] sm:$0xf]
        %v6725 = vld [vmem:[%s6719 + $0x14] sm:$0xf]
        %v6726 = vld [vmem:[%s6719 + $0x18] sm:$0xf]
        %v6727 = vld [vmem:[%s6719 + $0x1c] sm:$0xf]
        %v6728 = vld [vmem:[%s6719 + $0x20] sm:$0xf]
        %v6729 = vld [vmem:[%s6719 + $0x24] sm:$0xf]
        %v6730 = vld [vmem:[%s6719 + $0x28] sm:$0xf]
        %v6731 = vld [vmem:[%s6719 + $0x2c] sm:$0xf]
        %v6732 = vld [vmem:[%s6719 + $0x30] sm:$0xf]
        %v6733 = vld [vmem:[%s6719 + $0x34] sm:$0xf]
        %v6734 = vld [vmem:[%s6719 + $0x38] sm:$0xf]
        %v6735 = vld [vmem:[%s6719 + $0x3c] sm:$0xf]
        %v6737 = vshrl.u32 %v6700, 16
        %v6739 = vshll.u32 %v6700, 16
        %v6741 = vrot.slane %v6739, 1
        %v6742 = vor.u32 %v6737, %v6741
        %v6744 = vshll.u32 %v6701, 16
        %v6746 = vrot.slane %v6744, 1
        %v6747 = vsel %vm2896, %v6742, %v6746
        %v6748 = vshrl.u32 %v6701, 16
        %v6750 = vor.u32 %v6748, %v6746
        %v6752 = vshll.u32 %v6702, 16
        %v6754 = vrot.slane %v6752, 1
        %v6755 = vsel %vm2896, %v6750, %v6754
        %v6756 = vshrl.u32 %v6702, 16
        %v6758 = vor.u32 %v6756, %v6754
        %v6760 = vshll.u32 %v6703, 16
        %v6762 = vrot.slane %v6760, 1
        %v6763 = vsel %vm2896, %v6758, %v6762
        %v6764 = vshrl.u32 %v6703, 16
        %v6766 = vor.u32 %v6764, %v6762
        %v6768 = vshll.u32 %v6704, 16
        %v6770 = vrot.slane %v6768, 1
        %v6771 = vsel %vm2896, %v6766, %v6770
        %v6772 = vshrl.u32 %v6704, 16
        %v6774 = vor.u32 %v6772, %v6770
        %v6776 = vshll.u32 %v6705, 16
        %v6778 = vrot.slane %v6776, 1
        %v6779 = vsel %vm2896, %v6774, %v6778
        %v6780 = vshrl.u32 %v6705, 16
        %v6782 = vor.u32 %v6780, %v6778
        %v6784 = vshll.u32 %v6706, 16
        %v6786 = vrot.slane %v6784, 1
        %v6787 = vsel %vm2896, %v6782, %v6786
        %v6788 = vshrl.u32 %v6706, 16
        %v6790 = vor.u32 %v6788, %v6786
        %v6792 = vshll.u32 %v6707, 16
        %v6794 = vrot.slane %v6792, 1
        %v6795 = vsel %vm2896, %v6790, %v6794
        %v6796 = vshrl.u32 %v6707, 16
        %v6798 = vor.u32 %v6796, %v6794
        %v6800 = vshll.u32 %v6708, 16
        %v6802 = vrot.slane %v6800, 1
        %v6803 = vsel %vm2896, %v6798, %v6802
        %v6804 = vshrl.u32 %v6708, 16
        %v6806 = vor.u32 %v6804, %v6802
        %v6808 = vshll.u32 %v6709, 16
        %v6810 = vrot.slane %v6808, 1
        %v6811 = vsel %vm2896, %v6806, %v6810
        %v6812 = vshrl.u32 %v6709, 16
        %v6814 = vor.u32 %v6812, %v6810
        %v6816 = vshll.u32 %v6710, 16
        %v6818 = vrot.slane %v6816, 1
        %v6819 = vsel %vm2896, %v6814, %v6818
        %v6820 = vshrl.u32 %v6710, 16
        %v6822 = vor.u32 %v6820, %v6818
        %v6824 = vshll.u32 %v6711, 16
        %v6826 = vrot.slane %v6824, 1
        %v6827 = vsel %vm2896, %v6822, %v6826
        %v6828 = vshrl.u32 %v6711, 16
        %v6830 = vor.u32 %v6828, %v6826
        %v6832 = vshll.u32 %v6712, 16
        %v6834 = vrot.slane %v6832, 1
        %v6835 = vsel %vm2896, %v6830, %v6834
        %v6836 = vshrl.u32 %v6712, 16
        %v6838 = vor.u32 %v6836, %v6834
        %v6840 = vshll.u32 %v6713, 16
        %v6842 = vrot.slane %v6840, 1
        %v6843 = vsel %vm2896, %v6838, %v6842
        %v6844 = vshrl.u32 %v6713, 16
        %v6846 = vor.u32 %v6844, %v6842
        %v6848 = vshll.u32 %v6714, 16
        %v6850 = vrot.slane %v6848, 1
        %v6851 = vsel %vm2896, %v6846, %v6850
        %v6852 = vshrl.u32 %v6714, 16
        %v6854 = vor.u32 %v6852, %v6850
        %v6856 = vshll.u32 %v6715, 16
        %v6858 = vrot.slane %v6856, 1
        %v6859 = vsel %vm2896, %v6854, %v6858
        %v6860 = vshrl.u32 %v6715, 16
        %v6862 = vor.u32 %v6860, %v6858
        %v6864 = vshll.u32 %v6716, 16
        %v6866 = vrot.slane %v6864, 1
        %v6867 = vsel %vm2896, %v6862, %v6866
        %v6868 = vshrl.u32 %v6716, 16
        %v6870 = vor.u32 %v6868, %v6866
        %v6872 = vshll.u32 %v6717, 16
        %v6874 = vrot.slane %v6872, 1
        %v6875 = vsel %vm2896, %v6870, %v6874
        %v6876 = vshrl.u32 %v6717, 16
        %v6878 = vor.u32 %v6876, %v6874
        %v6880 = vshll.u32 %v6718, 16
        %v6882 = vrot.slane %v6880, 1
        %v6883 = vsel %vm2896, %v6878, %v6882
        %v6918 = vunpack.c.l.b16 %v6720
        %v6919 = vunpack.c.l.b16 %v6721
        %v6920 = vunpack.c.l.b16 %v6722
        %v6921 = vunpack.c.l.b16 %v6723
        %v6922 = vunpack.c.l.b16 %v6724
        %v6923 = vunpack.c.l.b16 %v6725
        %v6924 = vunpack.c.l.b16 %v6726
        %v6925 = vunpack.c.l.b16 %v6727
        %v6926 = vunpack.c.l.b16 %v6728
        %v6927 = vunpack.c.l.b16 %v6729
        %v6928 = vunpack.c.l.b16 %v6730
        %v6929 = vunpack.c.l.b16 %v6731
        %v6930 = vunpack.c.l.b16 %v6732
        %v6931 = vunpack.c.l.b16 %v6733
        %v6932 = vunpack.c.l.b16 %v6734
        %v6933 = vunpack.c.l.b16 %v6735
        %v6934 = vpack.c.b16 %v6919, %v6918
        %v6935 = vpack.c.b16 %v6921, %v6920
        %v6936 = vpack.c.b16 %v6923, %v6922
        %v6937 = vpack.c.b16 %v6925, %v6924
        %v6938 = vpack.c.b16 %v6927, %v6926
        %v6939 = vpack.c.b16 %v6929, %v6928
        %v6940 = vpack.c.b16 %v6931, %v6930
        %v6941 = vpack.c.b16 %v6933, %v6932
        %6950 = vmatprep.subr.bf16.mxu0 0
        %6951 = vmatpush1.bf16.msra.mxu0 %v6934
        %6952 = vmatprep.subr.bf16.mxu0 0
        %6953 = vmatpush1.bf16.msra.mxu0 %v6935
        %6954 = vmatprep.subr.bf16.mxu0 0
        %6955 = vmatpush1.bf16.msra.mxu0 %v6936
        %6956 = vmatprep.subr.bf16.mxu0 0
        %6957 = vmatpush1.bf16.msra.mxu0 %v6937
        %6958 = vmatprep.subr.bf16.mxu0 0
        %6959 = vmatpush1.bf16.msra.mxu0 %v6938
        %6960 = vmatprep.subr.bf16.mxu0 0
        %6961 = vmatpush1.bf16.msra.mxu0 %v6939
        %6962 = vmatprep.subr.bf16.mxu0 0
        %6963 = vmatpush1.bf16.msra.mxu0 %v6940
        %6964 = vmatprep.subr.bf16.mxu0 0
        %6965 = vmatpush1.bf16.msra.mxu0 %v6941
        %6966 = vmatprep.subr.bf16.mxu0 0
        %6967 = vmatpush1.bf16.msra.mxu0 0
        %6968 = vmatprep.subr.bf16.mxu0 0
        %6969 = vmatpush1.bf16.msra.mxu0 0
        %6970 = vmatprep.subr.bf16.mxu0 0
        %6971 = vmatpush1.bf16.msra.mxu0 0
        %6972 = vmatprep.subr.bf16.mxu0 0
        %6973 = vmatpush1.bf16.msra.mxu0 0
        %6974 = vmatprep.subr.bf16.mxu0 0
        %6975 = vmatpush1.bf16.msra.mxu0 0
        %6976 = vmatprep.subr.bf16.mxu0 0
        %6977 = vmatpush1.bf16.msra.mxu0 0
        %6978 = vmatprep.subr.bf16.mxu0 0
        %6979 = vmatpush1.bf16.msra.mxu0 0
        %6980 = vmatprep.subr.bf16.mxu0 0
        %6981 = vmatpush1.bf16.msra.mxu0 0
        %6982 = vmatprep.mubr.bf16.mxu0 0
        %6983 = vmatmul.mubr.bf16.gmra.mrb[0].mxu0 %v6747
        %v6984 = vpop.f32.mrb[0].mxu0
        %v6985 = vadd.f32 0.0, %v6984
        %v6986 = vpop.f32.mrb[0].mxu0
        %v6987 = vpop.f32.mrb[0].mxu0
        %v6988 = vadd.f32 0.0, %v6987
        %v6989 = vpop.f32.mrb[0].mxu0
        %6990 = vmatprep.mubr.bf16.mxu0 0
        %6991 = vmatmul.mubr.bf16.gmra.mrb[0].mxu0 %v6755
        %v6992 = vpop.f32.mrb[0].mxu0
        %v6993 = vadd.f32 0.0, %v6992
        %v6994 = vpop.f32.mrb[0].mxu0
        %v6995 = vpop.f32.mrb[0].mxu0
        %v6996 = vadd.f32 0.0, %v6995
        %v6997 = vpop.f32.mrb[0].mxu0
        %6998 = vmatprep.mubr.bf16.mxu0 0
        %6999 = vmatmul.mubr.bf16.gmra.mrb[0].mxu0 %v6763
        %v7000 = vpop.f32.mrb[0].mxu0
        %v7001 = vadd.f32 0.0, %v7000
        %v7002 = vpop.f32.mrb[0].mxu0
        %v7003 = vpop.f32.mrb[0].mxu0
        %v7004 = vadd.f32 0.0, %v7003
        %v7005 = vpop.f32.mrb[0].mxu0
        %7006 = vmatprep.mubr.bf16.mxu0 0
        %7007 = vmatmul.mubr.bf16.gmra.mrb[0].mxu0 %v6771
        %v7008 = vpop.f32.mrb[0].mxu0
        %v7009 = vadd.f32 0.0, %v7008
        %v7010 = vpop.f32.mrb[0].mxu0
        %v7011 = vpop.f32.mrb[0].mxu0
        %v7012 = vadd.f32 0.0, %v7011
        %v7013 = vpop.f32.mrb[0].mxu0
        %7014 = vmatprep.mubr.bf16.mxu0 0
        %7015 = vmatmul.mubr.bf16.gmra.mrb[0].mxu0 %v6779
        %v7016 = vpop.f32.mrb[0].mxu0
        %v7017 = vadd.f32 0.0, %v7016
        %v7018 = vpop.f32.mrb[0].mxu0
        %v7019 = vpop.f32.mrb[0].mxu0
        %v7020 = vadd.f32 0.0, %v7019
        %v7021 = vpop.f32.mrb[0].mxu0
        %7022 = vmatprep.mubr.bf16.mxu0 0
        %7023 = vmatmul.mubr.bf16.gmra.mrb[0].mxu0 %v6787
        %v7024 = vpop.f32.mrb[0].mxu0
        %v7025 = vadd.f32 0.0, %v7024
        %v7026 = vpop.f32.mrb[0].mxu0
        %v7027 = vpop.f32.mrb[0].mxu0
        %v7028 = vadd.f32 0.0, %v7027
        %v7029 = vpop.f32.mrb[0].mxu0
        %7030 = vmatprep.mubr.bf16.mxu0 0
        %7031 = vmatmul.mubr.bf16.gmra.mrb[0].mxu0 %v6795
        %v7032 = vpop.f32.mrb[0].mxu0
        %v7033 = vadd.f32 0.0, %v7032
        %v7034 = vpop.f32.mrb[0].mxu0
        %v7035 = vpop.f32.mrb[0].mxu0
        %v7036 = vadd.f32 0.0, %v7035
        %v7037 = vpop.f32.mrb[0].mxu0
        %7038 = vmatprep.mubr.bf16.mxu0 0
        %7039 = vmatmul.mubr.bf16.gmra.mrb[0].mxu0 %v6803
        %v7040 = vpop.f32.mrb[0].mxu0
        %v7041 = vadd.f32 0.0, %v7040
        %v7042 = vpop.f32.mrb[0].mxu0
        %v7043 = vpop.f32.mrb[0].mxu0
        %v7044 = vadd.f32 0.0, %v7043
        %v7045 = vpop.f32.mrb[0].mxu0
        %7046 = vmatprep.mubr.bf16.mxu0 0
        %7047 = vmatmul.mubr.bf16.gmra.mrb[0].mxu0 %v6811
        %v7048 = vpop.f32.mrb[0].mxu0
        %v7049 = vadd.f32 0.0, %v7048
        %v7050 = vpop.f32.mrb[0].mxu0
        %v7051 = vpop.f32.mrb[0].mxu0
        %v7052 = vadd.f32 0.0, %v7051
        %v7053 = vpop.f32.mrb[0].mxu0
        %7054 = vmatprep.mubr.bf16.mxu0 0
        %7055 = vmatmul.mubr.bf16.gmra.mrb[0].mxu0 %v6819
        %v7056 = vpop.f32.mrb[0].mxu0
        %v7057 = vadd.f32 0.0, %v7056
        %v7058 = vpop.f32.mrb[0].mxu0
        %v7059 = vpop.f32.mrb[0].mxu0
        %v7060 = vadd.f32 0.0, %v7059
        %v7061 = vpop.f32.mrb[0].mxu0
        %7062 = vmatprep.mubr.bf16.mxu0 0
        %7063 = vmatmul.mubr.bf16.gmra.mrb[0].mxu0 %v6827
        %v7064 = vpop.f32.mrb[0].mxu0
        %v7065 = vadd.f32 0.0, %v7064
        %v7066 = vpop.f32.mrb[0].mxu0
        %v7067 = vpop.f32.mrb[0].mxu0
        %v7068 = vadd.f32 0.0, %v7067
        %v7069 = vpop.f32.mrb[0].mxu0
        %7070 = vmatprep.mubr.bf16.mxu0 0
        %7071 = vmatmul.mubr.bf16.gmra.mrb[0].mxu0 %v6835
        %v7072 = vpop.f32.mrb[0].mxu0
        %v7073 = vadd.f32 0.0, %v7072
        %v7074 = vpop.f32.mrb[0].mxu0
        %v7075 = vpop.f32.mrb[0].mxu0
        %v7076 = vadd.f32 0.0, %v7075
        %v7077 = vpop.f32.mrb[0].mxu0
        %7078 = vmatprep.mubr.bf16.mxu0 0
        %7079 = vmatmul.mubr.bf16.gmra.mrb[0].mxu0 %v6843
        %v7080 = vpop.f32.mrb[0].mxu0
        %v7081 = vadd.f32 0.0, %v7080
        %v7082 = vpop.f32.mrb[0].mxu0
        %v7083 = vpop.f32.mrb[0].mxu0
        %v7084 = vadd.f32 0.0, %v7083
        %v7085 = vpop.f32.mrb[0].mxu0
        %7086 = vmatprep.mubr.bf16.mxu0 0
        %7087 = vmatmul.mubr.bf16.gmra.mrb[0].mxu0 %v6851
        %v7088 = vpop.f32.mrb[0].mxu0
        %v7089 = vadd.f32 0.0, %v7088
        %v7090 = vpop.f32.mrb[0].mxu0
        %v7091 = vpop.f32.mrb[0].mxu0
        %v7092 = vadd.f32 0.0, %v7091
        %v7093 = vpop.f32.mrb[0].mxu0
        %7094 = vmatprep.mubr.bf16.mxu0 0
        %7095 = vmatmul.mubr.bf16.gmra.mrb[0].mxu0 %v6859
        %v7096 = vpop.f32.mrb[0].mxu0
        %v7097 = vadd.f32 0.0, %v7096
        %v7098 = vpop.f32.mrb[0].mxu0
        %v7099 = vpop.f32.mrb[0].mxu0
        %v7100 = vadd.f32 0.0, %v7099
        %v7101 = vpop.f32.mrb[0].mxu0
        %7102 = vmatprep.mubr.bf16.mxu0 0
        %7103 = vmatmul.mubr.bf16.gmra.mrb[0].mxu0 %v6867
        %v7104 = vpop.f32.mrb[0].mxu0
        %v7105 = vadd.f32 0.0, %v7104
        %v7106 = vpop.f32.mrb[0].mxu0
        %v7107 = vpop.f32.mrb[0].mxu0
        %v7108 = vadd.f32 0.0, %v7107
        %v7109 = vpop.f32.mrb[0].mxu0
        %7110 = vmatprep.mubr.bf16.mxu0 0
        %7111 = vmatmul.mubr.bf16.gmra.mrb[0].mxu0 %v6875
        %v7112 = vpop.f32.mrb[0].mxu0
        %v7113 = vadd.f32 0.0, %v7112
        %v7114 = vpop.f32.mrb[0].mxu0
        %v7115 = vpop.f32.mrb[0].mxu0
        %v7116 = vadd.f32 0.0, %v7115
        %v7117 = vpop.f32.mrb[0].mxu0
        %7118 = vmatprep.mubr.bf16.mxu0 0
        %7119 = vmatmul.mubr.bf16.gmra.mrb[0].mxu0 %v6883
        %v7120 = vpop.f32.mrb[0].mxu0
        %v7121 = vadd.f32 0.0, %v7120
        %v7122 = vpop.f32.mrb[0].mxu0
        %v7123 = vpop.f32.mrb[0].mxu0
        %v7124 = vadd.f32 0.0, %v7123
        %v7125 = vpop.f32.mrb[0].mxu0
        %7126 = vdwg.mxu0
        %v7127 = vadd.f32 %v6664, %v6985
        %v7128 = vadd.f32 %v6665, %v6988
        %v7129 = vadd.f32 %v6666, %v6993
        %v7130 = vadd.f32 %v6667, %v6996
        %v7131 = vadd.f32 %v6668, %v7001
        %v7132 = vadd.f32 %v6669, %v7004
        %v7133 = vadd.f32 %v6670, %v7009
        %v7134 = vadd.f32 %v6671, %v7012
        %v7135 = vadd.f32 %v6672, %v7017
        %v7136 = vadd.f32 %v6673, %v7020
        %v7137 = vadd.f32 %v6674, %v7025
        %v7138 = vadd.f32 %v6675, %v7028
        %v7139 = vadd.f32 %v6676, %v7033
        %v7140 = vadd.f32 %v6677, %v7036
        %v7141 = vadd.f32 %v6678, %v7041
        %v7142 = vadd.f32 %v6679, %v7044
        %v7143 = vadd.f32 %v6680, %v7049
        %v7144 = vadd.f32 %v6681, %v7052
        %v7145 = vadd.f32 %v6682, %v7057
        %v7146 = vadd.f32 %v6683, %v7060
        %v7147 = vadd.f32 %v6684, %v7065
        %v7148 = vadd.f32 %v6685, %v7068
        %v7149 = vadd.f32 %v6686, %v7073
        %v7150 = vadd.f32 %v6687, %v7076
        %v7151 = vadd.f32 %v6688, %v7081
        %v7152 = vadd.f32 %v6689, %v7084
        %v7153 = vadd.f32 %v6690, %v7089
        %v7154 = vadd.f32 %v6691, %v7092
        %v7155 = vadd.f32 %v6692, %v7097
        %v7156 = vadd.f32 %v6693, %v7100
        %v7157 = vadd.f32 %v6694, %v7105
        %v7158 = vadd.f32 %v6695, %v7108
        %v7159 = vadd.f32 %v6696, %v7113
        %v7160 = vadd.f32 %v6697, %v7116
        %v7161 = vadd.f32 %v6698, %v7121
        %v7162 = vadd.f32 %v6699, %v7124
        %v7163 = vld [vmem:[#allocation3] sm:$0xfe]
        %s7164 = scalar_lea.vmem [#allocation9], 128
        %v7165 = vld [vmem:[%s7164] sm:$0xf]
        %v7166 = vld [vmem:[%s7164 + $0x4] sm:$0xf]
        %v7167 = vld [vmem:[%s7164 + $0x8] sm:$0xf]
        %v7168 = vld [vmem:[%s7164 + $0xc] sm:$0xf]
        %v7169 = vld [vmem:[%s7164 + $0x10] sm:$0xf]
        %v7170 = vld [vmem:[%s7164 + $0x14] sm:$0xf]
        %v7171 = vld [vmem:[%s7164 + $0x18] sm:$0xf]
        %v7172 = vld [vmem:[%s7164 + $0x1c] sm:$0xf]
        %v7173 = vld [vmem:[%s7164 + $0x20] sm:$0xf]
        %v7174 = vld [vmem:[%s7164 + $0x24] sm:$0xf]
        %v7175 = vld [vmem:[%s7164 + $0x28] sm:$0xf]
        %v7176 = vld [vmem:[%s7164 + $0x2c] sm:$0xf]
        %v7177 = vld [vmem:[%s7164 + $0x30] sm:$0xf]
        %v7178 = vld [vmem:[%s7164 + $0x34] sm:$0xf]
        %v7179 = vld [vmem:[%s7164 + $0x38] sm:$0xf]
        %v7180 = vld [vmem:[%s7164 + $0x3c] sm:$0xf]
        %v7200 = vrot.slane %v7163, 1
        %v7201 = vrot.slane %v6701, 1
        %v7202 = vsel %vm3361, %v7200, %v7201
        %v7203 = vrot.slane %v6702, 1
        %v7204 = vsel %vm3361, %v7201, %v7203
        %v7205 = vrot.slane %v6703, 1
        %v7206 = vsel %vm3361, %v7203, %v7205
        %v7207 = vrot.slane %v6704, 1
        %v7208 = vsel %vm3361, %v7205, %v7207
        %v7209 = vrot.slane %v6705, 1
        %v7210 = vsel %vm3361, %v7207, %v7209
        %v7211 = vrot.slane %v6706, 1
        %v7212 = vsel %vm3361, %v7209, %v7211
        %v7213 = vrot.slane %v6707, 1
        %v7214 = vsel %vm3361, %v7211, %v7213
        %v7215 = vrot.slane %v6708, 1
        %v7216 = vsel %vm3361, %v7213, %v7215
        %v7217 = vrot.slane %v6709, 1
        %v7218 = vsel %vm3361, %v7215, %v7217
        %v7219 = vrot.slane %v6710, 1
        %v7220 = vsel %vm3361, %v7217, %v7219
        %v7221 = vrot.slane %v6711, 1
        %v7222 = vsel %vm3361, %v7219, %v7221
        %v7223 = vrot.slane %v6712, 1
        %v7224 = vsel %vm3361, %v7221, %v7223
        %v7225 = vrot.slane %v6713, 1
        %v7226 = vsel %vm3361, %v7223, %v7225
        %v7227 = vrot.slane %v6714, 1
        %v7228 = vsel %vm3361, %v7225, %v7227
        %v7229 = vrot.slane %v6715, 1
        %v7230 = vsel %vm3361, %v7227, %v7229
        %v7231 = vrot.slane %v6716, 1
        %v7232 = vsel %vm3361, %v7229, %v7231
        %v7233 = vrot.slane %v6717, 1
        %v7234 = vsel %vm3361, %v7231, %v7233
        %v7235 = vrot.slane %v6718, 1
        %v7236 = vsel %vm3361, %v7233, %v7235
        %v7271 = vunpack.c.l.b16 %v7165
        %v7272 = vunpack.c.l.b16 %v7166
        %v7273 = vunpack.c.l.b16 %v7167
        %v7274 = vunpack.c.l.b16 %v7168
        %v7275 = vunpack.c.l.b16 %v7169
        %v7276 = vunpack.c.l.b16 %v7170
        %v7277 = vunpack.c.l.b16 %v7171
        %v7278 = vunpack.c.l.b16 %v7172
        %v7279 = vunpack.c.l.b16 %v7173
        %v7280 = vunpack.c.l.b16 %v7174
        %v7281 = vunpack.c.l.b16 %v7175
        %v7282 = vunpack.c.l.b16 %v7176
        %v7283 = vunpack.c.l.b16 %v7177
        %v7284 = vunpack.c.l.b16 %v7178
        %v7285 = vunpack.c.l.b16 %v7179
        %v7286 = vunpack.c.l.b16 %v7180
        %v7287 = vpack.c.b16 %v7272, %v7271
        %v7288 = vpack.c.b16 %v7274, %v7273
        %v7289 = vpack.c.b16 %v7276, %v7275
        %v7290 = vpack.c.b16 %v7278, %v7277
        %v7291 = vpack.c.b16 %v7280, %v7279
        %v7292 = vpack.c.b16 %v7282, %v7281
        %v7293 = vpack.c.b16 %v7284, %v7283
        %v7294 = vpack.c.b16 %v7286, %v7285
        %7303 = vmatprep.subr.bf16.mxu0 0
        %7304 = vmatpush1.bf16.msra.mxu0 %v7287
        %7305 = vmatprep.subr.bf16.mxu0 0
        %7306 = vmatpush1.bf16.msra.mxu0 %v7288
        %7307 = vmatprep.subr.bf16.mxu0 0
        %7308 = vmatpush1.bf16.msra.mxu0 %v7289
        %7309 = vmatprep.subr.bf16.mxu0 0
        %7310 = vmatpush1.bf16.msra.mxu0 %v7290
        %7311 = vmatprep.subr.bf16.mxu0 0
        %7312 = vmatpush1.bf16.msra.mxu0 %v7291
        %7313 = vmatprep.subr.bf16.mxu0 0
        %7314 = vmatpush1.bf16.msra.mxu0 %v7292
        %7315 = vmatprep.subr.bf16.mxu0 0
        %7316 = vmatpush1.bf16.msra.mxu0 %v7293
        %7317 = vmatprep.subr.bf16.mxu0 0
        %7318 = vmatpush1.bf16.msra.mxu0 %v7294
        %7319 = vmatprep.subr.bf16.mxu0 0
        %7320 = vmatpush1.bf16.msra.mxu0 0
        %7321 = vmatprep.subr.bf16.mxu0 0
        %7322 = vmatpush1.bf16.msra.mxu0 0
        %7323 = vmatprep.subr.bf16.mxu0 0
        %7324 = vmatpush1.bf16.msra.mxu0 0
        %7325 = vmatprep.subr.bf16.mxu0 0
        %7326 = vmatpush1.bf16.msra.mxu0 0
        %7327 = vmatprep.subr.bf16.mxu0 0
        %7328 = vmatpush1.bf16.msra.mxu0 0
        %7329 = vmatprep.subr.bf16.mxu0 0
        %7330 = vmatpush1.bf16.msra.mxu0 0
        %7331 = vmatprep.subr.bf16.mxu0 0
        %7332 = vmatpush1.bf16.msra.mxu0 0
        %7333 = vmatprep.subr.bf16.mxu0 0
        %7334 = vmatpush1.bf16.msra.mxu0 0
        %7335 = vmatprep.mubr.bf16.mxu0 0
        %7336 = vmatmul.mubr.bf16.gmra.mrb[0].mxu0 %v7202
        %v7337 = vpop.f32.mrb[0].mxu0
        %v7338 = vadd.f32 0.0, %v7337
        %v7339 = vpop.f32.mrb[0].mxu0
        %v7340 = vpop.f32.mrb[0].mxu0
        %v7341 = vadd.f32 0.0, %v7340
        %v7342 = vpop.f32.mrb[0].mxu0
        %7343 = vmatprep.mubr.bf16.mxu0 0
        %7344 = vmatmul.mubr.bf16.gmra.mrb[0].mxu0 %v7204
        %v7345 = vpop.f32.mrb[0].mxu0
        %v7346 = vadd.f32 0.0, %v7345
        %v7347 = vpop.f32.mrb[0].mxu0
        %v7348 = vpop.f32.mrb[0].mxu0
        %v7349 = vadd.f32 0.0, %v7348
        %v7350 = vpop.f32.mrb[0].mxu0
        %7351 = vmatprep.mubr.bf16.mxu0 0
        %7352 = vmatmul.mubr.bf16.gmra.mrb[0].mxu0 %v7206
        %v7353 = vpop.f32.mrb[0].mxu0
        %v7354 = vadd.f32 0.0, %v7353
        %v7355 = vpop.f32.mrb[0].mxu0
        %v7356 = vpop.f32.mrb[0].mxu0
        %v7357 = vadd.f32 0.0, %v7356
        %v7358 = vpop.f32.mrb[0].mxu0
        %7359 = vmatprep.mubr.bf16.mxu0 0
        %7360 = vmatmul.mubr.bf16.gmra.mrb[0].mxu0 %v7208
        %v7361 = vpop.f32.mrb[0].mxu0
        %v7362 = vadd.f32 0.0, %v7361
        %v7363 = vpop.f32.mrb[0].mxu0
        %v7364 = vpop.f32.mrb[0].mxu0
        %v7365 = vadd.f32 0.0, %v7364
        %v7366 = vpop.f32.mrb[0].mxu0
        %7367 = vmatprep.mubr.bf16.mxu0 0
        %7368 = vmatmul.mubr.bf16.gmra.mrb[0].mxu0 %v7210
        %v7369 = vpop.f32.mrb[0].mxu0
        %v7370 = vadd.f32 0.0, %v7369
        %v7371 = vpop.f32.mrb[0].mxu0
        %v7372 = vpop.f32.mrb[0].mxu0
        %v7373 = vadd.f32 0.0, %v7372
        %v7374 = vpop.f32.mrb[0].mxu0
        %7375 = vmatprep.mubr.bf16.mxu0 0
        %7376 = vmatmul.mubr.bf16.gmra.mrb[0].mxu0 %v7212
        %v7377 = vpop.f32.mrb[0].mxu0
        %v7378 = vadd.f32 0.0, %v7377
        %v7379 = vpop.f32.mrb[0].mxu0
        %v7380 = vpop.f32.mrb[0].mxu0
        %v7381 = vadd.f32 0.0, %v7380
        %v7382 = vpop.f32.mrb[0].mxu0
        %7383 = vmatprep.mubr.bf16.mxu0 0
        %7384 = vmatmul.mubr.bf16.gmra.mrb[0].mxu0 %v7214
        %v7385 = vpop.f32.mrb[0].mxu0
        %v7386 = vadd.f32 0.0, %v7385
        %v7387 = vpop.f32.mrb[0].mxu0
        %v7388 = vpop.f32.mrb[0].mxu0
        %v7389 = vadd.f32 0.0, %v7388
        %v7390 = vpop.f32.mrb[0].mxu0
        %7391 = vmatprep.mubr.bf16.mxu0 0
        %7392 = vmatmul.mubr.bf16.gmra.mrb[0].mxu0 %v7216
        %v7393 = vpop.f32.mrb[0].mxu0
        %v7394 = vadd.f32 0.0, %v7393
        %v7395 = vpop.f32.mrb[0].mxu0
        %v7396 = vpop.f32.mrb[0].mxu0
        %v7397 = vadd.f32 0.0, %v7396
        %v7398 = vpop.f32.mrb[0].mxu0
        %7399 = vmatprep.mubr.bf16.mxu0 0
        %7400 = vmatmul.mubr.bf16.gmra.mrb[0].mxu0 %v7218
        %v7401 = vpop.f32.mrb[0].mxu0
        %v7402 = vadd.f32 0.0, %v7401
        %v7403 = vpop.f32.mrb[0].mxu0
        %v7404 = vpop.f32.mrb[0].mxu0
        %v7405 = vadd.f32 0.0, %v7404
        %v7406 = vpop.f32.mrb[0].mxu0
        %7407 = vmatprep.mubr.bf16.mxu0 0
        %7408 = vmatmul.mubr.bf16.gmra.mrb[0].mxu0 %v7220
        %v7409 = vpop.f32.mrb[0].mxu0
        %v7410 = vadd.f32 0.0, %v7409
        %v7411 = vpop.f32.mrb[0].mxu0
        %v7412 = vpop.f32.mrb[0].mxu0
        %v7413 = vadd.f32 0.0, %v7412
        %v7414 = vpop.f32.mrb[0].mxu0
        %7415 = vmatprep.mubr.bf16.mxu0 0
        %7416 = vmatmul.mubr.bf16.gmra.mrb[0].mxu0 %v7222
        %v7417 = vpop.f32.mrb[0].mxu0
        %v7418 = vadd.f32 0.0, %v7417
        %v7419 = vpop.f32.mrb[0].mxu0
        %v7420 = vpop.f32.mrb[0].mxu0
        %v7421 = vadd.f32 0.0, %v7420
        %v7422 = vpop.f32.mrb[0].mxu0
        %7423 = vmatprep.mubr.bf16.mxu0 0
        %7424 = vmatmul.mubr.bf16.gmra.mrb[0].mxu0 %v7224
        %v7425 = vpop.f32.mrb[0].mxu0
        %v7426 = vadd.f32 0.0, %v7425
        %v7427 = vpop.f32.mrb[0].mxu0
        %v7428 = vpop.f32.mrb[0].mxu0
        %v7429 = vadd.f32 0.0, %v7428
        %v7430 = vpop.f32.mrb[0].mxu0
        %7431 = vmatprep.mubr.bf16.mxu0 0
        %7432 = vmatmul.mubr.bf16.gmra.mrb[0].mxu0 %v7226
        %v7433 = vpop.f32.mrb[0].mxu0
        %v7434 = vadd.f32 0.0, %v7433
        %v7435 = vpop.f32.mrb[0].mxu0
        %v7436 = vpop.f32.mrb[0].mxu0
        %v7437 = vadd.f32 0.0, %v7436
        %v7438 = vpop.f32.mrb[0].mxu0
        %7439 = vmatprep.mubr.bf16.mxu0 0
        %7440 = vmatmul.mubr.bf16.gmra.mrb[0].mxu0 %v7228
        %v7441 = vpop.f32.mrb[0].mxu0
        %v7442 = vadd.f32 0.0, %v7441
        %v7443 = vpop.f32.mrb[0].mxu0
        %v7444 = vpop.f32.mrb[0].mxu0
        %v7445 = vadd.f32 0.0, %v7444
        %v7446 = vpop.f32.mrb[0].mxu0
        %7447 = vmatprep.mubr.bf16.mxu0 0
        %7448 = vmatmul.mubr.bf16.gmra.mrb[0].mxu0 %v7230
        %v7449 = vpop.f32.mrb[0].mxu0
        %v7450 = vadd.f32 0.0, %v7449
        %v7451 = vpop.f32.mrb[0].mxu0
        %v7452 = vpop.f32.mrb[0].mxu0
        %v7453 = vadd.f32 0.0, %v7452
        %v7454 = vpop.f32.mrb[0].mxu0
        %7455 = vmatprep.mubr.bf16.mxu0 0
        %7456 = vmatmul.mubr.bf16.gmra.mrb[0].mxu0 %v7232
        %v7457 = vpop.f32.mrb[0].mxu0
        %v7458 = vadd.f32 0.0, %v7457
        %v7459 = vpop.f32.mrb[0].mxu0
        %v7460 = vpop.f32.mrb[0].mxu0
        %v7461 = vadd.f32 0.0, %v7460
        %v7462 = vpop.f32.mrb[0].mxu0
        %7463 = vmatprep.mubr.bf16.mxu0 0
        %7464 = vmatmul.mubr.bf16.gmra.mrb[0].mxu0 %v7234
        %v7465 = vpop.f32.mrb[0].mxu0
        %v7466 = vadd.f32 0.0, %v7465
        %v7467 = vpop.f32.mrb[0].mxu0
        %v7468 = vpop.f32.mrb[0].mxu0
        %v7469 = vadd.f32 0.0, %v7468
        %v7470 = vpop.f32.mrb[0].mxu0
        %7471 = vmatprep.mubr.bf16.mxu0 0
        %7472 = vmatmul.mubr.bf16.gmra.mrb[0].mxu0 %v7236
        %v7473 = vpop.f32.mrb[0].mxu0
        %v7474 = vadd.f32 0.0, %v7473
        %v7475 = vpop.f32.mrb[0].mxu0
        %v7476 = vpop.f32.mrb[0].mxu0
        %v7477 = vadd.f32 0.0, %v7476
        %v7478 = vpop.f32.mrb[0].mxu0
        %7479 = vdwg.mxu0
        %v7480 = vadd.f32 %v7127, %v7338
        %v7481 = vadd.f32 %v7128, %v7341
        %v7482 = vadd.f32 %v7129, %v7346
        %v7483 = vadd.f32 %v7130, %v7349
        %v7484 = vadd.f32 %v7131, %v7354
        %v7485 = vadd.f32 %v7132, %v7357
        %v7486 = vadd.f32 %v7133, %v7362
        %v7487 = vadd.f32 %v7134, %v7365
        %v7488 = vadd.f32 %v7135, %v7370
        %v7489 = vadd.f32 %v7136, %v7373
        %v7490 = vadd.f32 %v7137, %v7378
        %v7491 = vadd.f32 %v7138, %v7381
        %v7492 = vadd.f32 %v7139, %v7386
        %v7493 = vadd.f32 %v7140, %v7389
        %v7494 = vadd.f32 %v7141, %v7394
        %v7495 = vadd.f32 %v7142, %v7397
        %v7496 = vadd.f32 %v7143, %v7402
        %v7497 = vadd.f32 %v7144, %v7405
        %v7498 = vadd.f32 %v7145, %v7410
        %v7499 = vadd.f32 %v7146, %v7413
        %v7500 = vadd.f32 %v7147, %v7418
        %v7501 = vadd.f32 %v7148, %v7421
        %v7502 = vadd.f32 %v7149, %v7426
        %v7503 = vadd.f32 %v7150, %v7429
        %v7504 = vadd.f32 %v7151, %v7434
        %v7505 = vadd.f32 %v7152, %v7437
        %v7506 = vadd.f32 %v7153, %v7442
        %v7507 = vadd.f32 %v7154, %v7445
        %v7508 = vadd.f32 %v7155, %v7450
        %v7509 = vadd.f32 %v7156, %v7453
        %v7510 = vadd.f32 %v7157, %v7458
        %v7511 = vadd.f32 %v7158, %v7461
        %v7512 = vadd.f32 %v7159, %v7466
        %v7513 = vadd.f32 %v7160, %v7469
        %v7514 = vadd.f32 %v7161, %v7474
        %v7515 = vadd.f32 %v7162, %v7477
        %v7516 = vld [vmem:[#allocation3 + $0x8] sm:$0xfe]
        %v7517 = vld [vmem:[#allocation3 + $0x10] sm:$0xff]
        %v7518 = vld [vmem:[#allocation3 + $0x18] sm:$0xff]
        %v7519 = vld [vmem:[#allocation3 + $0x20] sm:$0xff]
        %v7520 = vld [vmem:[#allocation3 + $0x28] sm:$0xff]
        %v7521 = vld [vmem:[#allocation3 + $0x30] sm:$0xff]
        %v7522 = vld [vmem:[#allocation3 + $0x38] sm:$0xff]
        %v7523 = vld [vmem:[#allocation3 + $0x40] sm:$0xff]
        %v7524 = vld [vmem:[#allocation3 + $0x48] sm:$0xff]
        %v7525 = vld [vmem:[#allocation3 + $0x50] sm:$0xff]
        %v7526 = vld [vmem:[#allocation3 + $0x58] sm:$0xff]
        %v7527 = vld [vmem:[#allocation3 + $0x60] sm:$0xff]
        %v7528 = vld [vmem:[#allocation3 + $0x68] sm:$0xff]
        %v7529 = vld [vmem:[#allocation3 + $0x70] sm:$0xff]
        %v7530 = vld [vmem:[#allocation3 + $0x78] sm:$0xff]
        %v7531 = vld [vmem:[#allocation3 + $0x80] sm:$0xff]
        %v7532 = vld [vmem:[#allocation3 + $0x88] sm:$0xff]
        %v7533 = vld [vmem:[#allocation3 + $0x90] sm:$0xff]
        %v7534 = vld [vmem:[#allocation3 + $0x98] sm:$0x1]
        %s7535 = scalar_lea.vmem [#allocation9], 192
        %v7536 = vld [vmem:[%s7535] sm:$0xf]
        %v7537 = vld [vmem:[%s7535 + $0x4] sm:$0xf]
        %v7538 = vld [vmem:[%s7535 + $0x8] sm:$0xf]
        %v7539 = vld [vmem:[%s7535 + $0xc] sm:$0xf]
        %v7540 = vld [vmem:[%s7535 + $0x10] sm:$0xf]
        %v7541 = vld [vmem:[%s7535 + $0x14] sm:$0xf]
        %v7542 = vld [vmem:[%s7535 + $0x18] sm:$0xf]
        %v7543 = vld [vmem:[%s7535 + $0x1c] sm:$0xf]
        %v7544 = vld [vmem:[%s7535 + $0x20] sm:$0xf]
        %v7545 = vld [vmem:[%s7535 + $0x24] sm:$0xf]
        %v7546 = vld [vmem:[%s7535 + $0x28] sm:$0xf]
        %v7547 = vld [vmem:[%s7535 + $0x2c] sm:$0xf]
        %v7548 = vld [vmem:[%s7535 + $0x30] sm:$0xf]
        %v7549 = vld [vmem:[%s7535 + $0x34] sm:$0xf]
        %v7550 = vld [vmem:[%s7535 + $0x38] sm:$0xf]
        %v7551 = vld [vmem:[%s7535 + $0x3c] sm:$0xf]
        %v7571 = vrot.slane %v7516, 1
        %v7572 = vrot.slane %v7517, 1
        %v7573 = vsel %vm3361, %v7571, %v7572
        %v7574 = vrot.slane %v7518, 1
        %v7575 = vsel %vm3361, %v7572, %v7574
        %v7576 = vrot.slane %v7519, 1
        %v7577 = vsel %vm3361, %v7574, %v7576
        %v7578 = vrot.slane %v7520, 1
        %v7579 = vsel %vm3361, %v7576, %v7578
        %v7580 = vrot.slane %v7521, 1
        %v7581 = vsel %vm3361, %v7578, %v7580
        %v7582 = vrot.slane %v7522, 1
        %v7583 = vsel %vm3361, %v7580, %v7582
        %v7584 = vrot.slane %v7523, 1
        %v7585 = vsel %vm3361, %v7582, %v7584
        %v7586 = vrot.slane %v7524, 1
        %v7587 = vsel %vm3361, %v7584, %v7586
        %v7588 = vrot.slane %v7525, 1
        %v7589 = vsel %vm3361, %v7586, %v7588
        %v7590 = vrot.slane %v7526, 1
        %v7591 = vsel %vm3361, %v7588, %v7590
        %v7592 = vrot.slane %v7527, 1
        %v7593 = vsel %vm3361, %v7590, %v7592
        %v7594 = vrot.slane %v7528, 1
        %v7595 = vsel %vm3361, %v7592, %v7594
        %v7596 = vrot.slane %v7529, 1
        %v7597 = vsel %vm3361, %v7594, %v7596
        %v7598 = vrot.slane %v7530, 1
        %v7599 = vsel %vm3361, %v7596, %v7598
        %v7600 = vrot.slane %v7531, 1
        %v7601 = vsel %vm3361, %v7598, %v7600
        %v7602 = vrot.slane %v7532, 1
        %v7603 = vsel %vm3361, %v7600, %v7602
        %v7604 = vrot.slane %v7533, 1
        %v7605 = vsel %vm3361, %v7602, %v7604
        %v7606 = vrot.slane %v7534, 1
        %v7607 = vsel %vm3361, %v7604, %v7606
        %v7642 = vunpack.c.l.b16 %v7536
        %v7643 = vunpack.c.l.b16 %v7537
        %v7644 = vunpack.c.l.b16 %v7538
        %v7645 = vunpack.c.l.b16 %v7539
        %v7646 = vunpack.c.l.b16 %v7540
        %v7647 = vunpack.c.l.b16 %v7541
        %v7648 = vunpack.c.l.b16 %v7542
        %v7649 = vunpack.c.l.b16 %v7543
        %v7650 = vunpack.c.l.b16 %v7544
        %v7651 = vunpack.c.l.b16 %v7545
        %v7652 = vunpack.c.l.b16 %v7546
        %v7653 = vunpack.c.l.b16 %v7547
        %v7654 = vunpack.c.l.b16 %v7548
        %v7655 = vunpack.c.l.b16 %v7549
        %v7656 = vunpack.c.l.b16 %v7550
        %v7657 = vunpack.c.l.b16 %v7551
        %v7658 = vpack.c.b16 %v7643, %v7642
        %v7659 = vpack.c.b16 %v7645, %v7644
        %v7660 = vpack.c.b16 %v7647, %v7646
        %v7661 = vpack.c.b16 %v7649, %v7648
        %v7662 = vpack.c.b16 %v7651, %v7650
        %v7663 = vpack.c.b16 %v7653, %v7652
        %v7664 = vpack.c.b16 %v7655, %v7654
        %v7665 = vpack.c.b16 %v7657, %v7656
        %7674 = vmatprep.subr.bf16.mxu0 0
        %7675 = vmatpush1.bf16.msra.mxu0 %v7658
        %7676 = vmatprep.subr.bf16.mxu0 0
        %7677 = vmatpush1.bf16.msra.mxu0 %v7659
        %7678 = vmatprep.subr.bf16.mxu0 0
        %7679 = vmatpush1.bf16.msra.mxu0 %v7660
        %7680 = vmatprep.subr.bf16.mxu0 0
        %7681 = vmatpush1.bf16.msra.mxu0 %v7661
        %7682 = vmatprep.subr.bf16.mxu0 0
        %7683 = vmatpush1.bf16.msra.mxu0 %v7662
        %7684 = vmatprep.subr.bf16.mxu0 0
        %7685 = vmatpush1.bf16.msra.mxu0 %v7663
        %7686 = vmatprep.subr.bf16.mxu0 0
        %7687 = vmatpush1.bf16.msra.mxu0 %v7664
        %7688 = vmatprep.subr.bf16.mxu0 0
        %7689 = vmatpush1.bf16.msra.mxu0 %v7665
        %7690 = vmatprep.subr.bf16.mxu0 0
        %7691 = vmatpush1.bf16.msra.mxu0 0
        %7692 = vmatprep.subr.bf16.mxu0 0
        %7693 = vmatpush1.bf16.msra.mxu0 0
        %7694 = vmatprep.subr.bf16.mxu0 0
        %7695 = vmatpush1.bf16.msra.mxu0 0
        %7696 = vmatprep.subr.bf16.mxu0 0
        %7697 = vmatpush1.bf16.msra.mxu0 0
        %7698 = vmatprep.subr.bf16.mxu0 0
        %7699 = vmatpush1.bf16.msra.mxu0 0
        %7700 = vmatprep.subr.bf16.mxu0 0
        %7701 = vmatpush1.bf16.msra.mxu0 0
        %7702 = vmatprep.subr.bf16.mxu0 0
        %7703 = vmatpush1.bf16.msra.mxu0 0
        %7704 = vmatprep.subr.bf16.mxu0 0
        %7705 = vmatpush1.bf16.msra.mxu0 0
        %7706 = vmatprep.mubr.bf16.mxu0 0
        %7707 = vmatmul.mubr.bf16.gmra.mrb[0].mxu0 %v7573
        %v7708 = vpop.f32.mrb[0].mxu0
        %v7709 = vadd.f32 0.0, %v7708
        %v7710 = vpop.f32.mrb[0].mxu0
        %v7711 = vpop.f32.mrb[0].mxu0
        %v7712 = vadd.f32 0.0, %v7711
        %v7713 = vpop.f32.mrb[0].mxu0
        %7714 = vmatprep.mubr.bf16.mxu0 0
        %7715 = vmatmul.mubr.bf16.gmra.mrb[0].mxu0 %v7575
        %v7716 = vpop.f32.mrb[0].mxu0
        %v7717 = vadd.f32 0.0, %v7716
        %v7718 = vpop.f32.mrb[0].mxu0
        %v7719 = vpop.f32.mrb[0].mxu0
        %v7720 = vadd.f32 0.0, %v7719
        %v7721 = vpop.f32.mrb[0].mxu0
        %7722 = vmatprep.mubr.bf16.mxu0 0
        %7723 = vmatmul.mubr.bf16.gmra.mrb[0].mxu0 %v7577
        %v7724 = vpop.f32.mrb[0].mxu0
        %v7725 = vadd.f32 0.0, %v7724
        %v7726 = vpop.f32.mrb[0].mxu0
        %v7727 = vpop.f32.mrb[0].mxu0
        %v7728 = vadd.f32 0.0, %v7727
        %v7729 = vpop.f32.mrb[0].mxu0
        %7730 = vmatprep.mubr.bf16.mxu0 0
        %7731 = vmatmul.mubr.bf16.gmra.mrb[0].mxu0 %v7579
        %v7732 = vpop.f32.mrb[0].mxu0
        %v7733 = vadd.f32 0.0, %v7732
        %v7734 = vpop.f32.mrb[0].mxu0
        %v7735 = vpop.f32.mrb[0].mxu0
        %v7736 = vadd.f32 0.0, %v7735
        %v7737 = vpop.f32.mrb[0].mxu0
        %7738 = vmatprep.mubr.bf16.mxu0 0
        %7739 = vmatmul.mubr.bf16.gmra.mrb[0].mxu0 %v7581
        %v7740 = vpop.f32.mrb[0].mxu0
        %v7741 = vadd.f32 0.0, %v7740
        %v7742 = vpop.f32.mrb[0].mxu0
        %v7743 = vpop.f32.mrb[0].mxu0
        %v7744 = vadd.f32 0.0, %v7743
        %v7745 = vpop.f32.mrb[0].mxu0
        %7746 = vmatprep.mubr.bf16.mxu0 0
        %7747 = vmatmul.mubr.bf16.gmra.mrb[0].mxu0 %v7583
        %v7748 = vpop.f32.mrb[0].mxu0
        %v7749 = vadd.f32 0.0, %v7748
        %v7750 = vpop.f32.mrb[0].mxu0
        %v7751 = vpop.f32.mrb[0].mxu0
        %v7752 = vadd.f32 0.0, %v7751
        %v7753 = vpop.f32.mrb[0].mxu0
        %7754 = vmatprep.mubr.bf16.mxu0 0
        %7755 = vmatmul.mubr.bf16.gmra.mrb[0].mxu0 %v7585
        %v7756 = vpop.f32.mrb[0].mxu0
        %v7757 = vadd.f32 0.0, %v7756
        %v7758 = vpop.f32.mrb[0].mxu0
        %v7759 = vpop.f32.mrb[0].mxu0
        %v7760 = vadd.f32 0.0, %v7759
        %v7761 = vpop.f32.mrb[0].mxu0
        %7762 = vmatprep.mubr.bf16.mxu0 0
        %7763 = vmatmul.mubr.bf16.gmra.mrb[0].mxu0 %v7587
        %v7764 = vpop.f32.mrb[0].mxu0
        %v7765 = vadd.f32 0.0, %v7764
        %v7766 = vpop.f32.mrb[0].mxu0
        %v7767 = vpop.f32.mrb[0].mxu0
        %v7768 = vadd.f32 0.0, %v7767
        %v7769 = vpop.f32.mrb[0].mxu0
        %7770 = vmatprep.mubr.bf16.mxu0 0
        %7771 = vmatmul.mubr.bf16.gmra.mrb[0].mxu0 %v7589
        %v7772 = vpop.f32.mrb[0].mxu0
        %v7773 = vadd.f32 0.0, %v7772
        %v7774 = vpop.f32.mrb[0].mxu0
        %v7775 = vpop.f32.mrb[0].mxu0
        %v7776 = vadd.f32 0.0, %v7775
        %v7777 = vpop.f32.mrb[0].mxu0
        %7778 = vmatprep.mubr.bf16.mxu0 0
        %7779 = vmatmul.mubr.bf16.gmra.mrb[0].mxu0 %v7591
        %v7780 = vpop.f32.mrb[0].mxu0
        %v7781 = vadd.f32 0.0, %v7780
        %v7782 = vpop.f32.mrb[0].mxu0
        %v7783 = vpop.f32.mrb[0].mxu0
        %v7784 = vadd.f32 0.0, %v7783
        %v7785 = vpop.f32.mrb[0].mxu0
        %7786 = vmatprep.mubr.bf16.mxu0 0
        %7787 = vmatmul.mubr.bf16.gmra.mrb[0].mxu0 %v7593
        %v7788 = vpop.f32.mrb[0].mxu0
        %v7789 = vadd.f32 0.0, %v7788
        %v7790 = vpop.f32.mrb[0].mxu0
        %v7791 = vpop.f32.mrb[0].mxu0
        %v7792 = vadd.f32 0.0, %v7791
        %v7793 = vpop.f32.mrb[0].mxu0
        %7794 = vmatprep.mubr.bf16.mxu0 0
        %7795 = vmatmul.mubr.bf16.gmra.mrb[0].mxu0 %v7595
        %v7796 = vpop.f32.mrb[0].mxu0
        %v7797 = vadd.f32 0.0, %v7796
        %v7798 = vpop.f32.mrb[0].mxu0
        %v7799 = vpop.f32.mrb[0].mxu0
        %v7800 = vadd.f32 0.0, %v7799
        %v7801 = vpop.f32.mrb[0].mxu0
        %7802 = vmatprep.mubr.bf16.mxu0 0
        %7803 = vmatmul.mubr.bf16.gmra.mrb[0].mxu0 %v7597
        %v7804 = vpop.f32.mrb[0].mxu0
        %v7805 = vadd.f32 0.0, %v7804
        %v7806 = vpop.f32.mrb[0].mxu0
        %v7807 = vpop.f32.mrb[0].mxu0
        %v7808 = vadd.f32 0.0, %v7807
        %v7809 = vpop.f32.mrb[0].mxu0
        %7810 = vmatprep.mubr.bf16.mxu0 0
        %7811 = vmatmul.mubr.bf16.gmra.mrb[0].mxu0 %v7599
        %v7812 = vpop.f32.mrb[0].mxu0
        %v7813 = vadd.f32 0.0, %v7812
        %v7814 = vpop.f32.mrb[0].mxu0
        %v7815 = vpop.f32.mrb[0].mxu0
        %v7816 = vadd.f32 0.0, %v7815
        %v7817 = vpop.f32.mrb[0].mxu0
        %7818 = vmatprep.mubr.bf16.mxu0 0
        %7819 = vmatmul.mubr.bf16.gmra.mrb[0].mxu0 %v7601
        %v7820 = vpop.f32.mrb[0].mxu0
        %v7821 = vadd.f32 0.0, %v7820
        %v7822 = vpop.f32.mrb[0].mxu0
        %v7823 = vpop.f32.mrb[0].mxu0
        %v7824 = vadd.f32 0.0, %v7823
        %v7825 = vpop.f32.mrb[0].mxu0
        %7826 = vmatprep.mubr.bf16.mxu0 0
        %7827 = vmatmul.mubr.bf16.gmra.mrb[0].mxu0 %v7603
        %v7828 = vpop.f32.mrb[0].mxu0
        %v7829 = vadd.f32 0.0, %v7828
        %v7830 = vpop.f32.mrb[0].mxu0
        %v7831 = vpop.f32.mrb[0].mxu0
        %v7832 = vadd.f32 0.0, %v7831
        %v7833 = vpop.f32.mrb[0].mxu0
        %7834 = vmatprep.mubr.bf16.mxu0 0
        %7835 = vmatmul.mubr.bf16.gmra.mrb[0].mxu0 %v7605
        %v7836 = vpop.f32.mrb[0].mxu0
        %v7837 = vadd.f32 0.0, %v7836
        %v7838 = vpop.f32.mrb[0].mxu0
        %v7839 = vpop.f32.mrb[0].mxu0
        %v7840 = vadd.f32 0.0, %v7839
        %v7841 = vpop.f32.mrb[0].mxu0
        %7842 = vmatprep.mubr.bf16.mxu0 0
        %7843 = vmatmul.mubr.bf16.gmra.mrb[0].mxu0 %v7607
        %v7844 = vpop.f32.mrb[0].mxu0
        %v7845 = vadd.f32 0.0, %v7844
        %v7846 = vpop.f32.mrb[0].mxu0
        %v7847 = vpop.f32.mrb[0].mxu0
        %v7848 = vadd.f32 0.0, %v7847
        %v7849 = vpop.f32.mrb[0].mxu0
        %7850 = vdwg.mxu0
        %v7851 = vadd.f32 %v7480, %v7709
        %v7852 = vadd.f32 %v7481, %v7712
        %v7853 = vadd.f32 %v7482, %v7717
        %v7854 = vadd.f32 %v7483, %v7720
        %v7855 = vadd.f32 %v7484, %v7725
        %v7856 = vadd.f32 %v7485, %v7728
        %v7857 = vadd.f32 %v7486, %v7733
        %v7858 = vadd.f32 %v7487, %v7736
        %v7859 = vadd.f32 %v7488, %v7741
        %v7860 = vadd.f32 %v7489, %v7744
        %v7861 = vadd.f32 %v7490, %v7749
        %v7862 = vadd.f32 %v7491, %v7752
        %v7863 = vadd.f32 %v7492, %v7757
        %v7864 = vadd.f32 %v7493, %v7760
        %v7865 = vadd.f32 %v7494, %v7765
        %v7866 = vadd.f32 %v7495, %v7768
        %v7867 = vadd.f32 %v7496, %v7773
        %v7868 = vadd.f32 %v7497, %v7776
        %v7869 = vadd.f32 %v7498, %v7781
        %v7870 = vadd.f32 %v7499, %v7784
        %v7871 = vadd.f32 %v7500, %v7789
        %v7872 = vadd.f32 %v7501, %v7792
        %v7873 = vadd.f32 %v7502, %v7797
        %v7874 = vadd.f32 %v7503, %v7800
        %v7875 = vadd.f32 %v7504, %v7805
        %v7876 = vadd.f32 %v7505, %v7808
        %v7877 = vadd.f32 %v7506, %v7813
        %v7878 = vadd.f32 %v7507, %v7816
        %v7879 = vadd.f32 %v7508, %v7821
        %v7880 = vadd.f32 %v7509, %v7824
        %v7881 = vadd.f32 %v7510, %v7829
        %v7882 = vadd.f32 %v7511, %v7832
        %v7883 = vadd.f32 %v7512, %v7837
        %v7884 = vadd.f32 %v7513, %v7840
        %v7885 = vadd.f32 %v7514, %v7845
        %v7886 = vadd.f32 %v7515, %v7848
        %v7887 = vld [vmem:[#allocation3 + $0x98] sm:$0x3]
        %s7888 = scalar_lea.vmem [#allocation9], 256
        %v7889 = vld [vmem:[%s7888] sm:$0xf]
        %v7890 = vld [vmem:[%s7888 + $0x4] sm:$0xf]
        %v7891 = vld [vmem:[%s7888 + $0x8] sm:$0xf]
        %v7892 = vld [vmem:[%s7888 + $0xc] sm:$0xf]
        %v7893 = vld [vmem:[%s7888 + $0x10] sm:$0xf]
        %v7894 = vld [vmem:[%s7888 + $0x14] sm:$0xf]
        %v7895 = vld [vmem:[%s7888 + $0x18] sm:$0xf]
        %v7896 = vld [vmem:[%s7888 + $0x1c] sm:$0xf]
        %v7897 = vld [vmem:[%s7888 + $0x20] sm:$0xf]
        %v7898 = vld [vmem:[%s7888 + $0x24] sm:$0xf]
        %v7899 = vld [vmem:[%s7888 + $0x28] sm:$0xf]
        %v7900 = vld [vmem:[%s7888 + $0x2c] sm:$0xf]
        %v7901 = vld [vmem:[%s7888 + $0x30] sm:$0xf]
        %v7902 = vld [vmem:[%s7888 + $0x34] sm:$0xf]
        %v7903 = vld [vmem:[%s7888 + $0x38] sm:$0xf]
        %v7904 = vld [vmem:[%s7888 + $0x3c] sm:$0xf]
        %v7906 = vshrl.u32 %v7516, 16
        %v7908 = vrot.slane %v7906, 1
        %v7909 = vshll.u32 %v7516, 16
        %v7911 = vrot.slane %v7909, 2
        %v7912 = vor.u32 %v7908, %v7911
        %v7914 = vshrl.u32 %v7517, 16
        %v7916 = vrot.slane %v7914, 1
        %v7917 = vshll.u32 %v7517, 16
        %v7919 = vrot.slane %v7917, 2
        %v7920 = vor.u32 %v7916, %v7919
        %v7921 = vsel %vm4067, %v7912, %v7920
        %v7923 = vshrl.u32 %v7518, 16
        %v7925 = vrot.slane %v7923, 1
        %v7926 = vshll.u32 %v7518, 16
        %v7928 = vrot.slane %v7926, 2
        %v7929 = vor.u32 %v7925, %v7928
        %v7930 = vsel %vm4067, %v7920, %v7929
        %v7932 = vshrl.u32 %v7519, 16
        %v7934 = vrot.slane %v7932, 1
        %v7935 = vshll.u32 %v7519, 16
        %v7937 = vrot.slane %v7935, 2
        %v7938 = vor.u32 %v7934, %v7937
        %v7939 = vsel %vm4067, %v7929, %v7938
        %v7941 = vshrl.u32 %v7520, 16
        %v7943 = vrot.slane %v7941, 1
        %v7944 = vshll.u32 %v7520, 16
        %v7946 = vrot.slane %v7944, 2
        %v7947 = vor.u32 %v7943, %v7946
        %v7948 = vsel %vm4067, %v7938, %v7947
        %v7950 = vshrl.u32 %v7521, 16
        %v7952 = vrot.slane %v7950, 1
        %v7953 = vshll.u32 %v7521, 16
        %v7955 = vrot.slane %v7953, 2
        %v7956 = vor.u32 %v7952, %v7955
        %v7957 = vsel %vm4067, %v7947, %v7956
        %v7959 = vshrl.u32 %v7522, 16
        %v7961 = vrot.slane %v7959, 1
        %v7962 = vshll.u32 %v7522, 16
        %v7964 = vrot.slane %v7962, 2
        %v7965 = vor.u32 %v7961, %v7964
        %v7966 = vsel %vm4067, %v7956, %v7965
        %v7968 = vshrl.u32 %v7523, 16
        %v7970 = vrot.slane %v7968, 1
        %v7971 = vshll.u32 %v7523, 16
        %v7973 = vrot.slane %v7971, 2
        %v7974 = vor.u32 %v7970, %v7973
        %v7975 = vsel %vm4067, %v7965, %v7974
        %v7977 = vshrl.u32 %v7524, 16
        %v7979 = vrot.slane %v7977, 1
        %v7980 = vshll.u32 %v7524, 16
        %v7982 = vrot.slane %v7980, 2
        %v7983 = vor.u32 %v7979, %v7982
        %v7984 = vsel %vm4067, %v7974, %v7983
        %v7986 = vshrl.u32 %v7525, 16
        %v7988 = vrot.slane %v7986, 1
        %v7989 = vshll.u32 %v7525, 16
        %v7991 = vrot.slane %v7989, 2
        %v7992 = vor.u32 %v7988, %v7991
        %v7993 = vsel %vm4067, %v7983, %v7992
        %v7995 = vshrl.u32 %v7526, 16
        %v7997 = vrot.slane %v7995, 1
        %v7998 = vshll.u32 %v7526, 16
        %v8000 = vrot.slane %v7998, 2
        %v8001 = vor.u32 %v7997, %v8000
        %v8002 = vsel %vm4067, %v7992, %v8001
        %v8004 = vshrl.u32 %v7527, 16
        %v8006 = vrot.slane %v8004, 1
        %v8007 = vshll.u32 %v7527, 16
        %v8009 = vrot.slane %v8007, 2
        %v8010 = vor.u32 %v8006, %v8009
        %v8011 = vsel %vm4067, %v8001, %v8010
        %v8013 = vshrl.u32 %v7528, 16
        %v8015 = vrot.slane %v8013, 1
        %v8016 = vshll.u32 %v7528, 16
        %v8018 = vrot.slane %v8016, 2
        %v8019 = vor.u32 %v8015, %v8018
        %v8020 = vsel %vm4067, %v8010, %v8019
        %v8022 = vshrl.u32 %v7529, 16
        %v8024 = vrot.slane %v8022, 1
        %v8025 = vshll.u32 %v7529, 16
        %v8027 = vrot.slane %v8025, 2
        %v8028 = vor.u32 %v8024, %v8027
        %v8029 = vsel %vm4067, %v8019, %v8028
        %v8031 = vshrl.u32 %v7530, 16
        %v8033 = vrot.slane %v8031, 1
        %v8034 = vshll.u32 %v7530, 16
        %v8036 = vrot.slane %v8034, 2
        %v8037 = vor.u32 %v8033, %v8036
        %v8038 = vsel %vm4067, %v8028, %v8037
        %v8040 = vshrl.u32 %v7531, 16
        %v8042 = vrot.slane %v8040, 1
        %v8043 = vshll.u32 %v7531, 16
        %v8045 = vrot.slane %v8043, 2
        %v8046 = vor.u32 %v8042, %v8045
        %v8047 = vsel %vm4067, %v8037, %v8046
        %v8049 = vshrl.u32 %v7532, 16
        %v8051 = vrot.slane %v8049, 1
        %v8052 = vshll.u32 %v7532, 16
        %v8054 = vrot.slane %v8052, 2
        %v8055 = vor.u32 %v8051, %v8054
        %v8056 = vsel %vm4067, %v8046, %v8055
        %v8058 = vshrl.u32 %v7533, 16
        %v8060 = vrot.slane %v8058, 1
        %v8061 = vshll.u32 %v7533, 16
        %v8063 = vrot.slane %v8061, 2
        %v8064 = vor.u32 %v8060, %v8063
        %v8065 = vsel %vm4067, %v8055, %v8064
        %v8067 = vshrl.u32 %v7887, 16
        %v8069 = vrot.slane %v8067, 1
        %v8070 = vshll.u32 %v7887, 16
        %v8072 = vrot.slane %v8070, 2
        %v8073 = vor.u32 %v8069, %v8072
        %v8074 = vsel %vm4067, %v8064, %v8073
        %v8109 = vunpack.c.l.b16 %v7889
        %v8110 = vunpack.c.l.b16 %v7890
        %v8111 = vunpack.c.l.b16 %v7891
        %v8112 = vunpack.c.l.b16 %v7892
        %v8113 = vunpack.c.l.b16 %v7893
        %v8114 = vunpack.c.l.b16 %v7894
        %v8115 = vunpack.c.l.b16 %v7895
        %v8116 = vunpack.c.l.b16 %v7896
        %v8117 = vunpack.c.l.b16 %v7897
        %v8118 = vunpack.c.l.b16 %v7898
        %v8119 = vunpack.c.l.b16 %v7899
        %v8120 = vunpack.c.l.b16 %v7900
        %v8121 = vunpack.c.l.b16 %v7901
        %v8122 = vunpack.c.l.b16 %v7902
        %v8123 = vunpack.c.l.b16 %v7903
        %v8124 = vunpack.c.l.b16 %v7904
        %v8125 = vpack.c.b16 %v8110, %v8109
        %v8126 = vpack.c.b16 %v8112, %v8111
        %v8127 = vpack.c.b16 %v8114, %v8113
        %v8128 = vpack.c.b16 %v8116, %v8115
        %v8129 = vpack.c.b16 %v8118, %v8117
        %v8130 = vpack.c.b16 %v8120, %v8119
        %v8131 = vpack.c.b16 %v8122, %v8121
        %v8132 = vpack.c.b16 %v8124, %v8123
        %8141 = vmatprep.subr.bf16.mxu0 0
        %8142 = vmatpush1.bf16.msra.mxu0 %v8125
        %8143 = vmatprep.subr.bf16.mxu0 0
        %8144 = vmatpush1.bf16.msra.mxu0 %v8126
        %8145 = vmatprep.subr.bf16.mxu0 0
        %8146 = vmatpush1.bf16.msra.mxu0 %v8127
        %8147 = vmatprep.subr.bf16.mxu0 0
        %8148 = vmatpush1.bf16.msra.mxu0 %v8128
        %8149 = vmatprep.subr.bf16.mxu0 0
        %8150 = vmatpush1.bf16.msra.mxu0 %v8129
        %8151 = vmatprep.subr.bf16.mxu0 0
        %8152 = vmatpush1.bf16.msra.mxu0 %v8130
        %8153 = vmatprep.subr.bf16.mxu0 0
        %8154 = vmatpush1.bf16.msra.mxu0 %v8131
        %8155 = vmatprep.subr.bf16.mxu0 0
        %8156 = vmatpush1.bf16.msra.mxu0 %v8132
        %8157 = vmatprep.subr.bf16.mxu0 0
        %8158 = vmatpush1.bf16.msra.mxu0 0
        %8159 = vmatprep.subr.bf16.mxu0 0
        %8160 = vmatpush1.bf16.msra.mxu0 0
        %8161 = vmatprep.subr.bf16.mxu0 0
        %8162 = vmatpush1.bf16.msra.mxu0 0
        %8163 = vmatprep.subr.bf16.mxu0 0
        %8164 = vmatpush1.bf16.msra.mxu0 0
        %8165 = vmatprep.subr.bf16.mxu0 0
        %8166 = vmatpush1.bf16.msra.mxu0 0
        %8167 = vmatprep.subr.bf16.mxu0 0
        %8168 = vmatpush1.bf16.msra.mxu0 0
        %8169 = vmatprep.subr.bf16.mxu0 0
        %8170 = vmatpush1.bf16.msra.mxu0 0
        %8171 = vmatprep.subr.bf16.mxu0 0
        %8172 = vmatpush1.bf16.msra.mxu0 0
        %8173 = vmatprep.mubr.bf16.mxu0 0
        %8174 = vmatmul.mubr.bf16.gmra.mrb[0].mxu0 %v7921
        %v8175 = vpop.f32.mrb[0].mxu0
        %v8176 = vadd.f32 0.0, %v8175
        %v8177 = vpop.f32.mrb[0].mxu0
        %v8178 = vpop.f32.mrb[0].mxu0
        %v8179 = vadd.f32 0.0, %v8178
        %v8180 = vpop.f32.mrb[0].mxu0
        %8181 = vmatprep.mubr.bf16.mxu0 0
        %8182 = vmatmul.mubr.bf16.gmra.mrb[0].mxu0 %v7930
        %v8183 = vpop.f32.mrb[0].mxu0
        %v8184 = vadd.f32 0.0, %v8183
        %v8185 = vpop.f32.mrb[0].mxu0
        %v8186 = vpop.f32.mrb[0].mxu0
        %v8187 = vadd.f32 0.0, %v8186
        %v8188 = vpop.f32.mrb[0].mxu0
        %8189 = vmatprep.mubr.bf16.mxu0 0
        %8190 = vmatmul.mubr.bf16.gmra.mrb[0].mxu0 %v7939
        %v8191 = vpop.f32.mrb[0].mxu0
        %v8192 = vadd.f32 0.0, %v8191
        %v8193 = vpop.f32.mrb[0].mxu0
        %v8194 = vpop.f32.mrb[0].mxu0
        %v8195 = vadd.f32 0.0, %v8194
        %v8196 = vpop.f32.mrb[0].mxu0
        %8197 = vmatprep.mubr.bf16.mxu0 0
        %8198 = vmatmul.mubr.bf16.gmra.mrb[0].mxu0 %v7948
        %v8199 = vpop.f32.mrb[0].mxu0
        %v8200 = vadd.f32 0.0, %v8199
        %v8201 = vpop.f32.mrb[0].mxu0
        %v8202 = vpop.f32.mrb[0].mxu0
        %v8203 = vadd.f32 0.0, %v8202
        %v8204 = vpop.f32.mrb[0].mxu0
        %8205 = vmatprep.mubr.bf16.mxu0 0
        %8206 = vmatmul.mubr.bf16.gmra.mrb[0].mxu0 %v7957
        %v8207 = vpop.f32.mrb[0].mxu0
        %v8208 = vadd.f32 0.0, %v8207
        %v8209 = vpop.f32.mrb[0].mxu0
        %v8210 = vpop.f32.mrb[0].mxu0
        %v8211 = vadd.f32 0.0, %v8210
        %v8212 = vpop.f32.mrb[0].mxu0
        %8213 = vmatprep.mubr.bf16.mxu0 0
        %8214 = vmatmul.mubr.bf16.gmra.mrb[0].mxu0 %v7966
        %v8215 = vpop.f32.mrb[0].mxu0
        %v8216 = vadd.f32 0.0, %v8215
        %v8217 = vpop.f32.mrb[0].mxu0
        %v8218 = vpop.f32.mrb[0].mxu0
        %v8219 = vadd.f32 0.0, %v8218
        %v8220 = vpop.f32.mrb[0].mxu0
        %8221 = vmatprep.mubr.bf16.mxu0 0
        %8222 = vmatmul.mubr.bf16.gmra.mrb[0].mxu0 %v7975
        %v8223 = vpop.f32.mrb[0].mxu0
        %v8224 = vadd.f32 0.0, %v8223
        %v8225 = vpop.f32.mrb[0].mxu0
        %v8226 = vpop.f32.mrb[0].mxu0
        %v8227 = vadd.f32 0.0, %v8226
        %v8228 = vpop.f32.mrb[0].mxu0
        %8229 = vmatprep.mubr.bf16.mxu0 0
        %8230 = vmatmul.mubr.bf16.gmra.mrb[0].mxu0 %v7984
        %v8231 = vpop.f32.mrb[0].mxu0
        %v8232 = vadd.f32 0.0, %v8231
        %v8233 = vpop.f32.mrb[0].mxu0
        %v8234 = vpop.f32.mrb[0].mxu0
        %v8235 = vadd.f32 0.0, %v8234
        %v8236 = vpop.f32.mrb[0].mxu0
        %8237 = vmatprep.mubr.bf16.mxu0 0
        %8238 = vmatmul.mubr.bf16.gmra.mrb[0].mxu0 %v7993
        %v8239 = vpop.f32.mrb[0].mxu0
        %v8240 = vadd.f32 0.0, %v8239
        %v8241 = vpop.f32.mrb[0].mxu0
        %v8242 = vpop.f32.mrb[0].mxu0
        %v8243 = vadd.f32 0.0, %v8242
        %v8244 = vpop.f32.mrb[0].mxu0
        %8245 = vmatprep.mubr.bf16.mxu0 0
        %8246 = vmatmul.mubr.bf16.gmra.mrb[0].mxu0 %v8002
        %v8247 = vpop.f32.mrb[0].mxu0
        %v8248 = vadd.f32 0.0, %v8247
        %v8249 = vpop.f32.mrb[0].mxu0
        %v8250 = vpop.f32.mrb[0].mxu0
        %v8251 = vadd.f32 0.0, %v8250
        %v8252 = vpop.f32.mrb[0].mxu0
        %8253 = vmatprep.mubr.bf16.mxu0 0
        %8254 = vmatmul.mubr.bf16.gmra.mrb[0].mxu0 %v8011
        %v8255 = vpop.f32.mrb[0].mxu0
        %v8256 = vadd.f32 0.0, %v8255
        %v8257 = vpop.f32.mrb[0].mxu0
        %v8258 = vpop.f32.mrb[0].mxu0
        %v8259 = vadd.f32 0.0, %v8258
        %v8260 = vpop.f32.mrb[0].mxu0
        %8261 = vmatprep.mubr.bf16.mxu0 0
        %8262 = vmatmul.mubr.bf16.gmra.mrb[0].mxu0 %v8020
        %v8263 = vpop.f32.mrb[0].mxu0
        %v8264 = vadd.f32 0.0, %v8263
        %v8265 = vpop.f32.mrb[0].mxu0
        %v8266 = vpop.f32.mrb[0].mxu0
        %v8267 = vadd.f32 0.0, %v8266
        %v8268 = vpop.f32.mrb[0].mxu0
        %8269 = vmatprep.mubr.bf16.mxu0 0
        %8270 = vmatmul.mubr.bf16.gmra.mrb[0].mxu0 %v8029
        %v8271 = vpop.f32.mrb[0].mxu0
        %v8272 = vadd.f32 0.0, %v8271
        %v8273 = vpop.f32.mrb[0].mxu0
        %v8274 = vpop.f32.mrb[0].mxu0
        %v8275 = vadd.f32 0.0, %v8274
        %v8276 = vpop.f32.mrb[0].mxu0
        %8277 = vmatprep.mubr.bf16.mxu0 0
        %8278 = vmatmul.mubr.bf16.gmra.mrb[0].mxu0 %v8038
        %v8279 = vpop.f32.mrb[0].mxu0
        %v8280 = vadd.f32 0.0, %v8279
        %v8281 = vpop.f32.mrb[0].mxu0
        %v8282 = vpop.f32.mrb[0].mxu0
        %v8283 = vadd.f32 0.0, %v8282
        %v8284 = vpop.f32.mrb[0].mxu0
        %8285 = vmatprep.mubr.bf16.mxu0 0
        %8286 = vmatmul.mubr.bf16.gmra.mrb[0].mxu0 %v8047
        %v8287 = vpop.f32.mrb[0].mxu0
        %v8288 = vadd.f32 0.0, %v8287
        %v8289 = vpop.f32.mrb[0].mxu0
        %v8290 = vpop.f32.mrb[0].mxu0
        %v8291 = vadd.f32 0.0, %v8290
        %v8292 = vpop.f32.mrb[0].mxu0
        %8293 = vmatprep.mubr.bf16.mxu0 0
        %8294 = vmatmul.mubr.bf16.gmra.mrb[0].mxu0 %v8056
        %v8295 = vpop.f32.mrb[0].mxu0
        %v8296 = vadd.f32 0.0, %v8295
        %v8297 = vpop.f32.mrb[0].mxu0
        %v8298 = vpop.f32.mrb[0].mxu0
        %v8299 = vadd.f32 0.0, %v8298
        %v8300 = vpop.f32.mrb[0].mxu0
        %8301 = vmatprep.mubr.bf16.mxu0 0
        %8302 = vmatmul.mubr.bf16.gmra.mrb[0].mxu0 %v8065
        %v8303 = vpop.f32.mrb[0].mxu0
        %v8304 = vadd.f32 0.0, %v8303
        %v8305 = vpop.f32.mrb[0].mxu0
        %v8306 = vpop.f32.mrb[0].mxu0
        %v8307 = vadd.f32 0.0, %v8306
        %v8308 = vpop.f32.mrb[0].mxu0
        %8309 = vmatprep.mubr.bf16.mxu0 0
        %8310 = vmatmul.mubr.bf16.gmra.mrb[0].mxu0 %v8074
        %v8311 = vpop.f32.mrb[0].mxu0
        %v8312 = vadd.f32 0.0, %v8311
        %v8313 = vpop.f32.mrb[0].mxu0
        %v8314 = vpop.f32.mrb[0].mxu0
        %v8315 = vadd.f32 0.0, %v8314
        %v8316 = vpop.f32.mrb[0].mxu0
        %8317 = vdwg.mxu0
        %v8318 = vadd.f32 %v7851, %v8176
        %v8319 = vadd.f32 %v7852, %v8179
        %v8320 = vadd.f32 %v7853, %v8184
        %v8321 = vadd.f32 %v7854, %v8187
        %v8322 = vadd.f32 %v7855, %v8192
        %v8323 = vadd.f32 %v7856, %v8195
        %v8324 = vadd.f32 %v7857, %v8200
        %v8325 = vadd.f32 %v7858, %v8203
        %v8326 = vadd.f32 %v7859, %v8208
        %v8327 = vadd.f32 %v7860, %v8211
        %v8328 = vadd.f32 %v7861, %v8216
        %v8329 = vadd.f32 %v7862, %v8219
        %v8330 = vadd.f32 %v7863, %v8224
        %v8331 = vadd.f32 %v7864, %v8227
        %v8332 = vadd.f32 %v7865, %v8232
        %v8333 = vadd.f32 %v7866, %v8235
        %v8334 = vadd.f32 %v7867, %v8240
        %v8335 = vadd.f32 %v7868, %v8243
        %v8336 = vadd.f32 %v7869, %v8248
        %v8337 = vadd.f32 %v7870, %v8251
        %v8338 = vadd.f32 %v7871, %v8256
        %v8339 = vadd.f32 %v7872, %v8259
        %v8340 = vadd.f32 %v7873, %v8264
        %v8341 = vadd.f32 %v7874, %v8267
        %v8342 = vadd.f32 %v7875, %v8272
        %v8343 = vadd.f32 %v7876, %v8275
        %v8344 = vadd.f32 %v7877, %v8280
        %v8345 = vadd.f32 %v7878, %v8283
        %v8346 = vadd.f32 %v7879, %v8288
        %v8347 = vadd.f32 %v7880, %v8291
        %v8348 = vadd.f32 %v7881, %v8296
        %v8349 = vadd.f32 %v7882, %v8299
        %v8350 = vadd.f32 %v7883, %v8304
        %v8351 = vadd.f32 %v7884, %v8307
        %v8352 = vadd.f32 %v7885, %v8312
        %v8353 = vadd.f32 %v7886, %v8315
        %v8354 = vld [vmem:[#allocation3 + $0x8] sm:$0xfc]
        %s8355 = scalar_lea.vmem [#allocation9], 320
        %v8356 = vld [vmem:[%s8355] sm:$0xf]
        %v8357 = vld [vmem:[%s8355 + $0x4] sm:$0xf]
        %v8358 = vld [vmem:[%s8355 + $0x8] sm:$0xf]
        %v8359 = vld [vmem:[%s8355 + $0xc] sm:$0xf]
        %v8360 = vld [vmem:[%s8355 + $0x10] sm:$0xf]
        %v8361 = vld [vmem:[%s8355 + $0x14] sm:$0xf]
        %v8362 = vld [vmem:[%s8355 + $0x18] sm:$0xf]
        %v8363 = vld [vmem:[%s8355 + $0x1c] sm:$0xf]
        %v8364 = vld [vmem:[%s8355 + $0x20] sm:$0xf]
        %v8365 = vld [vmem:[%s8355 + $0x24] sm:$0xf]
        %v8366 = vld [vmem:[%s8355 + $0x28] sm:$0xf]
        %v8367 = vld [vmem:[%s8355 + $0x2c] sm:$0xf]
        %v8368 = vld [vmem:[%s8355 + $0x30] sm:$0xf]
        %v8369 = vld [vmem:[%s8355 + $0x34] sm:$0xf]
        %v8370 = vld [vmem:[%s8355 + $0x38] sm:$0xf]
        %v8371 = vld [vmem:[%s8355 + $0x3c] sm:$0xf]
        %v8374 = vrot.slane %v8354, 2
        %v8375 = vrot.slane %v7517, 2
        %v8376 = vsel %vm4537, %v8374, %v8375
        %v8377 = vrot.slane %v7518, 2
        %v8378 = vsel %vm4537, %v8375, %v8377
        %v8379 = vrot.slane %v7519, 2
        %v8380 = vsel %vm4537, %v8377, %v8379
        %v8381 = vrot.slane %v7520, 2
        %v8382 = vsel %vm4537, %v8379, %v8381
        %v8383 = vrot.slane %v7521, 2
        %v8384 = vsel %vm4537, %v8381, %v8383
        %v8385 = vrot.slane %v7522, 2
        %v8386 = vsel %vm4537, %v8383, %v8385
        %v8387 = vrot.slane %v7523, 2
        %v8388 = vsel %vm4537, %v8385, %v8387
        %v8389 = vrot.slane %v7524, 2
        %v8390 = vsel %vm4537, %v8387, %v8389
        %v8391 = vrot.slane %v7525, 2
        %v8392 = vsel %vm4537, %v8389, %v8391
        %v8393 = vrot.slane %v7526, 2
        %v8394 = vsel %vm4537, %v8391, %v8393
        %v8395 = vrot.slane %v7527, 2
        %v8396 = vsel %vm4537, %v8393, %v8395
        %v8397 = vrot.slane %v7528, 2
        %v8398 = vsel %vm4537, %v8395, %v8397
        %v8399 = vrot.slane %v7529, 2
        %v8400 = vsel %vm4537, %v8397, %v8399
        %v8401 = vrot.slane %v7530, 2
        %v8402 = vsel %vm4537, %v8399, %v8401
        %v8403 = vrot.slane %v7531, 2
        %v8404 = vsel %vm4537, %v8401, %v8403
        %v8405 = vrot.slane %v7532, 2
        %v8406 = vsel %vm4537, %v8403, %v8405
        %v8407 = vrot.slane %v7533, 2
        %v8408 = vsel %vm4537, %v8405, %v8407
        %v8409 = vrot.slane %v7887, 2
        %v8410 = vsel %vm4537, %v8407, %v8409
        %v8445 = vunpack.c.l.b16 %v8356
        %v8446 = vunpack.c.l.b16 %v8357
        %v8447 = vunpack.c.l.b16 %v8358
        %v8448 = vunpack.c.l.b16 %v8359
        %v8449 = vunpack.c.l.b16 %v8360
        %v8450 = vunpack.c.l.b16 %v8361
        %v8451 = vunpack.c.l.b16 %v8362
        %v8452 = vunpack.c.l.b16 %v8363
        %v8453 = vunpack.c.l.b16 %v8364
        %v8454 = vunpack.c.l.b16 %v8365
        %v8455 = vunpack.c.l.b16 %v8366
        %v8456 = vunpack.c.l.b16 %v8367
        %v8457 = vunpack.c.l.b16 %v8368
        %v8458 = vunpack.c.l.b16 %v8369
        %v8459 = vunpack.c.l.b16 %v8370
        %v8460 = vunpack.c.l.b16 %v8371
        %v8461 = vpack.c.b16 %v8446, %v8445
        %v8462 = vpack.c.b16 %v8448, %v8447
        %v8463 = vpack.c.b16 %v8450, %v8449
        %v8464 = vpack.c.b16 %v8452, %v8451
        %v8465 = vpack.c.b16 %v8454, %v8453
        %v8466 = vpack.c.b16 %v8456, %v8455
        %v8467 = vpack.c.b16 %v8458, %v8457
        %v8468 = vpack.c.b16 %v8460, %v8459
        %8477 = vmatprep.subr.bf16.mxu0 0
        %8478 = vmatpush1.bf16.msra.mxu0 %v8461
        %8479 = vmatprep.subr.bf16.mxu0 0
        %8480 = vmatpush1.bf16.msra.mxu0 %v8462
        %8481 = vmatprep.subr.bf16.mxu0 0
        %8482 = vmatpush1.bf16.msra.mxu0 %v8463
        %8483 = vmatprep.subr.bf16.mxu0 0
        %8484 = vmatpush1.bf16.msra.mxu0 %v8464
        %8485 = vmatprep.subr.bf16.mxu0 0
        %8486 = vmatpush1.bf16.msra.mxu0 %v8465
        %8487 = vmatprep.subr.bf16.mxu0 0
        %8488 = vmatpush1.bf16.msra.mxu0 %v8466
        %8489 = vmatprep.subr.bf16.mxu0 0
        %8490 = vmatpush1.bf16.msra.mxu0 %v8467
        %8491 = vmatprep.subr.bf16.mxu0 0
        %8492 = vmatpush1.bf16.msra.mxu0 %v8468
        %8493 = vmatprep.subr.bf16.mxu0 0
        %8494 = vmatpush1.bf16.msra.mxu0 0
        %8495 = vmatprep.subr.bf16.mxu0 0
        %8496 = vmatpush1.bf16.msra.mxu0 0
        %8497 = vmatprep.subr.bf16.mxu0 0
        %8498 = vmatpush1.bf16.msra.mxu0 0
        %8499 = vmatprep.subr.bf16.mxu0 0
        %8500 = vmatpush1.bf16.msra.mxu0 0
        %8501 = vmatprep.subr.bf16.mxu0 0
        %8502 = vmatpush1.bf16.msra.mxu0 0
        %8503 = vmatprep.subr.bf16.mxu0 0
        %8504 = vmatpush1.bf16.msra.mxu0 0
        %8505 = vmatprep.subr.bf16.mxu0 0
        %8506 = vmatpush1.bf16.msra.mxu0 0
        %8507 = vmatprep.subr.bf16.mxu0 0
        %8508 = vmatpush1.bf16.msra.mxu0 0
        %8509 = vmatprep.mubr.bf16.mxu0 0
        %8510 = vmatmul.mubr.bf16.gmra.mrb[0].mxu0 %v8376
        %v8511 = vpop.f32.mrb[0].mxu0
        %v8512 = vadd.f32 0.0, %v8511
        %v8513 = vpop.f32.mrb[0].mxu0
        %v8514 = vpop.f32.mrb[0].mxu0
        %v8515 = vadd.f32 0.0, %v8514
        %v8516 = vpop.f32.mrb[0].mxu0
        %8517 = vmatprep.mubr.bf16.mxu0 0
        %8518 = vmatmul.mubr.bf16.gmra.mrb[0].mxu0 %v8378
        %v8519 = vpop.f32.mrb[0].mxu0
        %v8520 = vadd.f32 0.0, %v8519
        %v8521 = vpop.f32.mrb[0].mxu0
        %v8522 = vpop.f32.mrb[0].mxu0
        %v8523 = vadd.f32 0.0, %v8522
        %v8524 = vpop.f32.mrb[0].mxu0
        %8525 = vmatprep.mubr.bf16.mxu0 0
        %8526 = vmatmul.mubr.bf16.gmra.mrb[0].mxu0 %v8380
        %v8527 = vpop.f32.mrb[0].mxu0
        %v8528 = vadd.f32 0.0, %v8527
        %v8529 = vpop.f32.mrb[0].mxu0
        %v8530 = vpop.f32.mrb[0].mxu0
        %v8531 = vadd.f32 0.0, %v8530
        %v8532 = vpop.f32.mrb[0].mxu0
        %8533 = vmatprep.mubr.bf16.mxu0 0
        %8534 = vmatmul.mubr.bf16.gmra.mrb[0].mxu0 %v8382
        %v8535 = vpop.f32.mrb[0].mxu0
        %v8536 = vadd.f32 0.0, %v8535
        %v8537 = vpop.f32.mrb[0].mxu0
        %v8538 = vpop.f32.mrb[0].mxu0
        %v8539 = vadd.f32 0.0, %v8538
        %v8540 = vpop.f32.mrb[0].mxu0
        %8541 = vmatprep.mubr.bf16.mxu0 0
        %8542 = vmatmul.mubr.bf16.gmra.mrb[0].mxu0 %v8384
        %v8543 = vpop.f32.mrb[0].mxu0
        %v8544 = vadd.f32 0.0, %v8543
        %v8545 = vpop.f32.mrb[0].mxu0
        %v8546 = vpop.f32.mrb[0].mxu0
        %v8547 = vadd.f32 0.0, %v8546
        %v8548 = vpop.f32.mrb[0].mxu0
        %8549 = vmatprep.mubr.bf16.mxu0 0
        %8550 = vmatmul.mubr.bf16.gmra.mrb[0].mxu0 %v8386
        %v8551 = vpop.f32.mrb[0].mxu0
        %v8552 = vadd.f32 0.0, %v8551
        %v8553 = vpop.f32.mrb[0].mxu0
        %v8554 = vpop.f32.mrb[0].mxu0
        %v8555 = vadd.f32 0.0, %v8554
        %v8556 = vpop.f32.mrb[0].mxu0
        %8557 = vmatprep.mubr.bf16.mxu0 0
        %8558 = vmatmul.mubr.bf16.gmra.mrb[0].mxu0 %v8388
        %v8559 = vpop.f32.mrb[0].mxu0
        %v8560 = vadd.f32 0.0, %v8559
        %v8561 = vpop.f32.mrb[0].mxu0
        %v8562 = vpop.f32.mrb[0].mxu0
        %v8563 = vadd.f32 0.0, %v8562
        %v8564 = vpop.f32.mrb[0].mxu0
        %8565 = vmatprep.mubr.bf16.mxu0 0
        %8566 = vmatmul.mubr.bf16.gmra.mrb[0].mxu0 %v8390
        %v8567 = vpop.f32.mrb[0].mxu0
        %v8568 = vadd.f32 0.0, %v8567
        %v8569 = vpop.f32.mrb[0].mxu0
        %v8570 = vpop.f32.mrb[0].mxu0
        %v8571 = vadd.f32 0.0, %v8570
        %v8572 = vpop.f32.mrb[0].mxu0
        %8573 = vmatprep.mubr.bf16.mxu0 0
        %8574 = vmatmul.mubr.bf16.gmra.mrb[0].mxu0 %v8392
        %v8575 = vpop.f32.mrb[0].mxu0
        %v8576 = vadd.f32 0.0, %v8575
        %v8577 = vpop.f32.mrb[0].mxu0
        %v8578 = vpop.f32.mrb[0].mxu0
        %v8579 = vadd.f32 0.0, %v8578
        %v8580 = vpop.f32.mrb[0].mxu0
        %8581 = vmatprep.mubr.bf16.mxu0 0
        %8582 = vmatmul.mubr.bf16.gmra.mrb[0].mxu0 %v8394
        %v8583 = vpop.f32.mrb[0].mxu0
        %v8584 = vadd.f32 0.0, %v8583
        %v8585 = vpop.f32.mrb[0].mxu0
        %v8586 = vpop.f32.mrb[0].mxu0
        %v8587 = vadd.f32 0.0, %v8586
        %v8588 = vpop.f32.mrb[0].mxu0
        %8589 = vmatprep.mubr.bf16.mxu0 0
        %8590 = vmatmul.mubr.bf16.gmra.mrb[0].mxu0 %v8396
        %v8591 = vpop.f32.mrb[0].mxu0
        %v8592 = vadd.f32 0.0, %v8591
        %v8593 = vpop.f32.mrb[0].mxu0
        %v8594 = vpop.f32.mrb[0].mxu0
        %v8595 = vadd.f32 0.0, %v8594
        %v8596 = vpop.f32.mrb[0].mxu0
        %8597 = vmatprep.mubr.bf16.mxu0 0
        %8598 = vmatmul.mubr.bf16.gmra.mrb[0].mxu0 %v8398
        %v8599 = vpop.f32.mrb[0].mxu0
        %v8600 = vadd.f32 0.0, %v8599
        %v8601 = vpop.f32.mrb[0].mxu0
        %v8602 = vpop.f32.mrb[0].mxu0
        %v8603 = vadd.f32 0.0, %v8602
        %v8604 = vpop.f32.mrb[0].mxu0
        %8605 = vmatprep.mubr.bf16.mxu0 0
        %8606 = vmatmul.mubr.bf16.gmra.mrb[0].mxu0 %v8400
        %v8607 = vpop.f32.mrb[0].mxu0
        %v8608 = vadd.f32 0.0, %v8607
        %v8609 = vpop.f32.mrb[0].mxu0
        %v8610 = vpop.f32.mrb[0].mxu0
        %v8611 = vadd.f32 0.0, %v8610
        %v8612 = vpop.f32.mrb[0].mxu0
        %8613 = vmatprep.mubr.bf16.mxu0 0
        %8614 = vmatmul.mubr.bf16.gmra.mrb[0].mxu0 %v8402
        %v8615 = vpop.f32.mrb[0].mxu0
        %v8616 = vadd.f32 0.0, %v8615
        %v8617 = vpop.f32.mrb[0].mxu0
        %v8618 = vpop.f32.mrb[0].mxu0
        %v8619 = vadd.f32 0.0, %v8618
        %v8620 = vpop.f32.mrb[0].mxu0
        %8621 = vmatprep.mubr.bf16.mxu0 0
        %8622 = vmatmul.mubr.bf16.gmra.mrb[0].mxu0 %v8404
        %v8623 = vpop.f32.mrb[0].mxu0
        %v8624 = vadd.f32 0.0, %v8623
        %v8625 = vpop.f32.mrb[0].mxu0
        %v8626 = vpop.f32.mrb[0].mxu0
        %v8627 = vadd.f32 0.0, %v8626
        %v8628 = vpop.f32.mrb[0].mxu0
        %8629 = vmatprep.mubr.bf16.mxu0 0
        %8630 = vmatmul.mubr.bf16.gmra.mrb[0].mxu0 %v8406
        %v8631 = vpop.f32.mrb[0].mxu0
        %v8632 = vadd.f32 0.0, %v8631
        %v8633 = vpop.f32.mrb[0].mxu0
        %v8634 = vpop.f32.mrb[0].mxu0
        %v8635 = vadd.f32 0.0, %v8634
        %v8636 = vpop.f32.mrb[0].mxu0
        %8637 = vmatprep.mubr.bf16.mxu0 0
        %8638 = vmatmul.mubr.bf16.gmra.mrb[0].mxu0 %v8408
        %v8639 = vpop.f32.mrb[0].mxu0
        %v8640 = vadd.f32 0.0, %v8639
        %v8641 = vpop.f32.mrb[0].mxu0
        %v8642 = vpop.f32.mrb[0].mxu0
        %v8643 = vadd.f32 0.0, %v8642
        %v8644 = vpop.f32.mrb[0].mxu0
        %8645 = vmatprep.mubr.bf16.mxu0 0
        %8646 = vmatmul.mubr.bf16.gmra.mrb[0].mxu0 %v8410
        %v8647 = vpop.f32.mrb[0].mxu0
        %v8648 = vadd.f32 0.0, %v8647
        %v8649 = vpop.f32.mrb[0].mxu0
        %v8650 = vpop.f32.mrb[0].mxu0
        %v8651 = vadd.f32 0.0, %v8650
        %v8652 = vpop.f32.mrb[0].mxu0
        %8653 = vdwg.mxu0
        %v8654 = vadd.f32 %v8318, %v8512
        %v8655 = vadd.f32 %v8319, %v8515
        %v8656 = vadd.f32 %v8320, %v8520
        %v8657 = vadd.f32 %v8321, %v8523
        %v8658 = vadd.f32 %v8322, %v8528
        %v8659 = vadd.f32 %v8323, %v8531
        %v8660 = vadd.f32 %v8324, %v8536
        %v8661 = vadd.f32 %v8325, %v8539
        %v8662 = vadd.f32 %v8326, %v8544
        %v8663 = vadd.f32 %v8327, %v8547
        %v8664 = vadd.f32 %v8328, %v8552
        %v8665 = vadd.f32 %v8329, %v8555
        %v8666 = vadd.f32 %v8330, %v8560
        %v8667 = vadd.f32 %v8331, %v8563
        %v8668 = vadd.f32 %v8332, %v8568
        %v8669 = vadd.f32 %v8333, %v8571
        %v8670 = vadd.f32 %v8334, %v8576
        %v8671 = vadd.f32 %v8335, %v8579
        %v8672 = vadd.f32 %v8336, %v8584
        %v8673 = vadd.f32 %v8337, %v8587
        %v8674 = vadd.f32 %v8338, %v8592
        %v8675 = vadd.f32 %v8339, %v8595
        %v8676 = vadd.f32 %v8340, %v8600
        %v8677 = vadd.f32 %v8341, %v8603
        %v8678 = vadd.f32 %v8342, %v8608
        %v8679 = vadd.f32 %v8343, %v8611
        %v8680 = vadd.f32 %v8344, %v8616
        %v8681 = vadd.f32 %v8345, %v8619
        %v8682 = vadd.f32 %v8346, %v8624
        %v8683 = vadd.f32 %v8347, %v8627
        %v8684 = vadd.f32 %v8348, %v8632
        %v8685 = vadd.f32 %v8349, %v8635
        %v8686 = vadd.f32 %v8350, %v8640
        %v8687 = vadd.f32 %v8351, %v8643
        %v8688 = vadd.f32 %v8352, %v8648
        %v8689 = vadd.f32 %v8353, %v8651
        %v8690 = vld [vmem:[#allocation3 + $0x10] sm:$0xfc]
        %v8691 = vld [vmem:[#allocation3 + $0x18] sm:$0xff]
        %v8692 = vld [vmem:[#allocation3 + $0x20] sm:$0xff]
        %v8693 = vld [vmem:[#allocation3 + $0x28] sm:$0xff]
        %v8694 = vld [vmem:[#allocation3 + $0x30] sm:$0xff]
        %v8695 = vld [vmem:[#allocation3 + $0x38] sm:$0xff]
        %v8696 = vld [vmem:[#allocation3 + $0x40] sm:$0xff]
        %v8697 = vld [vmem:[#allocation3 + $0x48] sm:$0xff]
        %v8698 = vld [vmem:[#allocation3 + $0x50] sm:$0xff]
        %v8699 = vld [vmem:[#allocation3 + $0x58] sm:$0xff]
        %v8700 = vld [vmem:[#allocation3 + $0x60] sm:$0xff]
        %v8701 = vld [vmem:[#allocation3 + $0x68] sm:$0xff]
        %v8702 = vld [vmem:[#allocation3 + $0x70] sm:$0xff]
        %v8703 = vld [vmem:[#allocation3 + $0x78] sm:$0xff]
        %v8704 = vld [vmem:[#allocation3 + $0x80] sm:$0xff]
        %v8705 = vld [vmem:[#allocation3 + $0x88] sm:$0xff]
        %v8706 = vld [vmem:[#allocation3 + $0x90] sm:$0xff]
        %v8707 = vld [vmem:[#allocation3 + $0x98] sm:$0xff]
        %v8708 = vld [vmem:[#allocation3 + $0xa0] sm:$0x3]
        %s8709 = scalar_lea.vmem [#allocation9], 384
        %v8710 = vld [vmem:[%s8709] sm:$0xf]
        %v8711 = vld [vmem:[%s8709 + $0x4] sm:$0xf]
        %v8712 = vld [vmem:[%s8709 + $0x8] sm:$0xf]
        %v8713 = vld [vmem:[%s8709 + $0xc] sm:$0xf]
        %v8714 = vld [vmem:[%s8709 + $0x10] sm:$0xf]
        %v8715 = vld [vmem:[%s8709 + $0x14] sm:$0xf]
        %v8716 = vld [vmem:[%s8709 + $0x18] sm:$0xf]
        %v8717 = vld [vmem:[%s8709 + $0x1c] sm:$0xf]
        %v8718 = vld [vmem:[%s8709 + $0x20] sm:$0xf]
        %v8719 = vld [vmem:[%s8709 + $0x24] sm:$0xf]
        %v8720 = vld [vmem:[%s8709 + $0x28] sm:$0xf]
        %v8721 = vld [vmem:[%s8709 + $0x2c] sm:$0xf]
        %v8722 = vld [vmem:[%s8709 + $0x30] sm:$0xf]
        %v8723 = vld [vmem:[%s8709 + $0x34] sm:$0xf]
        %v8724 = vld [vmem:[%s8709 + $0x38] sm:$0xf]
        %v8725 = vld [vmem:[%s8709 + $0x3c] sm:$0xf]
        %v8745 = vrot.slane %v8690, 2
        %v8746 = vrot.slane %v8691, 2
        %v8747 = vsel %vm4537, %v8745, %v8746
        %v8748 = vrot.slane %v8692, 2
        %v8749 = vsel %vm4537, %v8746, %v8748
        %v8750 = vrot.slane %v8693, 2
        %v8751 = vsel %vm4537, %v8748, %v8750
        %v8752 = vrot.slane %v8694, 2
        %v8753 = vsel %vm4537, %v8750, %v8752
        %v8754 = vrot.slane %v8695, 2
        %v8755 = vsel %vm4537, %v8752, %v8754
        %v8756 = vrot.slane %v8696, 2
        %v8757 = vsel %vm4537, %v8754, %v8756
        %v8758 = vrot.slane %v8697, 2
        %v8759 = vsel %vm4537, %v8756, %v8758
        %v8760 = vrot.slane %v8698, 2
        %v8761 = vsel %vm4537, %v8758, %v8760
        %v8762 = vrot.slane %v8699, 2
        %v8763 = vsel %vm4537, %v8760, %v8762
        %v8764 = vrot.slane %v8700, 2
        %v8765 = vsel %vm4537, %v8762, %v8764
        %v8766 = vrot.slane %v8701, 2
        %v8767 = vsel %vm4537, %v8764, %v8766
        %v8768 = vrot.slane %v8702, 2
        %v8769 = vsel %vm4537, %v8766, %v8768
        %v8770 = vrot.slane %v8703, 2
        %v8771 = vsel %vm4537, %v8768, %v8770
        %v8772 = vrot.slane %v8704, 2
        %v8773 = vsel %vm4537, %v8770, %v8772
        %v8774 = vrot.slane %v8705, 2
        %v8775 = vsel %vm4537, %v8772, %v8774
        %v8776 = vrot.slane %v8706, 2
        %v8777 = vsel %vm4537, %v8774, %v8776
        %v8778 = vrot.slane %v8707, 2
        %v8779 = vsel %vm4537, %v8776, %v8778
        %v8780 = vrot.slane %v8708, 2
        %v8781 = vsel %vm4537, %v8778, %v8780
        %v8816 = vunpack.c.l.b16 %v8710
        %v8817 = vunpack.c.l.b16 %v8711
        %v8818 = vunpack.c.l.b16 %v8712
        %v8819 = vunpack.c.l.b16 %v8713
        %v8820 = vunpack.c.l.b16 %v8714
        %v8821 = vunpack.c.l.b16 %v8715
        %v8822 = vunpack.c.l.b16 %v8716
        %v8823 = vunpack.c.l.b16 %v8717
        %v8824 = vunpack.c.l.b16 %v8718
        %v8825 = vunpack.c.l.b16 %v8719
        %v8826 = vunpack.c.l.b16 %v8720
        %v8827 = vunpack.c.l.b16 %v8721
        %v8828 = vunpack.c.l.b16 %v8722
        %v8829 = vunpack.c.l.b16 %v8723
        %v8830 = vunpack.c.l.b16 %v8724
        %v8831 = vunpack.c.l.b16 %v8725
        %v8832 = vpack.c.b16 %v8817, %v8816
        %v8833 = vpack.c.b16 %v8819, %v8818
        %v8834 = vpack.c.b16 %v8821, %v8820
        %v8835 = vpack.c.b16 %v8823, %v8822
        %v8836 = vpack.c.b16 %v8825, %v8824
        %v8837 = vpack.c.b16 %v8827, %v8826
        %v8838 = vpack.c.b16 %v8829, %v8828
        %v8839 = vpack.c.b16 %v8831, %v8830
        %8848 = vmatprep.subr.bf16.mxu0 0
        %8849 = vmatpush1.bf16.msra.mxu0 %v8832
        %8850 = vmatprep.subr.bf16.mxu0 0
        %8851 = vmatpush1.bf16.msra.mxu0 %v8833
        %8852 = vmatprep.subr.bf16.mxu0 0
        %8853 = vmatpush1.bf16.msra.mxu0 %v8834
        %8854 = vmatprep.subr.bf16.mxu0 0
        %8855 = vmatpush1.bf16.msra.mxu0 %v8835
        %8856 = vmatprep.subr.bf16.mxu0 0
        %8857 = vmatpush1.bf16.msra.mxu0 %v8836
        %8858 = vmatprep.subr.bf16.mxu0 0
        %8859 = vmatpush1.bf16.msra.mxu0 %v8837
        %8860 = vmatprep.subr.bf16.mxu0 0
        %8861 = vmatpush1.bf16.msra.mxu0 %v8838
        %8862 = vmatprep.subr.bf16.mxu0 0
        %8863 = vmatpush1.bf16.msra.mxu0 %v8839
        %8864 = vmatprep.subr.bf16.mxu0 0
        %8865 = vmatpush1.bf16.msra.mxu0 0
        %8866 = vmatprep.subr.bf16.mxu0 0
        %8867 = vmatpush1.bf16.msra.mxu0 0
        %8868 = vmatprep.subr.bf16.mxu0 0
        %8869 = vmatpush1.bf16.msra.mxu0 0
        %8870 = vmatprep.subr.bf16.mxu0 0
        %8871 = vmatpush1.bf16.msra.mxu0 0
        %8872 = vmatprep.subr.bf16.mxu0 0
        %8873 = vmatpush1.bf16.msra.mxu0 0
        %8874 = vmatprep.subr.bf16.mxu0 0
        %8875 = vmatpush1.bf16.msra.mxu0 0
        %8876 = vmatprep.subr.bf16.mxu0 0
        %8877 = vmatpush1.bf16.msra.mxu0 0
        %8878 = vmatprep.subr.bf16.mxu0 0
        %8879 = vmatpush1.bf16.msra.mxu0 0
        %8880 = vmatprep.mubr.bf16.mxu0 0
        %8881 = vmatmul.mubr.bf16.gmra.mrb[0].mxu0 %v8747
        %v8882 = vpop.f32.mrb[0].mxu0
        %v8883 = vadd.f32 0.0, %v8882
        %v8884 = vpop.f32.mrb[0].mxu0
        %v8885 = vpop.f32.mrb[0].mxu0
        %v8886 = vadd.f32 0.0, %v8885
        %v8887 = vpop.f32.mrb[0].mxu0
        %8888 = vmatprep.mubr.bf16.mxu0 0
        %8889 = vmatmul.mubr.bf16.gmra.mrb[0].mxu0 %v8749
        %v8890 = vpop.f32.mrb[0].mxu0
        %v8891 = vadd.f32 0.0, %v8890
        %v8892 = vpop.f32.mrb[0].mxu0
        %v8893 = vpop.f32.mrb[0].mxu0
        %v8894 = vadd.f32 0.0, %v8893
        %v8895 = vpop.f32.mrb[0].mxu0
        %8896 = vmatprep.mubr.bf16.mxu0 0
        %8897 = vmatmul.mubr.bf16.gmra.mrb[0].mxu0 %v8751
        %v8898 = vpop.f32.mrb[0].mxu0
        %v8899 = vadd.f32 0.0, %v8898
        %v8900 = vpop.f32.mrb[0].mxu0
        %v8901 = vpop.f32.mrb[0].mxu0
        %v8902 = vadd.f32 0.0, %v8901
        %v8903 = vpop.f32.mrb[0].mxu0
        %8904 = vmatprep.mubr.bf16.mxu0 0
        %8905 = vmatmul.mubr.bf16.gmra.mrb[0].mxu0 %v8753
        %v8906 = vpop.f32.mrb[0].mxu0
        %v8907 = vadd.f32 0.0, %v8906
        %v8908 = vpop.f32.mrb[0].mxu0
        %v8909 = vpop.f32.mrb[0].mxu0
        %v8910 = vadd.f32 0.0, %v8909
        %v8911 = vpop.f32.mrb[0].mxu0
        %8912 = vmatprep.mubr.bf16.mxu0 0
        %8913 = vmatmul.mubr.bf16.gmra.mrb[0].mxu0 %v8755
        %v8914 = vpop.f32.mrb[0].mxu0
        %v8915 = vadd.f32 0.0, %v8914
        %v8916 = vpop.f32.mrb[0].mxu0
        %v8917 = vpop.f32.mrb[0].mxu0
        %v8918 = vadd.f32 0.0, %v8917
        %v8919 = vpop.f32.mrb[0].mxu0
        %8920 = vmatprep.mubr.bf16.mxu0 0
        %8921 = vmatmul.mubr.bf16.gmra.mrb[0].mxu0 %v8757
        %v8922 = vpop.f32.mrb[0].mxu0
        %v8923 = vadd.f32 0.0, %v8922
        %v8924 = vpop.f32.mrb[0].mxu0
        %v8925 = vpop.f32.mrb[0].mxu0
        %v8926 = vadd.f32 0.0, %v8925
        %v8927 = vpop.f32.mrb[0].mxu0
        %8928 = vmatprep.mubr.bf16.mxu0 0
        %8929 = vmatmul.mubr.bf16.gmra.mrb[0].mxu0 %v8759
        %v8930 = vpop.f32.mrb[0].mxu0
        %v8931 = vadd.f32 0.0, %v8930
        %v8932 = vpop.f32.mrb[0].mxu0
        %v8933 = vpop.f32.mrb[0].mxu0
        %v8934 = vadd.f32 0.0, %v8933
        %v8935 = vpop.f32.mrb[0].mxu0
        %8936 = vmatprep.mubr.bf16.mxu0 0
        %8937 = vmatmul.mubr.bf16.gmra.mrb[0].mxu0 %v8761
        %v8938 = vpop.f32.mrb[0].mxu0
        %v8939 = vadd.f32 0.0, %v8938
        %v8940 = vpop.f32.mrb[0].mxu0
        %v8941 = vpop.f32.mrb[0].mxu0
        %v8942 = vadd.f32 0.0, %v8941
        %v8943 = vpop.f32.mrb[0].mxu0
        %8944 = vmatprep.mubr.bf16.mxu0 0
        %8945 = vmatmul.mubr.bf16.gmra.mrb[0].mxu0 %v8763
        %v8946 = vpop.f32.mrb[0].mxu0
        %v8947 = vadd.f32 0.0, %v8946
        %v8948 = vpop.f32.mrb[0].mxu0
        %v8949 = vpop.f32.mrb[0].mxu0
        %v8950 = vadd.f32 0.0, %v8949
        %v8951 = vpop.f32.mrb[0].mxu0
        %8952 = vmatprep.mubr.bf16.mxu0 0
        %8953 = vmatmul.mubr.bf16.gmra.mrb[0].mxu0 %v8765
        %v8954 = vpop.f32.mrb[0].mxu0
        %v8955 = vadd.f32 0.0, %v8954
        %v8956 = vpop.f32.mrb[0].mxu0
        %v8957 = vpop.f32.mrb[0].mxu0
        %v8958 = vadd.f32 0.0, %v8957
        %v8959 = vpop.f32.mrb[0].mxu0
        %8960 = vmatprep.mubr.bf16.mxu0 0
        %8961 = vmatmul.mubr.bf16.gmra.mrb[0].mxu0 %v8767
        %v8962 = vpop.f32.mrb[0].mxu0
        %v8963 = vadd.f32 0.0, %v8962
        %v8964 = vpop.f32.mrb[0].mxu0
        %v8965 = vpop.f32.mrb[0].mxu0
        %v8966 = vadd.f32 0.0, %v8965
        %v8967 = vpop.f32.mrb[0].mxu0
        %8968 = vmatprep.mubr.bf16.mxu0 0
        %8969 = vmatmul.mubr.bf16.gmra.mrb[0].mxu0 %v8769
        %v8970 = vpop.f32.mrb[0].mxu0
        %v8971 = vadd.f32 0.0, %v8970
        %v8972 = vpop.f32.mrb[0].mxu0
        %v8973 = vpop.f32.mrb[0].mxu0
        %v8974 = vadd.f32 0.0, %v8973
        %v8975 = vpop.f32.mrb[0].mxu0
        %8976 = vmatprep.mubr.bf16.mxu0 0
        %8977 = vmatmul.mubr.bf16.gmra.mrb[0].mxu0 %v8771
        %v8978 = vpop.f32.mrb[0].mxu0
        %v8979 = vadd.f32 0.0, %v8978
        %v8980 = vpop.f32.mrb[0].mxu0
        %v8981 = vpop.f32.mrb[0].mxu0
        %v8982 = vadd.f32 0.0, %v8981
        %v8983 = vpop.f32.mrb[0].mxu0
        %8984 = vmatprep.mubr.bf16.mxu0 0
        %8985 = vmatmul.mubr.bf16.gmra.mrb[0].mxu0 %v8773
        %v8986 = vpop.f32.mrb[0].mxu0
        %v8987 = vadd.f32 0.0, %v8986
        %v8988 = vpop.f32.mrb[0].mxu0
        %v8989 = vpop.f32.mrb[0].mxu0
        %v8990 = vadd.f32 0.0, %v8989
        %v8991 = vpop.f32.mrb[0].mxu0
        %8992 = vmatprep.mubr.bf16.mxu0 0
        %8993 = vmatmul.mubr.bf16.gmra.mrb[0].mxu0 %v8775
        %v8994 = vpop.f32.mrb[0].mxu0
        %v8995 = vadd.f32 0.0, %v8994
        %v8996 = vpop.f32.mrb[0].mxu0
        %v8997 = vpop.f32.mrb[0].mxu0
        %v8998 = vadd.f32 0.0, %v8997
        %v8999 = vpop.f32.mrb[0].mxu0
        %9000 = vmatprep.mubr.bf16.mxu0 0
        %9001 = vmatmul.mubr.bf16.gmra.mrb[0].mxu0 %v8777
        %v9002 = vpop.f32.mrb[0].mxu0
        %v9003 = vadd.f32 0.0, %v9002
        %v9004 = vpop.f32.mrb[0].mxu0
        %v9005 = vpop.f32.mrb[0].mxu0
        %v9006 = vadd.f32 0.0, %v9005
        %v9007 = vpop.f32.mrb[0].mxu0
        %9008 = vmatprep.mubr.bf16.mxu0 0
        %9009 = vmatmul.mubr.bf16.gmra.mrb[0].mxu0 %v8779
        %v9010 = vpop.f32.mrb[0].mxu0
        %v9011 = vadd.f32 0.0, %v9010
        %v9012 = vpop.f32.mrb[0].mxu0
        %v9013 = vpop.f32.mrb[0].mxu0
        %v9014 = vadd.f32 0.0, %v9013
        %v9015 = vpop.f32.mrb[0].mxu0
        %9016 = vmatprep.mubr.bf16.mxu0 0
        %9017 = vmatmul.mubr.bf16.gmra.mrb[0].mxu0 %v8781
        %v9018 = vpop.f32.mrb[0].mxu0
        %v9019 = vadd.f32 0.0, %v9018
        %v9020 = vpop.f32.mrb[0].mxu0
        %v9021 = vpop.f32.mrb[0].mxu0
        %v9022 = vadd.f32 0.0, %v9021
        %v9023 = vpop.f32.mrb[0].mxu0
        %9024 = vdwg.mxu0
        %v9025 = vadd.f32 %v8654, %v8883
        %v9026 = vadd.f32 %v8655, %v8886
        %v9027 = vadd.f32 %v8656, %v8891
        %v9028 = vadd.f32 %v8657, %v8894
        %v9029 = vadd.f32 %v8658, %v8899
        %v9030 = vadd.f32 %v8659, %v8902
        %v9031 = vadd.f32 %v8660, %v8907
        %v9032 = vadd.f32 %v8661, %v8910
        %v9033 = vadd.f32 %v8662, %v8915
        %v9034 = vadd.f32 %v8663, %v8918
        %v9035 = vadd.f32 %v8664, %v8923
        %v9036 = vadd.f32 %v8665, %v8926
        %v9037 = vadd.f32 %v8666, %v8931
        %v9038 = vadd.f32 %v8667, %v8934
        %v9039 = vadd.f32 %v8668, %v8939
        %v9040 = vadd.f32 %v8669, %v8942
        %v9041 = vadd.f32 %v8670, %v8947
        %v9042 = vadd.f32 %v8671, %v8950
        %v9043 = vadd.f32 %v8672, %v8955
        %v9044 = vadd.f32 %v8673, %v8958
        %v9045 = vadd.f32 %v8674, %v8963
        %v9046 = vadd.f32 %v8675, %v8966
        %v9047 = vadd.f32 %v8676, %v8971
        %v9048 = vadd.f32 %v8677, %v8974
        %v9049 = vadd.f32 %v8678, %v8979
        %v9050 = vadd.f32 %v8679, %v8982
        %v9051 = vadd.f32 %v8680, %v8987
        %v9052 = vadd.f32 %v8681, %v8990
        %v9053 = vadd.f32 %v8682, %v8995
        %v9054 = vadd.f32 %v8683, %v8998
        %v9055 = vadd.f32 %v8684, %v9003
        %v9056 = vadd.f32 %v8685, %v9006
        %v9057 = vadd.f32 %v8686, %v9011
        %v9058 = vadd.f32 %v8687, %v9014
        %v9059 = vadd.f32 %v8688, %v9019
        %v9060 = vadd.f32 %v8689, %v9022
        %v9061 = vld [vmem:[#allocation3 + $0xa0] sm:$0x7]
        %s9062 = scalar_lea.vmem [#allocation9], 448
        %v9063 = vld [vmem:[%s9062] sm:$0xf]
        %v9064 = vld [vmem:[%s9062 + $0x4] sm:$0xf]
        %v9065 = vld [vmem:[%s9062 + $0x8] sm:$0xf]
        %v9066 = vld [vmem:[%s9062 + $0xc] sm:$0xf]
        %v9067 = vld [vmem:[%s9062 + $0x10] sm:$0xf]
        %v9068 = vld [vmem:[%s9062 + $0x14] sm:$0xf]
        %v9069 = vld [vmem:[%s9062 + $0x18] sm:$0xf]
        %v9070 = vld [vmem:[%s9062 + $0x1c] sm:$0xf]
        %v9071 = vld [vmem:[%s9062 + $0x20] sm:$0xf]
        %v9072 = vld [vmem:[%s9062 + $0x24] sm:$0xf]
        %v9073 = vld [vmem:[%s9062 + $0x28] sm:$0xf]
        %v9074 = vld [vmem:[%s9062 + $0x2c] sm:$0xf]
        %v9075 = vld [vmem:[%s9062 + $0x30] sm:$0xf]
        %v9076 = vld [vmem:[%s9062 + $0x34] sm:$0xf]
        %v9077 = vld [vmem:[%s9062 + $0x38] sm:$0xf]
        %v9078 = vld [vmem:[%s9062 + $0x3c] sm:$0xf]
        %v9080 = vshrl.u32 %v8690, 16
        %v9082 = vrot.slane %v9080, 2
        %v9083 = vshll.u32 %v8690, 16
        %v9085 = vrot.slane %v9083, 3
        %v9086 = vor.u32 %v9082, %v9085
        %v9088 = vshrl.u32 %v8691, 16
        %v9090 = vrot.slane %v9088, 2
        %v9091 = vshll.u32 %v8691, 16
        %v9093 = vrot.slane %v9091, 3
        %v9094 = vor.u32 %v9090, %v9093
        %v9095 = vsel %vm5243, %v9086, %v9094
        %v9097 = vshrl.u32 %v8692, 16
        %v9099 = vrot.slane %v9097, 2
        %v9100 = vshll.u32 %v8692, 16
        %v9102 = vrot.slane %v9100, 3
        %v9103 = vor.u32 %v9099, %v9102
        %v9104 = vsel %vm5243, %v9094, %v9103
        %v9106 = vshrl.u32 %v8693, 16
        %v9108 = vrot.slane %v9106, 2
        %v9109 = vshll.u32 %v8693, 16
        %v9111 = vrot.slane %v9109, 3
        %v9112 = vor.u32 %v9108, %v9111
        %v9113 = vsel %vm5243, %v9103, %v9112
        %v9115 = vshrl.u32 %v8694, 16
        %v9117 = vrot.slane %v9115, 2
        %v9118 = vshll.u32 %v8694, 16
        %v9120 = vrot.slane %v9118, 3
        %v9121 = vor.u32 %v9117, %v9120
        %v9122 = vsel %vm5243, %v9112, %v9121
        %v9124 = vshrl.u32 %v8695, 16
        %v9126 = vrot.slane %v9124, 2
        %v9127 = vshll.u32 %v8695, 16
        %v9129 = vrot.slane %v9127, 3
        %v9130 = vor.u32 %v9126, %v9129
        %v9131 = vsel %vm5243, %v9121, %v9130
        %v9133 = vshrl.u32 %v8696, 16
        %v9135 = vrot.slane %v9133, 2
        %v9136 = vshll.u32 %v8696, 16
        %v9138 = vrot.slane %v9136, 3
        %v9139 = vor.u32 %v9135, %v9138
        %v9140 = vsel %vm5243, %v9130, %v9139
        %v9142 = vshrl.u32 %v8697, 16
        %v9144 = vrot.slane %v9142, 2
        %v9145 = vshll.u32 %v8697, 16
        %v9147 = vrot.slane %v9145, 3
        %v9148 = vor.u32 %v9144, %v9147
        %v9149 = vsel %vm5243, %v9139, %v9148
        %v9151 = vshrl.u32 %v8698, 16
        %v9153 = vrot.slane %v9151, 2
        %v9154 = vshll.u32 %v8698, 16
        %v9156 = vrot.slane %v9154, 3
        %v9157 = vor.u32 %v9153, %v9156
        %v9158 = vsel %vm5243, %v9148, %v9157
        %v9160 = vshrl.u32 %v8699, 16
        %v9162 = vrot.slane %v9160, 2
        %v9163 = vshll.u32 %v8699, 16
        %v9165 = vrot.slane %v9163, 3
        %v9166 = vor.u32 %v9162, %v9165
        %v9167 = vsel %vm5243, %v9157, %v9166
        %v9169 = vshrl.u32 %v8700, 16
        %v9171 = vrot.slane %v9169, 2
        %v9172 = vshll.u32 %v8700, 16
        %v9174 = vrot.slane %v9172, 3
        %v9175 = vor.u32 %v9171, %v9174
        %v9176 = vsel %vm5243, %v9166, %v9175
        %v9178 = vshrl.u32 %v8701, 16
        %v9180 = vrot.slane %v9178, 2
        %v9181 = vshll.u32 %v8701, 16
        %v9183 = vrot.slane %v9181, 3
        %v9184 = vor.u32 %v9180, %v9183
        %v9185 = vsel %vm5243, %v9175, %v9184
        %v9187 = vshrl.u32 %v8702, 16
        %v9189 = vrot.slane %v9187, 2
        %v9190 = vshll.u32 %v8702, 16
        %v9192 = vrot.slane %v9190, 3
        %v9193 = vor.u32 %v9189, %v9192
        %v9194 = vsel %vm5243, %v9184, %v9193
        %v9196 = vshrl.u32 %v8703, 16
        %v9198 = vrot.slane %v9196, 2
        %v9199 = vshll.u32 %v8703, 16
        %v9201 = vrot.slane %v9199, 3
        %v9202 = vor.u32 %v9198, %v9201
        %v9203 = vsel %vm5243, %v9193, %v9202
        %v9205 = vshrl.u32 %v8704, 16
        %v9207 = vrot.slane %v9205, 2
        %v9208 = vshll.u32 %v8704, 16
        %v9210 = vrot.slane %v9208, 3
        %v9211 = vor.u32 %v9207, %v9210
        %v9212 = vsel %vm5243, %v9202, %v9211
        %v9214 = vshrl.u32 %v8705, 16
        %v9216 = vrot.slane %v9214, 2
        %v9217 = vshll.u32 %v8705, 16
        %v9219 = vrot.slane %v9217, 3
        %v9220 = vor.u32 %v9216, %v9219
        %v9221 = vsel %vm5243, %v9211, %v9220
        %v9223 = vshrl.u32 %v8706, 16
        %v9225 = vrot.slane %v9223, 2
        %v9226 = vshll.u32 %v8706, 16
        %v9228 = vrot.slane %v9226, 3
        %v9229 = vor.u32 %v9225, %v9228
        %v9230 = vsel %vm5243, %v9220, %v9229
        %v9232 = vshrl.u32 %v8707, 16
        %v9234 = vrot.slane %v9232, 2
        %v9235 = vshll.u32 %v8707, 16
        %v9237 = vrot.slane %v9235, 3
        %v9238 = vor.u32 %v9234, %v9237
        %v9239 = vsel %vm5243, %v9229, %v9238
        %v9241 = vshrl.u32 %v9061, 16
        %v9243 = vrot.slane %v9241, 2
        %v9244 = vshll.u32 %v9061, 16
        %v9246 = vrot.slane %v9244, 3
        %v9247 = vor.u32 %v9243, %v9246
        %v9248 = vsel %vm5243, %v9238, %v9247
        %v9283 = vunpack.c.l.b16 %v9063
        %v9284 = vunpack.c.l.b16 %v9064
        %v9285 = vunpack.c.l.b16 %v9065
        %v9286 = vunpack.c.l.b16 %v9066
        %v9287 = vunpack.c.l.b16 %v9067
        %v9288 = vunpack.c.l.b16 %v9068
        %v9289 = vunpack.c.l.b16 %v9069
        %v9290 = vunpack.c.l.b16 %v9070
        %v9291 = vunpack.c.l.b16 %v9071
        %v9292 = vunpack.c.l.b16 %v9072
        %v9293 = vunpack.c.l.b16 %v9073
        %v9294 = vunpack.c.l.b16 %v9074
        %v9295 = vunpack.c.l.b16 %v9075
        %v9296 = vunpack.c.l.b16 %v9076
        %v9297 = vunpack.c.l.b16 %v9077
        %v9298 = vunpack.c.l.b16 %v9078
        %v9299 = vpack.c.b16 %v9284, %v9283
        %v9300 = vpack.c.b16 %v9286, %v9285
        %v9301 = vpack.c.b16 %v9288, %v9287
        %v9302 = vpack.c.b16 %v9290, %v9289
        %v9303 = vpack.c.b16 %v9292, %v9291
        %v9304 = vpack.c.b16 %v9294, %v9293
        %v9305 = vpack.c.b16 %v9296, %v9295
        %v9306 = vpack.c.b16 %v9298, %v9297
        %9315 = vmatprep.subr.bf16.mxu0 0
        %9316 = vmatpush1.bf16.msra.mxu0 %v9299
        %9317 = vmatprep.subr.bf16.mxu0 0
        %9318 = vmatpush1.bf16.msra.mxu0 %v9300
        %9319 = vmatprep.subr.bf16.mxu0 0
        %9320 = vmatpush1.bf16.msra.mxu0 %v9301
        %9321 = vmatprep.subr.bf16.mxu0 0
        %9322 = vmatpush1.bf16.msra.mxu0 %v9302
        %9323 = vmatprep.subr.bf16.mxu0 0
        %9324 = vmatpush1.bf16.msra.mxu0 %v9303
        %9325 = vmatprep.subr.bf16.mxu0 0
        %9326 = vmatpush1.bf16.msra.mxu0 %v9304
        %9327 = vmatprep.subr.bf16.mxu0 0
        %9328 = vmatpush1.bf16.msra.mxu0 %v9305
        %9329 = vmatprep.subr.bf16.mxu0 0
        %9330 = vmatpush1.bf16.msra.mxu0 %v9306
        %9331 = vmatprep.subr.bf16.mxu0 0
        %9332 = vmatpush1.bf16.msra.mxu0 0
        %9333 = vmatprep.subr.bf16.mxu0 0
        %9334 = vmatpush1.bf16.msra.mxu0 0
        %9335 = vmatprep.subr.bf16.mxu0 0
        %9336 = vmatpush1.bf16.msra.mxu0 0
        %9337 = vmatprep.subr.bf16.mxu0 0
        %9338 = vmatpush1.bf16.msra.mxu0 0
        %9339 = vmatprep.subr.bf16.mxu0 0
        %9340 = vmatpush1.bf16.msra.mxu0 0
        %9341 = vmatprep.subr.bf16.mxu0 0
        %9342 = vmatpush1.bf16.msra.mxu0 0
        %9343 = vmatprep.subr.bf16.mxu0 0
        %9344 = vmatpush1.bf16.msra.mxu0 0
        %9345 = vmatprep.subr.bf16.mxu0 0
        %9346 = vmatpush1.bf16.msra.mxu0 0
        %9347 = vmatprep.mubr.bf16.mxu0 0
        %9348 = vmatmul.mubr.bf16.gmra.mrb[0].mxu0 %v9095
        %v9349 = vpop.f32.mrb[0].mxu0
        %v9350 = vadd.f32 0.0, %v9349
        %v9351 = vpop.f32.mrb[0].mxu0
        %v9352 = vpop.f32.mrb[0].mxu0
        %v9353 = vadd.f32 0.0, %v9352
        %v9354 = vpop.f32.mrb[0].mxu0
        %9355 = vmatprep.mubr.bf16.mxu0 0
        %9356 = vmatmul.mubr.bf16.gmra.mrb[0].mxu0 %v9104
        %v9357 = vpop.f32.mrb[0].mxu0
        %v9358 = vadd.f32 0.0, %v9357
        %v9359 = vpop.f32.mrb[0].mxu0
        %v9360 = vpop.f32.mrb[0].mxu0
        %v9361 = vadd.f32 0.0, %v9360
        %v9362 = vpop.f32.mrb[0].mxu0
        %9363 = vmatprep.mubr.bf16.mxu0 0
        %9364 = vmatmul.mubr.bf16.gmra.mrb[0].mxu0 %v9113
        %v9365 = vpop.f32.mrb[0].mxu0
        %v9366 = vadd.f32 0.0, %v9365
        %v9367 = vpop.f32.mrb[0].mxu0
        %v9368 = vpop.f32.mrb[0].mxu0
        %v9369 = vadd.f32 0.0, %v9368
        %v9370 = vpop.f32.mrb[0].mxu0
        %9371 = vmatprep.mubr.bf16.mxu0 0
        %9372 = vmatmul.mubr.bf16.gmra.mrb[0].mxu0 %v9122
        %v9373 = vpop.f32.mrb[0].mxu0
        %v9374 = vadd.f32 0.0, %v9373
        %v9375 = vpop.f32.mrb[0].mxu0
        %v9376 = vpop.f32.mrb[0].mxu0
        %v9377 = vadd.f32 0.0, %v9376
        %v9378 = vpop.f32.mrb[0].mxu0
        %9379 = vmatprep.mubr.bf16.mxu0 0
        %9380 = vmatmul.mubr.bf16.gmra.mrb[0].mxu0 %v9131
        %v9381 = vpop.f32.mrb[0].mxu0
        %v9382 = vadd.f32 0.0, %v9381
        %v9383 = vpop.f32.mrb[0].mxu0
        %v9384 = vpop.f32.mrb[0].mxu0
        %v9385 = vadd.f32 0.0, %v9384
        %v9386 = vpop.f32.mrb[0].mxu0
        %9387 = vmatprep.mubr.bf16.mxu0 0
        %9388 = vmatmul.mubr.bf16.gmra.mrb[0].mxu0 %v9140
        %v9389 = vpop.f32.mrb[0].mxu0
        %v9390 = vadd.f32 0.0, %v9389
        %v9391 = vpop.f32.mrb[0].mxu0
        %v9392 = vpop.f32.mrb[0].mxu0
        %v9393 = vadd.f32 0.0, %v9392
        %v9394 = vpop.f32.mrb[0].mxu0
        %9395 = vmatprep.mubr.bf16.mxu0 0
        %9396 = vmatmul.mubr.bf16.gmra.mrb[0].mxu0 %v9149
        %v9397 = vpop.f32.mrb[0].mxu0
        %v9398 = vadd.f32 0.0, %v9397
        %v9399 = vpop.f32.mrb[0].mxu0
        %v9400 = vpop.f32.mrb[0].mxu0
        %v9401 = vadd.f32 0.0, %v9400
        %v9402 = vpop.f32.mrb[0].mxu0
        %9403 = vmatprep.mubr.bf16.mxu0 0
        %9404 = vmatmul.mubr.bf16.gmra.mrb[0].mxu0 %v9158
        %v9405 = vpop.f32.mrb[0].mxu0
        %v9406 = vadd.f32 0.0, %v9405
        %v9407 = vpop.f32.mrb[0].mxu0
        %v9408 = vpop.f32.mrb[0].mxu0
        %v9409 = vadd.f32 0.0, %v9408
        %v9410 = vpop.f32.mrb[0].mxu0
        %9411 = vmatprep.mubr.bf16.mxu0 0
        %9412 = vmatmul.mubr.bf16.gmra.mrb[0].mxu0 %v9167
        %v9413 = vpop.f32.mrb[0].mxu0
        %v9414 = vadd.f32 0.0, %v9413
        %v9415 = vpop.f32.mrb[0].mxu0
        %v9416 = vpop.f32.mrb[0].mxu0
        %v9417 = vadd.f32 0.0, %v9416
        %v9418 = vpop.f32.mrb[0].mxu0
        %9419 = vmatprep.mubr.bf16.mxu0 0
        %9420 = vmatmul.mubr.bf16.gmra.mrb[0].mxu0 %v9176
        %v9421 = vpop.f32.mrb[0].mxu0
        %v9422 = vadd.f32 0.0, %v9421
        %v9423 = vpop.f32.mrb[0].mxu0
        %v9424 = vpop.f32.mrb[0].mxu0
        %v9425 = vadd.f32 0.0, %v9424
        %v9426 = vpop.f32.mrb[0].mxu0
        %9427 = vmatprep.mubr.bf16.mxu0 0
        %9428 = vmatmul.mubr.bf16.gmra.mrb[0].mxu0 %v9185
        %v9429 = vpop.f32.mrb[0].mxu0
        %v9430 = vadd.f32 0.0, %v9429
        %v9431 = vpop.f32.mrb[0].mxu0
        %v9432 = vpop.f32.mrb[0].mxu0
        %v9433 = vadd.f32 0.0, %v9432
        %v9434 = vpop.f32.mrb[0].mxu0
        %9435 = vmatprep.mubr.bf16.mxu0 0
        %9436 = vmatmul.mubr.bf16.gmra.mrb[0].mxu0 %v9194
        %v9437 = vpop.f32.mrb[0].mxu0
        %v9438 = vadd.f32 0.0, %v9437
        %v9439 = vpop.f32.mrb[0].mxu0
        %v9440 = vpop.f32.mrb[0].mxu0
        %v9441 = vadd.f32 0.0, %v9440
        %v9442 = vpop.f32.mrb[0].mxu0
        %9443 = vmatprep.mubr.bf16.mxu0 0
        %9444 = vmatmul.mubr.bf16.gmra.mrb[0].mxu0 %v9203
        %v9445 = vpop.f32.mrb[0].mxu0
        %v9446 = vadd.f32 0.0, %v9445
        %v9447 = vpop.f32.mrb[0].mxu0
        %v9448 = vpop.f32.mrb[0].mxu0
        %v9449 = vadd.f32 0.0, %v9448
        %v9450 = vpop.f32.mrb[0].mxu0
        %9451 = vmatprep.mubr.bf16.mxu0 0
        %9452 = vmatmul.mubr.bf16.gmra.mrb[0].mxu0 %v9212
        %v9453 = vpop.f32.mrb[0].mxu0
        %v9454 = vadd.f32 0.0, %v9453
        %v9455 = vpop.f32.mrb[0].mxu0
        %v9456 = vpop.f32.mrb[0].mxu0
        %v9457 = vadd.f32 0.0, %v9456
        %v9458 = vpop.f32.mrb[0].mxu0
        %9459 = vmatprep.mubr.bf16.mxu0 0
        %9460 = vmatmul.mubr.bf16.gmra.mrb[0].mxu0 %v9221
        %v9461 = vpop.f32.mrb[0].mxu0
        %v9462 = vadd.f32 0.0, %v9461
        %v9463 = vpop.f32.mrb[0].mxu0
        %v9464 = vpop.f32.mrb[0].mxu0
        %v9465 = vadd.f32 0.0, %v9464
        %v9466 = vpop.f32.mrb[0].mxu0
        %9467 = vmatprep.mubr.bf16.mxu0 0
        %9468 = vmatmul.mubr.bf16.gmra.mrb[0].mxu0 %v9230
        %v9469 = vpop.f32.mrb[0].mxu0
        %v9470 = vadd.f32 0.0, %v9469
        %v9471 = vpop.f32.mrb[0].mxu0
        %v9472 = vpop.f32.mrb[0].mxu0
        %v9473 = vadd.f32 0.0, %v9472
        %v9474 = vpop.f32.mrb[0].mxu0
        %9475 = vmatprep.mubr.bf16.mxu0 0
        %9476 = vmatmul.mubr.bf16.gmra.mrb[0].mxu0 %v9239
        %v9477 = vpop.f32.mrb[0].mxu0
        %v9478 = vadd.f32 0.0, %v9477
        %v9479 = vpop.f32.mrb[0].mxu0
        %v9480 = vpop.f32.mrb[0].mxu0
        %v9481 = vadd.f32 0.0, %v9480
        %v9482 = vpop.f32.mrb[0].mxu0
        %9483 = vmatprep.mubr.bf16.mxu0 0
        %9484 = vmatmul.mubr.bf16.gmra.mrb[0].mxu0 %v9248
        %v9485 = vpop.f32.mrb[0].mxu0
        %v9486 = vadd.f32 0.0, %v9485
        %v9487 = vpop.f32.mrb[0].mxu0
        %v9488 = vpop.f32.mrb[0].mxu0
        %v9489 = vadd.f32 0.0, %v9488
        %v9490 = vpop.f32.mrb[0].mxu0
        %9491 = vdwg.mxu0
        %v9492 = vadd.f32 %v9025, %v9350
        %v9493 = vadd.f32 %v9026, %v9353
        %v9494 = vadd.f32 %v9027, %v9358
        %v9495 = vadd.f32 %v9028, %v9361
        %v9496 = vadd.f32 %v9029, %v9366
        %v9497 = vadd.f32 %v9030, %v9369
        %v9498 = vadd.f32 %v9031, %v9374
        %v9499 = vadd.f32 %v9032, %v9377
        %v9500 = vadd.f32 %v9033, %v9382
        %v9501 = vadd.f32 %v9034, %v9385
        %v9502 = vadd.f32 %v9035, %v9390
        %v9503 = vadd.f32 %v9036, %v9393
        %v9504 = vadd.f32 %v9037, %v9398
        %v9505 = vadd.f32 %v9038, %v9401
        %v9506 = vadd.f32 %v9039, %v9406
        %v9507 = vadd.f32 %v9040, %v9409
        %v9508 = vadd.f32 %v9041, %v9414
        %v9509 = vadd.f32 %v9042, %v9417
        %v9510 = vadd.f32 %v9043, %v9422
        %v9511 = vadd.f32 %v9044, %v9425
        %v9512 = vadd.f32 %v9045, %v9430
        %v9513 = vadd.f32 %v9046, %v9433
        %v9514 = vadd.f32 %v9047, %v9438
        %v9515 = vadd.f32 %v9048, %v9441
        %v9516 = vadd.f32 %v9049, %v9446
        %v9517 = vadd.f32 %v9050, %v9449
        %v9518 = vadd.f32 %v9051, %v9454
        %v9519 = vadd.f32 %v9052, %v9457
        %v9520 = vadd.f32 %v9053, %v9462
        %v9521 = vadd.f32 %v9054, %v9465
        %v9522 = vadd.f32 %v9055, %v9470
        %v9523 = vadd.f32 %v9056, %v9473
        %v9524 = vadd.f32 %v9057, %v9478
        %v9525 = vadd.f32 %v9058, %v9481
        %v9526 = vadd.f32 %v9059, %v9486
        %v9527 = vadd.f32 %v9060, %v9489
        %v9528 = vld [vmem:[#allocation3 + $0x10] sm:$0xf8]
        %s9529 = scalar_lea.vmem [#allocation9], 512
        %v9530 = vld [vmem:[%s9529] sm:$0xf]
        %v9531 = vld [vmem:[%s9529 + $0x4] sm:$0xf]
        %v9532 = vld [vmem:[%s9529 + $0x8] sm:$0xf]
        %v9533 = vld [vmem:[%s9529 + $0xc] sm:$0xf]
        %v9534 = vld [vmem:[%s9529 + $0x10] sm:$0xf]
        %v9535 = vld [vmem:[%s9529 + $0x14] sm:$0xf]
        %v9536 = vld [vmem:[%s9529 + $0x18] sm:$0xf]
        %v9537 = vld [vmem:[%s9529 + $0x1c] sm:$0xf]
        %v9538 = vld [vmem:[%s9529 + $0x20] sm:$0xf]
        %v9539 = vld [vmem:[%s9529 + $0x24] sm:$0xf]
        %v9540 = vld [vmem:[%s9529 + $0x28] sm:$0xf]
        %v9541 = vld [vmem:[%s9529 + $0x2c] sm:$0xf]
        %v9542 = vld [vmem:[%s9529 + $0x30] sm:$0xf]
        %v9543 = vld [vmem:[%s9529 + $0x34] sm:$0xf]
        %v9544 = vld [vmem:[%s9529 + $0x38] sm:$0xf]
        %v9545 = vld [vmem:[%s9529 + $0x3c] sm:$0xf]
        %v9548 = vrot.slane %v9528, 3
        %v9549 = vrot.slane %v8691, 3
        %v9550 = vsel %vm5713, %v9548, %v9549
        %v9551 = vrot.slane %v8692, 3
        %v9552 = vsel %vm5713, %v9549, %v9551
        %v9553 = vrot.slane %v8693, 3
        %v9554 = vsel %vm5713, %v9551, %v9553
        %v9555 = vrot.slane %v8694, 3
        %v9556 = vsel %vm5713, %v9553, %v9555
        %v9557 = vrot.slane %v8695, 3
        %v9558 = vsel %vm5713, %v9555, %v9557
        %v9559 = vrot.slane %v8696, 3
        %v9560 = vsel %vm5713, %v9557, %v9559
        %v9561 = vrot.slane %v8697, 3
        %v9562 = vsel %vm5713, %v9559, %v9561
        %v9563 = vrot.slane %v8698, 3
        %v9564 = vsel %vm5713, %v9561, %v9563
        %v9565 = vrot.slane %v8699, 3
        %v9566 = vsel %vm5713, %v9563, %v9565
        %v9567 = vrot.slane %v8700, 3
        %v9568 = vsel %vm5713, %v9565, %v9567
        %v9569 = vrot.slane %v8701, 3
        %v9570 = vsel %vm5713, %v9567, %v9569
        %v9571 = vrot.slane %v8702, 3
        %v9572 = vsel %vm5713, %v9569, %v9571
        %v9573 = vrot.slane %v8703, 3
        %v9574 = vsel %vm5713, %v9571, %v9573
        %v9575 = vrot.slane %v8704, 3
        %v9576 = vsel %vm5713, %v9573, %v9575
        %v9577 = vrot.slane %v8705, 3
        %v9578 = vsel %vm5713, %v9575, %v9577
        %v9579 = vrot.slane %v8706, 3
        %v9580 = vsel %vm5713, %v9577, %v9579
        %v9581 = vrot.slane %v8707, 3
        %v9582 = vsel %vm5713, %v9579, %v9581
        %v9583 = vrot.slane %v9061, 3
        %v9584 = vsel %vm5713, %v9581, %v9583
        %v9619 = vunpack.c.l.b16 %v9530
        %v9620 = vunpack.c.l.b16 %v9531
        %v9621 = vunpack.c.l.b16 %v9532
        %v9622 = vunpack.c.l.b16 %v9533
        %v9623 = vunpack.c.l.b16 %v9534
        %v9624 = vunpack.c.l.b16 %v9535
        %v9625 = vunpack.c.l.b16 %v9536
        %v9626 = vunpack.c.l.b16 %v9537
        %v9627 = vunpack.c.l.b16 %v9538
        %v9628 = vunpack.c.l.b16 %v9539
        %v9629 = vunpack.c.l.b16 %v9540
        %v9630 = vunpack.c.l.b16 %v9541
        %v9631 = vunpack.c.l.b16 %v9542
        %v9632 = vunpack.c.l.b16 %v9543
        %v9633 = vunpack.c.l.b16 %v9544
        %v9634 = vunpack.c.l.b16 %v9545
        %v9635 = vpack.c.b16 %v9620, %v9619
        %v9636 = vpack.c.b16 %v9622, %v9621
        %v9637 = vpack.c.b16 %v9624, %v9623
        %v9638 = vpack.c.b16 %v9626, %v9625
        %v9639 = vpack.c.b16 %v9628, %v9627
        %v9640 = vpack.c.b16 %v9630, %v9629
        %v9641 = vpack.c.b16 %v9632, %v9631
        %v9642 = vpack.c.b16 %v9634, %v9633
        %9651 = vmatprep.subr.bf16.mxu0 0
        %9652 = vmatpush1.bf16.msra.mxu0 %v9635
        %9653 = vmatprep.subr.bf16.mxu0 0
        %9654 = vmatpush1.bf16.msra.mxu0 %v9636
        %9655 = vmatprep.subr.bf16.mxu0 0
        %9656 = vmatpush1.bf16.msra.mxu0 %v9637
        %9657 = vmatprep.subr.bf16.mxu0 0
        %9658 = vmatpush1.bf16.msra.mxu0 %v9638
        %9659 = vmatprep.subr.bf16.mxu0 0
        %9660 = vmatpush1.bf16.msra.mxu0 %v9639
        %9661 = vmatprep.subr.bf16.mxu0 0
        %9662 = vmatpush1.bf16.msra.mxu0 %v9640
        %9663 = vmatprep.subr.bf16.mxu0 0
        %9664 = vmatpush1.bf16.msra.mxu0 %v9641
        %9665 = vmatprep.subr.bf16.mxu0 0
        %9666 = vmatpush1.bf16.msra.mxu0 %v9642
        %9667 = vmatprep.subr.bf16.mxu0 0
        %9668 = vmatpush1.bf16.msra.mxu0 0
        %9669 = vmatprep.subr.bf16.mxu0 0
        %9670 = vmatpush1.bf16.msra.mxu0 0
        %9671 = vmatprep.subr.bf16.mxu0 0
        %9672 = vmatpush1.bf16.msra.mxu0 0
        %9673 = vmatprep.subr.bf16.mxu0 0
        %9674 = vmatpush1.bf16.msra.mxu0 0
        %9675 = vmatprep.subr.bf16.mxu0 0
        %9676 = vmatpush1.bf16.msra.mxu0 0
        %9677 = vmatprep.subr.bf16.mxu0 0
        %9678 = vmatpush1.bf16.msra.mxu0 0
        %9679 = vmatprep.subr.bf16.mxu0 0
        %9680 = vmatpush1.bf16.msra.mxu0 0
        %9681 = vmatprep.subr.bf16.mxu0 0
        %9682 = vmatpush1.bf16.msra.mxu0 0
        %9683 = vmatprep.mubr.bf16.mxu0 0
        %9684 = vmatmul.mubr.bf16.gmra.mrb[0].mxu0 %v9550
        %v9685 = vpop.f32.mrb[0].mxu0
        %v9686 = vadd.f32 0.0, %v9685
        %v9687 = vpop.f32.mrb[0].mxu0
        %v9688 = vpop.f32.mrb[0].mxu0
        %v9689 = vadd.f32 0.0, %v9688
        %v9690 = vpop.f32.mrb[0].mxu0
        %9691 = vmatprep.mubr.bf16.mxu0 0
        %9692 = vmatmul.mubr.bf16.gmra.mrb[0].mxu0 %v9552
        %v9693 = vpop.f32.mrb[0].mxu0
        %v9694 = vadd.f32 0.0, %v9693
        %v9695 = vpop.f32.mrb[0].mxu0
        %v9696 = vpop.f32.mrb[0].mxu0
        %v9697 = vadd.f32 0.0, %v9696
        %v9698 = vpop.f32.mrb[0].mxu0
        %9699 = vmatprep.mubr.bf16.mxu0 0
        %9700 = vmatmul.mubr.bf16.gmra.mrb[0].mxu0 %v9554
        %v9701 = vpop.f32.mrb[0].mxu0
        %v9702 = vadd.f32 0.0, %v9701
        %v9703 = vpop.f32.mrb[0].mxu0
        %v9704 = vpop.f32.mrb[0].mxu0
        %v9705 = vadd.f32 0.0, %v9704
        %v9706 = vpop.f32.mrb[0].mxu0
        %9707 = vmatprep.mubr.bf16.mxu0 0
        %9708 = vmatmul.mubr.bf16.gmra.mrb[0].mxu0 %v9556
        %v9709 = vpop.f32.mrb[0].mxu0
        %v9710 = vadd.f32 0.0, %v9709
        %v9711 = vpop.f32.mrb[0].mxu0
        %v9712 = vpop.f32.mrb[0].mxu0
        %v9713 = vadd.f32 0.0, %v9712
        %v9714 = vpop.f32.mrb[0].mxu0
        %9715 = vmatprep.mubr.bf16.mxu0 0
        %9716 = vmatmul.mubr.bf16.gmra.mrb[0].mxu0 %v9558
        %v9717 = vpop.f32.mrb[0].mxu0
        %v9718 = vadd.f32 0.0, %v9717
        %v9719 = vpop.f32.mrb[0].mxu0
        %v9720 = vpop.f32.mrb[0].mxu0
        %v9721 = vadd.f32 0.0, %v9720
        %v9722 = vpop.f32.mrb[0].mxu0
        %9723 = vmatprep.mubr.bf16.mxu0 0
        %9724 = vmatmul.mubr.bf16.gmra.mrb[0].mxu0 %v9560
        %v9725 = vpop.f32.mrb[0].mxu0
        %v9726 = vadd.f32 0.0, %v9725
        %v9727 = vpop.f32.mrb[0].mxu0
        %v9728 = vpop.f32.mrb[0].mxu0
        %v9729 = vadd.f32 0.0, %v9728
        %v9730 = vpop.f32.mrb[0].mxu0
        %9731 = vmatprep.mubr.bf16.mxu0 0
        %9732 = vmatmul.mubr.bf16.gmra.mrb[0].mxu0 %v9562
        %v9733 = vpop.f32.mrb[0].mxu0
        %v9734 = vadd.f32 0.0, %v9733
        %v9735 = vpop.f32.mrb[0].mxu0
        %v9736 = vpop.f32.mrb[0].mxu0
        %v9737 = vadd.f32 0.0, %v9736
        %v9738 = vpop.f32.mrb[0].mxu0
        %9739 = vmatprep.mubr.bf16.mxu0 0
        %9740 = vmatmul.mubr.bf16.gmra.mrb[0].mxu0 %v9564
        %v9741 = vpop.f32.mrb[0].mxu0
        %v9742 = vadd.f32 0.0, %v9741
        %v9743 = vpop.f32.mrb[0].mxu0
        %v9744 = vpop.f32.mrb[0].mxu0
        %v9745 = vadd.f32 0.0, %v9744
        %v9746 = vpop.f32.mrb[0].mxu0
        %9747 = vmatprep.mubr.bf16.mxu0 0
        %9748 = vmatmul.mubr.bf16.gmra.mrb[0].mxu0 %v9566
        %v9749 = vpop.f32.mrb[0].mxu0
        %v9750 = vadd.f32 0.0, %v9749
        %v9751 = vpop.f32.mrb[0].mxu0
        %v9752 = vpop.f32.mrb[0].mxu0
        %v9753 = vadd.f32 0.0, %v9752
        %v9754 = vpop.f32.mrb[0].mxu0
        %9755 = vmatprep.mubr.bf16.mxu0 0
        %9756 = vmatmul.mubr.bf16.gmra.mrb[0].mxu0 %v9568
        %v9757 = vpop.f32.mrb[0].mxu0
        %v9758 = vadd.f32 0.0, %v9757
        %v9759 = vpop.f32.mrb[0].mxu0
        %v9760 = vpop.f32.mrb[0].mxu0
        %v9761 = vadd.f32 0.0, %v9760
        %v9762 = vpop.f32.mrb[0].mxu0
        %9763 = vmatprep.mubr.bf16.mxu0 0
        %9764 = vmatmul.mubr.bf16.gmra.mrb[0].mxu0 %v9570
        %v9765 = vpop.f32.mrb[0].mxu0
        %v9766 = vadd.f32 0.0, %v9765
        %v9767 = vpop.f32.mrb[0].mxu0
        %v9768 = vpop.f32.mrb[0].mxu0
        %v9769 = vadd.f32 0.0, %v9768
        %v9770 = vpop.f32.mrb[0].mxu0
        %9771 = vmatprep.mubr.bf16.mxu0 0
        %9772 = vmatmul.mubr.bf16.gmra.mrb[0].mxu0 %v9572
        %v9773 = vpop.f32.mrb[0].mxu0
        %v9774 = vadd.f32 0.0, %v9773
        %v9775 = vpop.f32.mrb[0].mxu0
        %v9776 = vpop.f32.mrb[0].mxu0
        %v9777 = vadd.f32 0.0, %v9776
        %v9778 = vpop.f32.mrb[0].mxu0
        %9779 = vmatprep.mubr.bf16.mxu0 0
        %9780 = vmatmul.mubr.bf16.gmra.mrb[0].mxu0 %v9574
        %v9781 = vpop.f32.mrb[0].mxu0
        %v9782 = vadd.f32 0.0, %v9781
        %v9783 = vpop.f32.mrb[0].mxu0
        %v9784 = vpop.f32.mrb[0].mxu0
        %v9785 = vadd.f32 0.0, %v9784
        %v9786 = vpop.f32.mrb[0].mxu0
        %9787 = vmatprep.mubr.bf16.mxu0 0
        %9788 = vmatmul.mubr.bf16.gmra.mrb[0].mxu0 %v9576
        %v9789 = vpop.f32.mrb[0].mxu0
        %v9790 = vadd.f32 0.0, %v9789
        %v9791 = vpop.f32.mrb[0].mxu0
        %v9792 = vpop.f32.mrb[0].mxu0
        %v9793 = vadd.f32 0.0, %v9792
        %v9794 = vpop.f32.mrb[0].mxu0
        %9795 = vmatprep.mubr.bf16.mxu0 0
        %9796 = vmatmul.mubr.bf16.gmra.mrb[0].mxu0 %v9578
        %v9797 = vpop.f32.mrb[0].mxu0
        %v9798 = vadd.f32 0.0, %v9797
        %v9799 = vpop.f32.mrb[0].mxu0
        %v9800 = vpop.f32.mrb[0].mxu0
        %v9801 = vadd.f32 0.0, %v9800
        %v9802 = vpop.f32.mrb[0].mxu0
        %9803 = vmatprep.mubr.bf16.mxu0 0
        %9804 = vmatmul.mubr.bf16.gmra.mrb[0].mxu0 %v9580
        %v9805 = vpop.f32.mrb[0].mxu0
        %v9806 = vadd.f32 0.0, %v9805
        %v9807 = vpop.f32.mrb[0].mxu0
        %v9808 = vpop.f32.mrb[0].mxu0
        %v9809 = vadd.f32 0.0, %v9808
        %v9810 = vpop.f32.mrb[0].mxu0
        %9811 = vmatprep.mubr.bf16.mxu0 0
        %9812 = vmatmul.mubr.bf16.gmra.mrb[0].mxu0 %v9582
        %v9813 = vpop.f32.mrb[0].mxu0
        %v9814 = vadd.f32 0.0, %v9813
        %v9815 = vpop.f32.mrb[0].mxu0
        %v9816 = vpop.f32.mrb[0].mxu0
        %v9817 = vadd.f32 0.0, %v9816
        %v9818 = vpop.f32.mrb[0].mxu0
        %9819 = vmatprep.mubr.bf16.mxu0 0
        %9820 = vmatmul.mubr.bf16.gmra.mrb[0].mxu0 %v9584
        %v9821 = vpop.f32.mrb[0].mxu0
        %v9822 = vadd.f32 0.0, %v9821
        %v9823 = vpop.f32.mrb[0].mxu0
        %v9824 = vpop.f32.mrb[0].mxu0
        %v9825 = vadd.f32 0.0, %v9824
        %v9826 = vpop.f32.mrb[0].mxu0
        %9827 = vdwg.mxu0
        %v9828 = vadd.f32 %v9492, %v9686
        %v9829 = vadd.f32 %v9493, %v9689
        %v9830 = vadd.f32 %v9494, %v9694
        %v9831 = vadd.f32 %v9495, %v9697
        %v9832 = vadd.f32 %v9496, %v9702
        %v9833 = vadd.f32 %v9497, %v9705
        %v9834 = vadd.f32 %v9498, %v9710
        %v9835 = vadd.f32 %v9499, %v9713
        %v9836 = vadd.f32 %v9500, %v9718
        %v9837 = vadd.f32 %v9501, %v9721
        %v9838 = vadd.f32 %v9502, %v9726
        %v9839 = vadd.f32 %v9503, %v9729
        %v9840 = vadd.f32 %v9504, %v9734
        %v9841 = vadd.f32 %v9505, %v9737
        %v9842 = vadd.f32 %v9506, %v9742
        %v9843 = vadd.f32 %v9507, %v9745
        %v9844 = vadd.f32 %v9508, %v9750
        %v9845 = vadd.f32 %v9509, %v9753
        %v9846 = vadd.f32 %v9510, %v9758
        %v9847 = vadd.f32 %v9511, %v9761
        %v9848 = vadd.f32 %v9512, %v9766
        %v9849 = vadd.f32 %v9513, %v9769
        %v9850 = vadd.f32 %v9514, %v9774
        %v9851 = vadd.f32 %v9515, %v9777
        %v9852 = vadd.f32 %v9516, %v9782
        %v9853 = vadd.f32 %v9517, %v9785
        %v9854 = vadd.f32 %v9518, %v9790
        %v9855 = vadd.f32 %v9519, %v9793
        %v9856 = vadd.f32 %v9520, %v9798
        %v9857 = vadd.f32 %v9521, %v9801
        %v9858 = vadd.f32 %v9522, %v9806
        %v9859 = vadd.f32 %v9523, %v9809
        %v9860 = vadd.f32 %v9524, %v9814
        %v9861 = vadd.f32 %v9525, %v9817
        %v9862 = vadd.f32 %v9526, %v9822
        %v9863 = vadd.f32 %v9527, %v9825
        %v9900 = vcombine.high %v9828, %v9828
        %v9902 = vunpack.c.l.s4 1983009808
        %v9903 = vunpack.c.0.s8 %v9902
        %v9904 = vlaneseq
        %v9905 = vshrl.u32 %v9904, 7
        %v9906 = vsub.s32 %v9903, %v9905
        %v9907 = vrot.slane %v9828, %v9906
        %v9909 = vunpack.c.l.s4 1983009808
        %v9910 = vunpack.c.0.s8 %v9909
        %v9911 = vlaneseq
        %v9912 = vshrl.u32 %v9911, 7
        %v9913 = vsub.s32 %v9910, %v9912
        %v9914 = vrot.slane %v9900, %v9913
        %v9915 = vcombine.high %v9907, %v9907
        %v9916 = vcombine.high %v9914, %v9914
        %v9917 = vcombine.high %v9829, %v9829
        %v9919 = vunpack.c.l.s4 1983009808
        %v9920 = vunpack.c.0.s8 %v9919
        %v9921 = vlaneseq
        %v9922 = vshrl.u32 %v9921, 7
        %v9923 = vsub.s32 %v9920, %v9922
        %v9924 = vrot.slane %v9829, %v9923
        %v9926 = vunpack.c.l.s4 1983009808
        %v9927 = vunpack.c.0.s8 %v9926
        %v9928 = vlaneseq
        %v9929 = vshrl.u32 %v9928, 7
        %v9930 = vsub.s32 %v9927, %v9929
        %v9931 = vrot.slane %v9917, %v9930
        %v9932 = vcombine.high %v9924, %v9924
        %v9933 = vcombine.high %v9931, %v9931
        %v9934 = vcombine.high %v9830, %v9830
        %v9936 = vunpack.c.l.s4 1983009808
        %v9937 = vunpack.c.0.s8 %v9936
        %v9938 = vlaneseq
        %v9939 = vshrl.u32 %v9938, 7
        %v9940 = vsub.s32 %v9937, %v9939
        %v9941 = vrot.slane %v9830, %v9940
        %v9943 = vunpack.c.l.s4 1983009808
        %v9944 = vunpack.c.0.s8 %v9943
        %v9945 = vlaneseq
        %v9946 = vshrl.u32 %v9945, 7
        %v9947 = vsub.s32 %v9944, %v9946
        %v9948 = vrot.slane %v9934, %v9947
        %v9949 = vcombine.high %v9941, %v9941
        %v9950 = vcombine.high %v9948, %v9948
        %v9951 = vcombine.high %v9831, %v9831
        %v9953 = vunpack.c.l.s4 1983009808
        %v9954 = vunpack.c.0.s8 %v9953
        %v9955 = vlaneseq
        %v9956 = vshrl.u32 %v9955, 7
        %v9957 = vsub.s32 %v9954, %v9956
        %v9958 = vrot.slane %v9831, %v9957
        %v9960 = vunpack.c.l.s4 1983009808
        %v9961 = vunpack.c.0.s8 %v9960
        %v9962 = vlaneseq
        %v9963 = vshrl.u32 %v9962, 7
        %v9964 = vsub.s32 %v9961, %v9963
        %v9965 = vrot.slane %v9951, %v9964
        %v9966 = vcombine.high %v9958, %v9958
        %v9967 = vcombine.high %v9965, %v9965
        %v9968 = vcombine.high %v9832, %v9832
        %v9970 = vunpack.c.l.s4 1983009808
        %v9971 = vunpack.c.0.s8 %v9970
        %v9972 = vlaneseq
        %v9973 = vshrl.u32 %v9972, 7
        %v9974 = vsub.s32 %v9971, %v9973
        %v9975 = vrot.slane %v9832, %v9974
        %v9977 = vunpack.c.l.s4 1983009808
        %v9978 = vunpack.c.0.s8 %v9977
        %v9979 = vlaneseq
        %v9980 = vshrl.u32 %v9979, 7
        %v9981 = vsub.s32 %v9978, %v9980
        %v9982 = vrot.slane %v9968, %v9981
        %v9983 = vcombine.high %v9982, %v9982
        %v9984 = vcombine.high %v9833, %v9833
        %v9986 = vunpack.c.l.s4 1983009808
        %v9987 = vunpack.c.0.s8 %v9986
        %v9988 = vlaneseq
        %v9989 = vshrl.u32 %v9988, 7
        %v9990 = vsub.s32 %v9987, %v9989
        %v9991 = vrot.slane %v9833, %v9990
        %v9993 = vunpack.c.l.s4 1983009808
        %v9994 = vunpack.c.0.s8 %v9993
        %v9995 = vlaneseq
        %v9996 = vshrl.u32 %v9995, 7
        %v9997 = vsub.s32 %v9994, %v9996
        %v9998 = vrot.slane %v9984, %v9997
        %v9999 = vcombine.high %v9991, %v9991
        %v10000 = vcombine.high %v9998, %v9998
        %v10001 = vcombine.high %v9834, %v9834
        %v10003 = vunpack.c.l.s4 1983009808
        %v10004 = vunpack.c.0.s8 %v10003
        %v10005 = vlaneseq
        %v10006 = vshrl.u32 %v10005, 7
        %v10007 = vsub.s32 %v10004, %v10006
        %v10008 = vrot.slane %v9834, %v10007
        %v10010 = vunpack.c.l.s4 1983009808
        %v10011 = vunpack.c.0.s8 %v10010
        %v10012 = vlaneseq
        %v10013 = vshrl.u32 %v10012, 7
        %v10014 = vsub.s32 %v10011, %v10013
        %v10015 = vrot.slane %v10001, %v10014
        %v10016 = vcombine.high %v10008, %v10008
        %v10017 = vcombine.high %v10015, %v10015
        %v10018 = vcombine.high %v9835, %v9835
        %v10020 = vunpack.c.l.s4 1983009808
        %v10021 = vunpack.c.0.s8 %v10020
        %v10022 = vlaneseq
        %v10023 = vshrl.u32 %v10022, 7
        %v10024 = vsub.s32 %v10021, %v10023
        %v10025 = vrot.slane %v9835, %v10024
        %v10027 = vunpack.c.l.s4 1983009808
        %v10028 = vunpack.c.0.s8 %v10027
        %v10029 = vlaneseq
        %v10030 = vshrl.u32 %v10029, 7
        %v10031 = vsub.s32 %v10028, %v10030
        %v10032 = vrot.slane %v10018, %v10031
        %v10033 = vcombine.high %v10025, %v10025
        %v10034 = vcombine.high %v10032, %v10032
        %v10035 = vcombine.high %v9836, %v9836
        %v10037 = vunpack.c.l.s4 1983009808
        %v10038 = vunpack.c.0.s8 %v10037
        %v10039 = vlaneseq
        %v10040 = vshrl.u32 %v10039, 7
        %v10041 = vsub.s32 %v10038, %v10040
        %v10042 = vrot.slane %v9836, %v10041
        %v10044 = vunpack.c.l.s4 1983009808
        %v10045 = vunpack.c.0.s8 %v10044
        %v10046 = vlaneseq
        %v10047 = vshrl.u32 %v10046, 7
        %v10048 = vsub.s32 %v10045, %v10047
        %v10049 = vrot.slane %v10035, %v10048
        %v10050 = vcombine.high %v10042, %v10042
        %v10051 = vcombine.high %v9837, %v9837
        %v10053 = vunpack.c.l.s4 1983009808
        %v10054 = vunpack.c.0.s8 %v10053
        %v10055 = vlaneseq
        %v10056 = vshrl.u32 %v10055, 7
        %v10057 = vsub.s32 %v10054, %v10056
        %v10058 = vrot.slane %v9837, %v10057
        %v10060 = vunpack.c.l.s4 1983009808
        %v10061 = vunpack.c.0.s8 %v10060
        %v10062 = vlaneseq
        %v10063 = vshrl.u32 %v10062, 7
        %v10064 = vsub.s32 %v10061, %v10063
        %v10065 = vrot.slane %v10051, %v10064
        %v10066 = vcombine.high %v10058, %v10058
        %v10067 = vcombine.high %v10065, %v10065
        %v10068 = vcombine.high %v9838, %v9838
        %v10070 = vunpack.c.l.s4 1983009808
        %v10071 = vunpack.c.0.s8 %v10070
        %v10072 = vlaneseq
        %v10073 = vshrl.u32 %v10072, 7
        %v10074 = vsub.s32 %v10071, %v10073
        %v10075 = vrot.slane %v9838, %v10074
        %v10077 = vunpack.c.l.s4 1983009808
        %v10078 = vunpack.c.0.s8 %v10077
        %v10079 = vlaneseq
        %v10080 = vshrl.u32 %v10079, 7
        %v10081 = vsub.s32 %v10078, %v10080
        %v10082 = vrot.slane %v10068, %v10081
        %v10083 = vcombine.high %v10075, %v10075
        %v10084 = vcombine.high %v10082, %v10082
        %v10085 = vcombine.high %v9839, %v9839
        %v10087 = vunpack.c.l.s4 1983009808
        %v10088 = vunpack.c.0.s8 %v10087
        %v10089 = vlaneseq
        %v10090 = vshrl.u32 %v10089, 7
        %v10091 = vsub.s32 %v10088, %v10090
        %v10092 = vrot.slane %v9839, %v10091
        %v10094 = vunpack.c.l.s4 1983009808
        %v10095 = vunpack.c.0.s8 %v10094
        %v10096 = vlaneseq
        %v10097 = vshrl.u32 %v10096, 7
        %v10098 = vsub.s32 %v10095, %v10097
        %v10099 = vrot.slane %v10085, %v10098
        %v10100 = vcombine.high %v10092, %v10092
        %v10101 = vcombine.high %v10099, %v10099
        %v10102 = vcombine.high %v9840, %v9840
        %v10104 = vunpack.c.l.s4 1983009808
        %v10105 = vunpack.c.0.s8 %v10104
        %v10106 = vlaneseq
        %v10107 = vshrl.u32 %v10106, 7
        %v10108 = vsub.s32 %v10105, %v10107
        %v10109 = vrot.slane %v9840, %v10108
        %v10111 = vunpack.c.l.s4 1983009808
        %v10112 = vunpack.c.0.s8 %v10111
        %v10113 = vlaneseq
        %v10114 = vshrl.u32 %v10113, 7
        %v10115 = vsub.s32 %v10112, %v10114
        %v10116 = vrot.slane %v10102, %v10115
        %v10117 = vcombine.high %v10109, %v10109
        %v10118 = vcombine.high %v10116, %v10116
        %v10119 = vcombine.high %v9841, %v9841
        %v10121 = vunpack.c.l.s4 1983009808
        %v10122 = vunpack.c.0.s8 %v10121
        %v10123 = vlaneseq
        %v10124 = vshrl.u32 %v10123, 7
        %v10125 = vsub.s32 %v10122, %v10124
        %v10126 = vrot.slane %v9841, %v10125
        %v10128 = vunpack.c.l.s4 1983009808
        %v10129 = vunpack.c.0.s8 %v10128
        %v10130 = vlaneseq
        %v10131 = vshrl.u32 %v10130, 7
        %v10132 = vsub.s32 %v10129, %v10131
        %v10133 = vrot.slane %v10119, %v10132
        %v10134 = vcombine.high %v10133, %v10133
        %v10135 = vcombine.high %v9842, %v9842
        %v10137 = vunpack.c.l.s4 1983009808
        %v10138 = vunpack.c.0.s8 %v10137
        %v10139 = vlaneseq
        %v10140 = vshrl.u32 %v10139, 7
        %v10141 = vsub.s32 %v10138, %v10140
        %v10142 = vrot.slane %v9842, %v10141
        %v10144 = vunpack.c.l.s4 1983009808
        %v10145 = vunpack.c.0.s8 %v10144
        %v10146 = vlaneseq
        %v10147 = vshrl.u32 %v10146, 7
        %v10148 = vsub.s32 %v10145, %v10147
        %v10149 = vrot.slane %v10135, %v10148
        %v10150 = vcombine.high %v10142, %v10142
        %v10151 = vcombine.high %v10149, %v10149
        %v10152 = vcombine.high %v9843, %v9843
        %v10154 = vunpack.c.l.s4 1983009808
        %v10155 = vunpack.c.0.s8 %v10154
        %v10156 = vlaneseq
        %v10157 = vshrl.u32 %v10156, 7
        %v10158 = vsub.s32 %v10155, %v10157
        %v10159 = vrot.slane %v9843, %v10158
        %v10161 = vunpack.c.l.s4 1983009808
        %v10162 = vunpack.c.0.s8 %v10161
        %v10163 = vlaneseq
        %v10164 = vshrl.u32 %v10163, 7
        %v10165 = vsub.s32 %v10162, %v10164
        %v10166 = vrot.slane %v10152, %v10165
        %v10167 = vcombine.high %v10159, %v10159
        %v10168 = vcombine.high %v10166, %v10166
        %v10169 = vcombine.high %v9844, %v9844
        %v10171 = vunpack.c.l.s4 1983009808
        %v10172 = vunpack.c.0.s8 %v10171
        %v10173 = vlaneseq
        %v10174 = vshrl.u32 %v10173, 7
        %v10175 = vsub.s32 %v10172, %v10174
        %v10176 = vrot.slane %v9844, %v10175
        %v10178 = vunpack.c.l.s4 1983009808
        %v10179 = vunpack.c.0.s8 %v10178
        %v10180 = vlaneseq
        %v10181 = vshrl.u32 %v10180, 7
        %v10182 = vsub.s32 %v10179, %v10181
        %v10183 = vrot.slane %v10169, %v10182
        %v10184 = vcombine.high %v10176, %v10176
        %v10185 = vcombine.high %v10183, %v10183
        %v10186 = vcombine.high %v9845, %v9845
        %v10188 = vunpack.c.l.s4 1983009808
        %v10189 = vunpack.c.0.s8 %v10188
        %v10190 = vlaneseq
        %v10191 = vshrl.u32 %v10190, 7
        %v10192 = vsub.s32 %v10189, %v10191
        %v10193 = vrot.slane %v9845, %v10192
        %v10195 = vunpack.c.l.s4 1983009808
        %v10196 = vunpack.c.0.s8 %v10195
        %v10197 = vlaneseq
        %v10198 = vshrl.u32 %v10197, 7
        %v10199 = vsub.s32 %v10196, %v10198
        %v10200 = vrot.slane %v10186, %v10199
        %v10201 = vcombine.high %v10193, %v10193
        %v10202 = vcombine.high %v9846, %v9846
        %v10204 = vunpack.c.l.s4 1983009808
        %v10205 = vunpack.c.0.s8 %v10204
        %v10206 = vlaneseq
        %v10207 = vshrl.u32 %v10206, 7
        %v10208 = vsub.s32 %v10205, %v10207
        %v10209 = vrot.slane %v9846, %v10208
        %v10211 = vunpack.c.l.s4 1983009808
        %v10212 = vunpack.c.0.s8 %v10211
        %v10213 = vlaneseq
        %v10214 = vshrl.u32 %v10213, 7
        %v10215 = vsub.s32 %v10212, %v10214
        %v10216 = vrot.slane %v10202, %v10215
        %v10217 = vcombine.high %v10209, %v10209
        %v10218 = vcombine.high %v10216, %v10216
        %v10219 = vcombine.high %v9847, %v9847
        %v10221 = vunpack.c.l.s4 1983009808
        %v10222 = vunpack.c.0.s8 %v10221
        %v10223 = vlaneseq
        %v10224 = vshrl.u32 %v10223, 7
        %v10225 = vsub.s32 %v10222, %v10224
        %v10226 = vrot.slane %v9847, %v10225
        %v10228 = vunpack.c.l.s4 1983009808
        %v10229 = vunpack.c.0.s8 %v10228
        %v10230 = vlaneseq
        %v10231 = vshrl.u32 %v10230, 7
        %v10232 = vsub.s32 %v10229, %v10231
        %v10233 = vrot.slane %v10219, %v10232
        %v10234 = vcombine.high %v10226, %v10226
        %v10235 = vcombine.high %v10233, %v10233
        %v10236 = vcombine.high %v9848, %v9848
        %v10238 = vunpack.c.l.s4 1983009808
        %v10239 = vunpack.c.0.s8 %v10238
        %v10240 = vlaneseq
        %v10241 = vshrl.u32 %v10240, 7
        %v10242 = vsub.s32 %v10239, %v10241
        %v10243 = vrot.slane %v9848, %v10242
        %v10245 = vunpack.c.l.s4 1983009808
        %v10246 = vunpack.c.0.s8 %v10245
        %v10247 = vlaneseq
        %v10248 = vshrl.u32 %v10247, 7
        %v10249 = vsub.s32 %v10246, %v10248
        %v10250 = vrot.slane %v10236, %v10249
        %v10251 = vcombine.high %v10243, %v10243
        %v10252 = vcombine.high %v10250, %v10250
        %v10253 = vcombine.high %v9849, %v9849
        %v10255 = vunpack.c.l.s4 1983009808
        %v10256 = vunpack.c.0.s8 %v10255
        %v10257 = vlaneseq
        %v10258 = vshrl.u32 %v10257, 7
        %v10259 = vsub.s32 %v10256, %v10258
        %v10260 = vrot.slane %v9849, %v10259
        %v10262 = vunpack.c.l.s4 1983009808
        %v10263 = vunpack.c.0.s8 %v10262
        %v10264 = vlaneseq
        %v10265 = vshrl.u32 %v10264, 7
        %v10266 = vsub.s32 %v10263, %v10265
        %v10267 = vrot.slane %v10253, %v10266
        %v10268 = vcombine.high %v10260, %v10260
        %v10269 = vcombine.high %v10267, %v10267
        %v10270 = vcombine.high %v9850, %v9850
        %v10272 = vunpack.c.l.s4 1983009808
        %v10273 = vunpack.c.0.s8 %v10272
        %v10274 = vlaneseq
        %v10275 = vshrl.u32 %v10274, 7
        %v10276 = vsub.s32 %v10273, %v10275
        %v10277 = vrot.slane %v9850, %v10276
        %v10279 = vunpack.c.l.s4 1983009808
        %v10280 = vunpack.c.0.s8 %v10279
        %v10281 = vlaneseq
        %v10282 = vshrl.u32 %v10281, 7
        %v10283 = vsub.s32 %v10280, %v10282
        %v10284 = vrot.slane %v10270, %v10283
        %v10285 = vcombine.high %v10284, %v10284
        %v10286 = vcombine.high %v9851, %v9851
        %v10288 = vunpack.c.l.s4 1983009808
        %v10289 = vunpack.c.0.s8 %v10288
        %v10290 = vlaneseq
        %v10291 = vshrl.u32 %v10290, 7
        %v10292 = vsub.s32 %v10289, %v10291
        %v10293 = vrot.slane %v9851, %v10292
        %v10295 = vunpack.c.l.s4 1983009808
        %v10296 = vunpack.c.0.s8 %v10295
        %v10297 = vlaneseq
        %v10298 = vshrl.u32 %v10297, 7
        %v10299 = vsub.s32 %v10296, %v10298
        %v10300 = vrot.slane %v10286, %v10299
        %v10301 = vcombine.high %v10293, %v10293
        %v10302 = vcombine.high %v10300, %v10300
        %v10303 = vcombine.high %v9852, %v9852
        %v10305 = vunpack.c.l.s4 1983009808
        %v10306 = vunpack.c.0.s8 %v10305
        %v10307 = vlaneseq
        %v10308 = vshrl.u32 %v10307, 7
        %v10309 = vsub.s32 %v10306, %v10308
        %v10310 = vrot.slane %v9852, %v10309
        %v10312 = vunpack.c.l.s4 1983009808
        %v10313 = vunpack.c.0.s8 %v10312
        %v10314 = vlaneseq
        %v10315 = vshrl.u32 %v10314, 7
        %v10316 = vsub.s32 %v10313, %v10315
        %v10317 = vrot.slane %v10303, %v10316
        %v10318 = vcombine.high %v10310, %v10310
        %v10319 = vcombine.high %v10317, %v10317
        %v10320 = vcombine.high %v9853, %v9853
        %v10322 = vunpack.c.l.s4 1983009808
        %v10323 = vunpack.c.0.s8 %v10322
        %v10324 = vlaneseq
        %v10325 = vshrl.u32 %v10324, 7
        %v10326 = vsub.s32 %v10323, %v10325
        %v10327 = vrot.slane %v9853, %v10326
        %v10329 = vunpack.c.l.s4 1983009808
        %v10330 = vunpack.c.0.s8 %v10329
        %v10331 = vlaneseq
        %v10332 = vshrl.u32 %v10331, 7
        %v10333 = vsub.s32 %v10330, %v10332
        %v10334 = vrot.slane %v10320, %v10333
        %v10335 = vcombine.high %v10327, %v10327
        %v10336 = vcombine.high %v10334, %v10334
        %v10337 = vcombine.high %v9854, %v9854
        %v10339 = vunpack.c.l.s4 1983009808
        %v10340 = vunpack.c.0.s8 %v10339
        %v10341 = vlaneseq
        %v10342 = vshrl.u32 %v10341, 7
        %v10343 = vsub.s32 %v10340, %v10342
        %v10344 = vrot.slane %v9854, %v10343
        %v10346 = vunpack.c.l.s4 1983009808
        %v10347 = vunpack.c.0.s8 %v10346
        %v10348 = vlaneseq
        %v10349 = vshrl.u32 %v10348, 7
        %v10350 = vsub.s32 %v10347, %v10349
        %v10351 = vrot.slane %v10337, %v10350
        %v10352 = vcombine.high %v10344, %v10344
        %v10353 = vcombine.high %v9855, %v9855
        %v10355 = vunpack.c.l.s4 1983009808
        %v10356 = vunpack.c.0.s8 %v10355
        %v10357 = vlaneseq
        %v10358 = vshrl.u32 %v10357, 7
        %v10359 = vsub.s32 %v10356, %v10358
        %v10360 = vrot.slane %v9855, %v10359
        %v10362 = vunpack.c.l.s4 1983009808
        %v10363 = vunpack.c.0.s8 %v10362
        %v10364 = vlaneseq
        %v10365 = vshrl.u32 %v10364, 7
        %v10366 = vsub.s32 %v10363, %v10365
        %v10367 = vrot.slane %v10353, %v10366
        %v10368 = vcombine.high %v10360, %v10360
        %v10369 = vcombine.high %v10367, %v10367
        %v10370 = vcombine.high %v9856, %v9856
        %v10372 = vunpack.c.l.s4 1983009808
        %v10373 = vunpack.c.0.s8 %v10372
        %v10374 = vlaneseq
        %v10375 = vshrl.u32 %v10374, 7
        %v10376 = vsub.s32 %v10373, %v10375
        %v10377 = vrot.slane %v9856, %v10376
        %v10379 = vunpack.c.l.s4 1983009808
        %v10380 = vunpack.c.0.s8 %v10379
        %v10381 = vlaneseq
        %v10382 = vshrl.u32 %v10381, 7
        %v10383 = vsub.s32 %v10380, %v10382
        %v10384 = vrot.slane %v10370, %v10383
        %v10385 = vcombine.high %v10377, %v10377
        %v10386 = vcombine.high %v10384, %v10384
        %v10387 = vcombine.high %v9857, %v9857
        %v10389 = vunpack.c.l.s4 1983009808
        %v10390 = vunpack.c.0.s8 %v10389
        %v10391 = vlaneseq
        %v10392 = vshrl.u32 %v10391, 7
        %v10393 = vsub.s32 %v10390, %v10392
        %v10394 = vrot.slane %v9857, %v10393
        %v10396 = vunpack.c.l.s4 1983009808
        %v10397 = vunpack.c.0.s8 %v10396
        %v10398 = vlaneseq
        %v10399 = vshrl.u32 %v10398, 7
        %v10400 = vsub.s32 %v10397, %v10399
        %v10401 = vrot.slane %v10387, %v10400
        %v10402 = vcombine.high %v10394, %v10394
        %v10403 = vcombine.high %v10401, %v10401
        %v10404 = vcombine.high %v9858, %v9858
        %v10406 = vunpack.c.l.s4 1983009808
        %v10407 = vunpack.c.0.s8 %v10406
        %v10408 = vlaneseq
        %v10409 = vshrl.u32 %v10408, 7
        %v10410 = vsub.s32 %v10407, %v10409
        %v10411 = vrot.slane %v9858, %v10410
        %v10413 = vunpack.c.l.s4 1983009808
        %v10414 = vunpack.c.0.s8 %v10413
        %v10415 = vlaneseq
        %v10416 = vshrl.u32 %v10415, 7
        %v10417 = vsub.s32 %v10414, %v10416
        %v10418 = vrot.slane %v10404, %v10417
        %v10419 = vcombine.high %v10411, %v10411
        %v10420 = vcombine.high %v10418, %v10418
        %v10421 = vcombine.high %v9859, %v9859
        %v10423 = vunpack.c.l.s4 1983009808
        %v10424 = vunpack.c.0.s8 %v10423
        %v10425 = vlaneseq
        %v10426 = vshrl.u32 %v10425, 7
        %v10427 = vsub.s32 %v10424, %v10426
        %v10428 = vrot.slane %v9859, %v10427
        %v10430 = vunpack.c.l.s4 1983009808
        %v10431 = vunpack.c.0.s8 %v10430
        %v10432 = vlaneseq
        %v10433 = vshrl.u32 %v10432, 7
        %v10434 = vsub.s32 %v10431, %v10433
        %v10435 = vrot.slane %v10421, %v10434
        %v10436 = vcombine.high %v10435, %v10435
        %v10437 = vcombine.high %v9860, %v9860
        %v10439 = vunpack.c.l.s4 1983009808
        %v10440 = vunpack.c.0.s8 %v10439
        %v10441 = vlaneseq
        %v10442 = vshrl.u32 %v10441, 7
        %v10443 = vsub.s32 %v10440, %v10442
        %v10444 = vrot.slane %v9860, %v10443
        %v10446 = vunpack.c.l.s4 1983009808
        %v10447 = vunpack.c.0.s8 %v10446
        %v10448 = vlaneseq
        %v10449 = vshrl.u32 %v10448, 7
        %v10450 = vsub.s32 %v10447, %v10449
        %v10451 = vrot.slane %v10437, %v10450
        %v10452 = vcombine.high %v10444, %v10444
        %v10453 = vcombine.high %v10451, %v10451
        %v10454 = vcombine.high %v9861, %v9861
        %v10456 = vunpack.c.l.s4 1983009808
        %v10457 = vunpack.c.0.s8 %v10456
        %v10458 = vlaneseq
        %v10459 = vshrl.u32 %v10458, 7
        %v10460 = vsub.s32 %v10457, %v10459
        %v10461 = vrot.slane %v9861, %v10460
        %v10463 = vunpack.c.l.s4 1983009808
        %v10464 = vunpack.c.0.s8 %v10463
        %v10465 = vlaneseq
        %v10466 = vshrl.u32 %v10465, 7
        %v10467 = vsub.s32 %v10464, %v10466
        %v10468 = vrot.slane %v10454, %v10467
        %v10469 = vcombine.high %v10461, %v10461
        %v10470 = vcombine.high %v10468, %v10468
        %v10471 = vcombine.high %v9862, %v9862
        %v10473 = vunpack.c.l.s4 1983009808
        %v10474 = vunpack.c.0.s8 %v10473
        %v10475 = vlaneseq
        %v10476 = vshrl.u32 %v10475, 7
        %v10477 = vsub.s32 %v10474, %v10476
        %v10478 = vrot.slane %v9862, %v10477
        %v10480 = vunpack.c.l.s4 1983009808
        %v10481 = vunpack.c.0.s8 %v10480
        %v10482 = vlaneseq
        %v10483 = vshrl.u32 %v10482, 7
        %v10484 = vsub.s32 %v10481, %v10483
        %v10485 = vrot.slane %v10471, %v10484
        %v10486 = vcombine.high %v10478, %v10478
        %v10487 = vcombine.high %v10485, %v10485
        %v10488 = vcombine.high %v9863, %v9863
        %v10490 = vunpack.c.l.s4 1983009808
        %v10491 = vunpack.c.0.s8 %v10490
        %v10492 = vlaneseq
        %v10493 = vshrl.u32 %v10492, 7
        %v10494 = vsub.s32 %v10491, %v10493
        %v10495 = vrot.slane %v9863, %v10494
        %v10497 = vunpack.c.l.s4 1983009808
        %v10498 = vunpack.c.0.s8 %v10497
        %v10499 = vlaneseq
        %v10500 = vshrl.u32 %v10499, 7
        %v10501 = vsub.s32 %v10498, %v10500
        %v10502 = vrot.slane %v10488, %v10501
        %v10503 = vcombine.high %v10495, %v10495
        %v10632 = vmul.f32 %v9907, 0.1
        %v10633 = vmul.f32 %v9915, 0.1
        %v10634 = vmul.f32 %v9914, 0.1
        %v10635 = vmul.f32 %v9916, 0.1
        %v10636 = vmul.f32 %v9924, 0.1
        %v10637 = vmul.f32 %v9932, 0.1
        %v10638 = vmul.f32 %v9931, 0.1
        %v10639 = vmul.f32 %v9933, 0.1
        %v10640 = vmul.f32 %v9949, 0.1
        %v10641 = vmul.f32 %v9948, 0.1
        %v10642 = vmul.f32 %v9950, 0.1
        %v10643 = vmul.f32 %v9958, 0.1
        %v10644 = vmul.f32 %v9966, 0.1
        %v10645 = vmul.f32 %v9965, 0.1
        %v10646 = vmul.f32 %v9967, 0.1
        %v10647 = vmul.f32 %v9975, 0.1
        %v10648 = vmul.f32 %v9982, 0.1
        %v10649 = vmul.f32 %v9983, 0.1
        %v10650 = vmul.f32 %v9991, 0.1
        %v10651 = vmul.f32 %v9999, 0.1
        %v10652 = vmul.f32 %v9998, 0.1
        %v10653 = vmul.f32 %v10000, 0.1
        %v10654 = vmul.f32 %v10008, 0.1
        %v10655 = vmul.f32 %v10016, 0.1
        %v10656 = vmul.f32 %v10017, 0.1
        %v10657 = vmul.f32 %v10025, 0.1
        %v10658 = vmul.f32 %v10033, 0.1
        %v10659 = vmul.f32 %v10032, 0.1
        %v10660 = vmul.f32 %v10034, 0.1
        %v10661 = vmul.f32 %v10042, 0.1
        %v10662 = vmul.f32 %v10050, 0.1
        %v10663 = vmul.f32 %v10049, 0.1
        %v10664 = vmul.f32 %v10058, 0.1
        %v10665 = vmul.f32 %v10066, 0.1
        %v10666 = vmul.f32 %v10065, 0.1
        %v10667 = vmul.f32 %v10067, 0.1
        %v10668 = vmul.f32 %v10075, 0.1
        %v10669 = vmul.f32 %v10083, 0.1
        %v10670 = vmul.f32 %v10082, 0.1
        %v10671 = vmul.f32 %v10084, 0.1
        %v10672 = vmul.f32 %v10100, 0.1
        %v10673 = vmul.f32 %v10099, 0.1
        %v10674 = vmul.f32 %v10101, 0.1
        %v10675 = vmul.f32 %v10109, 0.1
        %v10676 = vmul.f32 %v10117, 0.1
        %v10677 = vmul.f32 %v10116, 0.1
        %v10678 = vmul.f32 %v10118, 0.1
        %v10679 = vmul.f32 %v10126, 0.1
        %v10680 = vmul.f32 %v10133, 0.1
        %v10681 = vmul.f32 %v10134, 0.1
        %v10682 = vmul.f32 %v10142, 0.1
        %v10683 = vmul.f32 %v10150, 0.1
        %v10684 = vmul.f32 %v10149, 0.1
        %v10685 = vmul.f32 %v10151, 0.1
        %v10686 = vmul.f32 %v10159, 0.1
        %v10687 = vmul.f32 %v10167, 0.1
        %v10688 = vmul.f32 %v10168, 0.1
        %v10689 = vmul.f32 %v10176, 0.1
        %v10690 = vmul.f32 %v10184, 0.1
        %v10691 = vmul.f32 %v10183, 0.1
        %v10692 = vmul.f32 %v10185, 0.1
        %v10693 = vmul.f32 %v10193, 0.1
        %v10694 = vmul.f32 %v10201, 0.1
        %v10695 = vmul.f32 %v10200, 0.1
        %v10696 = vmul.f32 %v10209, 0.1
        %v10697 = vmul.f32 %v10217, 0.1
        %v10698 = vmul.f32 %v10216, 0.1
        %v10699 = vmul.f32 %v10218, 0.1
        %v10700 = vmul.f32 %v10226, 0.1
        %v10701 = vmul.f32 %v10234, 0.1
        %v10702 = vmul.f32 %v10233, 0.1
        %v10703 = vmul.f32 %v10235, 0.1
        %v10704 = vmul.f32 %v10251, 0.1
        %v10705 = vmul.f32 %v10250, 0.1
        %v10706 = vmul.f32 %v10252, 0.1
        %v10707 = vmul.f32 %v10260, 0.1
        %v10708 = vmul.f32 %v10268, 0.1
        %v10709 = vmul.f32 %v10267, 0.1
        %v10710 = vmul.f32 %v10269, 0.1
        %v10711 = vmul.f32 %v10277, 0.1
        %v10712 = vmul.f32 %v10284, 0.1
        %v10713 = vmul.f32 %v10285, 0.1
        %v10714 = vmul.f32 %v10293, 0.1
        %v10715 = vmul.f32 %v10301, 0.1
        %v10716 = vmul.f32 %v10300, 0.1
        %v10717 = vmul.f32 %v10302, 0.1
        %v10718 = vmul.f32 %v10310, 0.1
        %v10719 = vmul.f32 %v10318, 0.1
        %v10720 = vmul.f32 %v10319, 0.1
        %v10721 = vmul.f32 %v10327, 0.1
        %v10722 = vmul.f32 %v10335, 0.1
        %v10723 = vmul.f32 %v10334, 0.1
        %v10724 = vmul.f32 %v10336, 0.1
        %v10725 = vmul.f32 %v10344, 0.1
        %v10726 = vmul.f32 %v10352, 0.1
        %v10727 = vmul.f32 %v10351, 0.1
        %v10728 = vmul.f32 %v10360, 0.1
        %v10729 = vmul.f32 %v10368, 0.1
        %v10730 = vmul.f32 %v10367, 0.1
        %v10731 = vmul.f32 %v10369, 0.1
        %v10732 = vmul.f32 %v10377, 0.1
        %v10733 = vmul.f32 %v10385, 0.1
        %v10734 = vmul.f32 %v10384, 0.1
        %v10735 = vmul.f32 %v10386, 0.1
        %v10736 = vmul.f32 %v10402, 0.1
        %v10737 = vmul.f32 %v10401, 0.1
        %v10738 = vmul.f32 %v10403, 0.1
        %v10739 = vmul.f32 %v10411, 0.1
        %v10740 = vmul.f32 %v10419, 0.1
        %v10741 = vmul.f32 %v10418, 0.1
        %v10742 = vmul.f32 %v10420, 0.1
        %v10743 = vmul.f32 %v10428, 0.1
        %v10744 = vmul.f32 %v10435, 0.1
        %v10745 = vmul.f32 %v10436, 0.1
        %v10746 = vmul.f32 %v10444, 0.1
        %v10747 = vmul.f32 %v10452, 0.1
        %v10748 = vmul.f32 %v10451, 0.1
        %v10749 = vmul.f32 %v10453, 0.1
        %v10750 = vmul.f32 %v10461, 0.1
        %v10751 = vmul.f32 %v10469, 0.1
        %v10752 = vmul.f32 %v10470, 0.1
        %v10753 = vmul.f32 %v10478, 0.1
        %v10754 = vmul.f32 %v10486, 0.1
        %v10755 = vmul.f32 %v10485, 0.1
        %v10756 = vmul.f32 %v10487, 0.1
        %v10757 = vmul.f32 %v10495, 0.1
        %v10758 = vmul.f32 %v10503, 0.1
        %v10759 = vmul.f32 %v10502, 0.1
        %v10888 = vcombine.low %v10632, %v10633
        %v10889 = vcombine.low %v10634, %v10635
        %v10891 = vunpack.c.l.s4 1983009808
        %v10892 = vunpack.c.0.s8 %v10891
        %v10893 = vlaneseq
        %v10894 = vshrl.u32 %v10893, 7
        %v10895 = vsub.s32 %v10892, %v10894
        %v10896 = vrot.slane %v10888, %v10895
        %v10898 = vunpack.c.l.s4 1983009808
        %v10899 = vunpack.c.0.s8 %v10898
        %v10900 = vlaneseq
        %v10901 = vshrl.u32 %v10900, 7
        %v10902 = vsub.s32 %v10899, %v10901
        %v10903 = vrot.slane %v10889, %v10902
        %v10904 = vcombine.low %v10896, %v10903
        %v10905 = vcombine.low %v10636, %v10637
        %v10906 = vcombine.low %v10638, %v10639
        %v10908 = vunpack.c.l.s4 1983009808
        %v10909 = vunpack.c.0.s8 %v10908
        %v10910 = vlaneseq
        %v10911 = vshrl.u32 %v10910, 7
        %v10912 = vsub.s32 %v10909, %v10911
        %v10913 = vrot.slane %v10905, %v10912
        %v10915 = vunpack.c.l.s4 1983009808
        %v10916 = vunpack.c.0.s8 %v10915
        %v10917 = vlaneseq
        %v10918 = vshrl.u32 %v10917, 7
        %v10919 = vsub.s32 %v10916, %v10918
        %v10920 = vrot.slane %v10906, %v10919
        %v10921 = vcombine.low %v10913, %v10920
        %v10922 = vcombine.low %v10640, %v10641
        %v10923 = vcombine.low %v10642, %v10643
        %v10925 = vunpack.c.l.s4 1983009808
        %v10926 = vunpack.c.0.s8 %v10925
        %v10927 = vlaneseq
        %v10928 = vshrl.u32 %v10927, 7
        %v10929 = vsub.s32 %v10926, %v10928
        %v10930 = vrot.slane %v10922, %v10929
        %v10932 = vunpack.c.l.s4 1983009808
        %v10933 = vunpack.c.0.s8 %v10932
        %v10934 = vlaneseq
        %v10935 = vshrl.u32 %v10934, 7
        %v10936 = vsub.s32 %v10933, %v10935
        %v10937 = vrot.slane %v10923, %v10936
        %v10938 = vcombine.low %v10930, %v10937
        %v10939 = vcombine.low %v10644, %v10645
        %v10940 = vcombine.low %v10646, %v10647
        %v10942 = vunpack.c.l.s4 1983009808
        %v10943 = vunpack.c.0.s8 %v10942
        %v10944 = vlaneseq
        %v10945 = vshrl.u32 %v10944, 7
        %v10946 = vsub.s32 %v10943, %v10945
        %v10947 = vrot.slane %v10939, %v10946
        %v10949 = vunpack.c.l.s4 1983009808
        %v10950 = vunpack.c.0.s8 %v10949
        %v10951 = vlaneseq
        %v10952 = vshrl.u32 %v10951, 7
        %v10953 = vsub.s32 %v10950, %v10952
        %v10954 = vrot.slane %v10940, %v10953
        %v10955 = vcombine.low %v10947, %v10954
        %v10956 = vcombine.low %v10648, %v10649
        %v10957 = vcombine.low %v10650, %v10651
        %v10959 = vunpack.c.l.s4 1983009808
        %v10960 = vunpack.c.0.s8 %v10959
        %v10961 = vlaneseq
        %v10962 = vshrl.u32 %v10961, 7
        %v10963 = vsub.s32 %v10960, %v10962
        %v10964 = vrot.slane %v10956, %v10963
        %v10966 = vunpack.c.l.s4 1983009808
        %v10967 = vunpack.c.0.s8 %v10966
        %v10968 = vlaneseq
        %v10969 = vshrl.u32 %v10968, 7
        %v10970 = vsub.s32 %v10967, %v10969
        %v10971 = vrot.slane %v10957, %v10970
        %v10972 = vcombine.low %v10964, %v10971
        %v10973 = vcombine.low %v10652, %v10653
        %v10974 = vcombine.low %v10654, %v10655
        %v10976 = vunpack.c.l.s4 1983009808
        %v10977 = vunpack.c.0.s8 %v10976
        %v10978 = vlaneseq
        %v10979 = vshrl.u32 %v10978, 7
        %v10980 = vsub.s32 %v10977, %v10979
        %v10981 = vrot.slane %v10973, %v10980
        %v10983 = vunpack.c.l.s4 1983009808
        %v10984 = vunpack.c.0.s8 %v10983
        %v10985 = vlaneseq
        %v10986 = vshrl.u32 %v10985, 7
        %v10987 = vsub.s32 %v10984, %v10986
        %v10988 = vrot.slane %v10974, %v10987
        %v10989 = vcombine.low %v10981, %v10988
        %v10990 = vcombine.low %v10656, %v10657
        %v10991 = vcombine.low %v10658, %v10659
        %v10993 = vunpack.c.l.s4 1983009808
        %v10994 = vunpack.c.0.s8 %v10993
        %v10995 = vlaneseq
        %v10996 = vshrl.u32 %v10995, 7
        %v10997 = vsub.s32 %v10994, %v10996
        %v10998 = vrot.slane %v10990, %v10997
        %v11000 = vunpack.c.l.s4 1983009808
        %v11001 = vunpack.c.0.s8 %v11000
        %v11002 = vlaneseq
        %v11003 = vshrl.u32 %v11002, 7
        %v11004 = vsub.s32 %v11001, %v11003
        %v11005 = vrot.slane %v10991, %v11004
        %v11006 = vcombine.low %v10998, %v11005
        %v11007 = vcombine.low %v10660, %v10661
        %v11008 = vcombine.low %v10662, %v10663
        %v11010 = vunpack.c.l.s4 1983009808
        %v11011 = vunpack.c.0.s8 %v11010
        %v11012 = vlaneseq
        %v11013 = vshrl.u32 %v11012, 7
        %v11014 = vsub.s32 %v11011, %v11013
        %v11015 = vrot.slane %v11007, %v11014
        %v11017 = vunpack.c.l.s4 1983009808
        %v11018 = vunpack.c.0.s8 %v11017
        %v11019 = vlaneseq
        %v11020 = vshrl.u32 %v11019, 7
        %v11021 = vsub.s32 %v11018, %v11020
        %v11022 = vrot.slane %v11008, %v11021
        %v11023 = vcombine.low %v11015, %v11022
        %v11024 = vcombine.low %v10664, %v10665
        %v11025 = vcombine.low %v10666, %v10667
        %v11027 = vunpack.c.l.s4 1983009808
        %v11028 = vunpack.c.0.s8 %v11027
        %v11029 = vlaneseq
        %v11030 = vshrl.u32 %v11029, 7
        %v11031 = vsub.s32 %v11028, %v11030
        %v11032 = vrot.slane %v11024, %v11031
        %v11034 = vunpack.c.l.s4 1983009808
        %v11035 = vunpack.c.0.s8 %v11034
        %v11036 = vlaneseq
        %v11037 = vshrl.u32 %v11036, 7
        %v11038 = vsub.s32 %v11035, %v11037
        %v11039 = vrot.slane %v11025, %v11038
        %v11040 = vcombine.low %v11032, %v11039
        %v11041 = vcombine.low %v10668, %v10669
        %v11042 = vcombine.low %v10670, %v10671
        %v11044 = vunpack.c.l.s4 1983009808
        %v11045 = vunpack.c.0.s8 %v11044
        %v11046 = vlaneseq
        %v11047 = vshrl.u32 %v11046, 7
        %v11048 = vsub.s32 %v11045, %v11047
        %v11049 = vrot.slane %v11041, %v11048
        %v11051 = vunpack.c.l.s4 1983009808
        %v11052 = vunpack.c.0.s8 %v11051
        %v11053 = vlaneseq
        %v11054 = vshrl.u32 %v11053, 7
        %v11055 = vsub.s32 %v11052, %v11054
        %v11056 = vrot.slane %v11042, %v11055
        %v11057 = vcombine.low %v11049, %v11056
        %v11058 = vcombine.low %v10672, %v10673
        %v11059 = vcombine.low %v10674, %v10675
        %v11061 = vunpack.c.l.s4 1983009808
        %v11062 = vunpack.c.0.s8 %v11061
        %v11063 = vlaneseq
        %v11064 = vshrl.u32 %v11063, 7
        %v11065 = vsub.s32 %v11062, %v11064
        %v11066 = vrot.slane %v11058, %v11065
        %v11068 = vunpack.c.l.s4 1983009808
        %v11069 = vunpack.c.0.s8 %v11068
        %v11070 = vlaneseq
        %v11071 = vshrl.u32 %v11070, 7
        %v11072 = vsub.s32 %v11069, %v11071
        %v11073 = vrot.slane %v11059, %v11072
        %v11074 = vcombine.low %v11066, %v11073
        %v11075 = vcombine.low %v10676, %v10677
        %v11076 = vcombine.low %v10678, %v10679
        %v11078 = vunpack.c.l.s4 1983009808
        %v11079 = vunpack.c.0.s8 %v11078
        %v11080 = vlaneseq
        %v11081 = vshrl.u32 %v11080, 7
        %v11082 = vsub.s32 %v11079, %v11081
        %v11083 = vrot.slane %v11075, %v11082
        %v11085 = vunpack.c.l.s4 1983009808
        %v11086 = vunpack.c.0.s8 %v11085
        %v11087 = vlaneseq
        %v11088 = vshrl.u32 %v11087, 7
        %v11089 = vsub.s32 %v11086, %v11088
        %v11090 = vrot.slane %v11076, %v11089
        %v11091 = vcombine.low %v11083, %v11090
        %v11092 = vcombine.low %v10680, %v10681
        %v11093 = vcombine.low %v10682, %v10683
        %v11095 = vunpack.c.l.s4 1983009808
        %v11096 = vunpack.c.0.s8 %v11095
        %v11097 = vlaneseq
        %v11098 = vshrl.u32 %v11097, 7
        %v11099 = vsub.s32 %v11096, %v11098
        %v11100 = vrot.slane %v11092, %v11099
        %v11102 = vunpack.c.l.s4 1983009808
        %v11103 = vunpack.c.0.s8 %v11102
        %v11104 = vlaneseq
        %v11105 = vshrl.u32 %v11104, 7
        %v11106 = vsub.s32 %v11103, %v11105
        %v11107 = vrot.slane %v11093, %v11106
        %v11108 = vcombine.low %v11100, %v11107
        %v11109 = vcombine.low %v10684, %v10685
        %v11110 = vcombine.low %v10686, %v10687
        %v11112 = vunpack.c.l.s4 1983009808
        %v11113 = vunpack.c.0.s8 %v11112
        %v11114 = vlaneseq
        %v11115 = vshrl.u32 %v11114, 7
        %v11116 = vsub.s32 %v11113, %v11115
        %v11117 = vrot.slane %v11109, %v11116
        %v11119 = vunpack.c.l.s4 1983009808
        %v11120 = vunpack.c.0.s8 %v11119
        %v11121 = vlaneseq
        %v11122 = vshrl.u32 %v11121, 7
        %v11123 = vsub.s32 %v11120, %v11122
        %v11124 = vrot.slane %v11110, %v11123
        %v11125 = vcombine.low %v11117, %v11124
        %v11126 = vcombine.low %v10688, %v10689
        %v11127 = vcombine.low %v10690, %v10691
        %v11129 = vunpack.c.l.s4 1983009808
        %v11130 = vunpack.c.0.s8 %v11129
        %v11131 = vlaneseq
        %v11132 = vshrl.u32 %v11131, 7
        %v11133 = vsub.s32 %v11130, %v11132
        %v11134 = vrot.slane %v11126, %v11133
        %v11136 = vunpack.c.l.s4 1983009808
        %v11137 = vunpack.c.0.s8 %v11136
        %v11138 = vlaneseq
        %v11139 = vshrl.u32 %v11138, 7
        %v11140 = vsub.s32 %v11137, %v11139
        %v11141 = vrot.slane %v11127, %v11140
        %v11142 = vcombine.low %v11134, %v11141
        %v11143 = vcombine.low %v10692, %v10693
        %v11144 = vcombine.low %v10694, %v10695
        %v11146 = vunpack.c.l.s4 1983009808
        %v11147 = vunpack.c.0.s8 %v11146
        %v11148 = vlaneseq
        %v11149 = vshrl.u32 %v11148, 7
        %v11150 = vsub.s32 %v11147, %v11149
        %v11151 = vrot.slane %v11143, %v11150
        %v11153 = vunpack.c.l.s4 1983009808
        %v11154 = vunpack.c.0.s8 %v11153
        %v11155 = vlaneseq
        %v11156 = vshrl.u32 %v11155, 7
        %v11157 = vsub.s32 %v11154, %v11156
        %v11158 = vrot.slane %v11144, %v11157
        %v11159 = vcombine.low %v11151, %v11158
        %v11160 = vcombine.low %v10696, %v10697
        %v11161 = vcombine.low %v10698, %v10699
        %v11163 = vunpack.c.l.s4 1983009808
        %v11164 = vunpack.c.0.s8 %v11163
        %v11165 = vlaneseq
        %v11166 = vshrl.u32 %v11165, 7
        %v11167 = vsub.s32 %v11164, %v11166
        %v11168 = vrot.slane %v11160, %v11167
        %v11170 = vunpack.c.l.s4 1983009808
        %v11171 = vunpack.c.0.s8 %v11170
        %v11172 = vlaneseq
        %v11173 = vshrl.u32 %v11172, 7
        %v11174 = vsub.s32 %v11171, %v11173
        %v11175 = vrot.slane %v11161, %v11174
        %v11176 = vcombine.low %v11168, %v11175
        %v11177 = vcombine.low %v10700, %v10701
        %v11178 = vcombine.low %v10702, %v10703
        %v11180 = vunpack.c.l.s4 1983009808
        %v11181 = vunpack.c.0.s8 %v11180
        %v11182 = vlaneseq
        %v11183 = vshrl.u32 %v11182, 7
        %v11184 = vsub.s32 %v11181, %v11183
        %v11185 = vrot.slane %v11177, %v11184
        %v11187 = vunpack.c.l.s4 1983009808
        %v11188 = vunpack.c.0.s8 %v11187
        %v11189 = vlaneseq
        %v11190 = vshrl.u32 %v11189, 7
        %v11191 = vsub.s32 %v11188, %v11190
        %v11192 = vrot.slane %v11178, %v11191
        %v11193 = vcombine.low %v11185, %v11192
        %v11194 = vcombine.low %v10704, %v10705
        %v11195 = vcombine.low %v10706, %v10707
        %v11197 = vunpack.c.l.s4 1983009808
        %v11198 = vunpack.c.0.s8 %v11197
        %v11199 = vlaneseq
        %v11200 = vshrl.u32 %v11199, 7
        %v11201 = vsub.s32 %v11198, %v11200
        %v11202 = vrot.slane %v11194, %v11201
        %v11204 = vunpack.c.l.s4 1983009808
        %v11205 = vunpack.c.0.s8 %v11204
        %v11206 = vlaneseq
        %v11207 = vshrl.u32 %v11206, 7
        %v11208 = vsub.s32 %v11205, %v11207
        %v11209 = vrot.slane %v11195, %v11208
        %v11210 = vcombine.low %v11202, %v11209
        %v11211 = vcombine.low %v10708, %v10709
        %v11212 = vcombine.low %v10710, %v10711
        %v11214 = vunpack.c.l.s4 1983009808
        %v11215 = vunpack.c.0.s8 %v11214
        %v11216 = vlaneseq
        %v11217 = vshrl.u32 %v11216, 7
        %v11218 = vsub.s32 %v11215, %v11217
        %v11219 = vrot.slane %v11211, %v11218
        %v11221 = vunpack.c.l.s4 1983009808
        %v11222 = vunpack.c.0.s8 %v11221
        %v11223 = vlaneseq
        %v11224 = vshrl.u32 %v11223, 7
        %v11225 = vsub.s32 %v11222, %v11224
        %v11226 = vrot.slane %v11212, %v11225
        %v11227 = vcombine.low %v11219, %v11226
        %v11228 = vcombine.low %v10712, %v10713
        %v11229 = vcombine.low %v10714, %v10715
        %v11231 = vunpack.c.l.s4 1983009808
        %v11232 = vunpack.c.0.s8 %v11231
        %v11233 = vlaneseq
        %v11234 = vshrl.u32 %v11233, 7
        %v11235 = vsub.s32 %v11232, %v11234
        %v11236 = vrot.slane %v11228, %v11235
        %v11238 = vunpack.c.l.s4 1983009808
        %v11239 = vunpack.c.0.s8 %v11238
        %v11240 = vlaneseq
        %v11241 = vshrl.u32 %v11240, 7
        %v11242 = vsub.s32 %v11239, %v11241
        %v11243 = vrot.slane %v11229, %v11242
        %v11244 = vcombine.low %v11236, %v11243
        %v11245 = vcombine.low %v10716, %v10717
        %v11246 = vcombine.low %v10718, %v10719
        %v11248 = vunpack.c.l.s4 1983009808
        %v11249 = vunpack.c.0.s8 %v11248
        %v11250 = vlaneseq
        %v11251 = vshrl.u32 %v11250, 7
        %v11252 = vsub.s32 %v11249, %v11251
        %v11253 = vrot.slane %v11245, %v11252
        %v11255 = vunpack.c.l.s4 1983009808
        %v11256 = vunpack.c.0.s8 %v11255
        %v11257 = vlaneseq
        %v11258 = vshrl.u32 %v11257, 7
        %v11259 = vsub.s32 %v11256, %v11258
        %v11260 = vrot.slane %v11246, %v11259
        %v11261 = vcombine.low %v11253, %v11260
        %v11262 = vcombine.low %v10720, %v10721
        %v11263 = vcombine.low %v10722, %v10723
        %v11265 = vunpack.c.l.s4 1983009808
        %v11266 = vunpack.c.0.s8 %v11265
        %v11267 = vlaneseq
        %v11268 = vshrl.u32 %v11267, 7
        %v11269 = vsub.s32 %v11266, %v11268
        %v11270 = vrot.slane %v11262, %v11269
        %v11272 = vunpack.c.l.s4 1983009808
        %v11273 = vunpack.c.0.s8 %v11272
        %v11274 = vlaneseq
        %v11275 = vshrl.u32 %v11274, 7
        %v11276 = vsub.s32 %v11273, %v11275
        %v11277 = vrot.slane %v11263, %v11276
        %v11278 = vcombine.low %v11270, %v11277
        %v11279 = vcombine.low %v10724, %v10725
        %v11280 = vcombine.low %v10726, %v10727
        %v11282 = vunpack.c.l.s4 1983009808
        %v11283 = vunpack.c.0.s8 %v11282
        %v11284 = vlaneseq
        %v11285 = vshrl.u32 %v11284, 7
        %v11286 = vsub.s32 %v11283, %v11285
        %v11287 = vrot.slane %v11279, %v11286
        %v11289 = vunpack.c.l.s4 1983009808
        %v11290 = vunpack.c.0.s8 %v11289
        %v11291 = vlaneseq
        %v11292 = vshrl.u32 %v11291, 7
        %v11293 = vsub.s32 %v11290, %v11292
        %v11294 = vrot.slane %v11280, %v11293
        %v11295 = vcombine.low %v11287, %v11294
        %v11296 = vcombine.low %v10728, %v10729
        %v11297 = vcombine.low %v10730, %v10731
        %v11299 = vunpack.c.l.s4 1983009808
        %v11300 = vunpack.c.0.s8 %v11299
        %v11301 = vlaneseq
        %v11302 = vshrl.u32 %v11301, 7
        %v11303 = vsub.s32 %v11300, %v11302
        %v11304 = vrot.slane %v11296, %v11303
        %v11306 = vunpack.c.l.s4 1983009808
        %v11307 = vunpack.c.0.s8 %v11306
        %v11308 = vlaneseq
        %v11309 = vshrl.u32 %v11308, 7
        %v11310 = vsub.s32 %v11307, %v11309
        %v11311 = vrot.slane %v11297, %v11310
        %v11312 = vcombine.low %v11304, %v11311
        %v11313 = vcombine.low %v10732, %v10733
        %v11314 = vcombine.low %v10734, %v10735
        %v11316 = vunpack.c.l.s4 1983009808
        %v11317 = vunpack.c.0.s8 %v11316
        %v11318 = vlaneseq
        %v11319 = vshrl.u32 %v11318, 7
        %v11320 = vsub.s32 %v11317, %v11319
        %v11321 = vrot.slane %v11313, %v11320
        %v11323 = vunpack.c.l.s4 1983009808
        %v11324 = vunpack.c.0.s8 %v11323
        %v11325 = vlaneseq
        %v11326 = vshrl.u32 %v11325, 7
        %v11327 = vsub.s32 %v11324, %v11326
        %v11328 = vrot.slane %v11314, %v11327
        %v11329 = vcombine.low %v11321, %v11328
        %v11330 = vcombine.low %v10736, %v10737
        %v11331 = vcombine.low %v10738, %v10739
        %v11333 = vunpack.c.l.s4 1983009808
        %v11334 = vunpack.c.0.s8 %v11333
        %v11335 = vlaneseq
        %v11336 = vshrl.u32 %v11335, 7
        %v11337 = vsub.s32 %v11334, %v11336
        %v11338 = vrot.slane %v11330, %v11337
        %v11340 = vunpack.c.l.s4 1983009808
        %v11341 = vunpack.c.0.s8 %v11340
        %v11342 = vlaneseq
        %v11343 = vshrl.u32 %v11342, 7
        %v11344 = vsub.s32 %v11341, %v11343
        %v11345 = vrot.slane %v11331, %v11344
        %v11346 = vcombine.low %v11338, %v11345
        %v11347 = vcombine.low %v10740, %v10741
        %v11348 = vcombine.low %v10742, %v10743
        %v11350 = vunpack.c.l.s4 1983009808
        %v11351 = vunpack.c.0.s8 %v11350
        %v11352 = vlaneseq
        %v11353 = vshrl.u32 %v11352, 7
        %v11354 = vsub.s32 %v11351, %v11353
        %v11355 = vrot.slane %v11347, %v11354
        %v11357 = vunpack.c.l.s4 1983009808
        %v11358 = vunpack.c.0.s8 %v11357
        %v11359 = vlaneseq
        %v11360 = vshrl.u32 %v11359, 7
        %v11361 = vsub.s32 %v11358, %v11360
        %v11362 = vrot.slane %v11348, %v11361
        %v11363 = vcombine.low %v11355, %v11362
        %v11364 = vcombine.low %v10744, %v10745
        %v11365 = vcombine.low %v10746, %v10747
        %v11367 = vunpack.c.l.s4 1983009808
        %v11368 = vunpack.c.0.s8 %v11367
        %v11369 = vlaneseq
        %v11370 = vshrl.u32 %v11369, 7
        %v11371 = vsub.s32 %v11368, %v11370
        %v11372 = vrot.slane %v11364, %v11371
        %v11374 = vunpack.c.l.s4 1983009808
        %v11375 = vunpack.c.0.s8 %v11374
        %v11376 = vlaneseq
        %v11377 = vshrl.u32 %v11376, 7
        %v11378 = vsub.s32 %v11375, %v11377
        %v11379 = vrot.slane %v11365, %v11378
        %v11380 = vcombine.low %v11372, %v11379
        %v11381 = vcombine.low %v10748, %v10749
        %v11382 = vcombine.low %v10750, %v10751
        %v11384 = vunpack.c.l.s4 1983009808
        %v11385 = vunpack.c.0.s8 %v11384
        %v11386 = vlaneseq
        %v11387 = vshrl.u32 %v11386, 7
        %v11388 = vsub.s32 %v11385, %v11387
        %v11389 = vrot.slane %v11381, %v11388
        %v11391 = vunpack.c.l.s4 1983009808
        %v11392 = vunpack.c.0.s8 %v11391
        %v11393 = vlaneseq
        %v11394 = vshrl.u32 %v11393, 7
        %v11395 = vsub.s32 %v11392, %v11394
        %v11396 = vrot.slane %v11382, %v11395
        %v11397 = vcombine.low %v11389, %v11396
        %v11398 = vcombine.low %v10752, %v10753
        %v11399 = vcombine.low %v10754, %v10755
        %v11401 = vunpack.c.l.s4 1983009808
        %v11402 = vunpack.c.0.s8 %v11401
        %v11403 = vlaneseq
        %v11404 = vshrl.u32 %v11403, 7
        %v11405 = vsub.s32 %v11402, %v11404
        %v11406 = vrot.slane %v11398, %v11405
        %v11408 = vunpack.c.l.s4 1983009808
        %v11409 = vunpack.c.0.s8 %v11408
        %v11410 = vlaneseq
        %v11411 = vshrl.u32 %v11410, 7
        %v11412 = vsub.s32 %v11409, %v11411
        %v11413 = vrot.slane %v11399, %v11412
        %v11414 = vcombine.low %v11406, %v11413
        %v11415 = vcombine.low %v10756, %v10757
        %v11416 = vcombine.low %v10758, %v10759
        %v11418 = vunpack.c.l.s4 1983009808
        %v11419 = vunpack.c.0.s8 %v11418
        %v11420 = vlaneseq
        %v11421 = vshrl.u32 %v11420, 7
        %v11422 = vsub.s32 %v11419, %v11421
        %v11423 = vrot.slane %v11415, %v11422
        %v11425 = vunpack.c.l.s4 1983009808
        %v11426 = vunpack.c.0.s8 %v11425
        %v11427 = vlaneseq
        %v11428 = vshrl.u32 %v11427, 7
        %v11429 = vsub.s32 %v11426, %v11428
        %v11430 = vrot.slane %v11416, %v11429
        %v11431 = vcombine.low %v11423, %v11430
        %v11464 = vadd.f32 %v273, %v10904
        %v11465 = vadd.f32 %v274, %v10921
        %v11466 = vadd.f32 %v275, %v10938
        %v11467 = vadd.f32 %v276, %v10955
        %v11468 = vadd.f32 %v277, %v10972
        %v11469 = vadd.f32 %v278, %v10989
        %v11470 = vadd.f32 %v279, %v11006
        %v11471 = vadd.f32 %v280, %v11023
        %v11472 = vadd.f32 %v281, %v11040
        %v11473 = vadd.f32 %v282, %v11057
        %v11474 = vadd.f32 %v283, %v11074
        %v11475 = vadd.f32 %v284, %v11091
        %v11476 = vadd.f32 %v285, %v11108
        %v11477 = vadd.f32 %v286, %v11125
        %v11478 = vadd.f32 %v287, %v11142
        %v11479 = vadd.f32 %v288, %v11159
        %v11480 = vadd.f32 %v289, %v11176
        %v11481 = vadd.f32 %v290, %v11193
        %v11482 = vadd.f32 %v291, %v11210
        %v11483 = vadd.f32 %v292, %v11227
        %v11484 = vadd.f32 %v293, %v11244
        %v11485 = vadd.f32 %v294, %v11261
        %v11486 = vadd.f32 %v295, %v11278
        %v11487 = vadd.f32 %v296, %v11295
        %v11488 = vadd.f32 %v297, %v11312
        %v11489 = vadd.f32 %v298, %v11329
        %v11490 = vadd.f32 %v299, %v11346
        %v11491 = vadd.f32 %v300, %v11363
        %v11492 = vadd.f32 %v301, %v11380
        %v11493 = vadd.f32 %v302, %v11397
        %v11494 = vadd.f32 %v303, %v11414
        %v11495 = vadd.f32 %v304, %v11431
        %11496 = vst [vmem:[%s271] sm:$0xff] %v11464
        %11497 = vst [vmem:[%s271 + $0x8] sm:$0xff] %v11465
        %11498 = vst [vmem:[%s271 + $0x10] sm:$0xff] %v11466
        %11499 = vst [vmem:[%s271 + $0x18] sm:$0xff] %v11467
        %11500 = vst [vmem:[%s271 + $0x20] sm:$0xff] %v11468
        %11501 = vst [vmem:[%s271 + $0x28] sm:$0xff] %v11469
        %11502 = vst [vmem:[%s271 + $0x30] sm:$0xff] %v11470
        %11503 = vst [vmem:[%s271 + $0x38] sm:$0xff] %v11471
        %11504 = vst [vmem:[%s271 + $0x40] sm:$0xff] %v11472
        %11505 = vst [vmem:[%s271 + $0x48] sm:$0xff] %v11473
        %11506 = vst [vmem:[%s271 + $0x50] sm:$0xff] %v11474
        %11507 = vst [vmem:[%s271 + $0x58] sm:$0xff] %v11475
        %11508 = vst [vmem:[%s271 + $0x60] sm:$0xff] %v11476
        %11509 = vst [vmem:[%s271 + $0x68] sm:$0xff] %v11477
        %11510 = vst [vmem:[%s271 + $0x70] sm:$0xff] %v11478
        %11511 = vst [vmem:[%s271 + $0x78] sm:$0xff] %v11479
        %11512 = vst [vmem:[%s271 + $0x80] sm:$0xff] %v11480
        %11513 = vst [vmem:[%s271 + $0x88] sm:$0xff] %v11481
        %11514 = vst [vmem:[%s271 + $0x90] sm:$0xff] %v11482
        %11515 = vst [vmem:[%s271 + $0x98] sm:$0xff] %v11483
        %11516 = vst [vmem:[%s271 + $0xa0] sm:$0xff] %v11484
        %11517 = vst [vmem:[%s271 + $0xa8] sm:$0xff] %v11485
        %11518 = vst [vmem:[%s271 + $0xb0] sm:$0xff] %v11486
        %11519 = vst [vmem:[%s271 + $0xb8] sm:$0xff] %v11487
        %11520 = vst [vmem:[%s271 + $0xc0] sm:$0xff] %v11488
        %11521 = vst [vmem:[%s271 + $0xc8] sm:$0xff] %v11489
        %11522 = vst [vmem:[%s271 + $0xd0] sm:$0xff] %v11490
        %11523 = vst [vmem:[%s271 + $0xd8] sm:$0xff] %v11491
        %11524 = vst [vmem:[%s271 + $0xe0] sm:$0xff] %v11492
        %11525 = vst [vmem:[%s271 + $0xe8] sm:$0xff] %v11493
        %11526 = vst [vmem:[%s271 + $0xf0] sm:$0xff] %v11494
        %11527 = vst [vmem:[%s271 + $0xf8] sm:$0xff] %v11495
        %s11528 = sand.u32 %s141, 1
        %s11529 = scalar_lea.sflag [#allocation6], %s11528
        %s11530 = sand.u32 %s141, 1
        %s11531 = smul.addr %s11530, 256
        %s11532 = scalar_lea.vmem [#allocation10], %s11531
        // Predicated region
        $region53: #{_lambda_.1} parent=39 // pred_check
          %p11533 = pneg %p151
        $region54: #{_lambda_.1} parent=39 // pred_check_branch
          %11535 = sbr.rel (%p11533) target = $region56
        $region55: #{_lambda_.1} parent=39 // pred_region
          %s11537 = ssub.s32 4096, 4096
          %11538 = vsyncadd %s11529, %s11537
          %s11539 = smul.addr %s23, 32
          %s11540 = smul.addr %s11539, 128
          %s11541 = scalar_lea.hbm %s5, %s11540
          %s11542 = sshll.u32 %s11532, 4
          %s11543 = int_to_ptr.vmem [resolvable:$true] %s11542
          %11548 = dma.vmem_to_hbm [thread:$0]  %s11543, 4096, %s11541, %s11529, 128, 128, 8
        $region56: #{_lambda_.1} parent=39 // pred_fallthru
          _
      $region40: #{_lambda_.1} parent=5 // pred_fallthru
        _
      %p11549 = scmp.le.s32.totalorder 2, %s18
      // Predicated region
      $region57: #{_lambda_.1} parent=5 // pred_check
        %p11550 = pneg %p11549
      $region58: #{_lambda_.1} parent=5 // pred_check_branch
        %11552 = sbr.rel (%p11550) target = $region60
      $region59: #{_lambda_.1} parent=5 // pred_region
        %s11553 = ssub.s32 %s18, 2
        // Predicated region
        $region61: #{_lambda_.1} parent=59 // pred_check
          %p11554 = pneg %p157
        $region62: #{_lambda_.1} parent=59 // pred_check_branch
          %11556 = sbr.rel (%p11554) target = $region64
        $region63: #{_lambda_.1} parent=59 // pred_region
          %s11557 = sand.u32 %s142, 1
          %s11558 = scalar_lea.sflag [#allocation6], %s11557
          %s11559 = sand.u32 %s142, 1
          %s11560 = smul.addr %s11559, 256
          %s11561 = scalar_lea.vmem [#allocation10], %s11560
          %11562 = dma.done %s11558, 4096
        $region64: #{_lambda_.1} parent=59 // pred_fallthru
          _
      $region60: #{_lambda_.1} parent=5 // pred_fallthru
        _
    $region6: #{_lambda_.1} parent=1 // loop_footer
      %s22 = sadd.s32 1, %s18
    $region7: #{_lambda_.1} parent=1 // loop_footer_branch
      %17 = sbr.rel target = $region3
    $region8: #{_lambda_.1} parent=1 // loop_exit
      _
    %11563 = vsyncpa [#allocation5], 1
    %s11564 = scalar_lea.sflag [#allocation5], 1
    %11565 = vsyncpa %s11564, 1
    %11566 = vsyncpa [#allocation8], 1
    %11567 = vsyncpa [#allocation6], 1
    %s11568 = scalar_lea.sflag [#allocation6], 1
    %11569 = vsyncpa %s11568, 1

</llo_original>
